<compile_context>
chip_gen: v7x
topology: tpu7x:2x2x1
jax: 0.10.0
libtpu: 0.0.40
codegen_flags: <defaults>
</compile_context>

<pallas_src>
import jax
import jax.numpy as jnp
import numpy as np
from jax.experimental import pallas as pl
from jax.experimental.pallas import tpu as pltpu

MXU_DTYPE = jnp.bfloat16  # MXU operand dtype; accumulate + epilogue stay f32.
PADL = 8                  # interior W-offset in conv2 scratch -> 8-sublane-aligned stores


def _res_bottleneck_kernel(x_ref, w1_ref, wd_ref, s1_ref, b1_ref, sd_ref, bd_ref,
                           w2_ref, s2_ref, b2_ref, w3_ref, s3_ref, b3_ref,
                           out_ref, pad_ref):
    """One (batch n, row-tile r) grid step, NHWC.

    x_ref  : (1, H, W, Cin)          full image for batch n (same block across r)
    w1     : (Cin, Cm)   bf16        conv1 (1x1)
    wd     : (Cin, Cout) bf16        projection shortcut (1x1)
    w2     : (9, Cm, Cm) bf16        3x3 conv taps, index = kh*3+kw
    w3     : (Cm, Cout)  bf16        conv3 (1x1)
    s*/b*  : (1, C) f32              folded BatchNorm scale / shift
    out_ref: (1, TH, W, Cout)        output row tile
    pad_ref: (TH+2, PADL+W+1, Cm)    bf16 scratch: zero-padded conv2 input
    """
    H, W, Cin = x_ref.shape[1], x_ref.shape[2], x_ref.shape[3]
    TH = out_ref.shape[1]
    Cout = out_ref.shape[3]
    Cm = s1_ref.shape[1]

    r = pl.program_id(1)
    num_r = pl.num_programs(1)
    row0 = pl.multiple_of(r * TH, TH)

    s1, b1 = s1_ref[...], b1_ref[...]

    # ---- conv1 (1x1) + projection shortcut (1x1) on the interior row tile -------
    # Two dots sharing one LHS (a fused (Cin, Cm+Cout) weight only pays off when
    # Cm/Cout are 128-lane aligned; splitting avoids misaligned output slices).
    x_int = x_ref[:, pl.ds(row0, TH), :, :].reshape(TH * W, Cin).astype(MXU_DTYPE)
    y1 = jnp.dot(x_int, w1_ref[...], preferred_element_type=jnp.float32)
    y1 = jnp.maximum(y1 * s1 + b1, 0.0)                              # (TH*W, Cm)
    idn = jnp.dot(x_int, wd_ref[...], preferred_element_type=jnp.float32)
    idn = idn * sd_ref[...] + bd_ref[...]                            # (TH*W, Cout)

    # ---- conv1 on the two halo rows, batched into ONE M=2W matmul ---------------
    top_r = jnp.maximum(row0 - 1, 0)
    bot_r = jnp.minimum(row0 + TH, H - 1)
    x_top = x_ref[:, pl.ds(top_r, 1), :, :].reshape(W, Cin)
    x_bot = x_ref[:, pl.ds(bot_r, 1), :, :].reshape(W, Cin)
    x_halo = jnp.concatenate([x_top, x_bot], axis=0).astype(MXU_DTYPE)  # (2W, Cin)
    yh = jnp.dot(x_halo, w1_ref[...], preferred_element_type=jnp.float32)
    yh = jnp.maximum(yh * s1 + b1, 0.0)                              # (2W, Cm)
    top = jnp.where(r > 0, yh[:W, :], 0.0)           # zero halos outside the image
    bot = jnp.where(r < num_r - 1, yh[W:, :], 0.0)

    # ---- zero-padded conv2 input (bf16 scratch) ---------------------------------
    # Halo columns are written once per image: nothing else touches them, the
    # scratch persists across grid steps, and r is "arbitrary" so each core runs
    # r == 0 first for every batch it owns.
    @pl.when(r == 0)
    def _():
        zc = jnp.zeros((TH + 2, 1, Cm), pad_ref.dtype)
        pad_ref[:, PADL - 1:PADL, :] = zc                 # left halo column
        pad_ref[:, PADL + W:PADL + W + 1, :] = zc         # right halo column

    pad_ref[1:TH + 1, PADL:PADL + W, :] = y1.reshape(TH, W, Cm).astype(pad_ref.dtype)
    pad_ref[0:1, PADL:PADL + W, :] = top.reshape(1, W, Cm).astype(pad_ref.dtype)
    pad_ref[TH + 1:TH + 2, PADL:PADL + W, :] = bot.reshape(1, W, Cm).astype(pad_ref.dtype)

    # ---- conv2 (3x3): 9 accumulating K=Cm matmuls straight off the scratch ------
    acc = jnp.zeros((TH * W, Cm), jnp.float32)
    for kh in range(3):
        for kw in range(3):
            c0 = PADL - 1 + kw
            tap = pad_ref[kh:kh + TH, c0:c0 + W, :].reshape(TH * W, Cm)
            acc = acc + jnp.dot(tap, w2_ref[kh * 3 + kw],
                                preferred_element_type=jnp.float32)
    y2 = jnp.maximum(acc * s2_ref[...] + b2_ref[...], 0.0)           # (TH*W, Cm)

    # ---- conv3 (1x1) -> BN3, residual add, ReLU ---------------------------------
    y3 = jnp.dot(y2.astype(MXU_DTYPE), w3_ref[...],
                 preferred_element_type=jnp.float32)
    y3 = y3 * s3_ref[...] + b3_ref[...]
    out = jnp.maximum(y3 + idn, 0.0)
    out_ref[...] = out.reshape(1, TH, W, Cout).astype(out_ref.dtype)


def _pick_row_tile(h, w, target_m=512, max_rows=64):
    """Smallest divisor of h giving TH*W >= target_m, bounded by max_rows."""
    want = min(h, max(1, -(-target_m // w)))
    divs = [d for d in range(1, h + 1) if h % d == 0]
    good = [d for d in divs if want <= d <= max_rows]
    if good:
        return min(good)
    capped = [d for d in divs if d <= max_rows]
    return max(capped) if capped else h


def _vmem_limit_bytes():
    """Generation-aware VMEM budget: ~3/4 of physical, capped at 100 MiB.

    v5e/v6e (128 MiB) -> 96 MiB; v7x (64 MiB) -> 48 MiB.  Conservative fallback
    if the hardware query is unavailable.
    """
    try:
        cap = getattr(pltpu.get_tpu_info(), "vmem_capacity_bytes", None)
        if cap:
            return int(min(cap * 3 // 4, 100 * 1024 * 1024))
    except Exception:
        pass
    return 48 * 1024 * 1024


def res_bottleneck_block(x_nhwc, kparams, *, target_tile_m=512, max_tile_rows=64):
    """x_nhwc: (N, H, W, Cin) f32 or bf16 -> (N, H, W, Cout) float32."""
    (w1, wd, s1, b1, sd, bd, w2, s2, b2, w3, s3, b3) = kparams
    N, H, W, Cin = x_nhwc.shape
    Cm = s1.shape[1]
    Cout = w3.shape[1]
    TH = _pick_row_tile(H, W, target_m=target_tile_m, max_rows=max_tile_rows)
    R = H // TH

    def _full(shape):
        nd = len(shape)
        return pl.BlockSpec(shape, lambda n, r, _nd=nd: (0,) * _nd)

    in_specs = [
        pl.BlockSpec((1, H, W, Cin), lambda n, r: (n, 0, 0, 0)),   # x: full image per batch
        _full(w1.shape), _full(wd.shape), _full(s1.shape), _full(b1.shape),
        _full(sd.shape), _full(bd.shape),
        _full(w2.shape), _full(s2.shape), _full(b2.shape),
        _full(w3.shape), _full(s3.shape), _full(b3.shape),
    ]
    out_specs = pl.BlockSpec((1, TH, W, Cout), lambda n, r: (n, r, 0, 0))

    flops = 2 * N * H * W * (Cin * (Cm + Cout) + 9 * Cm * Cm + Cm * Cout)
    param_bytes = sum(int(p.size) * p.dtype.itemsize for p in kparams)
    bytes_accessed = (int(x_nhwc.size) * x_nhwc.dtype.itemsize
                      + N * H * W * Cout * 4 + param_bytes)
    cost = pl.CostEstimate(flops=flops, transcendentals=0,
                           bytes_accessed=bytes_accessed)

    return pl.pallas_call(
        _res_bottleneck_kernel,
        out_shape=jax.ShapeDtypeStruct((N, H, W, Cout), jnp.float32),
        grid=(N, R),
        in_specs=in_specs,
        out_specs=out_specs,
        scratch_shapes=[pltpu.VMEM((TH + 2, PADL + W + 1, Cm), MXU_DTYPE)],
        compiler_params=pltpu.CompilerParams(
            # batch axis parallel (megacore sharding splits images, not rows);
            # row axis sequential per core so the r==0 halo-column zeroing and
            # scratch persistence stay valid.
            dimension_semantics=("parallel", "arbitrary"),
            vmem_limit_bytes=_vmem_limit_bytes()),
        cost_estimate=cost,
    )(x_nhwc, w1, wd, s1, b1, sd, bd, w2, s2, b2, w3, s3, b3)


def make_params(key, cin, cm, cout, eps=1e-5):
    """Deterministic synthetic parameters (PyTorch OIHW conv layout, BN folded)."""
    ks = jax.random.split(key, 20)
    w1_t = 0.1 * jax.random.normal(ks[0], (cm, cin, 1, 1), jnp.float32)
    w2_t = 0.1 * jax.random.normal(ks[1], (cm, cm, 3, 3), jnp.float32)
    w3_t = 0.1 * jax.random.normal(ks[2], (cout, cm, 1, 1), jnp.float32)
    wd_t = 0.1 * jax.random.normal(ks[3], (cout, cin, 1, 1), jnp.float32)

    def bn(k0, k1, k2, k3, c):
        gamma = 1.0 + 0.1 * jax.random.normal(k0, (c,), jnp.float32)
        beta = 0.1 * jax.random.normal(k1, (c,), jnp.float32)
        mean = 0.1 * jax.random.normal(k2, (c,), jnp.float32)
        var = jnp.abs(jax.random.normal(k3, (c,), jnp.float32)) + 0.5
        scale = gamma / jnp.sqrt(var + eps)
        bias = beta - mean * scale
        return scale.reshape(1, c), bias.reshape(1, c)

    s1, b1 = bn(ks[4], ks[5], ks[6], ks[7], cm)
    s2, b2 = bn(ks[8], ks[9], ks[10], ks[11], cm)
    s3, b3 = bn(ks[12], ks[13], ks[14], ks[15], cout)
    sd, bd = bn(ks[16], ks[17], ks[18], ks[19], cout)

    raw = (w1_t, w2_t, w3_t, wd_t, s1, b1, s2, b2, s3, b3, sd, bd)

    # kernel-layout weights (bf16 at the MXU)
    w1 = jnp.transpose(w1_t[:, :, 0, 0], (1, 0)).astype(MXU_DTYPE)     # (cin, cm)
    wd = jnp.transpose(wd_t[:, :, 0, 0], (1, 0)).astype(MXU_DTYPE)     # (cin, cout)
    w2 = jnp.transpose(w2_t, (2, 3, 1, 0)).reshape(9, cm, cm).astype(MXU_DTYPE)
    w3 = jnp.transpose(w3_t[:, :, 0, 0], (1, 0)).astype(MXU_DTYPE)     # (cm, cout)
    kparams = (w1, wd, s1, b1, sd, bd, w2, s2, b2, w3, s3, b3)
    return kparams, raw


def ref_forward(x_nhwc, raw):
    """Pure-JAX NHWC reference (f32, HIGHEST precision) mirroring the PyTorch forward."""
    (w1_t, w2_t, w3_t, wd_t, s1, b1, s2, b2, s3, b3, sd, bd) = raw

    def conv(x, w, pad):
        return jax.lax.conv_general_dilated(
            x, w, window_strides=(1, 1), padding=pad,
            dimension_numbers=("NHWC", "OIHW", "NHWC"),
            precision=jax.lax.Precision.HIGHEST)

    def bn(y, scale, bias):
        return y * scale.reshape(1, 1, 1, -1) + bias.reshape(1, 1, 1, -1)

    y = jax.nn.relu(bn(conv(x_nhwc, w1_t, "VALID"), s1, b1))
    y = jax.nn.relu(bn(conv(y, w2_t, ((1, 1), (1, 1))), s2, b2))
    y = bn(conv(y, w3_t, "VALID"), s3, b3)
    idn = bn(conv(x_nhwc, wd_t, "VALID"), sd, bd)
    return jax.nn.relu(y + idn)


if __name__ == "__main__":
    key = jax.random.PRNGKey(0)
    k_x, k_p = jax.random.split(key)

    N, Cin, Cm, Cout, H, W = 2, 4, 4, 8, 16, 16
    x = jax.random.normal(k_x, (N, H, W, Cin), jnp.float32)   # NHWC
    # bf16 at the HBM boundary (halves input DMA; the MXU consumes bf16 anyway).
    # The reference sees the same bf16-rounded values, keeping the check fair.
    x_in = x.astype(MXU_DTYPE)

    kparams, raw = make_params(k_p, Cin, Cm, Cout)

    out = jax.block_until_ready(res_bottleneck_block(x_in, kparams))
    ref = jax.block_until_ready(ref_forward(x_in.astype(jnp.float32), raw))

    # bf16 MXU operands -> loosened tolerance vs. the f32 reference
    np.testing.assert_allclose(np.asarray(out), np.asarray(ref),
                               rtol=2e-2, atol=1e-2)

    print("KERNEL_OK")
</pallas_src>

<mosaic_0001>
module attributes {stable_mosaic.version = 11 : i64} {
  func.func @_res_bottleneck_kernel(%arg0: i32, %arg1: i32, %arg2: memref<1x16x16x4xbf16, #tpu.memory_space<vmem>>, %arg3: memref<4x4xbf16, #tpu.memory_space<vmem>>, %arg4: memref<4x8xbf16, #tpu.memory_space<vmem>>, %arg5: memref<1x4xf32, #tpu.memory_space<vmem>>, %arg6: memref<1x4xf32, #tpu.memory_space<vmem>>, %arg7: memref<1x8xf32, #tpu.memory_space<vmem>>, %arg8: memref<1x8xf32, #tpu.memory_space<vmem>>, %arg9: memref<9x4x4xbf16, #tpu.memory_space<vmem>>, %arg10: memref<1x4xf32, #tpu.memory_space<vmem>>, %arg11: memref<1x4xf32, #tpu.memory_space<vmem>>, %arg12: memref<4x8xbf16, #tpu.memory_space<vmem>>, %arg13: memref<1x8xf32, #tpu.memory_space<vmem>>, %arg14: memref<1x8xf32, #tpu.memory_space<vmem>>, %arg15: memref<1x16x16x8xf32, #tpu.memory_space<vmem>>, %arg16: memref<18x25x4xbf16, #tpu.memory_space<vmem>>) attributes {dimension_semantics = [#tpu.dimension_semantics<parallel>, #tpu.dimension_semantics<arbitrary>], iteration_bounds = array<i64: 2, 1>, scalar_prefetch = 0 : i64, scratch_operands = 1 : i64, tpu.core_type = #tpu.core_type<tc>, window_params = [{transform_indices = @transform_0, window_bounds = array<i64: 1, 16, 16, 4>}, {pipeline_mode = #tpu.pipeline_mode<synchronous>, transform_indices = @transform_1, window_bounds = array<i64: 4, 4>}, {pipeline_mode = #tpu.pipeline_mode<synchronous>, transform_indices = @transform_2, window_bounds = array<i64: 4, 8>}, {pipeline_mode = #tpu.pipeline_mode<synchronous>, transform_indices = @transform_3, window_bounds = array<i64: 1, 4>}, {pipeline_mode = #tpu.pipeline_mode<synchronous>, transform_indices = @transform_4, window_bounds = array<i64: 1, 4>}, {pipeline_mode = #tpu.pipeline_mode<synchronous>, transform_indices = @transform_5, window_bounds = array<i64: 1, 8>}, {pipeline_mode = #tpu.pipeline_mode<synchronous>, transform_indices = @transform_6, window_bounds = array<i64: 1, 8>}, {pipeline_mode = #tpu.pipeline_mode<synchronous>, transform_indices = @transform_7, window_bounds = array<i64: 9, 4, 4>}, {pipeline_mode = #tpu.pipeline_mode<synchronous>, transform_indices = @transform_8, window_bounds = array<i64: 1, 4>}, {pipeline_mode = #tpu.pipeline_mode<synchronous>, transform_indices = @transform_9, window_bounds = array<i64: 1, 4>}, {pipeline_mode = #tpu.pipeline_mode<synchronous>, transform_indices = @transform_10, window_bounds = array<i64: 4, 8>}, {pipeline_mode = #tpu.pipeline_mode<synchronous>, transform_indices = @transform_11, window_bounds = array<i64: 1, 8>}, {pipeline_mode = #tpu.pipeline_mode<synchronous>, transform_indices = @transform_12, window_bounds = array<i64: 1, 8>}, {transform_indices = @transform_13, window_bounds = array<i64: 1, 16, 16, 8>}]} {
    %c16_i32 = arith.constant 16 : i32
    %0 = arith.muli %arg1, %c16_i32 : i32
    %1 = tpu.assume_multiple %0, 16 : i32
    %c0 = arith.constant 0 : index
    %c0_0 = arith.constant 0 : index
    %2 = vector.load %arg5[%c0, %c0_0] : memref<1x4xf32, #tpu.memory_space<vmem>>, vector<1x4xf32>
    %c0_1 = arith.constant 0 : index
    %c0_2 = arith.constant 0 : index
    %3 = vector.load %arg6[%c0_1, %c0_2] : memref<1x4xf32, #tpu.memory_space<vmem>>, vector<1x4xf32>
    %c0_3 = arith.constant 0 : index
    %4 = arith.index_cast %1 : i32 to index
    %c0_4 = arith.constant 0 : index
    %c0_5 = arith.constant 0 : index
    %5 = vector.load %arg2[%c0_3, %4, %c0_4, %c0_5] : memref<1x16x16x4xbf16, #tpu.memory_space<vmem>>, vector<1x16x16x4xbf16>
    %6 = vector.shape_cast %5 : vector<1x16x16x4xbf16> to vector<256x4xbf16>
    %c0_6 = arith.constant 0 : index
    %c0_7 = arith.constant 0 : index
    %7 = vector.load %arg3[%c0_6, %c0_7] : memref<4x4xbf16, #tpu.memory_space<vmem>>, vector<4x4xbf16>
    %cst = arith.constant dense<0.000000e+00> : vector<256x4xf32>
    %8 = tpu.matmul %6, %7, %cst {dimension_numbers = #tpu.dot_dimension_numbers<[1], [0], [0], [1], [0, 0, 1, 1], [], []>} : vector<256x4xbf16>, vector<4x4xbf16>, vector<256x4xf32> -> vector<256x4xf32>
    %9 = vector.broadcast %2 : vector<1x4xf32> to vector<256x4xf32>
    %10 = arith.mulf %8, %9 : vector<256x4xf32>
    %11 = vector.broadcast %3 : vector<1x4xf32> to vector<256x4xf32>
    %12 = arith.addf %10, %11 : vector<256x4xf32>
    %cst_8 = arith.constant 0.000000e+00 : f32
    %13 = vector.broadcast %cst_8 : f32 to vector<256x4xf32>
    %14 = arith.maximumf %12, %13 : vector<256x4xf32>
    %c0_9 = arith.constant 0 : index
    %c0_10 = arith.constant 0 : index
    %15 = vector.load %arg4[%c0_9, %c0_10] : memref<4x8xbf16, #tpu.memory_space<vmem>>, vector<4x8xbf16>
    %cst_11 = arith.constant dense<0.000000e+00> : vector<256x8xf32>
    %16 = tpu.matmul %6, %15, %cst_11 {dimension_numbers = #tpu.dot_dimension_numbers<[1], [0], [0], [1], [0, 0, 1, 1], [], []>} : vector<256x4xbf16>, vector<4x8xbf16>, vector<256x8xf32> -> vector<256x8xf32>
    %c0_12 = arith.constant 0 : index
    %c0_13 = arith.constant 0 : index
    %17 = vector.load %arg7[%c0_12, %c0_13] : memref<1x8xf32, #tpu.memory_space<vmem>>, vector<1x8xf32>
    %18 = vector.broadcast %17 : vector<1x8xf32> to vector<256x8xf32>
    %19 = arith.mulf %16, %18 : vector<256x8xf32>
    %c0_14 = arith.constant 0 : index
    %c0_15 = arith.constant 0 : index
    %20 = vector.load %arg8[%c0_14, %c0_15] : memref<1x8xf32, #tpu.memory_space<vmem>>, vector<1x8xf32>
    %21 = vector.broadcast %20 : vector<1x8xf32> to vector<256x8xf32>
    %22 = arith.addf %19, %21 : vector<256x8xf32>
    %c1_i32 = arith.constant 1 : i32
    %23 = arith.subi %1, %c1_i32 : i32
    %c0_i32 = arith.constant 0 : i32
    %24 = arith.maxsi %23, %c0_i32 : i32
    %c16_i32_16 = arith.constant 16 : i32
    %25 = arith.addi %1, %c16_i32_16 : i32
    %c15_i32 = arith.constant 15 : i32
    %26 = arith.minsi %25, %c15_i32 : i32
    %c0_17 = arith.constant 0 : index
    %27 = arith.index_cast %24 : i32 to index
    %c0_18 = arith.constant 0 : index
    %c0_19 = arith.constant 0 : index
    %28 = vector.load %arg2[%c0_17, %27, %c0_18, %c0_19] : memref<1x16x16x4xbf16, #tpu.memory_space<vmem>>, vector<1x1x16x4xbf16>
    %29 = vector.shape_cast %28 : vector<1x1x16x4xbf16> to vector<16x4xbf16>
    %c0_20 = arith.constant 0 : index
    %30 = arith.index_cast %26 : i32 to index
    %c0_21 = arith.constant 0 : index
    %c0_22 = arith.constant 0 : index
    %31 = vector.load %arg2[%c0_20, %30, %c0_21, %c0_22] : memref<1x16x16x4xbf16, #tpu.memory_space<vmem>>, vector<1x1x16x4xbf16>
    %32 = vector.shape_cast %31 : vector<1x1x16x4xbf16> to vector<16x4xbf16>
    %33 = tpu.concatenate %29, %32 in 0 : vector<16x4xbf16>, vector<16x4xbf16> -> vector<32x4xbf16>
    %c0_23 = arith.constant 0 : index
    %c0_24 = arith.constant 0 : index
    %34 = vector.load %arg3[%c0_23, %c0_24] : memref<4x4xbf16, #tpu.memory_space<vmem>>, vector<4x4xbf16>
    %cst_25 = arith.constant dense<0.000000e+00> : vector<32x4xf32>
    %35 = tpu.matmul %33, %34, %cst_25 {dimension_numbers = #tpu.dot_dimension_numbers<[1], [0], [0], [1], [0, 0, 1, 1], [], []>} : vector<32x4xbf16>, vector<4x4xbf16>, vector<32x4xf32> -> vector<32x4xf32>
    %36 = vector.broadcast %2 : vector<1x4xf32> to vector<32x4xf32>
    %37 = arith.mulf %35, %36 : vector<32x4xf32>
    %38 = vector.broadcast %3 : vector<1x4xf32> to vector<32x4xf32>
    %39 = arith.addf %37, %38 : vector<32x4xf32>
    %cst_26 = arith.constant 0.000000e+00 : f32
    %40 = vector.broadcast %cst_26 : f32 to vector<32x4xf32>
    %41 = arith.maximumf %39, %40 : vector<32x4xf32>
    %c0_i32_27 = arith.constant 0 : i32
    %42 = arith.cmpi sgt, %arg1, %c0_i32_27 : i32
    %43 = vector.extract_strided_slice %41 {offsets = [0, 0], sizes = [16, 4], strides = [1, 1]} : vector<32x4xf32> to vector<16x4xf32>
    %cst_28 = arith.constant 0.000000e+00 : f32
    %44 = vector.broadcast %cst_28 : f32 to vector<16x4xf32>
    %45 = arith.select %42, %43, %44 : vector<16x4xf32>
    %c0_i32_29 = arith.constant 0 : i32
    %46 = arith.cmpi slt, %arg1, %c0_i32_29 : i32
    %47 = vector.extract_strided_slice %41 {offsets = [16, 0], sizes = [16, 4], strides = [1, 1]} : vector<32x4xf32> to vector<16x4xf32>
    %cst_30 = arith.constant 0.000000e+00 : f32
    %48 = vector.broadcast %cst_30 : f32 to vector<16x4xf32>
    %49 = arith.select %46, %47, %48 : vector<16x4xf32>
    %c0_i32_31 = arith.constant 0 : i32
    %50 = arith.cmpi eq, %arg1, %c0_i32_31 : i32
    %51 = arith.extui %50 : i1 to i32
    %c0_i32_32 = arith.constant 0 : i32
    %52 = arith.cmpi ne, %51, %c0_i32_32 : i32
    scf.if %52 {
      %cst_113 = arith.constant 0.000000e+00 : bf16
      %139 = vector.broadcast %cst_113 : bf16 to vector<18x1x4xbf16>
      %c0_114 = arith.constant 0 : index
      %c7_115 = arith.constant 7 : index
      %c0_116 = arith.constant 0 : index
      %140 = vector.load %arg16[%c0_114, %c7_115, %c0_116] : memref<18x25x4xbf16, #tpu.memory_space<vmem>>, vector<18x1x4xbf16>
      tpu.vector_store %arg16[%c0_114, %c7_115, %c0_116], %139 {strides = array<i32>} : memref<18x25x4xbf16, #tpu.memory_space<vmem>>, vector<18x1x4xbf16>,
      %c0_117 = arith.constant 0 : index
      %c24 = arith.constant 24 : index
      %c0_118 = arith.constant 0 : index
      %141 = vector.load %arg16[%c0_117, %c24, %c0_118] : memref<18x25x4xbf16, #tpu.memory_space<vmem>>, vector<18x1x4xbf16>
      tpu.vector_store %arg16[%c0_117, %c24, %c0_118], %139 {strides = array<i32>} : memref<18x25x4xbf16, #tpu.memory_space<vmem>>, vector<18x1x4xbf16>,
    } else {
    }
    %53 = vector.shape_cast %14 : vector<256x4xf32> to vector<16x16x4xf32>
    %54 = arith.truncf %53 : vector<16x16x4xf32> to vector<16x16x4xbf16>
    %c1 = arith.constant 1 : index
    %c8 = arith.constant 8 : index
    %c0_33 = arith.constant 0 : index
    %55 = vector.load %arg16[%c1, %c8, %c0_33] : memref<18x25x4xbf16, #tpu.memory_space<vmem>>, vector<16x16x4xbf16>
    tpu.vector_store %arg16[%c1, %c8, %c0_33], %54 {strides = array<i32>} : memref<18x25x4xbf16, #tpu.memory_space<vmem>>, vector<16x16x4xbf16>,
    %56 = vector.shape_cast %45 : vector<16x4xf32> to vector<1x16x4xf32>
    %57 = arith.truncf %56 : vector<1x16x4xf32> to vector<1x16x4xbf16>
    %c0_34 = arith.constant 0 : index
    %c8_35 = arith.constant 8 : index
    %c0_36 = arith.constant 0 : index
    %58 = vector.load %arg16[%c0_34, %c8_35, %c0_36] : memref<18x25x4xbf16, #tpu.memory_space<vmem>>, vector<1x16x4xbf16>
    tpu.vector_store %arg16[%c0_34, %c8_35, %c0_36], %57 {strides = array<i32>} : memref<18x25x4xbf16, #tpu.memory_space<vmem>>, vector<1x16x4xbf16>,
    %59 = vector.shape_cast %49 : vector<16x4xf32> to vector<1x16x4xf32>
    %60 = arith.truncf %59 : vector<1x16x4xf32> to vector<1x16x4xbf16>
    %c17 = arith.constant 17 : index
    %c8_37 = arith.constant 8 : index
    %c0_38 = arith.constant 0 : index
    %61 = vector.load %arg16[%c17, %c8_37, %c0_38] : memref<18x25x4xbf16, #tpu.memory_space<vmem>>, vector<1x16x4xbf16>
    tpu.vector_store %arg16[%c17, %c8_37, %c0_38], %60 {strides = array<i32>} : memref<18x25x4xbf16, #tpu.memory_space<vmem>>, vector<1x16x4xbf16>,
    %cst_39 = arith.constant 0.000000e+00 : f32
    %62 = vector.broadcast %cst_39 : f32 to vector<256x4xf32>
    %c0_40 = arith.constant 0 : index
    %c7 = arith.constant 7 : index
    %c0_41 = arith.constant 0 : index
    %63 = vector.load %arg16[%c0_40, %c7, %c0_41] : memref<18x25x4xbf16, #tpu.memory_space<vmem>>, vector<16x16x4xbf16>
    %64 = vector.shape_cast %63 : vector<16x16x4xbf16> to vector<256x4xbf16>
    %c0_42 = arith.constant 0 : index
    %c0_43 = arith.constant 0 : index
    %c0_44 = arith.constant 0 : index
    %65 = vector.load %arg9[%c0_42, %c0_43, %c0_44] : memref<9x4x4xbf16, #tpu.memory_space<vmem>>, vector<1x4x4xbf16>
    %66 = vector.shape_cast %65 : vector<1x4x4xbf16> to vector<4x4xbf16>
    %cst_45 = arith.constant dense<0.000000e+00> : vector<256x4xf32>
    %67 = tpu.matmul %64, %66, %cst_45 {dimension_numbers = #tpu.dot_dimension_numbers<[1], [0], [0], [1], [0, 0, 1, 1], [], []>} : vector<256x4xbf16>, vector<4x4xbf16>, vector<256x4xf32> -> vector<256x4xf32>
    %68 = arith.addf %62, %67 : vector<256x4xf32>
    %c0_46 = arith.constant 0 : index
    %c8_47 = arith.constant 8 : index
    %c0_48 = arith.constant 0 : index
    %69 = vector.load %arg16[%c0_46, %c8_47, %c0_48] : memref<18x25x4xbf16, #tpu.memory_space<vmem>>, vector<16x16x4xbf16>
    %70 = vector.shape_cast %69 : vector<16x16x4xbf16> to vector<256x4xbf16>
    %c1_49 = arith.constant 1 : index
    %c0_50 = arith.constant 0 : index
    %c0_51 = arith.constant 0 : index
    %71 = vector.load %arg9[%c1_49, %c0_50, %c0_51] : memref<9x4x4xbf16, #tpu.memory_space<vmem>>, vector<1x4x4xbf16>
    %72 = vector.shape_cast %71 : vector<1x4x4xbf16> to vector<4x4xbf16>
    %cst_52 = arith.constant dense<0.000000e+00> : vector<256x4xf32>
    %73 = tpu.matmul %70, %72, %cst_52 {dimension_numbers = #tpu.dot_dimension_numbers<[1], [0], [0], [1], [0, 0, 1, 1], [], []>} : vector<256x4xbf16>, vector<4x4xbf16>, vector<256x4xf32> -> vector<256x4xf32>
    %74 = arith.addf %68, %73 : vector<256x4xf32>
    %c0_53 = arith.constant 0 : index
    %c9 = arith.constant 9 : index
    %c0_54 = arith.constant 0 : index
    %75 = vector.load %arg16[%c0_53, %c9, %c0_54] : memref<18x25x4xbf16, #tpu.memory_space<vmem>>, vector<16x16x4xbf16>
    %76 = vector.shape_cast %75 : vector<16x16x4xbf16> to vector<256x4xbf16>
    %c2 = arith.constant 2 : index
    %c0_55 = arith.constant 0 : index
    %c0_56 = arith.constant 0 : index
    %77 = vector.load %arg9[%c2, %c0_55, %c0_56] : memref<9x4x4xbf16, #tpu.memory_space<vmem>>, vector<1x4x4xbf16>
    %78 = vector.shape_cast %77 : vector<1x4x4xbf16> to vector<4x4xbf16>
    %cst_57 = arith.constant dense<0.000000e+00> : vector<256x4xf32>
    %79 = tpu.matmul %76, %78, %cst_57 {dimension_numbers = #tpu.dot_dimension_numbers<[1], [0], [0], [1], [0, 0, 1, 1], [], []>} : vector<256x4xbf16>, vector<4x4xbf16>, vector<256x4xf32> -> vector<256x4xf32>
    %80 = arith.addf %74, %79 : vector<256x4xf32>
    %c1_58 = arith.constant 1 : index
    %c7_59 = arith.constant 7 : index
    %c0_60 = arith.constant 0 : index
    %81 = vector.load %arg16[%c1_58, %c7_59, %c0_60] : memref<18x25x4xbf16, #tpu.memory_space<vmem>>, vector<16x16x4xbf16>
    %82 = vector.shape_cast %81 : vector<16x16x4xbf16> to vector<256x4xbf16>
    %c3 = arith.constant 3 : index
    %c0_61 = arith.constant 0 : index
    %c0_62 = arith.constant 0 : index
    %83 = vector.load %arg9[%c3, %c0_61, %c0_62] : memref<9x4x4xbf16, #tpu.memory_space<vmem>>, vector<1x4x4xbf16>
    %84 = vector.shape_cast %83 : vector<1x4x4xbf16> to vector<4x4xbf16>
    %cst_63 = arith.constant dense<0.000000e+00> : vector<256x4xf32>
    %85 = tpu.matmul %82, %84, %cst_63 {dimension_numbers = #tpu.dot_dimension_numbers<[1], [0], [0], [1], [0, 0, 1, 1], [], []>} : vector<256x4xbf16>, vector<4x4xbf16>, vector<256x4xf32> -> vector<256x4xf32>
    %86 = arith.addf %80, %85 : vector<256x4xf32>
    %c1_64 = arith.constant 1 : index
    %c8_65 = arith.constant 8 : index
    %c0_66 = arith.constant 0 : index
    %87 = vector.load %arg16[%c1_64, %c8_65, %c0_66] : memref<18x25x4xbf16, #tpu.memory_space<vmem>>, vector<16x16x4xbf16>
    %88 = vector.shape_cast %87 : vector<16x16x4xbf16> to vector<256x4xbf16>
    %c4 = arith.constant 4 : index
    %c0_67 = arith.constant 0 : index
    %c0_68 = arith.constant 0 : index
    %89 = vector.load %arg9[%c4, %c0_67, %c0_68] : memref<9x4x4xbf16, #tpu.memory_space<vmem>>, vector<1x4x4xbf16>
    %90 = vector.shape_cast %89 : vector<1x4x4xbf16> to vector<4x4xbf16>
    %cst_69 = arith.constant dense<0.000000e+00> : vector<256x4xf32>
    %91 = tpu.matmul %88, %90, %cst_69 {dimension_numbers = #tpu.dot_dimension_numbers<[1], [0], [0], [1], [0, 0, 1, 1], [], []>} : vector<256x4xbf16>, vector<4x4xbf16>, vector<256x4xf32> -> vector<256x4xf32>
    %92 = arith.addf %86, %91 : vector<256x4xf32>
    %c1_70 = arith.constant 1 : index
    %c9_71 = arith.constant 9 : index
    %c0_72 = arith.constant 0 : index
    %93 = vector.load %arg16[%c1_70, %c9_71, %c0_72] : memref<18x25x4xbf16, #tpu.memory_space<vmem>>, vector<16x16x4xbf16>
    %94 = vector.shape_cast %93 : vector<16x16x4xbf16> to vector<256x4xbf16>
    %c5 = arith.constant 5 : index
    %c0_73 = arith.constant 0 : index
    %c0_74 = arith.constant 0 : index
    %95 = vector.load %arg9[%c5, %c0_73, %c0_74] : memref<9x4x4xbf16, #tpu.memory_space<vmem>>, vector<1x4x4xbf16>
    %96 = vector.shape_cast %95 : vector<1x4x4xbf16> to vector<4x4xbf16>
    %cst_75 = arith.constant dense<0.000000e+00> : vector<256x4xf32>
    %97 = tpu.matmul %94, %96, %cst_75 {dimension_numbers = #tpu.dot_dimension_numbers<[1], [0], [0], [1], [0, 0, 1, 1], [], []>} : vector<256x4xbf16>, vector<4x4xbf16>, vector<256x4xf32> -> vector<256x4xf32>
    %98 = arith.addf %92, %97 : vector<256x4xf32>
    %c2_76 = arith.constant 2 : index
    %c7_77 = arith.constant 7 : index
    %c0_78 = arith.constant 0 : index
    %99 = vector.load %arg16[%c2_76, %c7_77, %c0_78] : memref<18x25x4xbf16, #tpu.memory_space<vmem>>, vector<16x16x4xbf16>
    %100 = vector.shape_cast %99 : vector<16x16x4xbf16> to vector<256x4xbf16>
    %c6 = arith.constant 6 : index
    %c0_79 = arith.constant 0 : index
    %c0_80 = arith.constant 0 : index
    %101 = vector.load %arg9[%c6, %c0_79, %c0_80] : memref<9x4x4xbf16, #tpu.memory_space<vmem>>, vector<1x4x4xbf16>
    %102 = vector.shape_cast %101 : vector<1x4x4xbf16> to vector<4x4xbf16>
    %cst_81 = arith.constant dense<0.000000e+00> : vector<256x4xf32>
    %103 = tpu.matmul %100, %102, %cst_81 {dimension_numbers = #tpu.dot_dimension_numbers<[1], [0], [0], [1], [0, 0, 1, 1], [], []>} : vector<256x4xbf16>, vector<4x4xbf16>, vector<256x4xf32> -> vector<256x4xf32>
    %104 = arith.addf %98, %103 : vector<256x4xf32>
    %c2_82 = arith.constant 2 : index
    %c8_83 = arith.constant 8 : index
    %c0_84 = arith.constant 0 : index
    %105 = vector.load %arg16[%c2_82, %c8_83, %c0_84] : memref<18x25x4xbf16, #tpu.memory_space<vmem>>, vector<16x16x4xbf16>
    %106 = vector.shape_cast %105 : vector<16x16x4xbf16> to vector<256x4xbf16>
    %c7_85 = arith.constant 7 : index
    %c0_86 = arith.constant 0 : index
    %c0_87 = arith.constant 0 : index
    %107 = vector.load %arg9[%c7_85, %c0_86, %c0_87] : memref<9x4x4xbf16, #tpu.memory_space<vmem>>, vector<1x4x4xbf16>
    %108 = vector.shape_cast %107 : vector<1x4x4xbf16> to vector<4x4xbf16>
    %cst_88 = arith.constant dense<0.000000e+00> : vector<256x4xf32>
    %109 = tpu.matmul %106, %108, %cst_88 {dimension_numbers = #tpu.dot_dimension_numbers<[1], [0], [0], [1], [0, 0, 1, 1], [], []>} : vector<256x4xbf16>, vector<4x4xbf16>, vector<256x4xf32> -> vector<256x4xf32>
    %110 = arith.addf %104, %109 : vector<256x4xf32>
    %c2_89 = arith.constant 2 : index
    %c9_90 = arith.constant 9 : index
    %c0_91 = arith.constant 0 : index
    %111 = vector.load %arg16[%c2_89, %c9_90, %c0_91] : memref<18x25x4xbf16, #tpu.memory_space<vmem>>, vector<16x16x4xbf16>
    %112 = vector.shape_cast %111 : vector<16x16x4xbf16> to vector<256x4xbf16>
    %c8_92 = arith.constant 8 : index
    %c0_93 = arith.constant 0 : index
    %c0_94 = arith.constant 0 : index
    %113 = vector.load %arg9[%c8_92, %c0_93, %c0_94] : memref<9x4x4xbf16, #tpu.memory_space<vmem>>, vector<1x4x4xbf16>
    %114 = vector.shape_cast %113 : vector<1x4x4xbf16> to vector<4x4xbf16>
    %cst_95 = arith.constant dense<0.000000e+00> : vector<256x4xf32>
    %115 = tpu.matmul %112, %114, %cst_95 {dimension_numbers = #tpu.dot_dimension_numbers<[1], [0], [0], [1], [0, 0, 1, 1], [], []>} : vector<256x4xbf16>, vector<4x4xbf16>, vector<256x4xf32> -> vector<256x4xf32>
    %116 = arith.addf %110, %115 : vector<256x4xf32>
    %c0_96 = arith.constant 0 : index
    %c0_97 = arith.constant 0 : index
    %117 = vector.load %arg10[%c0_96, %c0_97] : memref<1x4xf32, #tpu.memory_space<vmem>>, vector<1x4xf32>
    %118 = vector.broadcast %117 : vector<1x4xf32> to vector<256x4xf32>
    %119 = arith.mulf %116, %118 : vector<256x4xf32>
    %c0_98 = arith.constant 0 : index
    %c0_99 = arith.constant 0 : index
    %120 = vector.load %arg11[%c0_98, %c0_99] : memref<1x4xf32, #tpu.memory_space<vmem>>, vector<1x4xf32>
    %121 = vector.broadcast %120 : vector<1x4xf32> to vector<256x4xf32>
    %122 = arith.addf %119, %121 : vector<256x4xf32>
    %cst_100 = arith.constant 0.000000e+00 : f32
    %123 = vector.broadcast %cst_100 : f32 to vector<256x4xf32>
    %124 = arith.maximumf %122, %123 : vector<256x4xf32>
    %125 = arith.truncf %124 : vector<256x4xf32> to vector<256x4xbf16>
    %c0_101 = arith.constant 0 : index
    %c0_102 = arith.constant 0 : index
    %126 = vector.load %arg12[%c0_101, %c0_102] : memref<4x8xbf16, #tpu.memory_space<vmem>>, vector<4x8xbf16>
    %cst_103 = arith.constant dense<0.000000e+00> : vector<256x8xf32>
    %127 = tpu.matmul %125, %126, %cst_103 {dimension_numbers = #tpu.dot_dimension_numbers<[1], [0], [0], [1], [0, 0, 1, 1], [], []>} : vector<256x4xbf16>, vector<4x8xbf16>, vector<256x8xf32> -> vector<256x8xf32>
    %c0_104 = arith.constant 0 : index
    %c0_105 = arith.constant 0 : index
    %128 = vector.load %arg13[%c0_104, %c0_105] : memref<1x8xf32, #tpu.memory_space<vmem>>, vector<1x8xf32>
    %129 = vector.broadcast %128 : vector<1x8xf32> to vector<256x8xf32>
    %130 = arith.mulf %127, %129 : vector<256x8xf32>
    %c0_106 = arith.constant 0 : index
    %c0_107 = arith.constant 0 : index
    %131 = vector.load %arg14[%c0_106, %c0_107] : memref<1x8xf32, #tpu.memory_space<vmem>>, vector<1x8xf32>
    %132 = vector.broadcast %131 : vector<1x8xf32> to vector<256x8xf32>
    %133 = arith.addf %130, %132 : vector<256x8xf32>
    %134 = arith.addf %133, %22 : vector<256x8xf32>
    %cst_108 = arith.constant 0.000000e+00 : f32
    %135 = vector.broadcast %cst_108 : f32 to vector<256x8xf32>
    %136 = arith.maximumf %134, %135 : vector<256x8xf32>
    %137 = vector.shape_cast %136 : vector<256x8xf32> to vector<1x16x16x8xf32>
    %c0_109 = arith.constant 0 : index
    %c0_110 = arith.constant 0 : index
    %c0_111 = arith.constant 0 : index
    %c0_112 = arith.constant 0 : index
    %138 = vector.load %arg15[%c0_109, %c0_110, %c0_111, %c0_112] : memref<1x16x16x8xf32, #tpu.memory_space<vmem>>, vector<1x16x16x8xf32>
    tpu.vector_store %arg15[%c0_109, %c0_110, %c0_111, %c0_112], %137 {strides = array<i32>} : memref<1x16x16x8xf32, #tpu.memory_space<vmem>>, vector<1x16x16x8xf32>,
    return
  }
  func.func @transform_0(%arg0: i32, %arg1: i32) -> (i32, i32, i32, i32) {
    %c0_i32 = arith.constant 0 : i32
    %c0_i32_0 = arith.constant 0 : i32
    %c0_i32_1 = arith.constant 0 : i32
    %c0_i32_2 = arith.constant 0 : i32
    return %arg0, %c0_i32, %c0_i32_0, %c0_i32_1 : i32, i32, i32, i32
  }
  func.func @transform_1(%arg0: i32, %arg1: i32) -> (i32, i32) {
    %c0_i32 = arith.constant 0 : i32
    %c0_i32_0 = arith.constant 0 : i32
    %c0_i32_1 = arith.constant 0 : i32
    return %c0_i32, %c0_i32_0 : i32, i32
  }
  func.func @transform_2(%arg0: i32, %arg1: i32) -> (i32, i32) {
    %c0_i32 = arith.constant 0 : i32
    %c0_i32_0 = arith.constant 0 : i32
    %c0_i32_1 = arith.constant 0 : i32
    return %c0_i32, %c0_i32_0 : i32, i32
  }
  func.func @transform_3(%arg0: i32, %arg1: i32) -> (i32, i32) {
    %c0_i32 = arith.constant 0 : i32
    %c0_i32_0 = arith.constant 0 : i32
    %c0_i32_1 = arith.constant 0 : i32
    return %c0_i32, %c0_i32_0 : i32, i32
  }
  func.func @transform_4(%arg0: i32, %arg1: i32) -> (i32, i32) {
    %c0_i32 = arith.constant 0 : i32
    %c0_i32_0 = arith.constant 0 : i32
    %c0_i32_1 = arith.constant 0 : i32
    return %c0_i32, %c0_i32_0 : i32, i32
  }
  func.func @transform_5(%arg0: i32, %arg1: i32) -> (i32, i32) {
    %c0_i32 = arith.constant 0 : i32
    %c0_i32_0 = arith.constant 0 : i32
    %c0_i32_1 = arith.constant 0 : i32
    return %c0_i32, %c0_i32_0 : i32, i32
  }
  func.func @transform_6(%arg0: i32, %arg1: i32) -> (i32, i32) {
    %c0_i32 = arith.constant 0 : i32
    %c0_i32_0 = arith.constant 0 : i32
    %c0_i32_1 = arith.constant 0 : i32
    return %c0_i32, %c0_i32_0 : i32, i32
  }
  func.func @transform_7(%arg0: i32, %arg1: i32) -> (i32, i32, i32) {
    %c0_i32 = arith.constant 0 : i32
    %c0_i32_0 = arith.constant 0 : i32
    %c0_i32_1 = arith.constant 0 : i32
    %c0_i32_2 = arith.constant 0 : i32
    return %c0_i32, %c0_i32_0, %c0_i32_1 : i32, i32, i32
  }
  func.func @transform_8(%arg0: i32, %arg1: i32) -> (i32, i32) {
    %c0_i32 = arith.constant 0 : i32
    %c0_i32_0 = arith.constant 0 : i32
    %c0_i32_1 = arith.constant 0 : i32
    return %c0_i32, %c0_i32_0 : i32, i32
  }
  func.func @transform_9(%arg0: i32, %arg1: i32) -> (i32, i32) {
    %c0_i32 = arith.constant 0 : i32
    %c0_i32_0 = arith.constant 0 : i32
    %c0_i32_1 = arith.constant 0 : i32
    return %c0_i32, %c0_i32_0 : i32, i32
  }
  func.func @transform_10(%arg0: i32, %arg1: i32) -> (i32, i32) {
    %c0_i32 = arith.constant 0 : i32
    %c0_i32_0 = arith.constant 0 : i32
    %c0_i32_1 = arith.constant 0 : i32
    return %c0_i32, %c0_i32_0 : i32, i32
  }
  func.func @transform_11(%arg0: i32, %arg1: i32) -> (i32, i32) {
    %c0_i32 = arith.constant 0 : i32
    %c0_i32_0 = arith.constant 0 : i32
    %c0_i32_1 = arith.constant 0 : i32
    return %c0_i32, %c0_i32_0 : i32, i32
  }
  func.func @transform_12(%arg0: i32, %arg1: i32) -> (i32, i32) {
    %c0_i32 = arith.constant 0 : i32
    %c0_i32_0 = arith.constant 0 : i32
    %c0_i32_1 = arith.constant 0 : i32
    return %c0_i32, %c0_i32_0 : i32, i32
  }
  func.func @transform_13(%arg0: i32, %arg1: i32) -> (i32, i32, i32, i32) {
    %c0_i32 = arith.constant 0 : i32
    %c0_i32_0 = arith.constant 0 : i32
    %c0_i32_1 = arith.constant 0 : i32
    return %arg0, %arg1, %c0_i32, %c0_i32_0 : i32, i32, i32, i32
  }
}

</mosaic_0001>

<llo_original>
// kernel: tpu_custom_call.1
$region0: #{tpu_custom_call.1}
  #allocation0 [shape = 'u32[]', space=smem, size = 0x4, offset = 0x4, fixed_abs, tag = 'smem constant byte address 0x4 - core index']
  #allocation1 [shape = 'u32[144,128]{1,0:T(1,128)}', space=vmem, size = 0x12000, scoped, tag = 'internal scratch']
  #allocation2 [shape = 'bf16[18,25,4]{2,1,0:T(8,128)(2,1)}', space=vmem, size = 0x24000, scoped, tag = 'scratch operand']
  %s0 = inlined_call_operand.vmem [shape: bf16[2,16,16,4], index: 0, kind: input, shape index: {}]
  %s1 = inlined_call_operand.vmem [shape: bf16[4,4], index: 1, kind: input, shape index: {}]
  %s2 = inlined_call_operand.vmem [shape: bf16[4,8], index: 2, kind: input, shape index: {}]
  %s3 = inlined_call_operand.vmem [shape: f32[1,4], index: 3, kind: input, shape index: {}]
  %s4 = inlined_call_operand.vmem [shape: f32[1,4], index: 4, kind: input, shape index: {}]
  %s5 = inlined_call_operand.vmem [shape: f32[1,8], index: 5, kind: input, shape index: {}]
  %s6 = inlined_call_operand.vmem [shape: f32[1,8], index: 6, kind: input, shape index: {}]
  %s7 = inlined_call_operand.vmem [shape: bf16[9,4,4], index: 7, kind: input, shape index: {}]
  %s8 = inlined_call_operand.vmem [shape: f32[1,4], index: 8, kind: input, shape index: {}]
  %s9 = inlined_call_operand.vmem [shape: f32[1,4], index: 9, kind: input, shape index: {}]
  %s10 = inlined_call_operand.vmem [shape: bf16[4,8], index: 10, kind: input, shape index: {}]
  %s11 = inlined_call_operand.vmem [shape: f32[1,8], index: 11, kind: input, shape index: {}]
  %s12 = inlined_call_operand.vmem [shape: f32[1,8], index: 12, kind: input, shape index: {}]
  %s13 = inlined_call_operand.vmem [shape: f32[2,16,16,8], index: 13, kind: output, shape index: {}]
  %s14 = sld [smem:[#allocation0]]
  $region89: #{tpu_custom_call.1} parent=0
    _
  %s16 = ssub.s32 1, %s14
  %s17 = scalar_select 0, %s16, %s14
  loop: start=0, step=1, limit=4
  $region2: #{tpu_custom_call.1} parent=0 // loop_pre_header
    _
  $region3: #{tpu_custom_call.1} parent=0 // loop_header
    %s19 = sphi 0, %s23
    %p20 = scmp.ge.s32.totalorder %s19, 4
    %s26 = sphi 0, %s38
    %s27 = sphi 0, %s34
    %s28 = sphi 0, %s26
    %s29 = sphi 0, %s27
    %s30 = sphi 0, %s28
    %s31 = sphi 0, %s29
    %s41 = sphi 0, %s43
    %s44 = sphi 0, %s41
    %s45 = sphi 0, %s44
    %s61 = sphi 0, %s45
    %s65 = sphi 0, %s65
    %s67 = sphi 0, %s65
    %s68 = sphi 0, %s67
    %s82 = sphi 0, %s68
    %s86 = sphi 0, %s86
    %s88 = sphi 0, %s86
    %s89 = sphi 0, %s88
    %s103 = sphi 0, %s89
    %s107 = sphi 0, %s107
    %s109 = sphi 0, %s107
    %s110 = sphi 0, %s109
    %s124 = sphi 0, %s110
    %s128 = sphi 0, %s128
    %s130 = sphi 0, %s128
    %s131 = sphi 0, %s130
    %s145 = sphi 0, %s131
    %s149 = sphi 0, %s149
    %s151 = sphi 0, %s149
    %s152 = sphi 0, %s151
    %s166 = sphi 0, %s152
    %s170 = sphi 0, %s170
    %s172 = sphi 0, %s170
    %s173 = sphi 0, %s172
    %s187 = sphi 0, %s173
    %s191 = sphi 0, %s191
    %s193 = sphi 0, %s191
    %s194 = sphi 0, %s193
    %s208 = sphi 0, %s194
    %s212 = sphi 0, %s212
    %s214 = sphi 0, %s212
    %s215 = sphi 0, %s214
    %s229 = sphi 0, %s215
    %s233 = sphi 0, %s233
    %s235 = sphi 0, %s233
    %s236 = sphi 0, %s235
    %s250 = sphi 0, %s236
    %s254 = sphi 0, %s254
    %s256 = sphi 0, %s254
    %s257 = sphi 0, %s256
    %s271 = sphi 0, %s257
    %s275 = sphi 0, %s275
    %s277 = sphi 0, %s275
    %s278 = sphi 0, %s277
    %s292 = sphi 0, %s278
    %s296 = sphi 0, %s296
    %s298 = sphi 0, %s296
    %s299 = sphi 0, %s298
    %s313 = sphi 0, %s299
    %s321 = sphi 0, %s323
    %s324 = sphi 0, %s321
    %s325 = sphi 0, %s324
    %s341 = sphi 0, %s325
  $region4: #{tpu_custom_call.1} parent=0 // loop_header_branch
    %22 = sbr.rel (%p20) target = $region8
  $region5: #{tpu_custom_call.1} parent=0 // loop_body
    %s24 = ssub.s32 %s19, 1
    %s25 = ssub.s32 %s19, 2
    %s32 = sadd.s32 1, %s27
    %p33 = scmp.ge.s32.totalorder %s32, 1
    %s34 = scalar_select %p33, 0, %s32
    %s35 = sadd.s32 1, %s26
    %s36 = scalar_select %p33, %s35, %s26
    %p37 = scmp.ge.s32.totalorder %s36, 2
    %s38 = scalar_select %p37, 0, %s36
    %s39 = ssub.s32 %s26, %s38
    %p40 = scmp.eq.s32.totalorder %s39, 0
    %s42 = sadd.s32 %s41, 1
    %s43 = scalar_select %p40, %s41, %s42
    %p46 = pneg %p40
    %p47 = scmp.eq.s32.totalorder %s19, 1
    %p48 = por %p46, %p47
    %p49 = scmp.ne.s32.totalorder %s41, %s44
    %p50 = scmp.eq.s32.totalorder %s19, 0
    %p51 = por %p49, %p50
    %p52 = scmp.ne.s32.totalorder %s41, %s44
    %p53 = scmp.eq.s32.totalorder %s24, 1
    %p54 = por %p52, %p53
    %p55 = scmp.ne.s32.totalorder %s44, %s45
    %p56 = scmp.eq.s32.totalorder %s24, 0
    %p57 = por %p55, %p56
    %p58 = scmp.ne.s32.totalorder %s44, %s45
    %p59 = scmp.eq.s32.totalorder %s25, 1
    %p60 = por %p58, %p59
    %p62 = scmp.ne.s32.totalorder %s45, %s61
    %p63 = scmp.eq.s32.totalorder %s25, 0
    %p64 = por %p62, %p63
    %s66 = sadd.s32 %s65, 1
    %p69 = scmp.eq.s32.totalorder %s19, 1
    %p70 = scmp.ne.s32.totalorder %s65, %s67
    %p71 = scmp.eq.s32.totalorder %s19, 0
    %p72 = por %p70, %p71
    %p73 = scmp.ne.s32.totalorder %s65, %s67
    %p74 = scmp.eq.s32.totalorder %s24, 1
    %p75 = por %p73, %p74
    %p76 = scmp.ne.s32.totalorder %s67, %s68
    %p77 = scmp.eq.s32.totalorder %s24, 0
    %p78 = por %p76, %p77
    %p79 = scmp.ne.s32.totalorder %s67, %s68
    %p80 = scmp.eq.s32.totalorder %s25, 1
    %p81 = por %p79, %p80
    %p83 = scmp.ne.s32.totalorder %s68, %s82
    %p84 = scmp.eq.s32.totalorder %s25, 0
    %p85 = por %p83, %p84
    %s87 = sadd.s32 %s86, 1
    %p90 = scmp.eq.s32.totalorder %s19, 1
    %p91 = scmp.ne.s32.totalorder %s86, %s88
    %p92 = scmp.eq.s32.totalorder %s19, 0
    %p93 = por %p91, %p92
    %p94 = scmp.ne.s32.totalorder %s86, %s88
    %p95 = scmp.eq.s32.totalorder %s24, 1
    %p96 = por %p94, %p95
    %p97 = scmp.ne.s32.totalorder %s88, %s89
    %p98 = scmp.eq.s32.totalorder %s24, 0
    %p99 = por %p97, %p98
    %p100 = scmp.ne.s32.totalorder %s88, %s89
    %p101 = scmp.eq.s32.totalorder %s25, 1
    %p102 = por %p100, %p101
    %p104 = scmp.ne.s32.totalorder %s89, %s103
    %p105 = scmp.eq.s32.totalorder %s25, 0
    %p106 = por %p104, %p105
    %s108 = sadd.s32 %s107, 1
    %p111 = scmp.eq.s32.totalorder %s19, 1
    %p112 = scmp.ne.s32.totalorder %s107, %s109
    %p113 = scmp.eq.s32.totalorder %s19, 0
    %p114 = por %p112, %p113
    %p115 = scmp.ne.s32.totalorder %s107, %s109
    %p116 = scmp.eq.s32.totalorder %s24, 1
    %p117 = por %p115, %p116
    %p118 = scmp.ne.s32.totalorder %s109, %s110
    %p119 = scmp.eq.s32.totalorder %s24, 0
    %p120 = por %p118, %p119
    %p121 = scmp.ne.s32.totalorder %s109, %s110
    %p122 = scmp.eq.s32.totalorder %s25, 1
    %p123 = por %p121, %p122
    %p125 = scmp.ne.s32.totalorder %s110, %s124
    %p126 = scmp.eq.s32.totalorder %s25, 0
    %p127 = por %p125, %p126
    %s129 = sadd.s32 %s128, 1
    %p132 = scmp.eq.s32.totalorder %s19, 1
    %p133 = scmp.ne.s32.totalorder %s128, %s130
    %p134 = scmp.eq.s32.totalorder %s19, 0
    %p135 = por %p133, %p134
    %p136 = scmp.ne.s32.totalorder %s128, %s130
    %p137 = scmp.eq.s32.totalorder %s24, 1
    %p138 = por %p136, %p137
    %p139 = scmp.ne.s32.totalorder %s130, %s131
    %p140 = scmp.eq.s32.totalorder %s24, 0
    %p141 = por %p139, %p140
    %p142 = scmp.ne.s32.totalorder %s130, %s131
    %p143 = scmp.eq.s32.totalorder %s25, 1
    %p144 = por %p142, %p143
    %p146 = scmp.ne.s32.totalorder %s131, %s145
    %p147 = scmp.eq.s32.totalorder %s25, 0
    %p148 = por %p146, %p147
    %s150 = sadd.s32 %s149, 1
    %p153 = scmp.eq.s32.totalorder %s19, 1
    %p154 = scmp.ne.s32.totalorder %s149, %s151
    %p155 = scmp.eq.s32.totalorder %s19, 0
    %p156 = por %p154, %p155
    %p157 = scmp.ne.s32.totalorder %s149, %s151
    %p158 = scmp.eq.s32.totalorder %s24, 1
    %p159 = por %p157, %p158
    %p160 = scmp.ne.s32.totalorder %s151, %s152
    %p161 = scmp.eq.s32.totalorder %s24, 0
    %p162 = por %p160, %p161
    %p163 = scmp.ne.s32.totalorder %s151, %s152
    %p164 = scmp.eq.s32.totalorder %s25, 1
    %p165 = por %p163, %p164
    %p167 = scmp.ne.s32.totalorder %s152, %s166
    %p168 = scmp.eq.s32.totalorder %s25, 0
    %p169 = por %p167, %p168
    %s171 = sadd.s32 %s170, 1
    %p174 = scmp.eq.s32.totalorder %s19, 1
    %p175 = scmp.ne.s32.totalorder %s170, %s172
    %p176 = scmp.eq.s32.totalorder %s19, 0
    %p177 = por %p175, %p176
    %p178 = scmp.ne.s32.totalorder %s170, %s172
    %p179 = scmp.eq.s32.totalorder %s24, 1
    %p180 = por %p178, %p179
    %p181 = scmp.ne.s32.totalorder %s172, %s173
    %p182 = scmp.eq.s32.totalorder %s24, 0
    %p183 = por %p181, %p182
    %p184 = scmp.ne.s32.totalorder %s172, %s173
    %p185 = scmp.eq.s32.totalorder %s25, 1
    %p186 = por %p184, %p185
    %p188 = scmp.ne.s32.totalorder %s173, %s187
    %p189 = scmp.eq.s32.totalorder %s25, 0
    %p190 = por %p188, %p189
    %s192 = sadd.s32 %s191, 1
    %p195 = scmp.eq.s32.totalorder %s19, 1
    %p196 = scmp.ne.s32.totalorder %s191, %s193
    %p197 = scmp.eq.s32.totalorder %s19, 0
    %p198 = por %p196, %p197
    %p199 = scmp.ne.s32.totalorder %s191, %s193
    %p200 = scmp.eq.s32.totalorder %s24, 1
    %p201 = por %p199, %p200
    %p202 = scmp.ne.s32.totalorder %s193, %s194
    %p203 = scmp.eq.s32.totalorder %s24, 0
    %p204 = por %p202, %p203
    %p205 = scmp.ne.s32.totalorder %s193, %s194
    %p206 = scmp.eq.s32.totalorder %s25, 1
    %p207 = por %p205, %p206
    %p209 = scmp.ne.s32.totalorder %s194, %s208
    %p210 = scmp.eq.s32.totalorder %s25, 0
    %p211 = por %p209, %p210
    %s213 = sadd.s32 %s212, 1
    %p216 = scmp.eq.s32.totalorder %s19, 1
    %p217 = scmp.ne.s32.totalorder %s212, %s214
    %p218 = scmp.eq.s32.totalorder %s19, 0
    %p219 = por %p217, %p218
    %p220 = scmp.ne.s32.totalorder %s212, %s214
    %p221 = scmp.eq.s32.totalorder %s24, 1
    %p222 = por %p220, %p221
    %p223 = scmp.ne.s32.totalorder %s214, %s215
    %p224 = scmp.eq.s32.totalorder %s24, 0
    %p225 = por %p223, %p224
    %p226 = scmp.ne.s32.totalorder %s214, %s215
    %p227 = scmp.eq.s32.totalorder %s25, 1
    %p228 = por %p226, %p227
    %p230 = scmp.ne.s32.totalorder %s215, %s229
    %p231 = scmp.eq.s32.totalorder %s25, 0
    %p232 = por %p230, %p231
    %s234 = sadd.s32 %s233, 1
    %p237 = scmp.eq.s32.totalorder %s19, 1
    %p238 = scmp.ne.s32.totalorder %s233, %s235
    %p239 = scmp.eq.s32.totalorder %s19, 0
    %p240 = por %p238, %p239
    %p241 = scmp.ne.s32.totalorder %s233, %s235
    %p242 = scmp.eq.s32.totalorder %s24, 1
    %p243 = por %p241, %p242
    %p244 = scmp.ne.s32.totalorder %s235, %s236
    %p245 = scmp.eq.s32.totalorder %s24, 0
    %p246 = por %p244, %p245
    %p247 = scmp.ne.s32.totalorder %s235, %s236
    %p248 = scmp.eq.s32.totalorder %s25, 1
    %p249 = por %p247, %p248
    %p251 = scmp.ne.s32.totalorder %s236, %s250
    %p252 = scmp.eq.s32.totalorder %s25, 0
    %p253 = por %p251, %p252
    %s255 = sadd.s32 %s254, 1
    %p258 = scmp.eq.s32.totalorder %s19, 1
    %p259 = scmp.ne.s32.totalorder %s254, %s256
    %p260 = scmp.eq.s32.totalorder %s19, 0
    %p261 = por %p259, %p260
    %p262 = scmp.ne.s32.totalorder %s254, %s256
    %p263 = scmp.eq.s32.totalorder %s24, 1
    %p264 = por %p262, %p263
    %p265 = scmp.ne.s32.totalorder %s256, %s257
    %p266 = scmp.eq.s32.totalorder %s24, 0
    %p267 = por %p265, %p266
    %p268 = scmp.ne.s32.totalorder %s256, %s257
    %p269 = scmp.eq.s32.totalorder %s25, 1
    %p270 = por %p268, %p269
    %p272 = scmp.ne.s32.totalorder %s257, %s271
    %p273 = scmp.eq.s32.totalorder %s25, 0
    %p274 = por %p272, %p273
    %s276 = sadd.s32 %s275, 1
    %p279 = scmp.eq.s32.totalorder %s19, 1
    %p280 = scmp.ne.s32.totalorder %s275, %s277
    %p281 = scmp.eq.s32.totalorder %s19, 0
    %p282 = por %p280, %p281
    %p283 = scmp.ne.s32.totalorder %s275, %s277
    %p284 = scmp.eq.s32.totalorder %s24, 1
    %p285 = por %p283, %p284
    %p286 = scmp.ne.s32.totalorder %s277, %s278
    %p287 = scmp.eq.s32.totalorder %s24, 0
    %p288 = por %p286, %p287
    %p289 = scmp.ne.s32.totalorder %s277, %s278
    %p290 = scmp.eq.s32.totalorder %s25, 1
    %p291 = por %p289, %p290
    %p293 = scmp.ne.s32.totalorder %s278, %s292
    %p294 = scmp.eq.s32.totalorder %s25, 0
    %p295 = por %p293, %p294
    %s297 = sadd.s32 %s296, 1
    %p300 = scmp.eq.s32.totalorder %s19, 1
    %p301 = scmp.ne.s32.totalorder %s296, %s298
    %p302 = scmp.eq.s32.totalorder %s19, 0
    %p303 = por %p301, %p302
    %p304 = scmp.ne.s32.totalorder %s296, %s298
    %p305 = scmp.eq.s32.totalorder %s24, 1
    %p306 = por %p304, %p305
    %p307 = scmp.ne.s32.totalorder %s298, %s299
    %p308 = scmp.eq.s32.totalorder %s24, 0
    %p309 = por %p307, %p308
    %p310 = scmp.ne.s32.totalorder %s298, %s299
    %p311 = scmp.eq.s32.totalorder %s25, 1
    %p312 = por %p310, %p311
    %p314 = scmp.ne.s32.totalorder %s299, %s313
    %p315 = scmp.eq.s32.totalorder %s25, 0
    %p316 = por %p314, %p315
    %s317 = ssub.s32 %s26, %s38
    %s318 = ssub.s32 %s27, %s34
    %s319 = sor.u32 %s317, %s318
    %p320 = scmp.eq.s32.totalorder %s319, 0
    %s322 = sadd.s32 %s321, 1
    %s323 = scalar_select %p320, %s321, %s322
    %p326 = pneg %p320
    %p327 = scmp.eq.s32.totalorder %s19, 1
    %p328 = por %p326, %p327
    %p329 = scmp.ne.s32.totalorder %s321, %s324
    %p330 = scmp.eq.s32.totalorder %s19, 0
    %p331 = por %p329, %p330
    %p332 = scmp.ne.s32.totalorder %s321, %s324
    %p333 = scmp.eq.s32.totalorder %s24, 1
    %p334 = por %p332, %p333
    %p335 = scmp.ne.s32.totalorder %s324, %s325
    %p336 = scmp.eq.s32.totalorder %s24, 0
    %p337 = por %p335, %p336
    %p338 = scmp.ne.s32.totalorder %s324, %s325
    %p339 = scmp.eq.s32.totalorder %s25, 1
    %p340 = por %p338, %p339
    %p342 = scmp.ne.s32.totalorder %s325, %s341
    %p343 = scmp.eq.s32.totalorder %s25, 0
    %p344 = por %p342, %p343
    %p345 = scmp.le.s32.totalorder 1, %s19
    %p346 = scmp.lt.s32.totalorder %s19, 3
    %p347 = pnand %p345, %p346
    %p348 = pneg %p347
    // Predicated region
    $region9: #{tpu_custom_call.1} parent=5 // pred_check
      _
    $region10: #{tpu_custom_call.1} parent=5 // pred_check_branch
      %350 = sbr.rel (%p347) target = $region12
    $region11: #{tpu_custom_call.1} parent=5 // pred_region
      %s351 = ssub.s32 %s19, 1
      // Predicated region
      $region13: #{tpu_custom_call.1} parent=11 // pred_check
        %p352 = pneg %p78
      $region14: #{tpu_custom_call.1} parent=11 // pred_check_branch
        %354 = sbr.rel (%p352) target = $region16
      $region15: #{tpu_custom_call.1} parent=11 // pred_region
        _
      $region16: #{tpu_custom_call.1} parent=11 // pred_fallthru
        _
      // Predicated region
      $region17: #{tpu_custom_call.1} parent=11 // pred_check
        %p355 = pneg %p99
      $region18: #{tpu_custom_call.1} parent=11 // pred_check_branch
        %357 = sbr.rel (%p355) target = $region20
      $region19: #{tpu_custom_call.1} parent=11 // pred_region
        _
      $region20: #{tpu_custom_call.1} parent=11 // pred_fallthru
        _
      // Predicated region
      $region21: #{tpu_custom_call.1} parent=11 // pred_check
        %p358 = pneg %p120
      $region22: #{tpu_custom_call.1} parent=11 // pred_check_branch
        %360 = sbr.rel (%p358) target = $region24
      $region23: #{tpu_custom_call.1} parent=11 // pred_region
        _
      $region24: #{tpu_custom_call.1} parent=11 // pred_fallthru
        _
      // Predicated region
      $region25: #{tpu_custom_call.1} parent=11 // pred_check
        %p361 = pneg %p141
      $region26: #{tpu_custom_call.1} parent=11 // pred_check_branch
        %363 = sbr.rel (%p361) target = $region28
      $region27: #{tpu_custom_call.1} parent=11 // pred_region
        _
      $region28: #{tpu_custom_call.1} parent=11 // pred_fallthru
        _
      // Predicated region
      $region29: #{tpu_custom_call.1} parent=11 // pred_check
        %p364 = pneg %p162
      $region30: #{tpu_custom_call.1} parent=11 // pred_check_branch
        %366 = sbr.rel (%p364) target = $region32
      $region31: #{tpu_custom_call.1} parent=11 // pred_region
        _
      $region32: #{tpu_custom_call.1} parent=11 // pred_fallthru
        _
      // Predicated region
      $region33: #{tpu_custom_call.1} parent=11 // pred_check
        %p367 = pneg %p183
      $region34: #{tpu_custom_call.1} parent=11 // pred_check_branch
        %369 = sbr.rel (%p367) target = $region36
      $region35: #{tpu_custom_call.1} parent=11 // pred_region
        _
      $region36: #{tpu_custom_call.1} parent=11 // pred_fallthru
        _
      // Predicated region
      $region37: #{tpu_custom_call.1} parent=11 // pred_check
        %p370 = pneg %p204
      $region38: #{tpu_custom_call.1} parent=11 // pred_check_branch
        %372 = sbr.rel (%p370) target = $region40
      $region39: #{tpu_custom_call.1} parent=11 // pred_region
        _
      $region40: #{tpu_custom_call.1} parent=11 // pred_fallthru
        _
      // Predicated region
      $region41: #{tpu_custom_call.1} parent=11 // pred_check
        %p373 = pneg %p225
      $region42: #{tpu_custom_call.1} parent=11 // pred_check_branch
        %375 = sbr.rel (%p373) target = $region44
      $region43: #{tpu_custom_call.1} parent=11 // pred_region
        _
      $region44: #{tpu_custom_call.1} parent=11 // pred_fallthru
        _
      // Predicated region
      $region45: #{tpu_custom_call.1} parent=11 // pred_check
        %p376 = pneg %p246
      $region46: #{tpu_custom_call.1} parent=11 // pred_check_branch
        %378 = sbr.rel (%p376) target = $region48
      $region47: #{tpu_custom_call.1} parent=11 // pred_region
        _
      $region48: #{tpu_custom_call.1} parent=11 // pred_fallthru
        _
      // Predicated region
      $region49: #{tpu_custom_call.1} parent=11 // pred_check
        %p379 = pneg %p267
      $region50: #{tpu_custom_call.1} parent=11 // pred_check_branch
        %381 = sbr.rel (%p379) target = $region52
      $region51: #{tpu_custom_call.1} parent=11 // pred_region
        _
      $region52: #{tpu_custom_call.1} parent=11 // pred_fallthru
        _
      // Predicated region
      $region53: #{tpu_custom_call.1} parent=11 // pred_check
        %p382 = pneg %p288
      $region54: #{tpu_custom_call.1} parent=11 // pred_check_branch
        %384 = sbr.rel (%p382) target = $region56
      $region55: #{tpu_custom_call.1} parent=11 // pred_region
        _
      $region56: #{tpu_custom_call.1} parent=11 // pred_fallthru
        _
      // Predicated region
      $region57: #{tpu_custom_call.1} parent=11 // pred_check
        %p385 = pneg %p309
      $region58: #{tpu_custom_call.1} parent=11 // pred_check_branch
        %387 = sbr.rel (%p385) target = $region60
      $region59: #{tpu_custom_call.1} parent=11 // pred_region
        _
      $region60: #{tpu_custom_call.1} parent=11 // pred_fallthru
        _
    $region12: #{tpu_custom_call.1} parent=5 // pred_fallthru
      _
    %p388 = scmp.lt.s32.totalorder %s19, 2
    // Predicated region
    $region61: #{tpu_custom_call.1} parent=5 // pred_check
      %p389 = pneg %p388
    $region62: #{tpu_custom_call.1} parent=5 // pred_check_branch
      %391 = sbr.rel (%p389) target = $region64
    $region63: #{tpu_custom_call.1} parent=5 // pred_region
      // Predicated region
      $region65: #{tpu_custom_call.1} parent=63 // pred_check
        %p392 = pneg %p51
      $region66: #{tpu_custom_call.1} parent=63 // pred_check_branch
        %394 = sbr.rel (%p392) target = $region68
      $region67: #{tpu_custom_call.1} parent=63 // pred_region
        %p395 = scmp.lt.s32.totalorder %s26, 1
        %s396 = scalar_select %p395, %s26, 1
        %s397 = smul.addr %s396, 32
        %s398 = smul.addr %s397, 4
        %s399 = scalar_lea.vmem %s0, %s398
      $region68: #{tpu_custom_call.1} parent=63 // pred_fallthru
        _
    $region64: #{tpu_custom_call.1} parent=5 // pred_fallthru
      _
    %p400 = scmp.le.s32.totalorder 1, %s19
    %p401 = scmp.lt.s32.totalorder %s19, 3
    %p402 = pnand %p400, %p401
    %p403 = pneg %p402
    // Predicated region
    $region69: #{tpu_custom_call.1} parent=5 // pred_check
      _
    $region70: #{tpu_custom_call.1} parent=5 // pred_check_branch
      %405 = sbr.rel (%p402) target = $region72
    $region71: #{tpu_custom_call.1} parent=5 // pred_region
      %s406 = ssub.s32 %s19, 1
      %p407 = scmp.lt.s32.totalorder %s28, 1
      %s408 = scalar_select %p407, %s28, 1
      %s409 = smul.addr %s408, 32
      %s410 = smul.addr %s409, 4
      %s411 = scalar_lea.vmem %s0, %s410
      %p412 = pneg %p57
      %p413 = pneg %p54
      %p414 = pneg %p78
      %p415 = pneg %p75
      %p416 = pneg %p99
      %p417 = pneg %p96
      %p418 = pneg %p120
      %p419 = pneg %p117
      %p420 = pneg %p141
      %p421 = pneg %p138
      %p422 = pneg %p162
      %p423 = pneg %p159
      %p424 = pneg %p183
      %p425 = pneg %p180
      %p426 = pneg %p204
      %p427 = pneg %p201
      %p428 = pneg %p225
      %p429 = pneg %p222
      %p430 = pneg %p246
      %p431 = pneg %p243
      %p432 = pneg %p267
      %p433 = pneg %p264
      %p434 = pneg %p288
      %p435 = pneg %p285
      %p436 = pneg %p309
      %p437 = pneg %p306
      %p438 = pneg %p337
      %p439 = pneg %p334
      %s440 = smul.u32 16, %s29
      %p441 = scmp.lt.s32.totalorder %s28, 1
      %s442 = scalar_select %p441, %s28, 1
      %p443 = scmp.lt.s32.totalorder %s440, 15
      %s444 = scalar_select %p443, %s440, 15
      %s445 = smul.addr %s444, 2
      %s446 = smul.addr %s442, 32
      %s447 = sadd.s32 %s445, %s446
      %s448 = smul.addr %s447, 8
      %s449 = scalar_lea.vmem %s13, %s448
      %p450 = scmp.lt.s32.totalorder %s28, 1
      %s451 = scalar_select %p450, %s28, 1
      %s452 = smul.addr %s451, 32
      %s453 = smul.addr %s452, 4
      %s454 = scalar_lea.vmem %s0, %s453
      %s455 = smul.u32 16, %s29
      %p456 = scmp.lt.s32.totalorder %s28, 1
      %s457 = scalar_select %p456, %s28, 1
      %p458 = scmp.lt.s32.totalorder %s455, 15
      %s459 = scalar_select %p458, %s455, 15
      %s460 = smul.addr %s459, 2
      %s461 = smul.addr %s457, 32
      %s462 = sadd.s32 %s460, %s461
      %s463 = smul.addr %s462, 8
      %s464 = scalar_lea.vmem %s13, %s463
      %s465 = smul.u32 16, %s29
      %s467 = smul.u32 %s29, 16
      %v468 = vld [vmem:[%s3] sm:$0x1]
      %v469 = vld [vmem:[%s4] sm:$0x1]
      %s470 = smul.u32 %s467, 2
      %s471 = smul.addr %s470, 4
      %s472 = scalar_lea.vmem %s454, %s471
      %v473 = vld [vmem:[%s472] sm:$0xf]
      %v474 = vld [vmem:[%s472 + $0x4] sm:$0xf]
      %v475 = vld [vmem:[%s472 + $0x8] sm:$0xf]
      %v476 = vld [vmem:[%s472 + $0xc] sm:$0xf]
      %v477 = vld [vmem:[%s472 + $0x10] sm:$0xf]
      %v478 = vld [vmem:[%s472 + $0x14] sm:$0xf]
      %v479 = vld [vmem:[%s472 + $0x18] sm:$0xf]
      %v480 = vld [vmem:[%s472 + $0x1c] sm:$0xf]
      %v481 = vld [vmem:[%s472 + $0x20] sm:$0xf]
      %v482 = vld [vmem:[%s472 + $0x24] sm:$0xf]
      %v483 = vld [vmem:[%s472 + $0x28] sm:$0xf]
      %v484 = vld [vmem:[%s472 + $0x2c] sm:$0xf]
      %v485 = vld [vmem:[%s472 + $0x30] sm:$0xf]
      %v486 = vld [vmem:[%s472 + $0x34] sm:$0xf]
      %v487 = vld [vmem:[%s472 + $0x38] sm:$0xf]
      %v488 = vld [vmem:[%s472 + $0x3c] sm:$0xf]
      %v489 = vld [vmem:[%s472 + $0x40] sm:$0xf]
      %v490 = vld [vmem:[%s472 + $0x44] sm:$0xf]
      %v491 = vld [vmem:[%s472 + $0x48] sm:$0xf]
      %v492 = vld [vmem:[%s472 + $0x4c] sm:$0xf]
      %v493 = vld [vmem:[%s472 + $0x50] sm:$0xf]
      %v494 = vld [vmem:[%s472 + $0x54] sm:$0xf]
      %v495 = vld [vmem:[%s472 + $0x58] sm:$0xf]
      %v496 = vld [vmem:[%s472 + $0x5c] sm:$0xf]
      %v497 = vld [vmem:[%s472 + $0x60] sm:$0xf]
      %v498 = vld [vmem:[%s472 + $0x64] sm:$0xf]
      %v499 = vld [vmem:[%s472 + $0x68] sm:$0xf]
      %v500 = vld [vmem:[%s472 + $0x6c] sm:$0xf]
      %v501 = vld [vmem:[%s472 + $0x70] sm:$0xf]
      %v502 = vld [vmem:[%s472 + $0x74] sm:$0xf]
      %v503 = vld [vmem:[%s472 + $0x78] sm:$0xf]
      %v504 = vld [vmem:[%s472 + $0x7c] sm:$0xf]
      %v505 = vld [vmem:[%s1] sm:$0x3]
      %v538 = vunpack.c.l.b16 %v473
      %v539 = vunpack.c.l.b16 %v474
      %v540 = vunpack.c.l.b16 %v475
      %v541 = vunpack.c.l.b16 %v476
      %v542 = vunpack.c.l.b16 %v477
      %v543 = vunpack.c.l.b16 %v478
      %v544 = vunpack.c.l.b16 %v479
      %v545 = vunpack.c.l.b16 %v480
      %v546 = vunpack.c.l.b16 %v481
      %v547 = vunpack.c.l.b16 %v482
      %v548 = vunpack.c.l.b16 %v483
      %v549 = vunpack.c.l.b16 %v484
      %v550 = vunpack.c.l.b16 %v485
      %v551 = vunpack.c.l.b16 %v486
      %v552 = vunpack.c.l.b16 %v487
      %v553 = vunpack.c.l.b16 %v488
      %v554 = vunpack.c.l.b16 %v489
      %v555 = vunpack.c.l.b16 %v490
      %v556 = vunpack.c.l.b16 %v491
      %v557 = vunpack.c.l.b16 %v492
      %v558 = vunpack.c.l.b16 %v493
      %v559 = vunpack.c.l.b16 %v494
      %v560 = vunpack.c.l.b16 %v495
      %v561 = vunpack.c.l.b16 %v496
      %v562 = vunpack.c.l.b16 %v497
      %v563 = vunpack.c.l.b16 %v498
      %v564 = vunpack.c.l.b16 %v499
      %v565 = vunpack.c.l.b16 %v500
      %v566 = vunpack.c.l.b16 %v501
      %v567 = vunpack.c.l.b16 %v502
      %v568 = vunpack.c.l.b16 %v503
      %v569 = vunpack.c.l.b16 %v504
      %v570 = vpack.c.b16 %v539, %v538
      %v571 = vpack.c.b16 %v541, %v540
      %v572 = vpack.c.b16 %v543, %v542
      %v573 = vpack.c.b16 %v545, %v544
      %v574 = vpack.c.b16 %v547, %v546
      %v575 = vpack.c.b16 %v549, %v548
      %v576 = vpack.c.b16 %v551, %v550
      %v577 = vpack.c.b16 %v553, %v552
      %v578 = vpack.c.b16 %v555, %v554
      %v579 = vpack.c.b16 %v557, %v556
      %v580 = vpack.c.b16 %v559, %v558
      %v581 = vpack.c.b16 %v561, %v560
      %v582 = vpack.c.b16 %v563, %v562
      %v583 = vpack.c.b16 %v565, %v564
      %v584 = vpack.c.b16 %v567, %v566
      %v585 = vpack.c.b16 %v569, %v568
      %vm586 = vcmask 31744
      %v588 = vsel %vm586, %v570, 0
      %v591 = vsel %vm586, %v571, 0
      %v594 = vsel %vm586, %v572, 0
      %v597 = vsel %vm586, %v573, 0
      %v600 = vsel %vm586, %v574, 0
      %v603 = vsel %vm586, %v575, 0
      %v606 = vsel %vm586, %v576, 0
      %v609 = vsel %vm586, %v577, 0
      %v612 = vsel %vm586, %v578, 0
      %v615 = vsel %vm586, %v579, 0
      %v618 = vsel %vm586, %v580, 0
      %v621 = vsel %vm586, %v581, 0
      %v624 = vsel %vm586, %v582, 0
      %v627 = vsel %vm586, %v583, 0
      %v630 = vsel %vm586, %v584, 0
      %v633 = vsel %vm586, %v585, 0
      %vm635 = vcmask 1041408
      %v637 = vsel %vm635, %v505, 0
      %639 = vmatprep.subr.bf16.mxu0 0
      %640 = vmatpush1.bf16.msra.mxu0 %v637
      %641 = vmatprep.subr.bf16.mxu0 0
      %642 = vmatpush1.bf16.msra.mxu0 0
      %643 = vmatprep.subr.bf16.mxu0 0
      %644 = vmatpush1.bf16.msra.mxu0 0
      %645 = vmatprep.subr.bf16.mxu0 0
      %646 = vmatpush1.bf16.msra.mxu0 0
      %647 = vmatprep.subr.bf16.mxu0 0
      %648 = vmatpush1.bf16.msra.mxu0 0
      %649 = vmatprep.subr.bf16.mxu0 0
      %650 = vmatpush1.bf16.msra.mxu0 0
      %651 = vmatprep.subr.bf16.mxu0 0
      %652 = vmatpush1.bf16.msra.mxu0 0
      %653 = vmatprep.subr.bf16.mxu0 0
      %654 = vmatpush1.bf16.msra.mxu0 0
      %655 = vmatprep.subr.bf16.mxu0 0
      %656 = vmatpush1.bf16.msra.mxu0 0
      %657 = vmatprep.subr.bf16.mxu0 0
      %658 = vmatpush1.bf16.msra.mxu0 0
      %659 = vmatprep.subr.bf16.mxu0 0
      %660 = vmatpush1.bf16.msra.mxu0 0
      %661 = vmatprep.subr.bf16.mxu0 0
      %662 = vmatpush1.bf16.msra.mxu0 0
      %663 = vmatprep.subr.bf16.mxu0 0
      %664 = vmatpush1.bf16.msra.mxu0 0
      %665 = vmatprep.subr.bf16.mxu0 0
      %666 = vmatpush1.bf16.msra.mxu0 0
      %667 = vmatprep.subr.bf16.mxu0 0
      %668 = vmatpush1.bf16.msra.mxu0 0
      %669 = vmatprep.subr.bf16.mxu0 0
      %670 = vmatpush1.bf16.msra.mxu0 0
      %671 = vmatprep.mubr.bf16.mxu0 0
      %672 = vmatmul.mubr.bf16.gmra.mrb[0].mxu0 %v588
      %v673 = vpop.f32.mrb[0].mxu0
      %v674 = vadd.f32 0.0, %v673
      %v675 = vpop.f32.mrb[0].mxu0
      %v676 = vpop.f32.mrb[0].mxu0
      %v677 = vadd.f32 0.0, %v676
      %v678 = vpop.f32.mrb[0].mxu0
      %679 = vmatprep.mubr.bf16.mxu0 0
      %680 = vmatmul.mubr.bf16.gmra.mrb[0].mxu0 %v591
      %v681 = vpop.f32.mrb[0].mxu0
      %v682 = vadd.f32 0.0, %v681
      %v683 = vpop.f32.mrb[0].mxu0
      %v684 = vpop.f32.mrb[0].mxu0
      %v685 = vadd.f32 0.0, %v684
      %v686 = vpop.f32.mrb[0].mxu0
      %687 = vmatprep.mubr.bf16.mxu0 0
      %688 = vmatmul.mubr.bf16.gmra.mrb[0].mxu0 %v594
      %v689 = vpop.f32.mrb[0].mxu0
      %v690 = vadd.f32 0.0, %v689
      %v691 = vpop.f32.mrb[0].mxu0
      %v692 = vpop.f32.mrb[0].mxu0
      %v693 = vadd.f32 0.0, %v692
      %v694 = vpop.f32.mrb[0].mxu0
      %695 = vmatprep.mubr.bf16.mxu0 0
      %696 = vmatmul.mubr.bf16.gmra.mrb[0].mxu0 %v597
      %v697 = vpop.f32.mrb[0].mxu0
      %v698 = vadd.f32 0.0, %v697
      %v699 = vpop.f32.mrb[0].mxu0
      %v700 = vpop.f32.mrb[0].mxu0
      %v701 = vadd.f32 0.0, %v700
      %v702 = vpop.f32.mrb[0].mxu0
      %703 = vmatprep.mubr.bf16.mxu0 0
      %704 = vmatmul.mubr.bf16.gmra.mrb[0].mxu0 %v600
      %v705 = vpop.f32.mrb[0].mxu0
      %v706 = vadd.f32 0.0, %v705
      %v707 = vpop.f32.mrb[0].mxu0
      %v708 = vpop.f32.mrb[0].mxu0
      %v709 = vadd.f32 0.0, %v708
      %v710 = vpop.f32.mrb[0].mxu0
      %711 = vmatprep.mubr.bf16.mxu0 0
      %712 = vmatmul.mubr.bf16.gmra.mrb[0].mxu0 %v603
      %v713 = vpop.f32.mrb[0].mxu0
      %v714 = vadd.f32 0.0, %v713
      %v715 = vpop.f32.mrb[0].mxu0
      %v716 = vpop.f32.mrb[0].mxu0
      %v717 = vadd.f32 0.0, %v716
      %v718 = vpop.f32.mrb[0].mxu0
      %719 = vmatprep.mubr.bf16.mxu0 0
      %720 = vmatmul.mubr.bf16.gmra.mrb[0].mxu0 %v606
      %v721 = vpop.f32.mrb[0].mxu0
      %v722 = vadd.f32 0.0, %v721
      %v723 = vpop.f32.mrb[0].mxu0
      %v724 = vpop.f32.mrb[0].mxu0
      %v725 = vadd.f32 0.0, %v724
      %v726 = vpop.f32.mrb[0].mxu0
      %727 = vmatprep.mubr.bf16.mxu0 0
      %728 = vmatmul.mubr.bf16.gmra.mrb[0].mxu0 %v609
      %v729 = vpop.f32.mrb[0].mxu0
      %v730 = vadd.f32 0.0, %v729
      %v731 = vpop.f32.mrb[0].mxu0
      %v732 = vpop.f32.mrb[0].mxu0
      %v733 = vadd.f32 0.0, %v732
      %v734 = vpop.f32.mrb[0].mxu0
      %735 = vmatprep.mubr.bf16.mxu0 0
      %736 = vmatmul.mubr.bf16.gmra.mrb[0].mxu0 %v612
      %v737 = vpop.f32.mrb[0].mxu0
      %v738 = vadd.f32 0.0, %v737
      %v739 = vpop.f32.mrb[0].mxu0
      %v740 = vpop.f32.mrb[0].mxu0
      %v741 = vadd.f32 0.0, %v740
      %v742 = vpop.f32.mrb[0].mxu0
      %743 = vmatprep.mubr.bf16.mxu0 0
      %744 = vmatmul.mubr.bf16.gmra.mrb[0].mxu0 %v615
      %v745 = vpop.f32.mrb[0].mxu0
      %v746 = vadd.f32 0.0, %v745
      %v747 = vpop.f32.mrb[0].mxu0
      %v748 = vpop.f32.mrb[0].mxu0
      %v749 = vadd.f32 0.0, %v748
      %v750 = vpop.f32.mrb[0].mxu0
      %751 = vmatprep.mubr.bf16.mxu0 0
      %752 = vmatmul.mubr.bf16.gmra.mrb[0].mxu0 %v618
      %v753 = vpop.f32.mrb[0].mxu0
      %v754 = vadd.f32 0.0, %v753
      %v755 = vpop.f32.mrb[0].mxu0
      %v756 = vpop.f32.mrb[0].mxu0
      %v757 = vadd.f32 0.0, %v756
      %v758 = vpop.f32.mrb[0].mxu0
      %759 = vmatprep.mubr.bf16.mxu0 0
      %760 = vmatmul.mubr.bf16.gmra.mrb[0].mxu0 %v621
      %v761 = vpop.f32.mrb[0].mxu0
      %v762 = vadd.f32 0.0, %v761
      %v763 = vpop.f32.mrb[0].mxu0
      %v764 = vpop.f32.mrb[0].mxu0
      %v765 = vadd.f32 0.0, %v764
      %v766 = vpop.f32.mrb[0].mxu0
      %767 = vmatprep.mubr.bf16.mxu0 0
      %768 = vmatmul.mubr.bf16.gmra.mrb[0].mxu0 %v624
      %v769 = vpop.f32.mrb[0].mxu0
      %v770 = vadd.f32 0.0, %v769
      %v771 = vpop.f32.mrb[0].mxu0
      %v772 = vpop.f32.mrb[0].mxu0
      %v773 = vadd.f32 0.0, %v772
      %v774 = vpop.f32.mrb[0].mxu0
      %775 = vmatprep.mubr.bf16.mxu0 0
      %776 = vmatmul.mubr.bf16.gmra.mrb[0].mxu0 %v627
      %v777 = vpop.f32.mrb[0].mxu0
      %v778 = vadd.f32 0.0, %v777
      %v779 = vpop.f32.mrb[0].mxu0
      %v780 = vpop.f32.mrb[0].mxu0
      %v781 = vadd.f32 0.0, %v780
      %v782 = vpop.f32.mrb[0].mxu0
      %783 = vmatprep.mubr.bf16.mxu0 0
      %784 = vmatmul.mubr.bf16.gmra.mrb[0].mxu0 %v630
      %v785 = vpop.f32.mrb[0].mxu0
      %v786 = vadd.f32 0.0, %v785
      %v787 = vpop.f32.mrb[0].mxu0
      %v788 = vpop.f32.mrb[0].mxu0
      %v789 = vadd.f32 0.0, %v788
      %v790 = vpop.f32.mrb[0].mxu0
      %791 = vmatprep.mubr.bf16.mxu0 0
      %792 = vmatmul.mubr.bf16.gmra.mrb[0].mxu0 %v633
      %v793 = vpop.f32.mrb[0].mxu0
      %v794 = vadd.f32 0.0, %v793
      %v795 = vpop.f32.mrb[0].mxu0
      %v796 = vpop.f32.mrb[0].mxu0
      %v797 = vadd.f32 0.0, %v796
      %v798 = vpop.f32.mrb[0].mxu0
      %799 = vdwg.mxu0
      %v801 = vlaneseq
      %v802 = vshrl.u32 %v801, 7
      %v803 = vsub.s32 0, %v802
      %v804 = vrot.slane %v468, %v803
      %v806 = vmul.f32 %v674, %v804
      %v807 = vmul.f32 %v677, %v804
      %v808 = vmul.f32 %v682, %v804
      %v809 = vmul.f32 %v685, %v804
      %v810 = vmul.f32 %v690, %v804
      %v811 = vmul.f32 %v693, %v804
      %v812 = vmul.f32 %v698, %v804
      %v813 = vmul.f32 %v701, %v804
      %v814 = vmul.f32 %v706, %v804
      %v815 = vmul.f32 %v709, %v804
      %v816 = vmul.f32 %v714, %v804
      %v817 = vmul.f32 %v717, %v804
      %v818 = vmul.f32 %v722, %v804
      %v819 = vmul.f32 %v725, %v804
      %v820 = vmul.f32 %v730, %v804
      %v821 = vmul.f32 %v733, %v804
      %v822 = vmul.f32 %v738, %v804
      %v823 = vmul.f32 %v741, %v804
      %v824 = vmul.f32 %v746, %v804
      %v825 = vmul.f32 %v749, %v804
      %v826 = vmul.f32 %v754, %v804
      %v827 = vmul.f32 %v757, %v804
      %v828 = vmul.f32 %v762, %v804
      %v829 = vmul.f32 %v765, %v804
      %v830 = vmul.f32 %v770, %v804
      %v831 = vmul.f32 %v773, %v804
      %v832 = vmul.f32 %v778, %v804
      %v833 = vmul.f32 %v781, %v804
      %v834 = vmul.f32 %v786, %v804
      %v835 = vmul.f32 %v789, %v804
      %v836 = vmul.f32 %v794, %v804
      %v837 = vmul.f32 %v797, %v804
      %v839 = vlaneseq
      %v840 = vshrl.u32 %v839, 7
      %v841 = vsub.s32 0, %v840
      %v842 = vrot.slane %v469, %v841
      %v844 = vadd.f32 %v806, %v842
      %v845 = vadd.f32 %v807, %v842
      %v846 = vadd.f32 %v808, %v842
      %v847 = vadd.f32 %v809, %v842
      %v848 = vadd.f32 %v810, %v842
      %v849 = vadd.f32 %v811, %v842
      %v850 = vadd.f32 %v812, %v842
      %v851 = vadd.f32 %v813, %v842
      %v852 = vadd.f32 %v814, %v842
      %v853 = vadd.f32 %v815, %v842
      %v854 = vadd.f32 %v816, %v842
      %v855 = vadd.f32 %v817, %v842
      %v856 = vadd.f32 %v818, %v842
      %v857 = vadd.f32 %v819, %v842
      %v858 = vadd.f32 %v820, %v842
      %v859 = vadd.f32 %v821, %v842
      %v860 = vadd.f32 %v822, %v842
      %v861 = vadd.f32 %v823, %v842
      %v862 = vadd.f32 %v824, %v842
      %v863 = vadd.f32 %v825, %v842
      %v864 = vadd.f32 %v826, %v842
      %v865 = vadd.f32 %v827, %v842
      %v866 = vadd.f32 %v828, %v842
      %v867 = vadd.f32 %v829, %v842
      %v868 = vadd.f32 %v830, %v842
      %v869 = vadd.f32 %v831, %v842
      %v870 = vadd.f32 %v832, %v842
      %v871 = vadd.f32 %v833, %v842
      %v872 = vadd.f32 %v834, %v842
      %v873 = vadd.f32 %v835, %v842
      %v874 = vadd.f32 %v836, %v842
      %v875 = vadd.f32 %v837, %v842
      %v876 = vmax.f32 %v844, 0.0
      %v877 = vmax.f32 %v845, 0.0
      %v878 = vmax.f32 %v846, 0.0
      %v879 = vmax.f32 %v847, 0.0
      %v880 = vmax.f32 %v848, 0.0
      %v881 = vmax.f32 %v849, 0.0
      %v882 = vmax.f32 %v850, 0.0
      %v883 = vmax.f32 %v851, 0.0
      %v884 = vmax.f32 %v852, 0.0
      %v885 = vmax.f32 %v853, 0.0
      %v886 = vmax.f32 %v854, 0.0
      %v887 = vmax.f32 %v855, 0.0
      %v888 = vmax.f32 %v856, 0.0
      %v889 = vmax.f32 %v857, 0.0
      %v890 = vmax.f32 %v858, 0.0
      %v891 = vmax.f32 %v859, 0.0
      %v892 = vmax.f32 %v860, 0.0
      %v893 = vmax.f32 %v861, 0.0
      %v894 = vmax.f32 %v862, 0.0
      %v895 = vmax.f32 %v863, 0.0
      %v896 = vmax.f32 %v864, 0.0
      %v897 = vmax.f32 %v865, 0.0
      %v898 = vmax.f32 %v866, 0.0
      %v899 = vmax.f32 %v867, 0.0
      %v900 = vmax.f32 %v868, 0.0
      %v901 = vmax.f32 %v869, 0.0
      %v902 = vmax.f32 %v870, 0.0
      %v903 = vmax.f32 %v871, 0.0
      %v904 = vmax.f32 %v872, 0.0
      %v905 = vmax.f32 %v873, 0.0
      %v906 = vmax.f32 %v874, 0.0
      %v907 = vmax.f32 %v875, 0.0
      %v908 = vld [vmem:[%s2] sm:$0x3]
      %v910 = vsel %vm635, %v908, 0
      %912 = vmatprep.subr.bf16.mxu0 0
      %913 = vmatpush1.bf16.msra.mxu0 %v910
      %914 = vmatprep.subr.bf16.mxu0 0
      %915 = vmatpush1.bf16.msra.mxu0 0
      %916 = vmatprep.subr.bf16.mxu0 0
      %917 = vmatpush1.bf16.msra.mxu0 0
      %918 = vmatprep.subr.bf16.mxu0 0
      %919 = vmatpush1.bf16.msra.mxu0 0
      %920 = vmatprep.subr.bf16.mxu0 0
      %921 = vmatpush1.bf16.msra.mxu0 0
      %922 = vmatprep.subr.bf16.mxu0 0
      %923 = vmatpush1.bf16.msra.mxu0 0
      %924 = vmatprep.subr.bf16.mxu0 0
      %925 = vmatpush1.bf16.msra.mxu0 0
      %926 = vmatprep.subr.bf16.mxu0 0
      %927 = vmatpush1.bf16.msra.mxu0 0
      %928 = vmatprep.subr.bf16.mxu0 0
      %929 = vmatpush1.bf16.msra.mxu0 0
      %930 = vmatprep.subr.bf16.mxu0 0
      %931 = vmatpush1.bf16.msra.mxu0 0
      %932 = vmatprep.subr.bf16.mxu0 0
      %933 = vmatpush1.bf16.msra.mxu0 0
      %934 = vmatprep.subr.bf16.mxu0 0
      %935 = vmatpush1.bf16.msra.mxu0 0
      %936 = vmatprep.subr.bf16.mxu0 0
      %937 = vmatpush1.bf16.msra.mxu0 0
      %938 = vmatprep.subr.bf16.mxu0 0
      %939 = vmatpush1.bf16.msra.mxu0 0
      %940 = vmatprep.subr.bf16.mxu0 0
      %941 = vmatpush1.bf16.msra.mxu0 0
      %942 = vmatprep.subr.bf16.mxu0 0
      %943 = vmatpush1.bf16.msra.mxu0 0
      %944 = vmatprep.mubr.bf16.mxu0 0
      %945 = vmatmul.mubr.bf16.gmra.mrb[0].mxu0 %v588
      %v946 = vpop.f32.mrb[0].mxu0
      %v947 = vadd.f32 0.0, %v946
      %v948 = vpop.f32.mrb[0].mxu0
      %v949 = vpop.f32.mrb[0].mxu0
      %v950 = vadd.f32 0.0, %v949
      %v951 = vpop.f32.mrb[0].mxu0
      %952 = vmatprep.mubr.bf16.mxu0 0
      %953 = vmatmul.mubr.bf16.gmra.mrb[0].mxu0 %v591
      %v954 = vpop.f32.mrb[0].mxu0
      %v955 = vadd.f32 0.0, %v954
      %v956 = vpop.f32.mrb[0].mxu0
      %v957 = vpop.f32.mrb[0].mxu0
      %v958 = vadd.f32 0.0, %v957
      %v959 = vpop.f32.mrb[0].mxu0
      %960 = vmatprep.mubr.bf16.mxu0 0
      %961 = vmatmul.mubr.bf16.gmra.mrb[0].mxu0 %v594
      %v962 = vpop.f32.mrb[0].mxu0
      %v963 = vadd.f32 0.0, %v962
      %v964 = vpop.f32.mrb[0].mxu0
      %v965 = vpop.f32.mrb[0].mxu0
      %v966 = vadd.f32 0.0, %v965
      %v967 = vpop.f32.mrb[0].mxu0
      %968 = vmatprep.mubr.bf16.mxu0 0
      %969 = vmatmul.mubr.bf16.gmra.mrb[0].mxu0 %v597
      %v970 = vpop.f32.mrb[0].mxu0
      %v971 = vadd.f32 0.0, %v970
      %v972 = vpop.f32.mrb[0].mxu0
      %v973 = vpop.f32.mrb[0].mxu0
      %v974 = vadd.f32 0.0, %v973
      %v975 = vpop.f32.mrb[0].mxu0
      %976 = vmatprep.mubr.bf16.mxu0 0
      %977 = vmatmul.mubr.bf16.gmra.mrb[0].mxu0 %v600
      %v978 = vpop.f32.mrb[0].mxu0
      %v979 = vadd.f32 0.0, %v978
      %v980 = vpop.f32.mrb[0].mxu0
      %v981 = vpop.f32.mrb[0].mxu0
      %v982 = vadd.f32 0.0, %v981
      %v983 = vpop.f32.mrb[0].mxu0
      %984 = vmatprep.mubr.bf16.mxu0 0
      %985 = vmatmul.mubr.bf16.gmra.mrb[0].mxu0 %v603
      %v986 = vpop.f32.mrb[0].mxu0
      %v987 = vadd.f32 0.0, %v986
      %v988 = vpop.f32.mrb[0].mxu0
      %v989 = vpop.f32.mrb[0].mxu0
      %v990 = vadd.f32 0.0, %v989
      %v991 = vpop.f32.mrb[0].mxu0
      %992 = vmatprep.mubr.bf16.mxu0 0
      %993 = vmatmul.mubr.bf16.gmra.mrb[0].mxu0 %v606
      %v994 = vpop.f32.mrb[0].mxu0
      %v995 = vadd.f32 0.0, %v994
      %v996 = vpop.f32.mrb[0].mxu0
      %v997 = vpop.f32.mrb[0].mxu0
      %v998 = vadd.f32 0.0, %v997
      %v999 = vpop.f32.mrb[0].mxu0
      %1000 = vmatprep.mubr.bf16.mxu0 0
      %1001 = vmatmul.mubr.bf16.gmra.mrb[0].mxu0 %v609
      %v1002 = vpop.f32.mrb[0].mxu0
      %v1003 = vadd.f32 0.0, %v1002
      %v1004 = vpop.f32.mrb[0].mxu0
      %v1005 = vpop.f32.mrb[0].mxu0
      %v1006 = vadd.f32 0.0, %v1005
      %v1007 = vpop.f32.mrb[0].mxu0
      %1008 = vmatprep.mubr.bf16.mxu0 0
      %1009 = vmatmul.mubr.bf16.gmra.mrb[0].mxu0 %v612
      %v1010 = vpop.f32.mrb[0].mxu0
      %v1011 = vadd.f32 0.0, %v1010
      %v1012 = vpop.f32.mrb[0].mxu0
      %v1013 = vpop.f32.mrb[0].mxu0
      %v1014 = vadd.f32 0.0, %v1013
      %v1015 = vpop.f32.mrb[0].mxu0
      %1016 = vmatprep.mubr.bf16.mxu0 0
      %1017 = vmatmul.mubr.bf16.gmra.mrb[0].mxu0 %v615
      %v1018 = vpop.f32.mrb[0].mxu0
      %v1019 = vadd.f32 0.0, %v1018
      %v1020 = vpop.f32.mrb[0].mxu0
      %v1021 = vpop.f32.mrb[0].mxu0
      %v1022 = vadd.f32 0.0, %v1021
      %v1023 = vpop.f32.mrb[0].mxu0
      %1024 = vmatprep.mubr.bf16.mxu0 0
      %1025 = vmatmul.mubr.bf16.gmra.mrb[0].mxu0 %v618
      %v1026 = vpop.f32.mrb[0].mxu0
      %v1027 = vadd.f32 0.0, %v1026
      %v1028 = vpop.f32.mrb[0].mxu0
      %v1029 = vpop.f32.mrb[0].mxu0
      %v1030 = vadd.f32 0.0, %v1029
      %v1031 = vpop.f32.mrb[0].mxu0
      %1032 = vmatprep.mubr.bf16.mxu0 0
      %1033 = vmatmul.mubr.bf16.gmra.mrb[0].mxu0 %v621
      %v1034 = vpop.f32.mrb[0].mxu0
      %v1035 = vadd.f32 0.0, %v1034
      %v1036 = vpop.f32.mrb[0].mxu0
      %v1037 = vpop.f32.mrb[0].mxu0
      %v1038 = vadd.f32 0.0, %v1037
      %v1039 = vpop.f32.mrb[0].mxu0
      %1040 = vmatprep.mubr.bf16.mxu0 0
      %1041 = vmatmul.mubr.bf16.gmra.mrb[0].mxu0 %v624
      %v1042 = vpop.f32.mrb[0].mxu0
      %v1043 = vadd.f32 0.0, %v1042
      %v1044 = vpop.f32.mrb[0].mxu0
      %v1045 = vpop.f32.mrb[0].mxu0
      %v1046 = vadd.f32 0.0, %v1045
      %v1047 = vpop.f32.mrb[0].mxu0
      %1048 = vmatprep.mubr.bf16.mxu0 0
      %1049 = vmatmul.mubr.bf16.gmra.mrb[0].mxu0 %v627
      %v1050 = vpop.f32.mrb[0].mxu0
      %v1051 = vadd.f32 0.0, %v1050
      %v1052 = vpop.f32.mrb[0].mxu0
      %v1053 = vpop.f32.mrb[0].mxu0
      %v1054 = vadd.f32 0.0, %v1053
      %v1055 = vpop.f32.mrb[0].mxu0
      %1056 = vmatprep.mubr.bf16.mxu0 0
      %1057 = vmatmul.mubr.bf16.gmra.mrb[0].mxu0 %v630
      %v1058 = vpop.f32.mrb[0].mxu0
      %v1059 = vadd.f32 0.0, %v1058
      %v1060 = vpop.f32.mrb[0].mxu0
      %v1061 = vpop.f32.mrb[0].mxu0
      %v1062 = vadd.f32 0.0, %v1061
      %v1063 = vpop.f32.mrb[0].mxu0
      %1064 = vmatprep.mubr.bf16.mxu0 0
      %1065 = vmatmul.mubr.bf16.gmra.mrb[0].mxu0 %v633
      %v1066 = vpop.f32.mrb[0].mxu0
      %v1067 = vadd.f32 0.0, %v1066
      %v1068 = vpop.f32.mrb[0].mxu0
      %v1069 = vpop.f32.mrb[0].mxu0
      %v1070 = vadd.f32 0.0, %v1069
      %v1071 = vpop.f32.mrb[0].mxu0
      %1072 = vdwg.mxu0
      %v1073 = vld [vmem:[%s5] sm:$0x1]
      %v1075 = vlaneseq
      %v1076 = vshrl.u32 %v1075, 7
      %v1077 = vsub.s32 0, %v1076
      %v1078 = vrot.slane %v1073, %v1077
      %v1080 = vmul.f32 %v947, %v1078
      %v1081 = vmul.f32 %v950, %v1078
      %v1082 = vmul.f32 %v955, %v1078
      %v1083 = vmul.f32 %v958, %v1078
      %v1084 = vmul.f32 %v963, %v1078
      %v1085 = vmul.f32 %v966, %v1078
      %v1086 = vmul.f32 %v971, %v1078
      %v1087 = vmul.f32 %v974, %v1078
      %v1088 = vmul.f32 %v979, %v1078
      %v1089 = vmul.f32 %v982, %v1078
      %v1090 = vmul.f32 %v987, %v1078
      %v1091 = vmul.f32 %v990, %v1078
      %v1092 = vmul.f32 %v995, %v1078
      %v1093 = vmul.f32 %v998, %v1078
      %v1094 = vmul.f32 %v1003, %v1078
      %v1095 = vmul.f32 %v1006, %v1078
      %v1096 = vmul.f32 %v1011, %v1078
      %v1097 = vmul.f32 %v1014, %v1078
      %v1098 = vmul.f32 %v1019, %v1078
      %v1099 = vmul.f32 %v1022, %v1078
      %v1100 = vmul.f32 %v1027, %v1078
      %v1101 = vmul.f32 %v1030, %v1078
      %v1102 = vmul.f32 %v1035, %v1078
      %v1103 = vmul.f32 %v1038, %v1078
      %v1104 = vmul.f32 %v1043, %v1078
      %v1105 = vmul.f32 %v1046, %v1078
      %v1106 = vmul.f32 %v1051, %v1078
      %v1107 = vmul.f32 %v1054, %v1078
      %v1108 = vmul.f32 %v1059, %v1078
      %v1109 = vmul.f32 %v1062, %v1078
      %v1110 = vmul.f32 %v1067, %v1078
      %v1111 = vmul.f32 %v1070, %v1078
      %v1112 = vld [vmem:[%s6] sm:$0x1]
      %v1114 = vlaneseq
      %v1115 = vshrl.u32 %v1114, 7
      %v1116 = vsub.s32 0, %v1115
      %v1117 = vrot.slane %v1112, %v1116
      %v1119 = vadd.f32 %v1080, %v1117
      %v1120 = vadd.f32 %v1081, %v1117
      %v1121 = vadd.f32 %v1082, %v1117
      %v1122 = vadd.f32 %v1083, %v1117
      %v1123 = vadd.f32 %v1084, %v1117
      %v1124 = vadd.f32 %v1085, %v1117
      %v1125 = vadd.f32 %v1086, %v1117
      %v1126 = vadd.f32 %v1087, %v1117
      %v1127 = vadd.f32 %v1088, %v1117
      %v1128 = vadd.f32 %v1089, %v1117
      %v1129 = vadd.f32 %v1090, %v1117
      %v1130 = vadd.f32 %v1091, %v1117
      %v1131 = vadd.f32 %v1092, %v1117
      %v1132 = vadd.f32 %v1093, %v1117
      %v1133 = vadd.f32 %v1094, %v1117
      %v1134 = vadd.f32 %v1095, %v1117
      %v1135 = vadd.f32 %v1096, %v1117
      %v1136 = vadd.f32 %v1097, %v1117
      %v1137 = vadd.f32 %v1098, %v1117
      %v1138 = vadd.f32 %v1099, %v1117
      %v1139 = vadd.f32 %v1100, %v1117
      %v1140 = vadd.f32 %v1101, %v1117
      %v1141 = vadd.f32 %v1102, %v1117
      %v1142 = vadd.f32 %v1103, %v1117
      %v1143 = vadd.f32 %v1104, %v1117
      %v1144 = vadd.f32 %v1105, %v1117
      %v1145 = vadd.f32 %v1106, %v1117
      %v1146 = vadd.f32 %v1107, %v1117
      %v1147 = vadd.f32 %v1108, %v1117
      %v1148 = vadd.f32 %v1109, %v1117
      %v1149 = vadd.f32 %v1110, %v1117
      %v1150 = vadd.f32 %v1111, %v1117
      %s1151 = ssub.s32 %s467, 1
      %p1152 = scmp.gt.s32.totalorder %s1151, 0
      %s1153 = scalar_select %p1152, %s1151, 0
      %s1154 = sadd.s32 %s467, 16
      %p1155 = scmp.lt.s32.totalorder %s1154, 15
      %s1156 = scalar_select %p1155, %s1154, 15
      %s1157 = smul.u32 %s1153, 2
      %s1158 = smul.addr %s1157, 4
      %s1159 = scalar_lea.vmem %s454, %s1158
      %v1160 = vld [vmem:[%s1159] sm:$0xf]
      %v1161 = vld [vmem:[%s1159 + $0x4] sm:$0xf]
      %s1162 = smul.u32 %s1156, 2
      %s1163 = smul.addr %s1162, 4
      %s1164 = scalar_lea.vmem %s454, %s1163
      %v1165 = vld [vmem:[%s1164] sm:$0xf]
      %v1166 = vld [vmem:[%s1164 + $0x4] sm:$0xf]
      %v1169 = vunpack.c.l.b16 %v1160
      %v1170 = vunpack.c.l.b16 %v1161
      %v1171 = vpack.c.b16 %v1170, %v1169
      %v1174 = vunpack.c.l.b16 %v1165
      %v1175 = vunpack.c.l.b16 %v1166
      %v1176 = vpack.c.b16 %v1175, %v1174
      %v1178 = vsel %vm586, %v1171, 0
      %v1181 = vsel %vm586, %v1176, 0
      %1183 = vmatprep.subr.bf16.mxu0 0
      %1184 = vmatpush1.bf16.msra.mxu0 %v637
      %1185 = vmatprep.subr.bf16.mxu0 0
      %1186 = vmatpush1.bf16.msra.mxu0 0
      %1187 = vmatprep.subr.bf16.mxu0 0
      %1188 = vmatpush1.bf16.msra.mxu0 0
      %1189 = vmatprep.subr.bf16.mxu0 0
      %1190 = vmatpush1.bf16.msra.mxu0 0
      %1191 = vmatprep.subr.bf16.mxu0 0
      %1192 = vmatpush1.bf16.msra.mxu0 0
      %1193 = vmatprep.subr.bf16.mxu0 0
      %1194 = vmatpush1.bf16.msra.mxu0 0
      %1195 = vmatprep.subr.bf16.mxu0 0
      %1196 = vmatpush1.bf16.msra.mxu0 0
      %1197 = vmatprep.subr.bf16.mxu0 0
      %1198 = vmatpush1.bf16.msra.mxu0 0
      %1199 = vmatprep.subr.bf16.mxu0 0
      %1200 = vmatpush1.bf16.msra.mxu0 0
      %1201 = vmatprep.subr.bf16.mxu0 0
      %1202 = vmatpush1.bf16.msra.mxu0 0
      %1203 = vmatprep.subr.bf16.mxu0 0
      %1204 = vmatpush1.bf16.msra.mxu0 0
      %1205 = vmatprep.subr.bf16.mxu0 0
      %1206 = vmatpush1.bf16.msra.mxu0 0
      %1207 = vmatprep.subr.bf16.mxu0 0
      %1208 = vmatpush1.bf16.msra.mxu0 0
      %1209 = vmatprep.subr.bf16.mxu0 0
      %1210 = vmatpush1.bf16.msra.mxu0 0
      %1211 = vmatprep.subr.bf16.mxu0 0
      %1212 = vmatpush1.bf16.msra.mxu0 0
      %1213 = vmatprep.subr.bf16.mxu0 0
      %1214 = vmatpush1.bf16.msra.mxu0 0
      %1215 = vmatprep.mubr.bf16.mxu0 0
      %1216 = vmatmul.mubr.bf16.gmra.mrb[0].mxu0 %v1178
      %v1217 = vpop.f32.mrb[0].mxu0
      %v1218 = vadd.f32 0.0, %v1217
      %v1219 = vpop.f32.mrb[0].mxu0
      %v1220 = vpop.f32.mrb[0].mxu0
      %v1221 = vadd.f32 0.0, %v1220
      %v1222 = vpop.f32.mrb[0].mxu0
      %1223 = vmatprep.mubr.bf16.mxu0 0
      %1224 = vmatmul.mubr.bf16.gmra.mrb[0].mxu0 %v1181
      %v1225 = vpop.f32.mrb[0].mxu0
      %v1226 = vadd.f32 0.0, %v1225
      %v1227 = vpop.f32.mrb[0].mxu0
      %v1228 = vpop.f32.mrb[0].mxu0
      %v1229 = vadd.f32 0.0, %v1228
      %v1230 = vpop.f32.mrb[0].mxu0
      %1231 = vdwg.mxu0
      %v1232 = vmul.f32 %v1218, %v804
      %v1233 = vmul.f32 %v1221, %v804
      %v1234 = vmul.f32 %v1226, %v804
      %v1235 = vmul.f32 %v1229, %v804
      %v1236 = vadd.f32 %v1232, %v842
      %v1237 = vadd.f32 %v1233, %v842
      %v1238 = vadd.f32 %v1234, %v842
      %v1239 = vadd.f32 %v1235, %v842
      %v1240 = vmax.f32 %v1236, 0.0
      %v1241 = vmax.f32 %v1237, 0.0
      %v1242 = vmax.f32 %v1238, 0.0
      %v1243 = vmax.f32 %v1239, 0.0
      %p1244 = scmp.gt.s32.totalorder %s29, 0
      %s1245 = scalar_select %p1244, 1, 0
      %v1246 = vstv %s1245
      %vm1247 = vcmp.eq.s32.totalorder %v1246, 1
      %v1248 = vsel %vm1247, %v1240, 0.0
      %v1249 = vsel %vm1247, %v1241, 0.0
      %p1250 = scmp.lt.s32.totalorder %s29, 0
      %s1251 = scalar_select %p1250, 1, 0
      %v1252 = vstv %s1251
      %vm1253 = vcmp.eq.s32.totalorder %v1252, 1
      %v1254 = vsel %vm1253, %v1242, 0.0
      %v1255 = vsel %vm1253, %v1243, 0.0
      %p1256 = scmp.eq.s32.totalorder %s29, 0
      // Predicated region
      $region73: #{tpu_custom_call.1} parent=71 // pred_check
        %p1257 = pneg %p1256
      $region74: #{tpu_custom_call.1} parent=71 // pred_check_branch
        %1259 = sbr.rel (%p1257) target = $region76
      $region75: #{tpu_custom_call.1} parent=71 // pred_region
        %vm1260 = vcmask 27651
        %vm1261 = vsmask.f32 7950
        %vm1262 = vmand %vm1260, %vm1261
        %v1263 = vld [vmem:[#allocation2] sm:$0x8]
        %v1264 = vsel %vm1262, 0, %v1263
        %1265 = vst [vmem:[#allocation2] sm:$0x8] %v1264
        %v1266 = vld [vmem:[#allocation2 + $0x10] sm:$0x8]
        %v1267 = vsel %vm1262, 0, %v1266
        %1268 = vst [vmem:[#allocation2 + $0x10] sm:$0x8] %v1267
        %v1269 = vld [vmem:[#allocation2 + $0x20] sm:$0x8]
        %v1270 = vsel %vm1262, 0, %v1269
        %1271 = vst [vmem:[#allocation2 + $0x20] sm:$0x8] %v1270
        %v1272 = vld [vmem:[#allocation2 + $0x30] sm:$0x8]
        %v1273 = vsel %vm1262, 0, %v1272
        %1274 = vst [vmem:[#allocation2 + $0x30] sm:$0x8] %v1273
        %v1275 = vld [vmem:[#allocation2 + $0x40] sm:$0x8]
        %v1276 = vsel %vm1262, 0, %v1275
        %1277 = vst [vmem:[#allocation2 + $0x40] sm:$0x8] %v1276
        %v1278 = vld [vmem:[#allocation2 + $0x50] sm:$0x8]
        %v1279 = vsel %vm1262, 0, %v1278
        %1280 = vst [vmem:[#allocation2 + $0x50] sm:$0x8] %v1279
        %v1281 = vld [vmem:[#allocation2 + $0x60] sm:$0x8]
        %v1282 = vsel %vm1262, 0, %v1281
        %1283 = vst [vmem:[#allocation2 + $0x60] sm:$0x8] %v1282
        %v1284 = vld [vmem:[#allocation2 + $0x70] sm:$0x8]
        %v1285 = vsel %vm1262, 0, %v1284
        %1286 = vst [vmem:[#allocation2 + $0x70] sm:$0x8] %v1285
        %v1287 = vld [vmem:[#allocation2 + $0x80] sm:$0x8]
        %v1288 = vsel %vm1262, 0, %v1287
        %1289 = vst [vmem:[#allocation2 + $0x80] sm:$0x8] %v1288
        %v1290 = vld [vmem:[#allocation2 + $0x90] sm:$0x8]
        %v1291 = vsel %vm1262, 0, %v1290
        %1292 = vst [vmem:[#allocation2 + $0x90] sm:$0x8] %v1291
        %v1293 = vld [vmem:[#allocation2 + $0xa0] sm:$0x8]
        %v1294 = vsel %vm1262, 0, %v1293
        %1295 = vst [vmem:[#allocation2 + $0xa0] sm:$0x8] %v1294
        %v1296 = vld [vmem:[#allocation2 + $0xb0] sm:$0x8]
        %v1297 = vsel %vm1262, 0, %v1296
        %1298 = vst [vmem:[#allocation2 + $0xb0] sm:$0x8] %v1297
        %v1299 = vld [vmem:[#allocation2 + $0xc0] sm:$0x8]
        %v1300 = vsel %vm1262, 0, %v1299
        %1301 = vst [vmem:[#allocation2 + $0xc0] sm:$0x8] %v1300
        %v1302 = vld [vmem:[#allocation2 + $0xd0] sm:$0x8]
        %v1303 = vsel %vm1262, 0, %v1302
        %1304 = vst [vmem:[#allocation2 + $0xd0] sm:$0x8] %v1303
        %v1305 = vld [vmem:[#allocation2 + $0xe0] sm:$0x8]
        %v1306 = vsel %vm1262, 0, %v1305
        %1307 = vst [vmem:[#allocation2 + $0xe0] sm:$0x8] %v1306
        %v1308 = vld [vmem:[#allocation2 + $0xf0] sm:$0x8]
        %v1309 = vsel %vm1262, 0, %v1308
        %1310 = vst [vmem:[#allocation2 + $0xf0] sm:$0x8] %v1309
        %v1311 = vld [vmem:[#allocation2 + $0x100] sm:$0x8]
        %v1312 = vsel %vm1262, 0, %v1311
        %1313 = vst [vmem:[#allocation2 + $0x100] sm:$0x8] %v1312
        %v1314 = vld [vmem:[#allocation2 + $0x110] sm:$0x8]
        %v1315 = vsel %vm1262, 0, %v1314
        %1316 = vst [vmem:[#allocation2 + $0x110] sm:$0x8] %v1315
        %vm1317 = vcmask 24576
        %vm1318 = vsmask.f32 256
        %vm1319 = vmand %vm1317, %vm1318
        %v1320 = vld [vmem:[#allocation2 + $0xc] sm:$0x1]
        %v1321 = vsel %vm1319, 0, %v1320
        %1322 = vst [vmem:[#allocation2 + $0xc] sm:$0x1] %v1321
        %v1323 = vld [vmem:[#allocation2 + $0x1c] sm:$0x1]
        %v1324 = vsel %vm1319, 0, %v1323
        %1325 = vst [vmem:[#allocation2 + $0x1c] sm:$0x1] %v1324
        %v1326 = vld [vmem:[#allocation2 + $0x2c] sm:$0x1]
        %v1327 = vsel %vm1319, 0, %v1326
        %1328 = vst [vmem:[#allocation2 + $0x2c] sm:$0x1] %v1327
        %v1329 = vld [vmem:[#allocation2 + $0x3c] sm:$0x1]
        %v1330 = vsel %vm1319, 0, %v1329
        %1331 = vst [vmem:[#allocation2 + $0x3c] sm:$0x1] %v1330
        %v1332 = vld [vmem:[#allocation2 + $0x4c] sm:$0x1]
        %v1333 = vsel %vm1319, 0, %v1332
        %1334 = vst [vmem:[#allocation2 + $0x4c] sm:$0x1] %v1333
        %v1335 = vld [vmem:[#allocation2 + $0x5c] sm:$0x1]
        %v1336 = vsel %vm1319, 0, %v1335
        %1337 = vst [vmem:[#allocation2 + $0x5c] sm:$0x1] %v1336
        %v1338 = vld [vmem:[#allocation2 + $0x6c] sm:$0x1]
        %v1339 = vsel %vm1319, 0, %v1338
        %1340 = vst [vmem:[#allocation2 + $0x6c] sm:$0x1] %v1339
        %v1341 = vld [vmem:[#allocation2 + $0x7c] sm:$0x1]
        %v1342 = vsel %vm1319, 0, %v1341
        %1343 = vst [vmem:[#allocation2 + $0x7c] sm:$0x1] %v1342
        %v1344 = vld [vmem:[#allocation2 + $0x8c] sm:$0x1]
        %v1345 = vsel %vm1319, 0, %v1344
        %1346 = vst [vmem:[#allocation2 + $0x8c] sm:$0x1] %v1345
        %v1347 = vld [vmem:[#allocation2 + $0x9c] sm:$0x1]
        %v1348 = vsel %vm1319, 0, %v1347
        %1349 = vst [vmem:[#allocation2 + $0x9c] sm:$0x1] %v1348
        %v1350 = vld [vmem:[#allocation2 + $0xac] sm:$0x1]
        %v1351 = vsel %vm1319, 0, %v1350
        %1352 = vst [vmem:[#allocation2 + $0xac] sm:$0x1] %v1351
        %v1353 = vld [vmem:[#allocation2 + $0xbc] sm:$0x1]
        %v1354 = vsel %vm1319, 0, %v1353
        %1355 = vst [vmem:[#allocation2 + $0xbc] sm:$0x1] %v1354
        %v1356 = vld [vmem:[#allocation2 + $0xcc] sm:$0x1]
        %v1357 = vsel %vm1319, 0, %v1356
        %1358 = vst [vmem:[#allocation2 + $0xcc] sm:$0x1] %v1357
        %v1359 = vld [vmem:[#allocation2 + $0xdc] sm:$0x1]
        %v1360 = vsel %vm1319, 0, %v1359
        %1361 = vst [vmem:[#allocation2 + $0xdc] sm:$0x1] %v1360
        %v1362 = vld [vmem:[#allocation2 + $0xec] sm:$0x1]
        %v1363 = vsel %vm1319, 0, %v1362
        %1364 = vst [vmem:[#allocation2 + $0xec] sm:$0x1] %v1363
        %v1365 = vld [vmem:[#allocation2 + $0xfc] sm:$0x1]
        %v1366 = vsel %vm1319, 0, %v1365
        %1367 = vst [vmem:[#allocation2 + $0xfc] sm:$0x1] %v1366
        %v1368 = vld [vmem:[#allocation2 + $0x10c] sm:$0x1]
        %v1369 = vsel %vm1319, 0, %v1368
        %1370 = vst [vmem:[#allocation2 + $0x10c] sm:$0x1] %v1369
        %v1371 = vld [vmem:[#allocation2 + $0x11c] sm:$0x1]
        %v1372 = vsel %vm1319, 0, %v1371
        %1373 = vst [vmem:[#allocation2 + $0x11c] sm:$0x1] %v1372
      $region76: #{tpu_custom_call.1} parent=71 // pred_fallthru
        _
      %v1374 = vpack.c.bf16 %v877, %v876
      %v1375 = vpack.c.bf16 %v879, %v878
      %v1376 = vpack.c.bf16 %v881, %v880
      %v1377 = vpack.c.bf16 %v883, %v882
      %v1378 = vpack.c.bf16 %v885, %v884
      %v1379 = vpack.c.bf16 %v887, %v886
      %v1380 = vpack.c.bf16 %v889, %v888
      %v1381 = vpack.c.bf16 %v891, %v890
      %v1382 = vpack.c.bf16 %v893, %v892
      %v1383 = vpack.c.bf16 %v895, %v894
      %v1384 = vpack.c.bf16 %v897, %v896
      %v1385 = vpack.c.bf16 %v899, %v898
      %v1386 = vpack.c.bf16 %v901, %v900
      %v1387 = vpack.c.bf16 %v903, %v902
      %v1388 = vpack.c.bf16 %v905, %v904
      %v1389 = vpack.c.bf16 %v907, %v906
      %v1406 = vunpack.c.l.b16 %v1374
      %v1407 = vunpack.c.h.b16 %v1374
      %v1408 = vunpack.c.l.b16 %v1375
      %v1409 = vunpack.c.h.b16 %v1375
      %v1410 = vunpack.c.l.b16 %v1376
      %v1411 = vunpack.c.h.b16 %v1376
      %v1412 = vunpack.c.l.b16 %v1377
      %v1413 = vunpack.c.h.b16 %v1377
      %v1414 = vunpack.c.l.b16 %v1378
      %v1415 = vunpack.c.h.b16 %v1378
      %v1416 = vunpack.c.l.b16 %v1379
      %v1417 = vunpack.c.h.b16 %v1379
      %v1418 = vunpack.c.l.b16 %v1380
      %v1419 = vunpack.c.h.b16 %v1380
      %v1420 = vunpack.c.l.b16 %v1381
      %v1421 = vunpack.c.h.b16 %v1381
      %v1422 = vunpack.c.l.b16 %v1382
      %v1423 = vunpack.c.h.b16 %v1382
      %v1424 = vunpack.c.l.b16 %v1383
      %v1425 = vunpack.c.h.b16 %v1383
      %v1426 = vunpack.c.l.b16 %v1384
      %v1427 = vunpack.c.h.b16 %v1384
      %v1428 = vunpack.c.l.b16 %v1385
      %v1429 = vunpack.c.h.b16 %v1385
      %v1430 = vunpack.c.l.b16 %v1386
      %v1431 = vunpack.c.h.b16 %v1386
      %v1432 = vunpack.c.l.b16 %v1387
      %v1433 = vunpack.c.h.b16 %v1387
      %v1434 = vunpack.c.l.b16 %v1388
      %v1435 = vunpack.c.h.b16 %v1388
      %v1436 = vunpack.c.l.b16 %v1389
      %v1437 = vunpack.c.h.b16 %v1389
      %v1438 = vpack.c.b16 %v1406, %v1406
      %v1439 = vpack.c.b16 %v1407, %v1407
      %v1440 = vpack.c.b16 %v1408, %v1408
      %v1441 = vpack.c.b16 %v1409, %v1409
      %v1442 = vpack.c.b16 %v1410, %v1410
      %v1443 = vpack.c.b16 %v1411, %v1411
      %v1444 = vpack.c.b16 %v1412, %v1412
      %v1445 = vpack.c.b16 %v1413, %v1413
      %v1446 = vpack.c.b16 %v1414, %v1414
      %v1447 = vpack.c.b16 %v1415, %v1415
      %v1448 = vpack.c.b16 %v1416, %v1416
      %v1449 = vpack.c.b16 %v1417, %v1417
      %v1450 = vpack.c.b16 %v1418, %v1418
      %v1451 = vpack.c.b16 %v1419, %v1419
      %v1452 = vpack.c.b16 %v1420, %v1420
      %v1453 = vpack.c.b16 %v1421, %v1421
      %v1454 = vpack.c.b16 %v1422, %v1422
      %v1455 = vpack.c.b16 %v1423, %v1423
      %v1456 = vpack.c.b16 %v1424, %v1424
      %v1457 = vpack.c.b16 %v1425, %v1425
      %v1458 = vpack.c.b16 %v1426, %v1426
      %v1459 = vpack.c.b16 %v1427, %v1427
      %v1460 = vpack.c.b16 %v1428, %v1428
      %v1461 = vpack.c.b16 %v1429, %v1429
      %v1462 = vpack.c.b16 %v1430, %v1430
      %v1463 = vpack.c.b16 %v1431, %v1431
      %v1464 = vpack.c.b16 %v1432, %v1432
      %v1465 = vpack.c.b16 %v1433, %v1433
      %v1466 = vpack.c.b16 %v1434, %v1434
      %v1467 = vpack.c.b16 %v1435, %v1435
      %v1468 = vpack.c.b16 %v1436, %v1436
      %v1469 = vpack.c.b16 %v1437, %v1437
      %s1502 = scalar_lea.vmem [#allocation2], 16
      %vm1503 = vcmask 27648
      %1504 = vst.msk [vmem:[%s1502 + $0x4] sm:$0xf] %vm1503, %v1438
      %1505 = vst.msk [vmem:[%s1502 + $0x8] sm:$0xf] %vm1503, %v1439
      %1506 = vst.msk [vmem:[%s1502 + $0x14] sm:$0xf] %vm1503, %v1440
      %1507 = vst.msk [vmem:[%s1502 + $0x18] sm:$0xf] %vm1503, %v1441
      %1508 = vst.msk [vmem:[%s1502 + $0x24] sm:$0xf] %vm1503, %v1442
      %1509 = vst.msk [vmem:[%s1502 + $0x28] sm:$0xf] %vm1503, %v1443
      %1510 = vst.msk [vmem:[%s1502 + $0x34] sm:$0xf] %vm1503, %v1444
      %1511 = vst.msk [vmem:[%s1502 + $0x38] sm:$0xf] %vm1503, %v1445
      %1512 = vst.msk [vmem:[%s1502 + $0x44] sm:$0xf] %vm1503, %v1446
      %1513 = vst.msk [vmem:[%s1502 + $0x48] sm:$0xf] %vm1503, %v1447
      %1514 = vst.msk [vmem:[%s1502 + $0x54] sm:$0xf] %vm1503, %v1448
      %1515 = vst.msk [vmem:[%s1502 + $0x58] sm:$0xf] %vm1503, %v1449
      %1516 = vst.msk [vmem:[%s1502 + $0x64] sm:$0xf] %vm1503, %v1450
      %1517 = vst.msk [vmem:[%s1502 + $0x68] sm:$0xf] %vm1503, %v1451
      %1518 = vst.msk [vmem:[%s1502 + $0x74] sm:$0xf] %vm1503, %v1452
      %1519 = vst.msk [vmem:[%s1502 + $0x78] sm:$0xf] %vm1503, %v1453
      %1520 = vst.msk [vmem:[%s1502 + $0x84] sm:$0xf] %vm1503, %v1454
      %1521 = vst.msk [vmem:[%s1502 + $0x88] sm:$0xf] %vm1503, %v1455
      %1522 = vst.msk [vmem:[%s1502 + $0x94] sm:$0xf] %vm1503, %v1456
      %1523 = vst.msk [vmem:[%s1502 + $0x98] sm:$0xf] %vm1503, %v1457
      %1524 = vst.msk [vmem:[%s1502 + $0xa4] sm:$0xf] %vm1503, %v1458
      %1525 = vst.msk [vmem:[%s1502 + $0xa8] sm:$0xf] %vm1503, %v1459
      %1526 = vst.msk [vmem:[%s1502 + $0xb4] sm:$0xf] %vm1503, %v1460
      %1527 = vst.msk [vmem:[%s1502 + $0xb8] sm:$0xf] %vm1503, %v1461
      %1528 = vst.msk [vmem:[%s1502 + $0xc4] sm:$0xf] %vm1503, %v1462
      %1529 = vst.msk [vmem:[%s1502 + $0xc8] sm:$0xf] %vm1503, %v1463
      %1530 = vst.msk [vmem:[%s1502 + $0xd4] sm:$0xf] %vm1503, %v1464
      %1531 = vst.msk [vmem:[%s1502 + $0xd8] sm:$0xf] %vm1503, %v1465
      %1532 = vst.msk [vmem:[%s1502 + $0xe4] sm:$0xf] %vm1503, %v1466
      %1533 = vst.msk [vmem:[%s1502 + $0xe8] sm:$0xf] %vm1503, %v1467
      %1534 = vst.msk [vmem:[%s1502 + $0xf4] sm:$0xf] %vm1503, %v1468
      %1535 = vst.msk [vmem:[%s1502 + $0xf8] sm:$0xf] %vm1503, %v1469
      %v1536 = vpack.c.bf16 %v1249, %v1248
      %v1538 = vunpack.c.l.b16 %v1536
      %v1539 = vunpack.c.h.b16 %v1536
      %v1540 = vpack.c.b16 %v1538, %v1538
      %v1541 = vpack.c.b16 %v1539, %v1539
      %1544 = vst.msk [vmem:[#allocation2 + $0x4] sm:$0xf] %vm1503, %v1540
      %1545 = vst.msk [vmem:[#allocation2 + $0x8] sm:$0xf] %vm1503, %v1541
      %v1546 = vpack.c.bf16 %v1255, %v1254
      %v1548 = vunpack.c.l.b16 %v1546
      %v1549 = vunpack.c.h.b16 %v1546
      %v1550 = vpack.c.b16 %v1548, %v1548
      %v1551 = vpack.c.b16 %v1549, %v1549
      %s1554 = scalar_lea.vmem [#allocation2], 272
      %1555 = vst.msk [vmem:[%s1554 + $0x4] sm:$0xf] %vm1503, %v1550
      %1556 = vst.msk [vmem:[%s1554 + $0x8] sm:$0xf] %vm1503, %v1551
      %v1557 = vld [vmem:[#allocation2] sm:$0x8]
      %v1558 = vld [vmem:[#allocation2 + $0x4] sm:$0xf]
      %v1559 = vld [vmem:[#allocation2 + $0x8] sm:$0xf]
      %v1560 = vld [vmem:[#allocation2 + $0x10] sm:$0x8]
      %v1561 = vld [vmem:[#allocation2 + $0x14] sm:$0xf]
      %v1562 = vld [vmem:[#allocation2 + $0x18] sm:$0xf]
      %v1563 = vld [vmem:[#allocation2 + $0x20] sm:$0x8]
      %v1564 = vld [vmem:[#allocation2 + $0x24] sm:$0xf]
      %v1565 = vld [vmem:[#allocation2 + $0x28] sm:$0xf]
      %v1566 = vld [vmem:[#allocation2 + $0x30] sm:$0x8]
      %v1567 = vld [vmem:[#allocation2 + $0x34] sm:$0xf]
      %v1568 = vld [vmem:[#allocation2 + $0x38] sm:$0xf]
      %v1569 = vld [vmem:[#allocation2 + $0x40] sm:$0x8]
      %v1570 = vld [vmem:[#allocation2 + $0x44] sm:$0xf]
      %v1571 = vld [vmem:[#allocation2 + $0x48] sm:$0xf]
      %v1572 = vld [vmem:[#allocation2 + $0x50] sm:$0x8]
      %v1573 = vld [vmem:[#allocation2 + $0x54] sm:$0xf]
      %v1574 = vld [vmem:[#allocation2 + $0x58] sm:$0xf]
      %v1575 = vld [vmem:[#allocation2 + $0x60] sm:$0x8]
      %v1576 = vld [vmem:[#allocation2 + $0x64] sm:$0xf]
      %v1577 = vld [vmem:[#allocation2 + $0x68] sm:$0xf]
      %v1578 = vld [vmem:[#allocation2 + $0x70] sm:$0x8]
      %v1579 = vld [vmem:[#allocation2 + $0x74] sm:$0xf]
      %v1580 = vld [vmem:[#allocation2 + $0x78] sm:$0xf]
      %v1581 = vld [vmem:[#allocation2 + $0x80] sm:$0x8]
      %v1582 = vld [vmem:[#allocation2 + $0x84] sm:$0xf]
      %v1583 = vld [vmem:[#allocation2 + $0x88] sm:$0xf]
      %v1584 = vld [vmem:[#allocation2 + $0x90] sm:$0x8]
      %v1585 = vld [vmem:[#allocation2 + $0x94] sm:$0xf]
      %v1586 = vld [vmem:[#allocation2 + $0x98] sm:$0xf]
      %v1587 = vld [vmem:[#allocation2 + $0xa0] sm:$0x8]
      %v1588 = vld [vmem:[#allocation2 + $0xa4] sm:$0xf]
      %v1589 = vld [vmem:[#allocation2 + $0xa8] sm:$0xf]
      %v1590 = vld [vmem:[#allocation2 + $0xb0] sm:$0x8]
      %v1591 = vld [vmem:[#allocation2 + $0xb4] sm:$0xf]
      %v1592 = vld [vmem:[#allocation2 + $0xb8] sm:$0xf]
      %v1593 = vld [vmem:[#allocation2 + $0xc0] sm:$0x8]
      %v1594 = vld [vmem:[#allocation2 + $0xc4] sm:$0xf]
      %v1595 = vld [vmem:[#allocation2 + $0xc8] sm:$0xf]
      %v1596 = vld [vmem:[#allocation2 + $0xd0] sm:$0x8]
      %v1597 = vld [vmem:[#allocation2 + $0xd4] sm:$0xf]
      %v1598 = vld [vmem:[#allocation2 + $0xd8] sm:$0xf]
      %v1599 = vld [vmem:[#allocation2 + $0xe0] sm:$0x8]
      %v1600 = vld [vmem:[#allocation2 + $0xe4] sm:$0xf]
      %v1601 = vld [vmem:[#allocation2 + $0xe8] sm:$0xf]
      %v1602 = vld [vmem:[#allocation2 + $0xf0] sm:$0x8]
      %v1603 = vld [vmem:[#allocation2 + $0xf4] sm:$0xf]
      %v1604 = vld [vmem:[#allocation2 + $0xf8] sm:$0xf]
      %vm1605 = vsmask.f32 256
      %vm1606 = vsmask.f32 4368
      %vm1607 = vmor %vm1605, %vm1606
      %v1609 = vshrl.u32 %v1557, 16
      %v1611 = vrot.slane %v1609, 7
      %v1612 = vrot.slane %v1611, 4
      %v1614 = vshrl.u32 %v1558, 16
      %v1616 = vrot.slane %v1614, 7
      %v1617 = vshll.u32 %v1558, 16
      %v1619 = vor.u32 %v1616, %v1617
      %v1620 = vsel %vm1607, %v1612, %v1619
      %v1621 = vrot.slane %v1616, 4
      %v1623 = vshrl.u32 %v1559, 16
      %v1625 = vrot.slane %v1623, 7
      %v1626 = vshll.u32 %v1559, 16
      %v1628 = vor.u32 %v1625, %v1626
      %v1629 = vsel %vm1607, %v1621, %v1628
      %v1631 = vshrl.u32 %v1560, 16
      %v1633 = vrot.slane %v1631, 7
      %v1634 = vrot.slane %v1633, 4
      %v1636 = vshrl.u32 %v1561, 16
      %v1638 = vrot.slane %v1636, 7
      %v1639 = vshll.u32 %v1561, 16
      %v1641 = vor.u32 %v1638, %v1639
      %v1642 = vsel %vm1607, %v1634, %v1641
      %v1643 = vrot.slane %v1638, 4
      %v1645 = vshrl.u32 %v1562, 16
      %v1647 = vrot.slane %v1645, 7
      %v1648 = vshll.u32 %v1562, 16
      %v1650 = vor.u32 %v1647, %v1648
      %v1651 = vsel %vm1607, %v1643, %v1650
      %v1653 = vshrl.u32 %v1563, 16
      %v1655 = vrot.slane %v1653, 7
      %v1656 = vrot.slane %v1655, 4
      %v1658 = vshrl.u32 %v1564, 16
      %v1660 = vrot.slane %v1658, 7
      %v1661 = vshll.u32 %v1564, 16
      %v1663 = vor.u32 %v1660, %v1661
      %v1664 = vsel %vm1607, %v1656, %v1663
      %v1665 = vrot.slane %v1660, 4
      %v1667 = vshrl.u32 %v1565, 16
      %v1669 = vrot.slane %v1667, 7
      %v1670 = vshll.u32 %v1565, 16
      %v1672 = vor.u32 %v1669, %v1670
      %v1673 = vsel %vm1607, %v1665, %v1672
      %v1675 = vshrl.u32 %v1566, 16
      %v1677 = vrot.slane %v1675, 7
      %v1678 = vrot.slane %v1677, 4
      %v1680 = vshrl.u32 %v1567, 16
      %v1682 = vrot.slane %v1680, 7
      %v1683 = vshll.u32 %v1567, 16
      %v1685 = vor.u32 %v1682, %v1683
      %v1686 = vsel %vm1607, %v1678, %v1685
      %v1687 = vrot.slane %v1682, 4
      %v1689 = vshrl.u32 %v1568, 16
      %v1691 = vrot.slane %v1689, 7
      %v1692 = vshll.u32 %v1568, 16
      %v1694 = vor.u32 %v1691, %v1692
      %v1695 = vsel %vm1607, %v1687, %v1694
      %v1697 = vshrl.u32 %v1569, 16
      %v1699 = vrot.slane %v1697, 7
      %v1700 = vrot.slane %v1699, 4
      %v1702 = vshrl.u32 %v1570, 16
      %v1704 = vrot.slane %v1702, 7
      %v1705 = vshll.u32 %v1570, 16
      %v1707 = vor.u32 %v1704, %v1705
      %v1708 = vsel %vm1607, %v1700, %v1707
      %v1709 = vrot.slane %v1704, 4
      %v1711 = vshrl.u32 %v1571, 16
      %v1713 = vrot.slane %v1711, 7
      %v1714 = vshll.u32 %v1571, 16
      %v1716 = vor.u32 %v1713, %v1714
      %v1717 = vsel %vm1607, %v1709, %v1716
      %v1719 = vshrl.u32 %v1572, 16
      %v1721 = vrot.slane %v1719, 7
      %v1722 = vrot.slane %v1721, 4
      %v1724 = vshrl.u32 %v1573, 16
      %v1726 = vrot.slane %v1724, 7
      %v1727 = vshll.u32 %v1573, 16
      %v1729 = vor.u32 %v1726, %v1727
      %v1730 = vsel %vm1607, %v1722, %v1729
      %v1731 = vrot.slane %v1726, 4
      %v1733 = vshrl.u32 %v1574, 16
      %v1735 = vrot.slane %v1733, 7
      %v1736 = vshll.u32 %v1574, 16
      %v1738 = vor.u32 %v1735, %v1736
      %v1739 = vsel %vm1607, %v1731, %v1738
      %v1741 = vshrl.u32 %v1575, 16
      %v1743 = vrot.slane %v1741, 7
      %v1744 = vrot.slane %v1743, 4
      %v1746 = vshrl.u32 %v1576, 16
      %v1748 = vrot.slane %v1746, 7
      %v1749 = vshll.u32 %v1576, 16
      %v1751 = vor.u32 %v1748, %v1749
      %v1752 = vsel %vm1607, %v1744, %v1751
      %v1753 = vrot.slane %v1748, 4
      %v1755 = vshrl.u32 %v1577, 16
      %v1757 = vrot.slane %v1755, 7
      %v1758 = vshll.u32 %v1577, 16
      %v1760 = vor.u32 %v1757, %v1758
      %v1761 = vsel %vm1607, %v1753, %v1760
      %v1763 = vshrl.u32 %v1578, 16
      %v1765 = vrot.slane %v1763, 7
      %v1766 = vrot.slane %v1765, 4
      %v1768 = vshrl.u32 %v1579, 16
      %v1770 = vrot.slane %v1768, 7
      %v1771 = vshll.u32 %v1579, 16
      %v1773 = vor.u32 %v1770, %v1771
      %v1774 = vsel %vm1607, %v1766, %v1773
      %v1775 = vrot.slane %v1770, 4
      %v1777 = vshrl.u32 %v1580, 16
      %v1779 = vrot.slane %v1777, 7
      %v1780 = vshll.u32 %v1580, 16
      %v1782 = vor.u32 %v1779, %v1780
      %v1783 = vsel %vm1607, %v1775, %v1782
      %v1785 = vshrl.u32 %v1581, 16
      %v1787 = vrot.slane %v1785, 7
      %v1788 = vrot.slane %v1787, 4
      %v1790 = vshrl.u32 %v1582, 16
      %v1792 = vrot.slane %v1790, 7
      %v1793 = vshll.u32 %v1582, 16
      %v1795 = vor.u32 %v1792, %v1793
      %v1796 = vsel %vm1607, %v1788, %v1795
      %v1797 = vrot.slane %v1792, 4
      %v1799 = vshrl.u32 %v1583, 16
      %v1801 = vrot.slane %v1799, 7
      %v1802 = vshll.u32 %v1583, 16
      %v1804 = vor.u32 %v1801, %v1802
      %v1805 = vsel %vm1607, %v1797, %v1804
      %v1807 = vshrl.u32 %v1584, 16
      %v1809 = vrot.slane %v1807, 7
      %v1810 = vrot.slane %v1809, 4
      %v1812 = vshrl.u32 %v1585, 16
      %v1814 = vrot.slane %v1812, 7
      %v1815 = vshll.u32 %v1585, 16
      %v1817 = vor.u32 %v1814, %v1815
      %v1818 = vsel %vm1607, %v1810, %v1817
      %v1819 = vrot.slane %v1814, 4
      %v1821 = vshrl.u32 %v1586, 16
      %v1823 = vrot.slane %v1821, 7
      %v1824 = vshll.u32 %v1586, 16
      %v1826 = vor.u32 %v1823, %v1824
      %v1827 = vsel %vm1607, %v1819, %v1826
      %v1829 = vshrl.u32 %v1587, 16
      %v1831 = vrot.slane %v1829, 7
      %v1832 = vrot.slane %v1831, 4
      %v1834 = vshrl.u32 %v1588, 16
      %v1836 = vrot.slane %v1834, 7
      %v1837 = vshll.u32 %v1588, 16
      %v1839 = vor.u32 %v1836, %v1837
      %v1840 = vsel %vm1607, %v1832, %v1839
      %v1841 = vrot.slane %v1836, 4
      %v1843 = vshrl.u32 %v1589, 16
      %v1845 = vrot.slane %v1843, 7
      %v1846 = vshll.u32 %v1589, 16
      %v1848 = vor.u32 %v1845, %v1846
      %v1849 = vsel %vm1607, %v1841, %v1848
      %v1851 = vshrl.u32 %v1590, 16
      %v1853 = vrot.slane %v1851, 7
      %v1854 = vrot.slane %v1853, 4
      %v1856 = vshrl.u32 %v1591, 16
      %v1858 = vrot.slane %v1856, 7
      %v1859 = vshll.u32 %v1591, 16
      %v1861 = vor.u32 %v1858, %v1859
      %v1862 = vsel %vm1607, %v1854, %v1861
      %v1863 = vrot.slane %v1858, 4
      %v1865 = vshrl.u32 %v1592, 16
      %v1867 = vrot.slane %v1865, 7
      %v1868 = vshll.u32 %v1592, 16
      %v1870 = vor.u32 %v1867, %v1868
      %v1871 = vsel %vm1607, %v1863, %v1870
      %v1873 = vshrl.u32 %v1593, 16
      %v1875 = vrot.slane %v1873, 7
      %v1876 = vrot.slane %v1875, 4
      %v1878 = vshrl.u32 %v1594, 16
      %v1880 = vrot.slane %v1878, 7
      %v1881 = vshll.u32 %v1594, 16
      %v1883 = vor.u32 %v1880, %v1881
      %v1884 = vsel %vm1607, %v1876, %v1883
      %v1885 = vrot.slane %v1880, 4
      %v1887 = vshrl.u32 %v1595, 16
      %v1889 = vrot.slane %v1887, 7
      %v1890 = vshll.u32 %v1595, 16
      %v1892 = vor.u32 %v1889, %v1890
      %v1893 = vsel %vm1607, %v1885, %v1892
      %v1895 = vshrl.u32 %v1596, 16
      %v1897 = vrot.slane %v1895, 7
      %v1898 = vrot.slane %v1897, 4
      %v1900 = vshrl.u32 %v1597, 16
      %v1902 = vrot.slane %v1900, 7
      %v1903 = vshll.u32 %v1597, 16
      %v1905 = vor.u32 %v1902, %v1903
      %v1906 = vsel %vm1607, %v1898, %v1905
      %v1907 = vrot.slane %v1902, 4
      %v1909 = vshrl.u32 %v1598, 16
      %v1911 = vrot.slane %v1909, 7
      %v1912 = vshll.u32 %v1598, 16
      %v1914 = vor.u32 %v1911, %v1912
      %v1915 = vsel %vm1607, %v1907, %v1914
      %v1917 = vshrl.u32 %v1599, 16
      %v1919 = vrot.slane %v1917, 7
      %v1920 = vrot.slane %v1919, 4
      %v1922 = vshrl.u32 %v1600, 16
      %v1924 = vrot.slane %v1922, 7
      %v1925 = vshll.u32 %v1600, 16
      %v1927 = vor.u32 %v1924, %v1925
      %v1928 = vsel %vm1607, %v1920, %v1927
      %v1929 = vrot.slane %v1924, 4
      %v1931 = vshrl.u32 %v1601, 16
      %v1933 = vrot.slane %v1931, 7
      %v1934 = vshll.u32 %v1601, 16
      %v1936 = vor.u32 %v1933, %v1934
      %v1937 = vsel %vm1607, %v1929, %v1936
      %v1939 = vshrl.u32 %v1602, 16
      %v1941 = vrot.slane %v1939, 7
      %v1942 = vrot.slane %v1941, 4
      %v1944 = vshrl.u32 %v1603, 16
      %v1946 = vrot.slane %v1944, 7
      %v1947 = vshll.u32 %v1603, 16
      %v1949 = vor.u32 %v1946, %v1947
      %v1950 = vsel %vm1607, %v1942, %v1949
      %v1951 = vrot.slane %v1946, 4
      %v1953 = vshrl.u32 %v1604, 16
      %v1955 = vrot.slane %v1953, 7
      %v1956 = vshll.u32 %v1604, 16
      %v1958 = vor.u32 %v1955, %v1956
      %v1959 = vsel %vm1607, %v1951, %v1958
      %v1960 = vld [vmem:[%s7] sm:$0x3]
      %s1961 = scalar_lea.vmem %s7, 2
      %v1962 = vld [vmem:[%s1961] sm:$0x3]
      %v1995 = vunpack.c.l.b16 %v1558
      %v1996 = vunpack.c.l.b16 %v1559
      %v1997 = vunpack.c.l.b16 %v1561
      %v1998 = vunpack.c.l.b16 %v1562
      %v1999 = vunpack.c.l.b16 %v1564
      %v2000 = vunpack.c.l.b16 %v1565
      %v2001 = vunpack.c.l.b16 %v1567
      %v2002 = vunpack.c.l.b16 %v1568
      %v2003 = vunpack.c.l.b16 %v1570
      %v2004 = vunpack.c.l.b16 %v1571
      %v2005 = vunpack.c.l.b16 %v1573
      %v2006 = vunpack.c.l.b16 %v1574
      %v2007 = vunpack.c.l.b16 %v1576
      %v2008 = vunpack.c.l.b16 %v1577
      %v2009 = vunpack.c.l.b16 %v1579
      %v2010 = vunpack.c.l.b16 %v1580
      %v2011 = vunpack.c.l.b16 %v1582
      %v2012 = vunpack.c.l.b16 %v1583
      %v2013 = vunpack.c.l.b16 %v1585
      %v2014 = vunpack.c.l.b16 %v1586
      %v2015 = vunpack.c.l.b16 %v1588
      %v2016 = vunpack.c.l.b16 %v1589
      %v2017 = vunpack.c.l.b16 %v1591
      %v2018 = vunpack.c.l.b16 %v1592
      %v2019 = vunpack.c.l.b16 %v1594
      %v2020 = vunpack.c.l.b16 %v1595
      %v2021 = vunpack.c.l.b16 %v1597
      %v2022 = vunpack.c.l.b16 %v1598
      %v2023 = vunpack.c.l.b16 %v1600
      %v2024 = vunpack.c.l.b16 %v1601
      %v2025 = vunpack.c.l.b16 %v1603
      %v2026 = vunpack.c.l.b16 %v1604
      %v2027 = vpack.c.b16 %v1996, %v1995
      %v2028 = vpack.c.b16 %v1998, %v1997
      %v2029 = vpack.c.b16 %v2000, %v1999
      %v2030 = vpack.c.b16 %v2002, %v2001
      %v2031 = vpack.c.b16 %v2004, %v2003
      %v2032 = vpack.c.b16 %v2006, %v2005
      %v2033 = vpack.c.b16 %v2008, %v2007
      %v2034 = vpack.c.b16 %v2010, %v2009
      %v2035 = vpack.c.b16 %v2012, %v2011
      %v2036 = vpack.c.b16 %v2014, %v2013
      %v2037 = vpack.c.b16 %v2016, %v2015
      %v2038 = vpack.c.b16 %v2018, %v2017
      %v2039 = vpack.c.b16 %v2020, %v2019
      %v2040 = vpack.c.b16 %v2022, %v2021
      %v2041 = vpack.c.b16 %v2024, %v2023
      %v2042 = vpack.c.b16 %v2026, %v2025
      %v2044 = vsel %vm586, %v2027, 0
      %v2047 = vsel %vm586, %v2028, 0
      %v2050 = vsel %vm586, %v2029, 0
      %v2053 = vsel %vm586, %v2030, 0
      %v2056 = vsel %vm586, %v2031, 0
      %v2059 = vsel %vm586, %v2032, 0
      %v2062 = vsel %vm586, %v2033, 0
      %v2065 = vsel %vm586, %v2034, 0
      %v2068 = vsel %vm586, %v2035, 0
      %v2071 = vsel %vm586, %v2036, 0
      %v2074 = vsel %vm586, %v2037, 0
      %v2077 = vsel %vm586, %v2038, 0
      %v2080 = vsel %vm586, %v2039, 0
      %v2083 = vsel %vm586, %v2040, 0
      %v2086 = vsel %vm586, %v2041, 0
      %v2089 = vsel %vm586, %v2042, 0
      %v2092 = vsel %vm635, %v1962, 0
      %2094 = vmatprep.subr.bf16.mxu0 0
      %2095 = vmatpush1.bf16.msra.mxu0 %v2092
      %2096 = vmatprep.subr.bf16.mxu0 0
      %2097 = vmatpush1.bf16.msra.mxu0 0
      %2098 = vmatprep.subr.bf16.mxu0 0
      %2099 = vmatpush1.bf16.msra.mxu0 0
      %2100 = vmatprep.subr.bf16.mxu0 0
      %2101 = vmatpush1.bf16.msra.mxu0 0
      %2102 = vmatprep.subr.bf16.mxu0 0
      %2103 = vmatpush1.bf16.msra.mxu0 0
      %2104 = vmatprep.subr.bf16.mxu0 0
      %2105 = vmatpush1.bf16.msra.mxu0 0
      %2106 = vmatprep.subr.bf16.mxu0 0
      %2107 = vmatpush1.bf16.msra.mxu0 0
      %2108 = vmatprep.subr.bf16.mxu0 0
      %2109 = vmatpush1.bf16.msra.mxu0 0
      %2110 = vmatprep.subr.bf16.mxu0 0
      %2111 = vmatpush1.bf16.msra.mxu0 0
      %2112 = vmatprep.subr.bf16.mxu0 0
      %2113 = vmatpush1.bf16.msra.mxu0 0
      %2114 = vmatprep.subr.bf16.mxu0 0
      %2115 = vmatpush1.bf16.msra.mxu0 0
      %2116 = vmatprep.subr.bf16.mxu0 0
      %2117 = vmatpush1.bf16.msra.mxu0 0
      %2118 = vmatprep.subr.bf16.mxu0 0
      %2119 = vmatpush1.bf16.msra.mxu0 0
      %2120 = vmatprep.subr.bf16.mxu0 0
      %2121 = vmatpush1.bf16.msra.mxu0 0
      %2122 = vmatprep.subr.bf16.mxu0 0
      %2123 = vmatpush1.bf16.msra.mxu0 0
      %2124 = vmatprep.subr.bf16.mxu0 0
      %2125 = vmatpush1.bf16.msra.mxu0 0
      %2126 = vmatprep.mubr.bf16.mxu0 0
      %2127 = vmatmul.mubr.bf16.gmra.mrb[0].mxu0 %v2044
      %v2128 = vpop.f32.mrb[0].mxu0
      %v2129 = vadd.f32 0.0, %v2128
      %v2130 = vpop.f32.mrb[0].mxu0
      %v2131 = vpop.f32.mrb[0].mxu0
      %v2132 = vadd.f32 0.0, %v2131
      %v2133 = vpop.f32.mrb[0].mxu0
      %2134 = vmatprep.mubr.bf16.mxu0 0
      %2135 = vmatmul.mubr.bf16.gmra.mrb[0].mxu0 %v2047
      %v2136 = vpop.f32.mrb[0].mxu0
      %v2137 = vadd.f32 0.0, %v2136
      %v2138 = vpop.f32.mrb[0].mxu0
      %v2139 = vpop.f32.mrb[0].mxu0
      %v2140 = vadd.f32 0.0, %v2139
      %v2141 = vpop.f32.mrb[0].mxu0
      %2142 = vmatprep.mubr.bf16.mxu0 0
      %2143 = vmatmul.mubr.bf16.gmra.mrb[0].mxu0 %v2050
      %v2144 = vpop.f32.mrb[0].mxu0
      %v2145 = vadd.f32 0.0, %v2144
      %v2146 = vpop.f32.mrb[0].mxu0
      %v2147 = vpop.f32.mrb[0].mxu0
      %v2148 = vadd.f32 0.0, %v2147
      %v2149 = vpop.f32.mrb[0].mxu0
      %2150 = vmatprep.mubr.bf16.mxu0 0
      %2151 = vmatmul.mubr.bf16.gmra.mrb[0].mxu0 %v2053
      %v2152 = vpop.f32.mrb[0].mxu0
      %v2153 = vadd.f32 0.0, %v2152
      %v2154 = vpop.f32.mrb[0].mxu0
      %v2155 = vpop.f32.mrb[0].mxu0
      %v2156 = vadd.f32 0.0, %v2155
      %v2157 = vpop.f32.mrb[0].mxu0
      %2158 = vmatprep.mubr.bf16.mxu0 0
      %2159 = vmatmul.mubr.bf16.gmra.mrb[0].mxu0 %v2056
      %v2160 = vpop.f32.mrb[0].mxu0
      %v2161 = vadd.f32 0.0, %v2160
      %v2162 = vpop.f32.mrb[0].mxu0
      %v2163 = vpop.f32.mrb[0].mxu0
      %v2164 = vadd.f32 0.0, %v2163
      %v2165 = vpop.f32.mrb[0].mxu0
      %2166 = vmatprep.mubr.bf16.mxu0 0
      %2167 = vmatmul.mubr.bf16.gmra.mrb[0].mxu0 %v2059
      %v2168 = vpop.f32.mrb[0].mxu0
      %v2169 = vadd.f32 0.0, %v2168
      %v2170 = vpop.f32.mrb[0].mxu0
      %v2171 = vpop.f32.mrb[0].mxu0
      %v2172 = vadd.f32 0.0, %v2171
      %v2173 = vpop.f32.mrb[0].mxu0
      %2174 = vmatprep.mubr.bf16.mxu0 0
      %2175 = vmatmul.mubr.bf16.gmra.mrb[0].mxu0 %v2062
      %v2176 = vpop.f32.mrb[0].mxu0
      %v2177 = vadd.f32 0.0, %v2176
      %v2178 = vpop.f32.mrb[0].mxu0
      %v2179 = vpop.f32.mrb[0].mxu0
      %v2180 = vadd.f32 0.0, %v2179
      %v2181 = vpop.f32.mrb[0].mxu0
      %2182 = vmatprep.mubr.bf16.mxu0 0
      %2183 = vmatmul.mubr.bf16.gmra.mrb[0].mxu0 %v2065
      %v2184 = vpop.f32.mrb[0].mxu0
      %v2185 = vadd.f32 0.0, %v2184
      %v2186 = vpop.f32.mrb[0].mxu0
      %v2187 = vpop.f32.mrb[0].mxu0
      %v2188 = vadd.f32 0.0, %v2187
      %v2189 = vpop.f32.mrb[0].mxu0
      %2190 = vmatprep.mubr.bf16.mxu0 0
      %2191 = vmatmul.mubr.bf16.gmra.mrb[0].mxu0 %v2068
      %v2192 = vpop.f32.mrb[0].mxu0
      %v2193 = vadd.f32 0.0, %v2192
      %v2194 = vpop.f32.mrb[0].mxu0
      %v2195 = vpop.f32.mrb[0].mxu0
      %v2196 = vadd.f32 0.0, %v2195
      %v2197 = vpop.f32.mrb[0].mxu0
      %2198 = vmatprep.mubr.bf16.mxu0 0
      %2199 = vmatmul.mubr.bf16.gmra.mrb[0].mxu0 %v2071
      %v2200 = vpop.f32.mrb[0].mxu0
      %v2201 = vadd.f32 0.0, %v2200
      %v2202 = vpop.f32.mrb[0].mxu0
      %v2203 = vpop.f32.mrb[0].mxu0
      %v2204 = vadd.f32 0.0, %v2203
      %v2205 = vpop.f32.mrb[0].mxu0
      %2206 = vmatprep.mubr.bf16.mxu0 0
      %2207 = vmatmul.mubr.bf16.gmra.mrb[0].mxu0 %v2074
      %v2208 = vpop.f32.mrb[0].mxu0
      %v2209 = vadd.f32 0.0, %v2208
      %v2210 = vpop.f32.mrb[0].mxu0
      %v2211 = vpop.f32.mrb[0].mxu0
      %v2212 = vadd.f32 0.0, %v2211
      %v2213 = vpop.f32.mrb[0].mxu0
      %2214 = vmatprep.mubr.bf16.mxu0 0
      %2215 = vmatmul.mubr.bf16.gmra.mrb[0].mxu0 %v2077
      %v2216 = vpop.f32.mrb[0].mxu0
      %v2217 = vadd.f32 0.0, %v2216
      %v2218 = vpop.f32.mrb[0].mxu0
      %v2219 = vpop.f32.mrb[0].mxu0
      %v2220 = vadd.f32 0.0, %v2219
      %v2221 = vpop.f32.mrb[0].mxu0
      %2222 = vmatprep.mubr.bf16.mxu0 0
      %2223 = vmatmul.mubr.bf16.gmra.mrb[0].mxu0 %v2080
      %v2224 = vpop.f32.mrb[0].mxu0
      %v2225 = vadd.f32 0.0, %v2224
      %v2226 = vpop.f32.mrb[0].mxu0
      %v2227 = vpop.f32.mrb[0].mxu0
      %v2228 = vadd.f32 0.0, %v2227
      %v2229 = vpop.f32.mrb[0].mxu0
      %2230 = vmatprep.mubr.bf16.mxu0 0
      %2231 = vmatmul.mubr.bf16.gmra.mrb[0].mxu0 %v2083
      %v2232 = vpop.f32.mrb[0].mxu0
      %v2233 = vadd.f32 0.0, %v2232
      %v2234 = vpop.f32.mrb[0].mxu0
      %v2235 = vpop.f32.mrb[0].mxu0
      %v2236 = vadd.f32 0.0, %v2235
      %v2237 = vpop.f32.mrb[0].mxu0
      %2238 = vmatprep.mubr.bf16.mxu0 0
      %2239 = vmatmul.mubr.bf16.gmra.mrb[0].mxu0 %v2086
      %v2240 = vpop.f32.mrb[0].mxu0
      %v2241 = vadd.f32 0.0, %v2240
      %v2242 = vpop.f32.mrb[0].mxu0
      %v2243 = vpop.f32.mrb[0].mxu0
      %v2244 = vadd.f32 0.0, %v2243
      %v2245 = vpop.f32.mrb[0].mxu0
      %2246 = vmatprep.mubr.bf16.mxu0 0
      %2247 = vmatmul.mubr.bf16.gmra.mrb[0].mxu0 %v2089
      %v2248 = vpop.f32.mrb[0].mxu0
      %v2249 = vadd.f32 0.0, %v2248
      %v2250 = vpop.f32.mrb[0].mxu0
      %v2251 = vpop.f32.mrb[0].mxu0
      %v2252 = vadd.f32 0.0, %v2251
      %v2253 = vpop.f32.mrb[0].mxu0
      %2254 = vdwg.mxu0
      %v2255 = vunpack.c.l.b16 %v1620
      %v2256 = vunpack.c.l.b16 %v1629
      %v2257 = vunpack.c.l.b16 %v1642
      %v2258 = vunpack.c.l.b16 %v1651
      %v2259 = vunpack.c.l.b16 %v1664
      %v2260 = vunpack.c.l.b16 %v1673
      %v2261 = vunpack.c.l.b16 %v1686
      %v2262 = vunpack.c.l.b16 %v1695
      %v2263 = vunpack.c.l.b16 %v1708
      %v2264 = vunpack.c.l.b16 %v1717
      %v2265 = vunpack.c.l.b16 %v1730
      %v2266 = vunpack.c.l.b16 %v1739
      %v2267 = vunpack.c.l.b16 %v1752
      %v2268 = vunpack.c.l.b16 %v1761
      %v2269 = vunpack.c.l.b16 %v1774
      %v2270 = vunpack.c.l.b16 %v1783
      %v2271 = vunpack.c.l.b16 %v1796
      %v2272 = vunpack.c.l.b16 %v1805
      %v2273 = vunpack.c.l.b16 %v1818
      %v2274 = vunpack.c.l.b16 %v1827
      %v2275 = vunpack.c.l.b16 %v1840
      %v2276 = vunpack.c.l.b16 %v1849
      %v2277 = vunpack.c.l.b16 %v1862
      %v2278 = vunpack.c.l.b16 %v1871
      %v2279 = vunpack.c.l.b16 %v1884
      %v2280 = vunpack.c.l.b16 %v1893
      %v2281 = vunpack.c.l.b16 %v1906
      %v2282 = vunpack.c.l.b16 %v1915
      %v2283 = vunpack.c.l.b16 %v1928
      %v2284 = vunpack.c.l.b16 %v1937
      %v2285 = vunpack.c.l.b16 %v1950
      %v2286 = vunpack.c.l.b16 %v1959
      %v2287 = vpack.c.b16 %v2256, %v2255
      %v2288 = vpack.c.b16 %v2258, %v2257
      %v2289 = vpack.c.b16 %v2260, %v2259
      %v2290 = vpack.c.b16 %v2262, %v2261
      %v2291 = vpack.c.b16 %v2264, %v2263
      %v2292 = vpack.c.b16 %v2266, %v2265
      %v2293 = vpack.c.b16 %v2268, %v2267
      %v2294 = vpack.c.b16 %v2270, %v2269
      %v2295 = vpack.c.b16 %v2272, %v2271
      %v2296 = vpack.c.b16 %v2274, %v2273
      %v2297 = vpack.c.b16 %v2276, %v2275
      %v2298 = vpack.c.b16 %v2278, %v2277
      %v2299 = vpack.c.b16 %v2280, %v2279
      %v2300 = vpack.c.b16 %v2282, %v2281
      %v2301 = vpack.c.b16 %v2284, %v2283
      %v2302 = vpack.c.b16 %v2286, %v2285
      %v2304 = vsel %vm586, %v2287, 0
      %v2307 = vsel %vm586, %v2288, 0
      %v2310 = vsel %vm586, %v2289, 0
      %v2313 = vsel %vm586, %v2290, 0
      %v2316 = vsel %vm586, %v2291, 0
      %v2319 = vsel %vm586, %v2292, 0
      %v2322 = vsel %vm586, %v2293, 0
      %v2325 = vsel %vm586, %v2294, 0
      %v2328 = vsel %vm586, %v2295, 0
      %v2331 = vsel %vm586, %v2296, 0
      %v2334 = vsel %vm586, %v2297, 0
      %v2337 = vsel %vm586, %v2298, 0
      %v2340 = vsel %vm586, %v2299, 0
      %v2343 = vsel %vm586, %v2300, 0
      %v2346 = vsel %vm586, %v2301, 0
      %v2349 = vsel %vm586, %v2302, 0
      %v2352 = vsel %vm635, %v1960, 0
      %2354 = vmatprep.subr.bf16.mxu0 0
      %2355 = vmatpush1.bf16.msra.mxu0 %v2352
      %2356 = vmatprep.subr.bf16.mxu0 0
      %2357 = vmatpush1.bf16.msra.mxu0 0
      %2358 = vmatprep.subr.bf16.mxu0 0
      %2359 = vmatpush1.bf16.msra.mxu0 0
      %2360 = vmatprep.subr.bf16.mxu0 0
      %2361 = vmatpush1.bf16.msra.mxu0 0
      %2362 = vmatprep.subr.bf16.mxu0 0
      %2363 = vmatpush1.bf16.msra.mxu0 0
      %2364 = vmatprep.subr.bf16.mxu0 0
      %2365 = vmatpush1.bf16.msra.mxu0 0
      %2366 = vmatprep.subr.bf16.mxu0 0
      %2367 = vmatpush1.bf16.msra.mxu0 0
      %2368 = vmatprep.subr.bf16.mxu0 0
      %2369 = vmatpush1.bf16.msra.mxu0 0
      %2370 = vmatprep.subr.bf16.mxu0 0
      %2371 = vmatpush1.bf16.msra.mxu0 0
      %2372 = vmatprep.subr.bf16.mxu0 0
      %2373 = vmatpush1.bf16.msra.mxu0 0
      %2374 = vmatprep.subr.bf16.mxu0 0
      %2375 = vmatpush1.bf16.msra.mxu0 0
      %2376 = vmatprep.subr.bf16.mxu0 0
      %2377 = vmatpush1.bf16.msra.mxu0 0
      %2378 = vmatprep.subr.bf16.mxu0 0
      %2379 = vmatpush1.bf16.msra.mxu0 0
      %2380 = vmatprep.subr.bf16.mxu0 0
      %2381 = vmatpush1.bf16.msra.mxu0 0
      %2382 = vmatprep.subr.bf16.mxu0 0
      %2383 = vmatpush1.bf16.msra.mxu0 0
      %2384 = vmatprep.subr.bf16.mxu0 0
      %2385 = vmatpush1.bf16.msra.mxu0 0
      %2386 = vmatprep.mubr.bf16.mxu0 0
      %2387 = vmatmul.mubr.bf16.gmra.mrb[0].mxu0 %v2304
      %v2388 = vpop.f32.mrb[0].mxu0
      %v2389 = vadd.f32 %v2129, %v2388
      %v2390 = vpop.f32.mrb[0].mxu0
      %v2391 = vpop.f32.mrb[0].mxu0
      %v2392 = vadd.f32 %v2132, %v2391
      %v2393 = vpop.f32.mrb[0].mxu0
      %2394 = vmatprep.mubr.bf16.mxu0 0
      %2395 = vmatmul.mubr.bf16.gmra.mrb[0].mxu0 %v2307
      %v2396 = vpop.f32.mrb[0].mxu0
      %v2397 = vadd.f32 %v2137, %v2396
      %v2398 = vpop.f32.mrb[0].mxu0
      %v2399 = vpop.f32.mrb[0].mxu0
      %v2400 = vadd.f32 %v2140, %v2399
      %v2401 = vpop.f32.mrb[0].mxu0
      %2402 = vmatprep.mubr.bf16.mxu0 0
      %2403 = vmatmul.mubr.bf16.gmra.mrb[0].mxu0 %v2310
      %v2404 = vpop.f32.mrb[0].mxu0
      %v2405 = vadd.f32 %v2145, %v2404
      %v2406 = vpop.f32.mrb[0].mxu0
      %v2407 = vpop.f32.mrb[0].mxu0
      %v2408 = vadd.f32 %v2148, %v2407
      %v2409 = vpop.f32.mrb[0].mxu0
      %2410 = vmatprep.mubr.bf16.mxu0 0
      %2411 = vmatmul.mubr.bf16.gmra.mrb[0].mxu0 %v2313
      %v2412 = vpop.f32.mrb[0].mxu0
      %v2413 = vadd.f32 %v2153, %v2412
      %v2414 = vpop.f32.mrb[0].mxu0
      %v2415 = vpop.f32.mrb[0].mxu0
      %v2416 = vadd.f32 %v2156, %v2415
      %v2417 = vpop.f32.mrb[0].mxu0
      %2418 = vmatprep.mubr.bf16.mxu0 0
      %2419 = vmatmul.mubr.bf16.gmra.mrb[0].mxu0 %v2316
      %v2420 = vpop.f32.mrb[0].mxu0
      %v2421 = vadd.f32 %v2161, %v2420
      %v2422 = vpop.f32.mrb[0].mxu0
      %v2423 = vpop.f32.mrb[0].mxu0
      %v2424 = vadd.f32 %v2164, %v2423
      %v2425 = vpop.f32.mrb[0].mxu0
      %2426 = vmatprep.mubr.bf16.mxu0 0
      %2427 = vmatmul.mubr.bf16.gmra.mrb[0].mxu0 %v2319
      %v2428 = vpop.f32.mrb[0].mxu0
      %v2429 = vadd.f32 %v2169, %v2428
      %v2430 = vpop.f32.mrb[0].mxu0
      %v2431 = vpop.f32.mrb[0].mxu0
      %v2432 = vadd.f32 %v2172, %v2431
      %v2433 = vpop.f32.mrb[0].mxu0
      %2434 = vmatprep.mubr.bf16.mxu0 0
      %2435 = vmatmul.mubr.bf16.gmra.mrb[0].mxu0 %v2322
      %v2436 = vpop.f32.mrb[0].mxu0
      %v2437 = vadd.f32 %v2177, %v2436
      %v2438 = vpop.f32.mrb[0].mxu0
      %v2439 = vpop.f32.mrb[0].mxu0
      %v2440 = vadd.f32 %v2180, %v2439
      %v2441 = vpop.f32.mrb[0].mxu0
      %2442 = vmatprep.mubr.bf16.mxu0 0
      %2443 = vmatmul.mubr.bf16.gmra.mrb[0].mxu0 %v2325
      %v2444 = vpop.f32.mrb[0].mxu0
      %v2445 = vadd.f32 %v2185, %v2444
      %v2446 = vpop.f32.mrb[0].mxu0
      %v2447 = vpop.f32.mrb[0].mxu0
      %v2448 = vadd.f32 %v2188, %v2447
      %v2449 = vpop.f32.mrb[0].mxu0
      %2450 = vmatprep.mubr.bf16.mxu0 0
      %2451 = vmatmul.mubr.bf16.gmra.mrb[0].mxu0 %v2328
      %v2452 = vpop.f32.mrb[0].mxu0
      %v2453 = vadd.f32 %v2193, %v2452
      %v2454 = vpop.f32.mrb[0].mxu0
      %v2455 = vpop.f32.mrb[0].mxu0
      %v2456 = vadd.f32 %v2196, %v2455
      %v2457 = vpop.f32.mrb[0].mxu0
      %2458 = vmatprep.mubr.bf16.mxu0 0
      %2459 = vmatmul.mubr.bf16.gmra.mrb[0].mxu0 %v2331
      %v2460 = vpop.f32.mrb[0].mxu0
      %v2461 = vadd.f32 %v2201, %v2460
      %v2462 = vpop.f32.mrb[0].mxu0
      %v2463 = vpop.f32.mrb[0].mxu0
      %v2464 = vadd.f32 %v2204, %v2463
      %v2465 = vpop.f32.mrb[0].mxu0
      %2466 = vmatprep.mubr.bf16.mxu0 0
      %2467 = vmatmul.mubr.bf16.gmra.mrb[0].mxu0 %v2334
      %v2468 = vpop.f32.mrb[0].mxu0
      %v2469 = vadd.f32 %v2209, %v2468
      %v2470 = vpop.f32.mrb[0].mxu0
      %v2471 = vpop.f32.mrb[0].mxu0
      %v2472 = vadd.f32 %v2212, %v2471
      %v2473 = vpop.f32.mrb[0].mxu0
      %2474 = vmatprep.mubr.bf16.mxu0 0
      %2475 = vmatmul.mubr.bf16.gmra.mrb[0].mxu0 %v2337
      %v2476 = vpop.f32.mrb[0].mxu0
      %v2477 = vadd.f32 %v2217, %v2476
      %v2478 = vpop.f32.mrb[0].mxu0
      %v2479 = vpop.f32.mrb[0].mxu0
      %v2480 = vadd.f32 %v2220, %v2479
      %v2481 = vpop.f32.mrb[0].mxu0
      %2482 = vmatprep.mubr.bf16.mxu0 0
      %2483 = vmatmul.mubr.bf16.gmra.mrb[0].mxu0 %v2340
      %v2484 = vpop.f32.mrb[0].mxu0
      %v2485 = vadd.f32 %v2225, %v2484
      %v2486 = vpop.f32.mrb[0].mxu0
      %v2487 = vpop.f32.mrb[0].mxu0
      %v2488 = vadd.f32 %v2228, %v2487
      %v2489 = vpop.f32.mrb[0].mxu0
      %2490 = vmatprep.mubr.bf16.mxu0 0
      %2491 = vmatmul.mubr.bf16.gmra.mrb[0].mxu0 %v2343
      %v2492 = vpop.f32.mrb[0].mxu0
      %v2493 = vadd.f32 %v2233, %v2492
      %v2494 = vpop.f32.mrb[0].mxu0
      %v2495 = vpop.f32.mrb[0].mxu0
      %v2496 = vadd.f32 %v2236, %v2495
      %v2497 = vpop.f32.mrb[0].mxu0
      %2498 = vmatprep.mubr.bf16.mxu0 0
      %2499 = vmatmul.mubr.bf16.gmra.mrb[0].mxu0 %v2346
      %v2500 = vpop.f32.mrb[0].mxu0
      %v2501 = vadd.f32 %v2241, %v2500
      %v2502 = vpop.f32.mrb[0].mxu0
      %v2503 = vpop.f32.mrb[0].mxu0
      %v2504 = vadd.f32 %v2244, %v2503
      %v2505 = vpop.f32.mrb[0].mxu0
      %2506 = vmatprep.mubr.bf16.mxu0 0
      %2507 = vmatmul.mubr.bf16.gmra.mrb[0].mxu0 %v2349
      %v2508 = vpop.f32.mrb[0].mxu0
      %v2509 = vadd.f32 %v2249, %v2508
      %v2510 = vpop.f32.mrb[0].mxu0
      %v2511 = vpop.f32.mrb[0].mxu0
      %v2512 = vadd.f32 %v2252, %v2511
      %v2513 = vpop.f32.mrb[0].mxu0
      %2514 = vdwg.mxu0
      %v2515 = vld [vmem:[#allocation2 + $0x4] sm:$0xf]
      %v2516 = vld [vmem:[#allocation2 + $0x8] sm:$0xf]
      %v2517 = vld [vmem:[#allocation2 + $0xc] sm:$0x1]
      %v2518 = vld [vmem:[#allocation2 + $0x14] sm:$0xf]
      %v2519 = vld [vmem:[#allocation2 + $0x18] sm:$0xf]
      %v2520 = vld [vmem:[#allocation2 + $0x1c] sm:$0x1]
      %v2521 = vld [vmem:[#allocation2 + $0x24] sm:$0xf]
      %v2522 = vld [vmem:[#allocation2 + $0x28] sm:$0xf]
      %v2523 = vld [vmem:[#allocation2 + $0x2c] sm:$0x1]
      %v2524 = vld [vmem:[#allocation2 + $0x34] sm:$0xf]
      %v2525 = vld [vmem:[#allocation2 + $0x38] sm:$0xf]
      %v2526 = vld [vmem:[#allocation2 + $0x3c] sm:$0x1]
      %v2527 = vld [vmem:[#allocation2 + $0x44] sm:$0xf]
      %v2528 = vld [vmem:[#allocation2 + $0x48] sm:$0xf]
      %v2529 = vld [vmem:[#allocation2 + $0x4c] sm:$0x1]
      %v2530 = vld [vmem:[#allocation2 + $0x54] sm:$0xf]
      %v2531 = vld [vmem:[#allocation2 + $0x58] sm:$0xf]
      %v2532 = vld [vmem:[#allocation2 + $0x5c] sm:$0x1]
      %v2533 = vld [vmem:[#allocation2 + $0x64] sm:$0xf]
      %v2534 = vld [vmem:[#allocation2 + $0x68] sm:$0xf]
      %v2535 = vld [vmem:[#allocation2 + $0x6c] sm:$0x1]
      %v2536 = vld [vmem:[#allocation2 + $0x74] sm:$0xf]
      %v2537 = vld [vmem:[#allocation2 + $0x78] sm:$0xf]
      %v2538 = vld [vmem:[#allocation2 + $0x7c] sm:$0x1]
      %v2539 = vld [vmem:[#allocation2 + $0x84] sm:$0xf]
      %v2540 = vld [vmem:[#allocation2 + $0x88] sm:$0xf]
      %v2541 = vld [vmem:[#allocation2 + $0x8c] sm:$0x1]
      %v2542 = vld [vmem:[#allocation2 + $0x94] sm:$0xf]
      %v2543 = vld [vmem:[#allocation2 + $0x98] sm:$0xf]
      %v2544 = vld [vmem:[#allocation2 + $0x9c] sm:$0x1]
      %v2545 = vld [vmem:[#allocation2 + $0xa4] sm:$0xf]
      %v2546 = vld [vmem:[#allocation2 + $0xa8] sm:$0xf]
      %v2547 = vld [vmem:[#allocation2 + $0xac] sm:$0x1]
      %v2548 = vld [vmem:[#allocation2 + $0xb4] sm:$0xf]
      %v2549 = vld [vmem:[#allocation2 + $0xb8] sm:$0xf]
      %v2550 = vld [vmem:[#allocation2 + $0xbc] sm:$0x1]
      %v2551 = vld [vmem:[#allocation2 + $0xc4] sm:$0xf]
      %v2552 = vld [vmem:[#allocation2 + $0xc8] sm:$0xf]
      %v2553 = vld [vmem:[#allocation2 + $0xcc] sm:$0x1]
      %v2554 = vld [vmem:[#allocation2 + $0xd4] sm:$0xf]
      %v2555 = vld [vmem:[#allocation2 + $0xd8] sm:$0xf]
      %v2556 = vld [vmem:[#allocation2 + $0xdc] sm:$0x1]
      %v2557 = vld [vmem:[#allocation2 + $0xe4] sm:$0xf]
      %v2558 = vld [vmem:[#allocation2 + $0xe8] sm:$0xf]
      %v2559 = vld [vmem:[#allocation2 + $0xec] sm:$0x1]
      %v2560 = vld [vmem:[#allocation2 + $0xf4] sm:$0xf]
      %v2561 = vld [vmem:[#allocation2 + $0xf8] sm:$0xf]
      %v2562 = vld [vmem:[#allocation2 + $0xfc] sm:$0x1]
      %vm2563 = vsmask.f32 3328
      %vm2564 = vsmask.f32 7440
      %vm2565 = vmor %vm2563, %vm2564
      %v2567 = vshrl.u32 %v2515, 16
      %v2569 = vrot.slane %v2567, 4
      %v2570 = vshll.u32 %v2515, 16
      %v2572 = vrot.slane %v2570, 5
      %v2573 = vor.u32 %v2569, %v2572
      %v2574 = vrot.slane %v2573, 4
      %v2576 = vshll.u32 %v2516, 16
      %v2578 = vrot.slane %v2576, 5
      %v2579 = vsel %vm2565, %v2574, %v2578
      %v2580 = vshrl.u32 %v2516, 16
      %v2582 = vrot.slane %v2580, 4
      %v2583 = vor.u32 %v2582, %v2578
      %v2584 = vrot.slane %v2583, 4
      %v2586 = vshll.u32 %v2517, 16
      %v2588 = vrot.slane %v2586, 5
      %v2589 = vsel %vm2565, %v2584, %v2588
      %v2591 = vshrl.u32 %v2518, 16
      %v2593 = vrot.slane %v2591, 4
      %v2594 = vshll.u32 %v2518, 16
      %v2596 = vrot.slane %v2594, 5
      %v2597 = vor.u32 %v2593, %v2596
      %v2598 = vrot.slane %v2597, 4
      %v2600 = vshll.u32 %v2519, 16
      %v2602 = vrot.slane %v2600, 5
      %v2603 = vsel %vm2565, %v2598, %v2602
      %v2604 = vshrl.u32 %v2519, 16
      %v2606 = vrot.slane %v2604, 4
      %v2607 = vor.u32 %v2606, %v2602
      %v2608 = vrot.slane %v2607, 4
      %v2610 = vshll.u32 %v2520, 16
      %v2612 = vrot.slane %v2610, 5
      %v2613 = vsel %vm2565, %v2608, %v2612
      %v2615 = vshrl.u32 %v2521, 16
      %v2617 = vrot.slane %v2615, 4
      %v2618 = vshll.u32 %v2521, 16
      %v2620 = vrot.slane %v2618, 5
      %v2621 = vor.u32 %v2617, %v2620
      %v2622 = vrot.slane %v2621, 4
      %v2624 = vshll.u32 %v2522, 16
      %v2626 = vrot.slane %v2624, 5
      %v2627 = vsel %vm2565, %v2622, %v2626
      %v2628 = vshrl.u32 %v2522, 16
      %v2630 = vrot.slane %v2628, 4
      %v2631 = vor.u32 %v2630, %v2626
      %v2632 = vrot.slane %v2631, 4
      %v2634 = vshll.u32 %v2523, 16
      %v2636 = vrot.slane %v2634, 5
      %v2637 = vsel %vm2565, %v2632, %v2636
      %v2639 = vshrl.u32 %v2524, 16
      %v2641 = vrot.slane %v2639, 4
      %v2642 = vshll.u32 %v2524, 16
      %v2644 = vrot.slane %v2642, 5
      %v2645 = vor.u32 %v2641, %v2644
      %v2646 = vrot.slane %v2645, 4
      %v2648 = vshll.u32 %v2525, 16
      %v2650 = vrot.slane %v2648, 5
      %v2651 = vsel %vm2565, %v2646, %v2650
      %v2652 = vshrl.u32 %v2525, 16
      %v2654 = vrot.slane %v2652, 4
      %v2655 = vor.u32 %v2654, %v2650
      %v2656 = vrot.slane %v2655, 4
      %v2658 = vshll.u32 %v2526, 16
      %v2660 = vrot.slane %v2658, 5
      %v2661 = vsel %vm2565, %v2656, %v2660
      %v2663 = vshrl.u32 %v2527, 16
      %v2665 = vrot.slane %v2663, 4
      %v2666 = vshll.u32 %v2527, 16
      %v2668 = vrot.slane %v2666, 5
      %v2669 = vor.u32 %v2665, %v2668
      %v2670 = vrot.slane %v2669, 4
      %v2672 = vshll.u32 %v2528, 16
      %v2674 = vrot.slane %v2672, 5
      %v2675 = vsel %vm2565, %v2670, %v2674
      %v2676 = vshrl.u32 %v2528, 16
      %v2678 = vrot.slane %v2676, 4
      %v2679 = vor.u32 %v2678, %v2674
      %v2680 = vrot.slane %v2679, 4
      %v2682 = vshll.u32 %v2529, 16
      %v2684 = vrot.slane %v2682, 5
      %v2685 = vsel %vm2565, %v2680, %v2684
      %v2687 = vshrl.u32 %v2530, 16
      %v2689 = vrot.slane %v2687, 4
      %v2690 = vshll.u32 %v2530, 16
      %v2692 = vrot.slane %v2690, 5
      %v2693 = vor.u32 %v2689, %v2692
      %v2694 = vrot.slane %v2693, 4
      %v2696 = vshll.u32 %v2531, 16
      %v2698 = vrot.slane %v2696, 5
      %v2699 = vsel %vm2565, %v2694, %v2698
      %v2700 = vshrl.u32 %v2531, 16
      %v2702 = vrot.slane %v2700, 4
      %v2703 = vor.u32 %v2702, %v2698
      %v2704 = vrot.slane %v2703, 4
      %v2706 = vshll.u32 %v2532, 16
      %v2708 = vrot.slane %v2706, 5
      %v2709 = vsel %vm2565, %v2704, %v2708
      %v2711 = vshrl.u32 %v2533, 16
      %v2713 = vrot.slane %v2711, 4
      %v2714 = vshll.u32 %v2533, 16
      %v2716 = vrot.slane %v2714, 5
      %v2717 = vor.u32 %v2713, %v2716
      %v2718 = vrot.slane %v2717, 4
      %v2720 = vshll.u32 %v2534, 16
      %v2722 = vrot.slane %v2720, 5
      %v2723 = vsel %vm2565, %v2718, %v2722
      %v2724 = vshrl.u32 %v2534, 16
      %v2726 = vrot.slane %v2724, 4
      %v2727 = vor.u32 %v2726, %v2722
      %v2728 = vrot.slane %v2727, 4
      %v2730 = vshll.u32 %v2535, 16
      %v2732 = vrot.slane %v2730, 5
      %v2733 = vsel %vm2565, %v2728, %v2732
      %v2735 = vshrl.u32 %v2536, 16
      %v2737 = vrot.slane %v2735, 4
      %v2738 = vshll.u32 %v2536, 16
      %v2740 = vrot.slane %v2738, 5
      %v2741 = vor.u32 %v2737, %v2740
      %v2742 = vrot.slane %v2741, 4
      %v2744 = vshll.u32 %v2537, 16
      %v2746 = vrot.slane %v2744, 5
      %v2747 = vsel %vm2565, %v2742, %v2746
      %v2748 = vshrl.u32 %v2537, 16
      %v2750 = vrot.slane %v2748, 4
      %v2751 = vor.u32 %v2750, %v2746
      %v2752 = vrot.slane %v2751, 4
      %v2754 = vshll.u32 %v2538, 16
      %v2756 = vrot.slane %v2754, 5
      %v2757 = vsel %vm2565, %v2752, %v2756
      %v2759 = vshrl.u32 %v2539, 16
      %v2761 = vrot.slane %v2759, 4
      %v2762 = vshll.u32 %v2539, 16
      %v2764 = vrot.slane %v2762, 5
      %v2765 = vor.u32 %v2761, %v2764
      %v2766 = vrot.slane %v2765, 4
      %v2768 = vshll.u32 %v2540, 16
      %v2770 = vrot.slane %v2768, 5
      %v2771 = vsel %vm2565, %v2766, %v2770
      %v2772 = vshrl.u32 %v2540, 16
      %v2774 = vrot.slane %v2772, 4
      %v2775 = vor.u32 %v2774, %v2770
      %v2776 = vrot.slane %v2775, 4
      %v2778 = vshll.u32 %v2541, 16
      %v2780 = vrot.slane %v2778, 5
      %v2781 = vsel %vm2565, %v2776, %v2780
      %v2783 = vshrl.u32 %v2542, 16
      %v2785 = vrot.slane %v2783, 4
      %v2786 = vshll.u32 %v2542, 16
      %v2788 = vrot.slane %v2786, 5
      %v2789 = vor.u32 %v2785, %v2788
      %v2790 = vrot.slane %v2789, 4
      %v2792 = vshll.u32 %v2543, 16
      %v2794 = vrot.slane %v2792, 5
      %v2795 = vsel %vm2565, %v2790, %v2794
      %v2796 = vshrl.u32 %v2543, 16
      %v2798 = vrot.slane %v2796, 4
      %v2799 = vor.u32 %v2798, %v2794
      %v2800 = vrot.slane %v2799, 4
      %v2802 = vshll.u32 %v2544, 16
      %v2804 = vrot.slane %v2802, 5
      %v2805 = vsel %vm2565, %v2800, %v2804
      %v2807 = vshrl.u32 %v2545, 16
      %v2809 = vrot.slane %v2807, 4
      %v2810 = vshll.u32 %v2545, 16
      %v2812 = vrot.slane %v2810, 5
      %v2813 = vor.u32 %v2809, %v2812
      %v2814 = vrot.slane %v2813, 4
      %v2816 = vshll.u32 %v2546, 16
      %v2818 = vrot.slane %v2816, 5
      %v2819 = vsel %vm2565, %v2814, %v2818
      %v2820 = vshrl.u32 %v2546, 16
      %v2822 = vrot.slane %v2820, 4
      %v2823 = vor.u32 %v2822, %v2818
      %v2824 = vrot.slane %v2823, 4
      %v2826 = vshll.u32 %v2547, 16
      %v2828 = vrot.slane %v2826, 5
      %v2829 = vsel %vm2565, %v2824, %v2828
      %v2831 = vshrl.u32 %v2548, 16
      %v2833 = vrot.slane %v2831, 4
      %v2834 = vshll.u32 %v2548, 16
      %v2836 = vrot.slane %v2834, 5
      %v2837 = vor.u32 %v2833, %v2836
      %v2838 = vrot.slane %v2837, 4
      %v2840 = vshll.u32 %v2549, 16
      %v2842 = vrot.slane %v2840, 5
      %v2843 = vsel %vm2565, %v2838, %v2842
      %v2844 = vshrl.u32 %v2549, 16
      %v2846 = vrot.slane %v2844, 4
      %v2847 = vor.u32 %v2846, %v2842
      %v2848 = vrot.slane %v2847, 4
      %v2850 = vshll.u32 %v2550, 16
      %v2852 = vrot.slane %v2850, 5
      %v2853 = vsel %vm2565, %v2848, %v2852
      %v2855 = vshrl.u32 %v2551, 16
      %v2857 = vrot.slane %v2855, 4
      %v2858 = vshll.u32 %v2551, 16
      %v2860 = vrot.slane %v2858, 5
      %v2861 = vor.u32 %v2857, %v2860
      %v2862 = vrot.slane %v2861, 4
      %v2864 = vshll.u32 %v2552, 16
      %v2866 = vrot.slane %v2864, 5
      %v2867 = vsel %vm2565, %v2862, %v2866
      %v2868 = vshrl.u32 %v2552, 16
      %v2870 = vrot.slane %v2868, 4
      %v2871 = vor.u32 %v2870, %v2866
      %v2872 = vrot.slane %v2871, 4
      %v2874 = vshll.u32 %v2553, 16
      %v2876 = vrot.slane %v2874, 5
      %v2877 = vsel %vm2565, %v2872, %v2876
      %v2879 = vshrl.u32 %v2554, 16
      %v2881 = vrot.slane %v2879, 4
      %v2882 = vshll.u32 %v2554, 16
      %v2884 = vrot.slane %v2882, 5
      %v2885 = vor.u32 %v2881, %v2884
      %v2886 = vrot.slane %v2885, 4
      %v2888 = vshll.u32 %v2555, 16
      %v2890 = vrot.slane %v2888, 5
      %v2891 = vsel %vm2565, %v2886, %v2890
      %v2892 = vshrl.u32 %v2555, 16
      %v2894 = vrot.slane %v2892, 4
      %v2895 = vor.u32 %v2894, %v2890
      %v2896 = vrot.slane %v2895, 4
      %v2898 = vshll.u32 %v2556, 16
      %v2900 = vrot.slane %v2898, 5
      %v2901 = vsel %vm2565, %v2896, %v2900
      %v2903 = vshrl.u32 %v2557, 16
      %v2905 = vrot.slane %v2903, 4
      %v2906 = vshll.u32 %v2557, 16
      %v2908 = vrot.slane %v2906, 5
      %v2909 = vor.u32 %v2905, %v2908
      %v2910 = vrot.slane %v2909, 4
      %v2912 = vshll.u32 %v2558, 16
      %v2914 = vrot.slane %v2912, 5
      %v2915 = vsel %vm2565, %v2910, %v2914
      %v2916 = vshrl.u32 %v2558, 16
      %v2918 = vrot.slane %v2916, 4
      %v2919 = vor.u32 %v2918, %v2914
      %v2920 = vrot.slane %v2919, 4
      %v2922 = vshll.u32 %v2559, 16
      %v2924 = vrot.slane %v2922, 5
      %v2925 = vsel %vm2565, %v2920, %v2924
      %v2927 = vshrl.u32 %v2560, 16
      %v2929 = vrot.slane %v2927, 4
      %v2930 = vshll.u32 %v2560, 16
      %v2932 = vrot.slane %v2930, 5
      %v2933 = vor.u32 %v2929, %v2932
      %v2934 = vrot.slane %v2933, 4
      %v2936 = vshll.u32 %v2561, 16
      %v2938 = vrot.slane %v2936, 5
      %v2939 = vsel %vm2565, %v2934, %v2938
      %v2940 = vshrl.u32 %v2561, 16
      %v2942 = vrot.slane %v2940, 4
      %v2943 = vor.u32 %v2942, %v2938
      %v2944 = vrot.slane %v2943, 4
      %v2946 = vshll.u32 %v2562, 16
      %v2948 = vrot.slane %v2946, 5
      %v2949 = vsel %vm2565, %v2944, %v2948
      %s2950 = scalar_lea.vmem %s7, 4
      %v2951 = vld [vmem:[%s2950] sm:$0x3]
      %v2952 = vunpack.c.l.b16 %v2579
      %v2953 = vunpack.c.l.b16 %v2589
      %v2954 = vunpack.c.l.b16 %v2603
      %v2955 = vunpack.c.l.b16 %v2613
      %v2956 = vunpack.c.l.b16 %v2627
      %v2957 = vunpack.c.l.b16 %v2637
      %v2958 = vunpack.c.l.b16 %v2651
      %v2959 = vunpack.c.l.b16 %v2661
      %v2960 = vunpack.c.l.b16 %v2675
      %v2961 = vunpack.c.l.b16 %v2685
      %v2962 = vunpack.c.l.b16 %v2699
      %v2963 = vunpack.c.l.b16 %v2709
      %v2964 = vunpack.c.l.b16 %v2723
      %v2965 = vunpack.c.l.b16 %v2733
      %v2966 = vunpack.c.l.b16 %v2747
      %v2967 = vunpack.c.l.b16 %v2757
      %v2968 = vunpack.c.l.b16 %v2771
      %v2969 = vunpack.c.l.b16 %v2781
      %v2970 = vunpack.c.l.b16 %v2795
      %v2971 = vunpack.c.l.b16 %v2805
      %v2972 = vunpack.c.l.b16 %v2819
      %v2973 = vunpack.c.l.b16 %v2829
      %v2974 = vunpack.c.l.b16 %v2843
      %v2975 = vunpack.c.l.b16 %v2853
      %v2976 = vunpack.c.l.b16 %v2867
      %v2977 = vunpack.c.l.b16 %v2877
      %v2978 = vunpack.c.l.b16 %v2891
      %v2979 = vunpack.c.l.b16 %v2901
      %v2980 = vunpack.c.l.b16 %v2915
      %v2981 = vunpack.c.l.b16 %v2925
      %v2982 = vunpack.c.l.b16 %v2939
      %v2983 = vunpack.c.l.b16 %v2949
      %v2984 = vpack.c.b16 %v2953, %v2952
      %v2985 = vpack.c.b16 %v2955, %v2954
      %v2986 = vpack.c.b16 %v2957, %v2956
      %v2987 = vpack.c.b16 %v2959, %v2958
      %v2988 = vpack.c.b16 %v2961, %v2960
      %v2989 = vpack.c.b16 %v2963, %v2962
      %v2990 = vpack.c.b16 %v2965, %v2964
      %v2991 = vpack.c.b16 %v2967, %v2966
      %v2992 = vpack.c.b16 %v2969, %v2968
      %v2993 = vpack.c.b16 %v2971, %v2970
      %v2994 = vpack.c.b16 %v2973, %v2972
      %v2995 = vpack.c.b16 %v2975, %v2974
      %v2996 = vpack.c.b16 %v2977, %v2976
      %v2997 = vpack.c.b16 %v2979, %v2978
      %v2998 = vpack.c.b16 %v2981, %v2980
      %v2999 = vpack.c.b16 %v2983, %v2982
      %v3001 = vsel %vm586, %v2984, 0
      %v3004 = vsel %vm586, %v2985, 0
      %v3007 = vsel %vm586, %v2986, 0
      %v3010 = vsel %vm586, %v2987, 0
      %v3013 = vsel %vm586, %v2988, 0
      %v3016 = vsel %vm586, %v2989, 0
      %v3019 = vsel %vm586, %v2990, 0
      %v3022 = vsel %vm586, %v2991, 0
      %v3025 = vsel %vm586, %v2992, 0
      %v3028 = vsel %vm586, %v2993, 0
      %v3031 = vsel %vm586, %v2994, 0
      %v3034 = vsel %vm586, %v2995, 0
      %v3037 = vsel %vm586, %v2996, 0
      %v3040 = vsel %vm586, %v2997, 0
      %v3043 = vsel %vm586, %v2998, 0
      %v3046 = vsel %vm586, %v2999, 0
      %v3049 = vsel %vm635, %v2951, 0
      %3051 = vmatprep.subr.bf16.mxu0 0
      %3052 = vmatpush1.bf16.msra.mxu0 %v3049
      %3053 = vmatprep.subr.bf16.mxu0 0
      %3054 = vmatpush1.bf16.msra.mxu0 0
      %3055 = vmatprep.subr.bf16.mxu0 0
      %3056 = vmatpush1.bf16.msra.mxu0 0
      %3057 = vmatprep.subr.bf16.mxu0 0
      %3058 = vmatpush1.bf16.msra.mxu0 0
      %3059 = vmatprep.subr.bf16.mxu0 0
      %3060 = vmatpush1.bf16.msra.mxu0 0
      %3061 = vmatprep.subr.bf16.mxu0 0
      %3062 = vmatpush1.bf16.msra.mxu0 0
      %3063 = vmatprep.subr.bf16.mxu0 0
      %3064 = vmatpush1.bf16.msra.mxu0 0
      %3065 = vmatprep.subr.bf16.mxu0 0
      %3066 = vmatpush1.bf16.msra.mxu0 0
      %3067 = vmatprep.subr.bf16.mxu0 0
      %3068 = vmatpush1.bf16.msra.mxu0 0
      %3069 = vmatprep.subr.bf16.mxu0 0
      %3070 = vmatpush1.bf16.msra.mxu0 0
      %3071 = vmatprep.subr.bf16.mxu0 0
      %3072 = vmatpush1.bf16.msra.mxu0 0
      %3073 = vmatprep.subr.bf16.mxu0 0
      %3074 = vmatpush1.bf16.msra.mxu0 0
      %3075 = vmatprep.subr.bf16.mxu0 0
      %3076 = vmatpush1.bf16.msra.mxu0 0
      %3077 = vmatprep.subr.bf16.mxu0 0
      %3078 = vmatpush1.bf16.msra.mxu0 0
      %3079 = vmatprep.subr.bf16.mxu0 0
      %3080 = vmatpush1.bf16.msra.mxu0 0
      %3081 = vmatprep.subr.bf16.mxu0 0
      %3082 = vmatpush1.bf16.msra.mxu0 0
      %3083 = vmatprep.mubr.bf16.mxu0 0
      %3084 = vmatmul.mubr.bf16.gmra.mrb[0].mxu0 %v3001
      %v3085 = vpop.f32.mrb[0].mxu0
      %v3086 = vadd.f32 0.0, %v3085
      %v3087 = vpop.f32.mrb[0].mxu0
      %v3088 = vpop.f32.mrb[0].mxu0
      %v3089 = vadd.f32 0.0, %v3088
      %v3090 = vpop.f32.mrb[0].mxu0
      %3091 = vmatprep.mubr.bf16.mxu0 0
      %3092 = vmatmul.mubr.bf16.gmra.mrb[0].mxu0 %v3004
      %v3093 = vpop.f32.mrb[0].mxu0
      %v3094 = vadd.f32 0.0, %v3093
      %v3095 = vpop.f32.mrb[0].mxu0
      %v3096 = vpop.f32.mrb[0].mxu0
      %v3097 = vadd.f32 0.0, %v3096
      %v3098 = vpop.f32.mrb[0].mxu0
      %3099 = vmatprep.mubr.bf16.mxu0 0
      %3100 = vmatmul.mubr.bf16.gmra.mrb[0].mxu0 %v3007
      %v3101 = vpop.f32.mrb[0].mxu0
      %v3102 = vadd.f32 0.0, %v3101
      %v3103 = vpop.f32.mrb[0].mxu0
      %v3104 = vpop.f32.mrb[0].mxu0
      %v3105 = vadd.f32 0.0, %v3104
      %v3106 = vpop.f32.mrb[0].mxu0
      %3107 = vmatprep.mubr.bf16.mxu0 0
      %3108 = vmatmul.mubr.bf16.gmra.mrb[0].mxu0 %v3010
      %v3109 = vpop.f32.mrb[0].mxu0
      %v3110 = vadd.f32 0.0, %v3109
      %v3111 = vpop.f32.mrb[0].mxu0
      %v3112 = vpop.f32.mrb[0].mxu0
      %v3113 = vadd.f32 0.0, %v3112
      %v3114 = vpop.f32.mrb[0].mxu0
      %3115 = vmatprep.mubr.bf16.mxu0 0
      %3116 = vmatmul.mubr.bf16.gmra.mrb[0].mxu0 %v3013
      %v3117 = vpop.f32.mrb[0].mxu0
      %v3118 = vadd.f32 0.0, %v3117
      %v3119 = vpop.f32.mrb[0].mxu0
      %v3120 = vpop.f32.mrb[0].mxu0
      %v3121 = vadd.f32 0.0, %v3120
      %v3122 = vpop.f32.mrb[0].mxu0
      %3123 = vmatprep.mubr.bf16.mxu0 0
      %3124 = vmatmul.mubr.bf16.gmra.mrb[0].mxu0 %v3016
      %v3125 = vpop.f32.mrb[0].mxu0
      %v3126 = vadd.f32 0.0, %v3125
      %v3127 = vpop.f32.mrb[0].mxu0
      %v3128 = vpop.f32.mrb[0].mxu0
      %v3129 = vadd.f32 0.0, %v3128
      %v3130 = vpop.f32.mrb[0].mxu0
      %3131 = vmatprep.mubr.bf16.mxu0 0
      %3132 = vmatmul.mubr.bf16.gmra.mrb[0].mxu0 %v3019
      %v3133 = vpop.f32.mrb[0].mxu0
      %v3134 = vadd.f32 0.0, %v3133
      %v3135 = vpop.f32.mrb[0].mxu0
      %v3136 = vpop.f32.mrb[0].mxu0
      %v3137 = vadd.f32 0.0, %v3136
      %v3138 = vpop.f32.mrb[0].mxu0
      %3139 = vmatprep.mubr.bf16.mxu0 0
      %3140 = vmatmul.mubr.bf16.gmra.mrb[0].mxu0 %v3022
      %v3141 = vpop.f32.mrb[0].mxu0
      %v3142 = vadd.f32 0.0, %v3141
      %v3143 = vpop.f32.mrb[0].mxu0
      %v3144 = vpop.f32.mrb[0].mxu0
      %v3145 = vadd.f32 0.0, %v3144
      %v3146 = vpop.f32.mrb[0].mxu0
      %3147 = vmatprep.mubr.bf16.mxu0 0
      %3148 = vmatmul.mubr.bf16.gmra.mrb[0].mxu0 %v3025
      %v3149 = vpop.f32.mrb[0].mxu0
      %v3150 = vadd.f32 0.0, %v3149
      %v3151 = vpop.f32.mrb[0].mxu0
      %v3152 = vpop.f32.mrb[0].mxu0
      %v3153 = vadd.f32 0.0, %v3152
      %v3154 = vpop.f32.mrb[0].mxu0
      %3155 = vmatprep.mubr.bf16.mxu0 0
      %3156 = vmatmul.mubr.bf16.gmra.mrb[0].mxu0 %v3028
      %v3157 = vpop.f32.mrb[0].mxu0
      %v3158 = vadd.f32 0.0, %v3157
      %v3159 = vpop.f32.mrb[0].mxu0
      %v3160 = vpop.f32.mrb[0].mxu0
      %v3161 = vadd.f32 0.0, %v3160
      %v3162 = vpop.f32.mrb[0].mxu0
      %3163 = vmatprep.mubr.bf16.mxu0 0
      %3164 = vmatmul.mubr.bf16.gmra.mrb[0].mxu0 %v3031
      %v3165 = vpop.f32.mrb[0].mxu0
      %v3166 = vadd.f32 0.0, %v3165
      %v3167 = vpop.f32.mrb[0].mxu0
      %v3168 = vpop.f32.mrb[0].mxu0
      %v3169 = vadd.f32 0.0, %v3168
      %v3170 = vpop.f32.mrb[0].mxu0
      %3171 = vmatprep.mubr.bf16.mxu0 0
      %3172 = vmatmul.mubr.bf16.gmra.mrb[0].mxu0 %v3034
      %v3173 = vpop.f32.mrb[0].mxu0
      %v3174 = vadd.f32 0.0, %v3173
      %v3175 = vpop.f32.mrb[0].mxu0
      %v3176 = vpop.f32.mrb[0].mxu0
      %v3177 = vadd.f32 0.0, %v3176
      %v3178 = vpop.f32.mrb[0].mxu0
      %3179 = vmatprep.mubr.bf16.mxu0 0
      %3180 = vmatmul.mubr.bf16.gmra.mrb[0].mxu0 %v3037
      %v3181 = vpop.f32.mrb[0].mxu0
      %v3182 = vadd.f32 0.0, %v3181
      %v3183 = vpop.f32.mrb[0].mxu0
      %v3184 = vpop.f32.mrb[0].mxu0
      %v3185 = vadd.f32 0.0, %v3184
      %v3186 = vpop.f32.mrb[0].mxu0
      %3187 = vmatprep.mubr.bf16.mxu0 0
      %3188 = vmatmul.mubr.bf16.gmra.mrb[0].mxu0 %v3040
      %v3189 = vpop.f32.mrb[0].mxu0
      %v3190 = vadd.f32 0.0, %v3189
      %v3191 = vpop.f32.mrb[0].mxu0
      %v3192 = vpop.f32.mrb[0].mxu0
      %v3193 = vadd.f32 0.0, %v3192
      %v3194 = vpop.f32.mrb[0].mxu0
      %3195 = vmatprep.mubr.bf16.mxu0 0
      %3196 = vmatmul.mubr.bf16.gmra.mrb[0].mxu0 %v3043
      %v3197 = vpop.f32.mrb[0].mxu0
      %v3198 = vadd.f32 0.0, %v3197
      %v3199 = vpop.f32.mrb[0].mxu0
      %v3200 = vpop.f32.mrb[0].mxu0
      %v3201 = vadd.f32 0.0, %v3200
      %v3202 = vpop.f32.mrb[0].mxu0
      %3203 = vmatprep.mubr.bf16.mxu0 0
      %3204 = vmatmul.mubr.bf16.gmra.mrb[0].mxu0 %v3046
      %v3205 = vpop.f32.mrb[0].mxu0
      %v3206 = vadd.f32 0.0, %v3205
      %v3207 = vpop.f32.mrb[0].mxu0
      %v3208 = vpop.f32.mrb[0].mxu0
      %v3209 = vadd.f32 0.0, %v3208
      %v3210 = vpop.f32.mrb[0].mxu0
      %3211 = vdwg.mxu0
      %v3212 = vadd.f32 %v2389, %v3086
      %v3213 = vadd.f32 %v2392, %v3089
      %v3214 = vadd.f32 %v2397, %v3094
      %v3215 = vadd.f32 %v2400, %v3097
      %v3216 = vadd.f32 %v2405, %v3102
      %v3217 = vadd.f32 %v2408, %v3105
      %v3218 = vadd.f32 %v2413, %v3110
      %v3219 = vadd.f32 %v2416, %v3113
      %v3220 = vadd.f32 %v2421, %v3118
      %v3221 = vadd.f32 %v2424, %v3121
      %v3222 = vadd.f32 %v2429, %v3126
      %v3223 = vadd.f32 %v2432, %v3129
      %v3224 = vadd.f32 %v2437, %v3134
      %v3225 = vadd.f32 %v2440, %v3137
      %v3226 = vadd.f32 %v2445, %v3142
      %v3227 = vadd.f32 %v2448, %v3145
      %v3228 = vadd.f32 %v2453, %v3150
      %v3229 = vadd.f32 %v2456, %v3153
      %v3230 = vadd.f32 %v2461, %v3158
      %v3231 = vadd.f32 %v2464, %v3161
      %v3232 = vadd.f32 %v2469, %v3166
      %v3233 = vadd.f32 %v2472, %v3169
      %v3234 = vadd.f32 %v2477, %v3174
      %v3235 = vadd.f32 %v2480, %v3177
      %v3236 = vadd.f32 %v2485, %v3182
      %v3237 = vadd.f32 %v2488, %v3185
      %v3238 = vadd.f32 %v2493, %v3190
      %v3239 = vadd.f32 %v2496, %v3193
      %v3240 = vadd.f32 %v2501, %v3198
      %v3241 = vadd.f32 %v2504, %v3201
      %v3242 = vadd.f32 %v2509, %v3206
      %v3243 = vadd.f32 %v2512, %v3209
      %v3244 = vld [vmem:[%s1502] sm:$0x8]
      %v3245 = vld [vmem:[%s1502 + $0x4] sm:$0xf]
      %v3246 = vld [vmem:[%s1502 + $0x8] sm:$0xf]
      %v3247 = vld [vmem:[%s1502 + $0x10] sm:$0x8]
      %v3248 = vld [vmem:[%s1502 + $0x14] sm:$0xf]
      %v3249 = vld [vmem:[%s1502 + $0x18] sm:$0xf]
      %v3250 = vld [vmem:[%s1502 + $0x20] sm:$0x8]
      %v3251 = vld [vmem:[%s1502 + $0x24] sm:$0xf]
      %v3252 = vld [vmem:[%s1502 + $0x28] sm:$0xf]
      %v3253 = vld [vmem:[%s1502 + $0x30] sm:$0x8]
      %v3254 = vld [vmem:[%s1502 + $0x34] sm:$0xf]
      %v3255 = vld [vmem:[%s1502 + $0x38] sm:$0xf]
      %v3256 = vld [vmem:[%s1502 + $0x40] sm:$0x8]
      %v3257 = vld [vmem:[%s1502 + $0x44] sm:$0xf]
      %v3258 = vld [vmem:[%s1502 + $0x48] sm:$0xf]
      %v3259 = vld [vmem:[%s1502 + $0x50] sm:$0x8]
      %v3260 = vld [vmem:[%s1502 + $0x54] sm:$0xf]
      %v3261 = vld [vmem:[%s1502 + $0x58] sm:$0xf]
      %v3262 = vld [vmem:[%s1502 + $0x60] sm:$0x8]
      %v3263 = vld [vmem:[%s1502 + $0x64] sm:$0xf]
      %v3264 = vld [vmem:[%s1502 + $0x68] sm:$0xf]
      %v3265 = vld [vmem:[%s1502 + $0x70] sm:$0x8]
      %v3266 = vld [vmem:[%s1502 + $0x74] sm:$0xf]
      %v3267 = vld [vmem:[%s1502 + $0x78] sm:$0xf]
      %v3268 = vld [vmem:[%s1502 + $0x80] sm:$0x8]
      %v3269 = vld [vmem:[%s1502 + $0x84] sm:$0xf]
      %v3270 = vld [vmem:[%s1502 + $0x88] sm:$0xf]
      %v3271 = vld [vmem:[%s1502 + $0x90] sm:$0x8]
      %v3272 = vld [vmem:[%s1502 + $0x94] sm:$0xf]
      %v3273 = vld [vmem:[%s1502 + $0x98] sm:$0xf]
      %v3274 = vld [vmem:[%s1502 + $0xa0] sm:$0x8]
      %v3275 = vld [vmem:[%s1502 + $0xa4] sm:$0xf]
      %v3276 = vld [vmem:[%s1502 + $0xa8] sm:$0xf]
      %v3277 = vld [vmem:[%s1502 + $0xb0] sm:$0x8]
      %v3278 = vld [vmem:[%s1502 + $0xb4] sm:$0xf]
      %v3279 = vld [vmem:[%s1502 + $0xb8] sm:$0xf]
      %v3280 = vld [vmem:[%s1502 + $0xc0] sm:$0x8]
      %v3281 = vld [vmem:[%s1502 + $0xc4] sm:$0xf]
      %v3282 = vld [vmem:[%s1502 + $0xc8] sm:$0xf]
      %v3283 = vld [vmem:[%s1502 + $0xd0] sm:$0x8]
      %v3284 = vld [vmem:[%s1502 + $0xd4] sm:$0xf]
      %v3285 = vld [vmem:[%s1502 + $0xd8] sm:$0xf]
      %v3286 = vld [vmem:[%s1502 + $0xe0] sm:$0x8]
      %v3287 = vld [vmem:[%s1502 + $0xe4] sm:$0xf]
      %v3288 = vld [vmem:[%s1502 + $0xe8] sm:$0xf]
      %v3289 = vld [vmem:[%s1502 + $0xf0] sm:$0x8]
      %v3290 = vld [vmem:[%s1502 + $0xf4] sm:$0xf]
      %v3291 = vld [vmem:[%s1502 + $0xf8] sm:$0xf]
      %v3293 = vshrl.u32 %v3244, 16
      %v3295 = vrot.slane %v3293, 7
      %v3296 = vrot.slane %v3295, 4
      %v3298 = vshrl.u32 %v3245, 16
      %v3300 = vrot.slane %v3298, 7
      %v3301 = vshll.u32 %v3245, 16
      %v3303 = vor.u32 %v3300, %v3301
      %v3304 = vsel %vm1607, %v3296, %v3303
      %v3305 = vrot.slane %v3300, 4
      %v3307 = vshrl.u32 %v3246, 16
      %v3309 = vrot.slane %v3307, 7
      %v3310 = vshll.u32 %v3246, 16
      %v3312 = vor.u32 %v3309, %v3310
      %v3313 = vsel %vm1607, %v3305, %v3312
      %v3315 = vshrl.u32 %v3247, 16
      %v3317 = vrot.slane %v3315, 7
      %v3318 = vrot.slane %v3317, 4
      %v3320 = vshrl.u32 %v3248, 16
      %v3322 = vrot.slane %v3320, 7
      %v3323 = vshll.u32 %v3248, 16
      %v3325 = vor.u32 %v3322, %v3323
      %v3326 = vsel %vm1607, %v3318, %v3325
      %v3327 = vrot.slane %v3322, 4
      %v3329 = vshrl.u32 %v3249, 16
      %v3331 = vrot.slane %v3329, 7
      %v3332 = vshll.u32 %v3249, 16
      %v3334 = vor.u32 %v3331, %v3332
      %v3335 = vsel %vm1607, %v3327, %v3334
      %v3337 = vshrl.u32 %v3250, 16
      %v3339 = vrot.slane %v3337, 7
      %v3340 = vrot.slane %v3339, 4
      %v3342 = vshrl.u32 %v3251, 16
      %v3344 = vrot.slane %v3342, 7
      %v3345 = vshll.u32 %v3251, 16
      %v3347 = vor.u32 %v3344, %v3345
      %v3348 = vsel %vm1607, %v3340, %v3347
      %v3349 = vrot.slane %v3344, 4
      %v3351 = vshrl.u32 %v3252, 16
      %v3353 = vrot.slane %v3351, 7
      %v3354 = vshll.u32 %v3252, 16
      %v3356 = vor.u32 %v3353, %v3354
      %v3357 = vsel %vm1607, %v3349, %v3356
      %v3359 = vshrl.u32 %v3253, 16
      %v3361 = vrot.slane %v3359, 7
      %v3362 = vrot.slane %v3361, 4
      %v3364 = vshrl.u32 %v3254, 16
      %v3366 = vrot.slane %v3364, 7
      %v3367 = vshll.u32 %v3254, 16
      %v3369 = vor.u32 %v3366, %v3367
      %v3370 = vsel %vm1607, %v3362, %v3369
      %v3371 = vrot.slane %v3366, 4
      %v3373 = vshrl.u32 %v3255, 16
      %v3375 = vrot.slane %v3373, 7
      %v3376 = vshll.u32 %v3255, 16
      %v3378 = vor.u32 %v3375, %v3376
      %v3379 = vsel %vm1607, %v3371, %v3378
      %v3381 = vshrl.u32 %v3256, 16
      %v3383 = vrot.slane %v3381, 7
      %v3384 = vrot.slane %v3383, 4
      %v3386 = vshrl.u32 %v3257, 16
      %v3388 = vrot.slane %v3386, 7
      %v3389 = vshll.u32 %v3257, 16
      %v3391 = vor.u32 %v3388, %v3389
      %v3392 = vsel %vm1607, %v3384, %v3391
      %v3393 = vrot.slane %v3388, 4
      %v3395 = vshrl.u32 %v3258, 16
      %v3397 = vrot.slane %v3395, 7
      %v3398 = vshll.u32 %v3258, 16
      %v3400 = vor.u32 %v3397, %v3398
      %v3401 = vsel %vm1607, %v3393, %v3400
      %v3403 = vshrl.u32 %v3259, 16
      %v3405 = vrot.slane %v3403, 7
      %v3406 = vrot.slane %v3405, 4
      %v3408 = vshrl.u32 %v3260, 16
      %v3410 = vrot.slane %v3408, 7
      %v3411 = vshll.u32 %v3260, 16
      %v3413 = vor.u32 %v3410, %v3411
      %v3414 = vsel %vm1607, %v3406, %v3413
      %v3415 = vrot.slane %v3410, 4
      %v3417 = vshrl.u32 %v3261, 16
      %v3419 = vrot.slane %v3417, 7
      %v3420 = vshll.u32 %v3261, 16
      %v3422 = vor.u32 %v3419, %v3420
      %v3423 = vsel %vm1607, %v3415, %v3422
      %v3425 = vshrl.u32 %v3262, 16
      %v3427 = vrot.slane %v3425, 7
      %v3428 = vrot.slane %v3427, 4
      %v3430 = vshrl.u32 %v3263, 16
      %v3432 = vrot.slane %v3430, 7
      %v3433 = vshll.u32 %v3263, 16
      %v3435 = vor.u32 %v3432, %v3433
      %v3436 = vsel %vm1607, %v3428, %v3435
      %v3437 = vrot.slane %v3432, 4
      %v3439 = vshrl.u32 %v3264, 16
      %v3441 = vrot.slane %v3439, 7
      %v3442 = vshll.u32 %v3264, 16
      %v3444 = vor.u32 %v3441, %v3442
      %v3445 = vsel %vm1607, %v3437, %v3444
      %v3447 = vshrl.u32 %v3265, 16
      %v3449 = vrot.slane %v3447, 7
      %v3450 = vrot.slane %v3449, 4
      %v3452 = vshrl.u32 %v3266, 16
      %v3454 = vrot.slane %v3452, 7
      %v3455 = vshll.u32 %v3266, 16
      %v3457 = vor.u32 %v3454, %v3455
      %v3458 = vsel %vm1607, %v3450, %v3457
      %v3459 = vrot.slane %v3454, 4
      %v3461 = vshrl.u32 %v3267, 16
      %v3463 = vrot.slane %v3461, 7
      %v3464 = vshll.u32 %v3267, 16
      %v3466 = vor.u32 %v3463, %v3464
      %v3467 = vsel %vm1607, %v3459, %v3466
      %v3469 = vshrl.u32 %v3268, 16
      %v3471 = vrot.slane %v3469, 7
      %v3472 = vrot.slane %v3471, 4
      %v3474 = vshrl.u32 %v3269, 16
      %v3476 = vrot.slane %v3474, 7
      %v3477 = vshll.u32 %v3269, 16
      %v3479 = vor.u32 %v3476, %v3477
      %v3480 = vsel %vm1607, %v3472, %v3479
      %v3481 = vrot.slane %v3476, 4
      %v3483 = vshrl.u32 %v3270, 16
      %v3485 = vrot.slane %v3483, 7
      %v3486 = vshll.u32 %v3270, 16
      %v3488 = vor.u32 %v3485, %v3486
      %v3489 = vsel %vm1607, %v3481, %v3488
      %v3491 = vshrl.u32 %v3271, 16
      %v3493 = vrot.slane %v3491, 7
      %v3494 = vrot.slane %v3493, 4
      %v3496 = vshrl.u32 %v3272, 16
      %v3498 = vrot.slane %v3496, 7
      %v3499 = vshll.u32 %v3272, 16
      %v3501 = vor.u32 %v3498, %v3499
      %v3502 = vsel %vm1607, %v3494, %v3501
      %v3503 = vrot.slane %v3498, 4
      %v3505 = vshrl.u32 %v3273, 16
      %v3507 = vrot.slane %v3505, 7
      %v3508 = vshll.u32 %v3273, 16
      %v3510 = vor.u32 %v3507, %v3508
      %v3511 = vsel %vm1607, %v3503, %v3510
      %v3513 = vshrl.u32 %v3274, 16
      %v3515 = vrot.slane %v3513, 7
      %v3516 = vrot.slane %v3515, 4
      %v3518 = vshrl.u32 %v3275, 16
      %v3520 = vrot.slane %v3518, 7
      %v3521 = vshll.u32 %v3275, 16
      %v3523 = vor.u32 %v3520, %v3521
      %v3524 = vsel %vm1607, %v3516, %v3523
      %v3525 = vrot.slane %v3520, 4
      %v3527 = vshrl.u32 %v3276, 16
      %v3529 = vrot.slane %v3527, 7
      %v3530 = vshll.u32 %v3276, 16
      %v3532 = vor.u32 %v3529, %v3530
      %v3533 = vsel %vm1607, %v3525, %v3532
      %v3535 = vshrl.u32 %v3277, 16
      %v3537 = vrot.slane %v3535, 7
      %v3538 = vrot.slane %v3537, 4
      %v3540 = vshrl.u32 %v3278, 16
      %v3542 = vrot.slane %v3540, 7
      %v3543 = vshll.u32 %v3278, 16
      %v3545 = vor.u32 %v3542, %v3543
      %v3546 = vsel %vm1607, %v3538, %v3545
      %v3547 = vrot.slane %v3542, 4
      %v3549 = vshrl.u32 %v3279, 16
      %v3551 = vrot.slane %v3549, 7
      %v3552 = vshll.u32 %v3279, 16
      %v3554 = vor.u32 %v3551, %v3552
      %v3555 = vsel %vm1607, %v3547, %v3554
      %v3557 = vshrl.u32 %v3280, 16
      %v3559 = vrot.slane %v3557, 7
      %v3560 = vrot.slane %v3559, 4
      %v3562 = vshrl.u32 %v3281, 16
      %v3564 = vrot.slane %v3562, 7
      %v3565 = vshll.u32 %v3281, 16
      %v3567 = vor.u32 %v3564, %v3565
      %v3568 = vsel %vm1607, %v3560, %v3567
      %v3569 = vrot.slane %v3564, 4
      %v3571 = vshrl.u32 %v3282, 16
      %v3573 = vrot.slane %v3571, 7
      %v3574 = vshll.u32 %v3282, 16
      %v3576 = vor.u32 %v3573, %v3574
      %v3577 = vsel %vm1607, %v3569, %v3576
      %v3579 = vshrl.u32 %v3283, 16
      %v3581 = vrot.slane %v3579, 7
      %v3582 = vrot.slane %v3581, 4
      %v3584 = vshrl.u32 %v3284, 16
      %v3586 = vrot.slane %v3584, 7
      %v3587 = vshll.u32 %v3284, 16
      %v3589 = vor.u32 %v3586, %v3587
      %v3590 = vsel %vm1607, %v3582, %v3589
      %v3591 = vrot.slane %v3586, 4
      %v3593 = vshrl.u32 %v3285, 16
      %v3595 = vrot.slane %v3593, 7
      %v3596 = vshll.u32 %v3285, 16
      %v3598 = vor.u32 %v3595, %v3596
      %v3599 = vsel %vm1607, %v3591, %v3598
      %v3601 = vshrl.u32 %v3286, 16
      %v3603 = vrot.slane %v3601, 7
      %v3604 = vrot.slane %v3603, 4
      %v3606 = vshrl.u32 %v3287, 16
      %v3608 = vrot.slane %v3606, 7
      %v3609 = vshll.u32 %v3287, 16
      %v3611 = vor.u32 %v3608, %v3609
      %v3612 = vsel %vm1607, %v3604, %v3611
      %v3613 = vrot.slane %v3608, 4
      %v3615 = vshrl.u32 %v3288, 16
      %v3617 = vrot.slane %v3615, 7
      %v3618 = vshll.u32 %v3288, 16
      %v3620 = vor.u32 %v3617, %v3618
      %v3621 = vsel %vm1607, %v3613, %v3620
      %v3623 = vshrl.u32 %v3289, 16
      %v3625 = vrot.slane %v3623, 7
      %v3626 = vrot.slane %v3625, 4
      %v3628 = vshrl.u32 %v3290, 16
      %v3630 = vrot.slane %v3628, 7
      %v3631 = vshll.u32 %v3290, 16
      %v3633 = vor.u32 %v3630, %v3631
      %v3634 = vsel %vm1607, %v3626, %v3633
      %v3635 = vrot.slane %v3630, 4
      %v3637 = vshrl.u32 %v3291, 16
      %v3639 = vrot.slane %v3637, 7
      %v3640 = vshll.u32 %v3291, 16
      %v3642 = vor.u32 %v3639, %v3640
      %v3643 = vsel %vm1607, %v3635, %v3642
      %s3644 = scalar_lea.vmem %s7, 6
      %v3645 = vld [vmem:[%s3644] sm:$0x3]
      %v3646 = vunpack.c.l.b16 %v3304
      %v3647 = vunpack.c.l.b16 %v3313
      %v3648 = vunpack.c.l.b16 %v3326
      %v3649 = vunpack.c.l.b16 %v3335
      %v3650 = vunpack.c.l.b16 %v3348
      %v3651 = vunpack.c.l.b16 %v3357
      %v3652 = vunpack.c.l.b16 %v3370
      %v3653 = vunpack.c.l.b16 %v3379
      %v3654 = vunpack.c.l.b16 %v3392
      %v3655 = vunpack.c.l.b16 %v3401
      %v3656 = vunpack.c.l.b16 %v3414
      %v3657 = vunpack.c.l.b16 %v3423
      %v3658 = vunpack.c.l.b16 %v3436
      %v3659 = vunpack.c.l.b16 %v3445
      %v3660 = vunpack.c.l.b16 %v3458
      %v3661 = vunpack.c.l.b16 %v3467
      %v3662 = vunpack.c.l.b16 %v3480
      %v3663 = vunpack.c.l.b16 %v3489
      %v3664 = vunpack.c.l.b16 %v3502
      %v3665 = vunpack.c.l.b16 %v3511
      %v3666 = vunpack.c.l.b16 %v3524
      %v3667 = vunpack.c.l.b16 %v3533
      %v3668 = vunpack.c.l.b16 %v3546
      %v3669 = vunpack.c.l.b16 %v3555
      %v3670 = vunpack.c.l.b16 %v3568
      %v3671 = vunpack.c.l.b16 %v3577
      %v3672 = vunpack.c.l.b16 %v3590
      %v3673 = vunpack.c.l.b16 %v3599
      %v3674 = vunpack.c.l.b16 %v3612
      %v3675 = vunpack.c.l.b16 %v3621
      %v3676 = vunpack.c.l.b16 %v3634
      %v3677 = vunpack.c.l.b16 %v3643
      %v3678 = vpack.c.b16 %v3647, %v3646
      %v3679 = vpack.c.b16 %v3649, %v3648
      %v3680 = vpack.c.b16 %v3651, %v3650
      %v3681 = vpack.c.b16 %v3653, %v3652
      %v3682 = vpack.c.b16 %v3655, %v3654
      %v3683 = vpack.c.b16 %v3657, %v3656
      %v3684 = vpack.c.b16 %v3659, %v3658
      %v3685 = vpack.c.b16 %v3661, %v3660
      %v3686 = vpack.c.b16 %v3663, %v3662
      %v3687 = vpack.c.b16 %v3665, %v3664
      %v3688 = vpack.c.b16 %v3667, %v3666
      %v3689 = vpack.c.b16 %v3669, %v3668
      %v3690 = vpack.c.b16 %v3671, %v3670
      %v3691 = vpack.c.b16 %v3673, %v3672
      %v3692 = vpack.c.b16 %v3675, %v3674
      %v3693 = vpack.c.b16 %v3677, %v3676
      %v3695 = vsel %vm586, %v3678, 0
      %v3698 = vsel %vm586, %v3679, 0
      %v3701 = vsel %vm586, %v3680, 0
      %v3704 = vsel %vm586, %v3681, 0
      %v3707 = vsel %vm586, %v3682, 0
      %v3710 = vsel %vm586, %v3683, 0
      %v3713 = vsel %vm586, %v3684, 0
      %v3716 = vsel %vm586, %v3685, 0
      %v3719 = vsel %vm586, %v3686, 0
      %v3722 = vsel %vm586, %v3687, 0
      %v3725 = vsel %vm586, %v3688, 0
      %v3728 = vsel %vm586, %v3689, 0
      %v3731 = vsel %vm586, %v3690, 0
      %v3734 = vsel %vm586, %v3691, 0
      %v3737 = vsel %vm586, %v3692, 0
      %v3740 = vsel %vm586, %v3693, 0
      %v3743 = vsel %vm635, %v3645, 0
      %3745 = vmatprep.subr.bf16.mxu0 0
      %3746 = vmatpush1.bf16.msra.mxu0 %v3743
      %3747 = vmatprep.subr.bf16.mxu0 0
      %3748 = vmatpush1.bf16.msra.mxu0 0
      %3749 = vmatprep.subr.bf16.mxu0 0
      %3750 = vmatpush1.bf16.msra.mxu0 0
      %3751 = vmatprep.subr.bf16.mxu0 0
      %3752 = vmatpush1.bf16.msra.mxu0 0
      %3753 = vmatprep.subr.bf16.mxu0 0
      %3754 = vmatpush1.bf16.msra.mxu0 0
      %3755 = vmatprep.subr.bf16.mxu0 0
      %3756 = vmatpush1.bf16.msra.mxu0 0
      %3757 = vmatprep.subr.bf16.mxu0 0
      %3758 = vmatpush1.bf16.msra.mxu0 0
      %3759 = vmatprep.subr.bf16.mxu0 0
      %3760 = vmatpush1.bf16.msra.mxu0 0
      %3761 = vmatprep.subr.bf16.mxu0 0
      %3762 = vmatpush1.bf16.msra.mxu0 0
      %3763 = vmatprep.subr.bf16.mxu0 0
      %3764 = vmatpush1.bf16.msra.mxu0 0
      %3765 = vmatprep.subr.bf16.mxu0 0
      %3766 = vmatpush1.bf16.msra.mxu0 0
      %3767 = vmatprep.subr.bf16.mxu0 0
      %3768 = vmatpush1.bf16.msra.mxu0 0
      %3769 = vmatprep.subr.bf16.mxu0 0
      %3770 = vmatpush1.bf16.msra.mxu0 0
      %3771 = vmatprep.subr.bf16.mxu0 0
      %3772 = vmatpush1.bf16.msra.mxu0 0
      %3773 = vmatprep.subr.bf16.mxu0 0
      %3774 = vmatpush1.bf16.msra.mxu0 0
      %3775 = vmatprep.subr.bf16.mxu0 0
      %3776 = vmatpush1.bf16.msra.mxu0 0
      %3777 = vmatprep.mubr.bf16.mxu0 0
      %3778 = vmatmul.mubr.bf16.gmra.mrb[0].mxu0 %v3695
      %v3779 = vpop.f32.mrb[0].mxu0
      %v3780 = vadd.f32 0.0, %v3779
      %v3781 = vpop.f32.mrb[0].mxu0
      %v3782 = vpop.f32.mrb[0].mxu0
      %v3783 = vadd.f32 0.0, %v3782
      %v3784 = vpop.f32.mrb[0].mxu0
      %3785 = vmatprep.mubr.bf16.mxu0 0
      %3786 = vmatmul.mubr.bf16.gmra.mrb[0].mxu0 %v3698
      %v3787 = vpop.f32.mrb[0].mxu0
      %v3788 = vadd.f32 0.0, %v3787
      %v3789 = vpop.f32.mrb[0].mxu0
      %v3790 = vpop.f32.mrb[0].mxu0
      %v3791 = vadd.f32 0.0, %v3790
      %v3792 = vpop.f32.mrb[0].mxu0
      %3793 = vmatprep.mubr.bf16.mxu0 0
      %3794 = vmatmul.mubr.bf16.gmra.mrb[0].mxu0 %v3701
      %v3795 = vpop.f32.mrb[0].mxu0
      %v3796 = vadd.f32 0.0, %v3795
      %v3797 = vpop.f32.mrb[0].mxu0
      %v3798 = vpop.f32.mrb[0].mxu0
      %v3799 = vadd.f32 0.0, %v3798
      %v3800 = vpop.f32.mrb[0].mxu0
      %3801 = vmatprep.mubr.bf16.mxu0 0
      %3802 = vmatmul.mubr.bf16.gmra.mrb[0].mxu0 %v3704
      %v3803 = vpop.f32.mrb[0].mxu0
      %v3804 = vadd.f32 0.0, %v3803
      %v3805 = vpop.f32.mrb[0].mxu0
      %v3806 = vpop.f32.mrb[0].mxu0
      %v3807 = vadd.f32 0.0, %v3806
      %v3808 = vpop.f32.mrb[0].mxu0
      %3809 = vmatprep.mubr.bf16.mxu0 0
      %3810 = vmatmul.mubr.bf16.gmra.mrb[0].mxu0 %v3707
      %v3811 = vpop.f32.mrb[0].mxu0
      %v3812 = vadd.f32 0.0, %v3811
      %v3813 = vpop.f32.mrb[0].mxu0
      %v3814 = vpop.f32.mrb[0].mxu0
      %v3815 = vadd.f32 0.0, %v3814
      %v3816 = vpop.f32.mrb[0].mxu0
      %3817 = vmatprep.mubr.bf16.mxu0 0
      %3818 = vmatmul.mubr.bf16.gmra.mrb[0].mxu0 %v3710
      %v3819 = vpop.f32.mrb[0].mxu0
      %v3820 = vadd.f32 0.0, %v3819
      %v3821 = vpop.f32.mrb[0].mxu0
      %v3822 = vpop.f32.mrb[0].mxu0
      %v3823 = vadd.f32 0.0, %v3822
      %v3824 = vpop.f32.mrb[0].mxu0
      %3825 = vmatprep.mubr.bf16.mxu0 0
      %3826 = vmatmul.mubr.bf16.gmra.mrb[0].mxu0 %v3713
      %v3827 = vpop.f32.mrb[0].mxu0
      %v3828 = vadd.f32 0.0, %v3827
      %v3829 = vpop.f32.mrb[0].mxu0
      %v3830 = vpop.f32.mrb[0].mxu0
      %v3831 = vadd.f32 0.0, %v3830
      %v3832 = vpop.f32.mrb[0].mxu0
      %3833 = vmatprep.mubr.bf16.mxu0 0
      %3834 = vmatmul.mubr.bf16.gmra.mrb[0].mxu0 %v3716
      %v3835 = vpop.f32.mrb[0].mxu0
      %v3836 = vadd.f32 0.0, %v3835
      %v3837 = vpop.f32.mrb[0].mxu0
      %v3838 = vpop.f32.mrb[0].mxu0
      %v3839 = vadd.f32 0.0, %v3838
      %v3840 = vpop.f32.mrb[0].mxu0
      %3841 = vmatprep.mubr.bf16.mxu0 0
      %3842 = vmatmul.mubr.bf16.gmra.mrb[0].mxu0 %v3719
      %v3843 = vpop.f32.mrb[0].mxu0
      %v3844 = vadd.f32 0.0, %v3843
      %v3845 = vpop.f32.mrb[0].mxu0
      %v3846 = vpop.f32.mrb[0].mxu0
      %v3847 = vadd.f32 0.0, %v3846
      %v3848 = vpop.f32.mrb[0].mxu0
      %3849 = vmatprep.mubr.bf16.mxu0 0
      %3850 = vmatmul.mubr.bf16.gmra.mrb[0].mxu0 %v3722
      %v3851 = vpop.f32.mrb[0].mxu0
      %v3852 = vadd.f32 0.0, %v3851
      %v3853 = vpop.f32.mrb[0].mxu0
      %v3854 = vpop.f32.mrb[0].mxu0
      %v3855 = vadd.f32 0.0, %v3854
      %v3856 = vpop.f32.mrb[0].mxu0
      %3857 = vmatprep.mubr.bf16.mxu0 0
      %3858 = vmatmul.mubr.bf16.gmra.mrb[0].mxu0 %v3725
      %v3859 = vpop.f32.mrb[0].mxu0
      %v3860 = vadd.f32 0.0, %v3859
      %v3861 = vpop.f32.mrb[0].mxu0
      %v3862 = vpop.f32.mrb[0].mxu0
      %v3863 = vadd.f32 0.0, %v3862
      %v3864 = vpop.f32.mrb[0].mxu0
      %3865 = vmatprep.mubr.bf16.mxu0 0
      %3866 = vmatmul.mubr.bf16.gmra.mrb[0].mxu0 %v3728
      %v3867 = vpop.f32.mrb[0].mxu0
      %v3868 = vadd.f32 0.0, %v3867
      %v3869 = vpop.f32.mrb[0].mxu0
      %v3870 = vpop.f32.mrb[0].mxu0
      %v3871 = vadd.f32 0.0, %v3870
      %v3872 = vpop.f32.mrb[0].mxu0
      %3873 = vmatprep.mubr.bf16.mxu0 0
      %3874 = vmatmul.mubr.bf16.gmra.mrb[0].mxu0 %v3731
      %v3875 = vpop.f32.mrb[0].mxu0
      %v3876 = vadd.f32 0.0, %v3875
      %v3877 = vpop.f32.mrb[0].mxu0
      %v3878 = vpop.f32.mrb[0].mxu0
      %v3879 = vadd.f32 0.0, %v3878
      %v3880 = vpop.f32.mrb[0].mxu0
      %3881 = vmatprep.mubr.bf16.mxu0 0
      %3882 = vmatmul.mubr.bf16.gmra.mrb[0].mxu0 %v3734
      %v3883 = vpop.f32.mrb[0].mxu0
      %v3884 = vadd.f32 0.0, %v3883
      %v3885 = vpop.f32.mrb[0].mxu0
      %v3886 = vpop.f32.mrb[0].mxu0
      %v3887 = vadd.f32 0.0, %v3886
      %v3888 = vpop.f32.mrb[0].mxu0
      %3889 = vmatprep.mubr.bf16.mxu0 0
      %3890 = vmatmul.mubr.bf16.gmra.mrb[0].mxu0 %v3737
      %v3891 = vpop.f32.mrb[0].mxu0
      %v3892 = vadd.f32 0.0, %v3891
      %v3893 = vpop.f32.mrb[0].mxu0
      %v3894 = vpop.f32.mrb[0].mxu0
      %v3895 = vadd.f32 0.0, %v3894
      %v3896 = vpop.f32.mrb[0].mxu0
      %3897 = vmatprep.mubr.bf16.mxu0 0
      %3898 = vmatmul.mubr.bf16.gmra.mrb[0].mxu0 %v3740
      %v3899 = vpop.f32.mrb[0].mxu0
      %v3900 = vadd.f32 0.0, %v3899
      %v3901 = vpop.f32.mrb[0].mxu0
      %v3902 = vpop.f32.mrb[0].mxu0
      %v3903 = vadd.f32 0.0, %v3902
      %v3904 = vpop.f32.mrb[0].mxu0
      %3905 = vdwg.mxu0
      %v3906 = vadd.f32 %v3212, %v3780
      %v3907 = vadd.f32 %v3213, %v3783
      %v3908 = vadd.f32 %v3214, %v3788
      %v3909 = vadd.f32 %v3215, %v3791
      %v3910 = vadd.f32 %v3216, %v3796
      %v3911 = vadd.f32 %v3217, %v3799
      %v3912 = vadd.f32 %v3218, %v3804
      %v3913 = vadd.f32 %v3219, %v3807
      %v3914 = vadd.f32 %v3220, %v3812
      %v3915 = vadd.f32 %v3221, %v3815
      %v3916 = vadd.f32 %v3222, %v3820
      %v3917 = vadd.f32 %v3223, %v3823
      %v3918 = vadd.f32 %v3224, %v3828
      %v3919 = vadd.f32 %v3225, %v3831
      %v3920 = vadd.f32 %v3226, %v3836
      %v3921 = vadd.f32 %v3227, %v3839
      %v3922 = vadd.f32 %v3228, %v3844
      %v3923 = vadd.f32 %v3229, %v3847
      %v3924 = vadd.f32 %v3230, %v3852
      %v3925 = vadd.f32 %v3231, %v3855
      %v3926 = vadd.f32 %v3232, %v3860
      %v3927 = vadd.f32 %v3233, %v3863
      %v3928 = vadd.f32 %v3234, %v3868
      %v3929 = vadd.f32 %v3235, %v3871
      %v3930 = vadd.f32 %v3236, %v3876
      %v3931 = vadd.f32 %v3237, %v3879
      %v3932 = vadd.f32 %v3238, %v3884
      %v3933 = vadd.f32 %v3239, %v3887
      %v3934 = vadd.f32 %v3240, %v3892
      %v3935 = vadd.f32 %v3241, %v3895
      %v3936 = vadd.f32 %v3242, %v3900
      %v3937 = vadd.f32 %v3243, %v3903
      %s3938 = scalar_lea.vmem %s7, 8
      %v3939 = vld [vmem:[%s3938] sm:$0x3]
      %v3972 = vunpack.c.l.b16 %v3245
      %v3973 = vunpack.c.l.b16 %v3246
      %v3974 = vunpack.c.l.b16 %v3248
      %v3975 = vunpack.c.l.b16 %v3249
      %v3976 = vunpack.c.l.b16 %v3251
      %v3977 = vunpack.c.l.b16 %v3252
      %v3978 = vunpack.c.l.b16 %v3254
      %v3979 = vunpack.c.l.b16 %v3255
      %v3980 = vunpack.c.l.b16 %v3257
      %v3981 = vunpack.c.l.b16 %v3258
      %v3982 = vunpack.c.l.b16 %v3260
      %v3983 = vunpack.c.l.b16 %v3261
      %v3984 = vunpack.c.l.b16 %v3263
      %v3985 = vunpack.c.l.b16 %v3264
      %v3986 = vunpack.c.l.b16 %v3266
      %v3987 = vunpack.c.l.b16 %v3267
      %v3988 = vunpack.c.l.b16 %v3269
      %v3989 = vunpack.c.l.b16 %v3270
      %v3990 = vunpack.c.l.b16 %v3272
      %v3991 = vunpack.c.l.b16 %v3273
      %v3992 = vunpack.c.l.b16 %v3275
      %v3993 = vunpack.c.l.b16 %v3276
      %v3994 = vunpack.c.l.b16 %v3278
      %v3995 = vunpack.c.l.b16 %v3279
      %v3996 = vunpack.c.l.b16 %v3281
      %v3997 = vunpack.c.l.b16 %v3282
      %v3998 = vunpack.c.l.b16 %v3284
      %v3999 = vunpack.c.l.b16 %v3285
      %v4000 = vunpack.c.l.b16 %v3287
      %v4001 = vunpack.c.l.b16 %v3288
      %v4002 = vunpack.c.l.b16 %v3290
      %v4003 = vunpack.c.l.b16 %v3291
      %v4004 = vpack.c.b16 %v3973, %v3972
      %v4005 = vpack.c.b16 %v3975, %v3974
      %v4006 = vpack.c.b16 %v3977, %v3976
      %v4007 = vpack.c.b16 %v3979, %v3978
      %v4008 = vpack.c.b16 %v3981, %v3980
      %v4009 = vpack.c.b16 %v3983, %v3982
      %v4010 = vpack.c.b16 %v3985, %v3984
      %v4011 = vpack.c.b16 %v3987, %v3986
      %v4012 = vpack.c.b16 %v3989, %v3988
      %v4013 = vpack.c.b16 %v3991, %v3990
      %v4014 = vpack.c.b16 %v3993, %v3992
      %v4015 = vpack.c.b16 %v3995, %v3994
      %v4016 = vpack.c.b16 %v3997, %v3996
      %v4017 = vpack.c.b16 %v3999, %v3998
      %v4018 = vpack.c.b16 %v4001, %v4000
      %v4019 = vpack.c.b16 %v4003, %v4002
      %v4021 = vsel %vm586, %v4004, 0
      %v4024 = vsel %vm586, %v4005, 0
      %v4027 = vsel %vm586, %v4006, 0
      %v4030 = vsel %vm586, %v4007, 0
      %v4033 = vsel %vm586, %v4008, 0
      %v4036 = vsel %vm586, %v4009, 0
      %v4039 = vsel %vm586, %v4010, 0
      %v4042 = vsel %vm586, %v4011, 0
      %v4045 = vsel %vm586, %v4012, 0
      %v4048 = vsel %vm586, %v4013, 0
      %v4051 = vsel %vm586, %v4014, 0
      %v4054 = vsel %vm586, %v4015, 0
      %v4057 = vsel %vm586, %v4016, 0
      %v4060 = vsel %vm586, %v4017, 0
      %v4063 = vsel %vm586, %v4018, 0
      %v4066 = vsel %vm586, %v4019, 0
      %v4069 = vsel %vm635, %v3939, 0
      %4071 = vmatprep.subr.bf16.mxu0 0
      %4072 = vmatpush1.bf16.msra.mxu0 %v4069
      %4073 = vmatprep.subr.bf16.mxu0 0
      %4074 = vmatpush1.bf16.msra.mxu0 0
      %4075 = vmatprep.subr.bf16.mxu0 0
      %4076 = vmatpush1.bf16.msra.mxu0 0
      %4077 = vmatprep.subr.bf16.mxu0 0
      %4078 = vmatpush1.bf16.msra.mxu0 0
      %4079 = vmatprep.subr.bf16.mxu0 0
      %4080 = vmatpush1.bf16.msra.mxu0 0
      %4081 = vmatprep.subr.bf16.mxu0 0
      %4082 = vmatpush1.bf16.msra.mxu0 0
      %4083 = vmatprep.subr.bf16.mxu0 0
      %4084 = vmatpush1.bf16.msra.mxu0 0
      %4085 = vmatprep.subr.bf16.mxu0 0
      %4086 = vmatpush1.bf16.msra.mxu0 0
      %4087 = vmatprep.subr.bf16.mxu0 0
      %4088 = vmatpush1.bf16.msra.mxu0 0
      %4089 = vmatprep.subr.bf16.mxu0 0
      %4090 = vmatpush1.bf16.msra.mxu0 0
      %4091 = vmatprep.subr.bf16.mxu0 0
      %4092 = vmatpush1.bf16.msra.mxu0 0
      %4093 = vmatprep.subr.bf16.mxu0 0
      %4094 = vmatpush1.bf16.msra.mxu0 0
      %4095 = vmatprep.subr.bf16.mxu0 0
      %4096 = vmatpush1.bf16.msra.mxu0 0
      %4097 = vmatprep.subr.bf16.mxu0 0
      %4098 = vmatpush1.bf16.msra.mxu0 0
      %4099 = vmatprep.subr.bf16.mxu0 0
      %4100 = vmatpush1.bf16.msra.mxu0 0
      %4101 = vmatprep.subr.bf16.mxu0 0
      %4102 = vmatpush1.bf16.msra.mxu0 0
      %4103 = vmatprep.mubr.bf16.mxu0 0
      %4104 = vmatmul.mubr.bf16.gmra.mrb[0].mxu0 %v4021
      %v4105 = vpop.f32.mrb[0].mxu0
      %v4106 = vadd.f32 0.0, %v4105
      %v4107 = vpop.f32.mrb[0].mxu0
      %v4108 = vpop.f32.mrb[0].mxu0
      %v4109 = vadd.f32 0.0, %v4108
      %v4110 = vpop.f32.mrb[0].mxu0
      %4111 = vmatprep.mubr.bf16.mxu0 0
      %4112 = vmatmul.mubr.bf16.gmra.mrb[0].mxu0 %v4024
      %v4113 = vpop.f32.mrb[0].mxu0
      %v4114 = vadd.f32 0.0, %v4113
      %v4115 = vpop.f32.mrb[0].mxu0
      %v4116 = vpop.f32.mrb[0].mxu0
      %v4117 = vadd.f32 0.0, %v4116
      %v4118 = vpop.f32.mrb[0].mxu0
      %4119 = vmatprep.mubr.bf16.mxu0 0
      %4120 = vmatmul.mubr.bf16.gmra.mrb[0].mxu0 %v4027
      %v4121 = vpop.f32.mrb[0].mxu0
      %v4122 = vadd.f32 0.0, %v4121
      %v4123 = vpop.f32.mrb[0].mxu0
      %v4124 = vpop.f32.mrb[0].mxu0
      %v4125 = vadd.f32 0.0, %v4124
      %v4126 = vpop.f32.mrb[0].mxu0
      %4127 = vmatprep.mubr.bf16.mxu0 0
      %4128 = vmatmul.mubr.bf16.gmra.mrb[0].mxu0 %v4030
      %v4129 = vpop.f32.mrb[0].mxu0
      %v4130 = vadd.f32 0.0, %v4129
      %v4131 = vpop.f32.mrb[0].mxu0
      %v4132 = vpop.f32.mrb[0].mxu0
      %v4133 = vadd.f32 0.0, %v4132
      %v4134 = vpop.f32.mrb[0].mxu0
      %4135 = vmatprep.mubr.bf16.mxu0 0
      %4136 = vmatmul.mubr.bf16.gmra.mrb[0].mxu0 %v4033
      %v4137 = vpop.f32.mrb[0].mxu0
      %v4138 = vadd.f32 0.0, %v4137
      %v4139 = vpop.f32.mrb[0].mxu0
      %v4140 = vpop.f32.mrb[0].mxu0
      %v4141 = vadd.f32 0.0, %v4140
      %v4142 = vpop.f32.mrb[0].mxu0
      %4143 = vmatprep.mubr.bf16.mxu0 0
      %4144 = vmatmul.mubr.bf16.gmra.mrb[0].mxu0 %v4036
      %v4145 = vpop.f32.mrb[0].mxu0
      %v4146 = vadd.f32 0.0, %v4145
      %v4147 = vpop.f32.mrb[0].mxu0
      %v4148 = vpop.f32.mrb[0].mxu0
      %v4149 = vadd.f32 0.0, %v4148
      %v4150 = vpop.f32.mrb[0].mxu0
      %4151 = vmatprep.mubr.bf16.mxu0 0
      %4152 = vmatmul.mubr.bf16.gmra.mrb[0].mxu0 %v4039
      %v4153 = vpop.f32.mrb[0].mxu0
      %v4154 = vadd.f32 0.0, %v4153
      %v4155 = vpop.f32.mrb[0].mxu0
      %v4156 = vpop.f32.mrb[0].mxu0
      %v4157 = vadd.f32 0.0, %v4156
      %v4158 = vpop.f32.mrb[0].mxu0
      %4159 = vmatprep.mubr.bf16.mxu0 0
      %4160 = vmatmul.mubr.bf16.gmra.mrb[0].mxu0 %v4042
      %v4161 = vpop.f32.mrb[0].mxu0
      %v4162 = vadd.f32 0.0, %v4161
      %v4163 = vpop.f32.mrb[0].mxu0
      %v4164 = vpop.f32.mrb[0].mxu0
      %v4165 = vadd.f32 0.0, %v4164
      %v4166 = vpop.f32.mrb[0].mxu0
      %4167 = vmatprep.mubr.bf16.mxu0 0
      %4168 = vmatmul.mubr.bf16.gmra.mrb[0].mxu0 %v4045
      %v4169 = vpop.f32.mrb[0].mxu0
      %v4170 = vadd.f32 0.0, %v4169
      %v4171 = vpop.f32.mrb[0].mxu0
      %v4172 = vpop.f32.mrb[0].mxu0
      %v4173 = vadd.f32 0.0, %v4172
      %v4174 = vpop.f32.mrb[0].mxu0
      %4175 = vmatprep.mubr.bf16.mxu0 0
      %4176 = vmatmul.mubr.bf16.gmra.mrb[0].mxu0 %v4048
      %v4177 = vpop.f32.mrb[0].mxu0
      %v4178 = vadd.f32 0.0, %v4177
      %v4179 = vpop.f32.mrb[0].mxu0
      %v4180 = vpop.f32.mrb[0].mxu0
      %v4181 = vadd.f32 0.0, %v4180
      %v4182 = vpop.f32.mrb[0].mxu0
      %4183 = vmatprep.mubr.bf16.mxu0 0
      %4184 = vmatmul.mubr.bf16.gmra.mrb[0].mxu0 %v4051
      %v4185 = vpop.f32.mrb[0].mxu0
      %v4186 = vadd.f32 0.0, %v4185
      %v4187 = vpop.f32.mrb[0].mxu0
      %v4188 = vpop.f32.mrb[0].mxu0
      %v4189 = vadd.f32 0.0, %v4188
      %v4190 = vpop.f32.mrb[0].mxu0
      %4191 = vmatprep.mubr.bf16.mxu0 0
      %4192 = vmatmul.mubr.bf16.gmra.mrb[0].mxu0 %v4054
      %v4193 = vpop.f32.mrb[0].mxu0
      %v4194 = vadd.f32 0.0, %v4193
      %v4195 = vpop.f32.mrb[0].mxu0
      %v4196 = vpop.f32.mrb[0].mxu0
      %v4197 = vadd.f32 0.0, %v4196
      %v4198 = vpop.f32.mrb[0].mxu0
      %4199 = vmatprep.mubr.bf16.mxu0 0
      %4200 = vmatmul.mubr.bf16.gmra.mrb[0].mxu0 %v4057
      %v4201 = vpop.f32.mrb[0].mxu0
      %v4202 = vadd.f32 0.0, %v4201
      %v4203 = vpop.f32.mrb[0].mxu0
      %v4204 = vpop.f32.mrb[0].mxu0
      %v4205 = vadd.f32 0.0, %v4204
      %v4206 = vpop.f32.mrb[0].mxu0
      %4207 = vmatprep.mubr.bf16.mxu0 0
      %4208 = vmatmul.mubr.bf16.gmra.mrb[0].mxu0 %v4060
      %v4209 = vpop.f32.mrb[0].mxu0
      %v4210 = vadd.f32 0.0, %v4209
      %v4211 = vpop.f32.mrb[0].mxu0
      %v4212 = vpop.f32.mrb[0].mxu0
      %v4213 = vadd.f32 0.0, %v4212
      %v4214 = vpop.f32.mrb[0].mxu0
      %4215 = vmatprep.mubr.bf16.mxu0 0
      %4216 = vmatmul.mubr.bf16.gmra.mrb[0].mxu0 %v4063
      %v4217 = vpop.f32.mrb[0].mxu0
      %v4218 = vadd.f32 0.0, %v4217
      %v4219 = vpop.f32.mrb[0].mxu0
      %v4220 = vpop.f32.mrb[0].mxu0
      %v4221 = vadd.f32 0.0, %v4220
      %v4222 = vpop.f32.mrb[0].mxu0
      %4223 = vmatprep.mubr.bf16.mxu0 0
      %4224 = vmatmul.mubr.bf16.gmra.mrb[0].mxu0 %v4066
      %v4225 = vpop.f32.mrb[0].mxu0
      %v4226 = vadd.f32 0.0, %v4225
      %v4227 = vpop.f32.mrb[0].mxu0
      %v4228 = vpop.f32.mrb[0].mxu0
      %v4229 = vadd.f32 0.0, %v4228
      %v4230 = vpop.f32.mrb[0].mxu0
      %4231 = vdwg.mxu0
      %v4232 = vadd.f32 %v3906, %v4106
      %v4233 = vadd.f32 %v3907, %v4109
      %v4234 = vadd.f32 %v3908, %v4114
      %v4235 = vadd.f32 %v3909, %v4117
      %v4236 = vadd.f32 %v3910, %v4122
      %v4237 = vadd.f32 %v3911, %v4125
      %v4238 = vadd.f32 %v3912, %v4130
      %v4239 = vadd.f32 %v3913, %v4133
      %v4240 = vadd.f32 %v3914, %v4138
      %v4241 = vadd.f32 %v3915, %v4141
      %v4242 = vadd.f32 %v3916, %v4146
      %v4243 = vadd.f32 %v3917, %v4149
      %v4244 = vadd.f32 %v3918, %v4154
      %v4245 = vadd.f32 %v3919, %v4157
      %v4246 = vadd.f32 %v3920, %v4162
      %v4247 = vadd.f32 %v3921, %v4165
      %v4248 = vadd.f32 %v3922, %v4170
      %v4249 = vadd.f32 %v3923, %v4173
      %v4250 = vadd.f32 %v3924, %v4178
      %v4251 = vadd.f32 %v3925, %v4181
      %v4252 = vadd.f32 %v3926, %v4186
      %v4253 = vadd.f32 %v3927, %v4189
      %v4254 = vadd.f32 %v3928, %v4194
      %v4255 = vadd.f32 %v3929, %v4197
      %v4256 = vadd.f32 %v3930, %v4202
      %v4257 = vadd.f32 %v3931, %v4205
      %v4258 = vadd.f32 %v3932, %v4210
      %v4259 = vadd.f32 %v3933, %v4213
      %v4260 = vadd.f32 %v3934, %v4218
      %v4261 = vadd.f32 %v3935, %v4221
      %v4262 = vadd.f32 %v3936, %v4226
      %v4263 = vadd.f32 %v3937, %v4229
      %v4264 = vld [vmem:[%s1502 + $0x4] sm:$0xf]
      %v4265 = vld [vmem:[%s1502 + $0x8] sm:$0xf]
      %v4266 = vld [vmem:[%s1502 + $0xc] sm:$0x1]
      %v4267 = vld [vmem:[%s1502 + $0x14] sm:$0xf]
      %v4268 = vld [vmem:[%s1502 + $0x18] sm:$0xf]
      %v4269 = vld [vmem:[%s1502 + $0x1c] sm:$0x1]
      %v4270 = vld [vmem:[%s1502 + $0x24] sm:$0xf]
      %v4271 = vld [vmem:[%s1502 + $0x28] sm:$0xf]
      %v4272 = vld [vmem:[%s1502 + $0x2c] sm:$0x1]
      %v4273 = vld [vmem:[%s1502 + $0x34] sm:$0xf]
      %v4274 = vld [vmem:[%s1502 + $0x38] sm:$0xf]
      %v4275 = vld [vmem:[%s1502 + $0x3c] sm:$0x1]
      %v4276 = vld [vmem:[%s1502 + $0x44] sm:$0xf]
      %v4277 = vld [vmem:[%s1502 + $0x48] sm:$0xf]
      %v4278 = vld [vmem:[%s1502 + $0x4c] sm:$0x1]
      %v4279 = vld [vmem:[%s1502 + $0x54] sm:$0xf]
      %v4280 = vld [vmem:[%s1502 + $0x58] sm:$0xf]
      %v4281 = vld [vmem:[%s1502 + $0x5c] sm:$0x1]
      %v4282 = vld [vmem:[%s1502 + $0x64] sm:$0xf]
      %v4283 = vld [vmem:[%s1502 + $0x68] sm:$0xf]
      %v4284 = vld [vmem:[%s1502 + $0x6c] sm:$0x1]
      %v4285 = vld [vmem:[%s1502 + $0x74] sm:$0xf]
      %v4286 = vld [vmem:[%s1502 + $0x78] sm:$0xf]
      %v4287 = vld [vmem:[%s1502 + $0x7c] sm:$0x1]
      %v4288 = vld [vmem:[%s1502 + $0x84] sm:$0xf]
      %v4289 = vld [vmem:[%s1502 + $0x88] sm:$0xf]
      %v4290 = vld [vmem:[%s1502 + $0x8c] sm:$0x1]
      %v4291 = vld [vmem:[%s1502 + $0x94] sm:$0xf]
      %v4292 = vld [vmem:[%s1502 + $0x98] sm:$0xf]
      %v4293 = vld [vmem:[%s1502 + $0x9c] sm:$0x1]
      %v4294 = vld [vmem:[%s1502 + $0xa4] sm:$0xf]
      %v4295 = vld [vmem:[%s1502 + $0xa8] sm:$0xf]
      %v4296 = vld [vmem:[%s1502 + $0xac] sm:$0x1]
      %v4297 = vld [vmem:[%s1502 + $0xb4] sm:$0xf]
      %v4298 = vld [vmem:[%s1502 + $0xb8] sm:$0xf]
      %v4299 = vld [vmem:[%s1502 + $0xbc] sm:$0x1]
      %v4300 = vld [vmem:[%s1502 + $0xc4] sm:$0xf]
      %v4301 = vld [vmem:[%s1502 + $0xc8] sm:$0xf]
      %v4302 = vld [vmem:[%s1502 + $0xcc] sm:$0x1]
      %v4303 = vld [vmem:[%s1502 + $0xd4] sm:$0xf]
      %v4304 = vld [vmem:[%s1502 + $0xd8] sm:$0xf]
      %v4305 = vld [vmem:[%s1502 + $0xdc] sm:$0x1]
      %v4306 = vld [vmem:[%s1502 + $0xe4] sm:$0xf]
      %v4307 = vld [vmem:[%s1502 + $0xe8] sm:$0xf]
      %v4308 = vld [vmem:[%s1502 + $0xec] sm:$0x1]
      %v4309 = vld [vmem:[%s1502 + $0xf4] sm:$0xf]
      %v4310 = vld [vmem:[%s1502 + $0xf8] sm:$0xf]
      %v4311 = vld [vmem:[%s1502 + $0xfc] sm:$0x1]
      %v4313 = vshrl.u32 %v4264, 16
      %v4315 = vrot.slane %v4313, 4
      %v4316 = vshll.u32 %v4264, 16
      %v4318 = vrot.slane %v4316, 5
      %v4319 = vor.u32 %v4315, %v4318
      %v4320 = vrot.slane %v4319, 4
      %v4322 = vshll.u32 %v4265, 16
      %v4324 = vrot.slane %v4322, 5
      %v4325 = vsel %vm2565, %v4320, %v4324
      %v4326 = vshrl.u32 %v4265, 16
      %v4328 = vrot.slane %v4326, 4
      %v4329 = vor.u32 %v4328, %v4324
      %v4330 = vrot.slane %v4329, 4
      %v4332 = vshll.u32 %v4266, 16
      %v4334 = vrot.slane %v4332, 5
      %v4335 = vsel %vm2565, %v4330, %v4334
      %v4337 = vshrl.u32 %v4267, 16
      %v4339 = vrot.slane %v4337, 4
      %v4340 = vshll.u32 %v4267, 16
      %v4342 = vrot.slane %v4340, 5
      %v4343 = vor.u32 %v4339, %v4342
      %v4344 = vrot.slane %v4343, 4
      %v4346 = vshll.u32 %v4268, 16
      %v4348 = vrot.slane %v4346, 5
      %v4349 = vsel %vm2565, %v4344, %v4348
      %v4350 = vshrl.u32 %v4268, 16
      %v4352 = vrot.slane %v4350, 4
      %v4353 = vor.u32 %v4352, %v4348
      %v4354 = vrot.slane %v4353, 4
      %v4356 = vshll.u32 %v4269, 16
      %v4358 = vrot.slane %v4356, 5
      %v4359 = vsel %vm2565, %v4354, %v4358
      %v4361 = vshrl.u32 %v4270, 16
      %v4363 = vrot.slane %v4361, 4
      %v4364 = vshll.u32 %v4270, 16
      %v4366 = vrot.slane %v4364, 5
      %v4367 = vor.u32 %v4363, %v4366
      %v4368 = vrot.slane %v4367, 4
      %v4370 = vshll.u32 %v4271, 16
      %v4372 = vrot.slane %v4370, 5
      %v4373 = vsel %vm2565, %v4368, %v4372
      %v4374 = vshrl.u32 %v4271, 16
      %v4376 = vrot.slane %v4374, 4
      %v4377 = vor.u32 %v4376, %v4372
      %v4378 = vrot.slane %v4377, 4
      %v4380 = vshll.u32 %v4272, 16
      %v4382 = vrot.slane %v4380, 5
      %v4383 = vsel %vm2565, %v4378, %v4382
      %v4385 = vshrl.u32 %v4273, 16
      %v4387 = vrot.slane %v4385, 4
      %v4388 = vshll.u32 %v4273, 16
      %v4390 = vrot.slane %v4388, 5
      %v4391 = vor.u32 %v4387, %v4390
      %v4392 = vrot.slane %v4391, 4
      %v4394 = vshll.u32 %v4274, 16
      %v4396 = vrot.slane %v4394, 5
      %v4397 = vsel %vm2565, %v4392, %v4396
      %v4398 = vshrl.u32 %v4274, 16
      %v4400 = vrot.slane %v4398, 4
      %v4401 = vor.u32 %v4400, %v4396
      %v4402 = vrot.slane %v4401, 4
      %v4404 = vshll.u32 %v4275, 16
      %v4406 = vrot.slane %v4404, 5
      %v4407 = vsel %vm2565, %v4402, %v4406
      %v4409 = vshrl.u32 %v4276, 16
      %v4411 = vrot.slane %v4409, 4
      %v4412 = vshll.u32 %v4276, 16
      %v4414 = vrot.slane %v4412, 5
      %v4415 = vor.u32 %v4411, %v4414
      %v4416 = vrot.slane %v4415, 4
      %v4418 = vshll.u32 %v4277, 16
      %v4420 = vrot.slane %v4418, 5
      %v4421 = vsel %vm2565, %v4416, %v4420
      %v4422 = vshrl.u32 %v4277, 16
      %v4424 = vrot.slane %v4422, 4
      %v4425 = vor.u32 %v4424, %v4420
      %v4426 = vrot.slane %v4425, 4
      %v4428 = vshll.u32 %v4278, 16
      %v4430 = vrot.slane %v4428, 5
      %v4431 = vsel %vm2565, %v4426, %v4430
      %v4433 = vshrl.u32 %v4279, 16
      %v4435 = vrot.slane %v4433, 4
      %v4436 = vshll.u32 %v4279, 16
      %v4438 = vrot.slane %v4436, 5
      %v4439 = vor.u32 %v4435, %v4438
      %v4440 = vrot.slane %v4439, 4
      %v4442 = vshll.u32 %v4280, 16
      %v4444 = vrot.slane %v4442, 5
      %v4445 = vsel %vm2565, %v4440, %v4444
      %v4446 = vshrl.u32 %v4280, 16
      %v4448 = vrot.slane %v4446, 4
      %v4449 = vor.u32 %v4448, %v4444
      %v4450 = vrot.slane %v4449, 4
      %v4452 = vshll.u32 %v4281, 16
      %v4454 = vrot.slane %v4452, 5
      %v4455 = vsel %vm2565, %v4450, %v4454
      %v4457 = vshrl.u32 %v4282, 16
      %v4459 = vrot.slane %v4457, 4
      %v4460 = vshll.u32 %v4282, 16
      %v4462 = vrot.slane %v4460, 5
      %v4463 = vor.u32 %v4459, %v4462
      %v4464 = vrot.slane %v4463, 4
      %v4466 = vshll.u32 %v4283, 16
      %v4468 = vrot.slane %v4466, 5
      %v4469 = vsel %vm2565, %v4464, %v4468
      %v4470 = vshrl.u32 %v4283, 16
      %v4472 = vrot.slane %v4470, 4
      %v4473 = vor.u32 %v4472, %v4468
      %v4474 = vrot.slane %v4473, 4
      %v4476 = vshll.u32 %v4284, 16
      %v4478 = vrot.slane %v4476, 5
      %v4479 = vsel %vm2565, %v4474, %v4478
      %v4481 = vshrl.u32 %v4285, 16
      %v4483 = vrot.slane %v4481, 4
      %v4484 = vshll.u32 %v4285, 16
      %v4486 = vrot.slane %v4484, 5
      %v4487 = vor.u32 %v4483, %v4486
      %v4488 = vrot.slane %v4487, 4
      %v4490 = vshll.u32 %v4286, 16
      %v4492 = vrot.slane %v4490, 5
      %v4493 = vsel %vm2565, %v4488, %v4492
      %v4494 = vshrl.u32 %v4286, 16
      %v4496 = vrot.slane %v4494, 4
      %v4497 = vor.u32 %v4496, %v4492
      %v4498 = vrot.slane %v4497, 4
      %v4500 = vshll.u32 %v4287, 16
      %v4502 = vrot.slane %v4500, 5
      %v4503 = vsel %vm2565, %v4498, %v4502
      %v4505 = vshrl.u32 %v4288, 16
      %v4507 = vrot.slane %v4505, 4
      %v4508 = vshll.u32 %v4288, 16
      %v4510 = vrot.slane %v4508, 5
      %v4511 = vor.u32 %v4507, %v4510
      %v4512 = vrot.slane %v4511, 4
      %v4514 = vshll.u32 %v4289, 16
      %v4516 = vrot.slane %v4514, 5
      %v4517 = vsel %vm2565, %v4512, %v4516
      %v4518 = vshrl.u32 %v4289, 16
      %v4520 = vrot.slane %v4518, 4
      %v4521 = vor.u32 %v4520, %v4516
      %v4522 = vrot.slane %v4521, 4
      %v4524 = vshll.u32 %v4290, 16
      %v4526 = vrot.slane %v4524, 5
      %v4527 = vsel %vm2565, %v4522, %v4526
      %v4529 = vshrl.u32 %v4291, 16
      %v4531 = vrot.slane %v4529, 4
      %v4532 = vshll.u32 %v4291, 16
      %v4534 = vrot.slane %v4532, 5
      %v4535 = vor.u32 %v4531, %v4534
      %v4536 = vrot.slane %v4535, 4
      %v4538 = vshll.u32 %v4292, 16
      %v4540 = vrot.slane %v4538, 5
      %v4541 = vsel %vm2565, %v4536, %v4540
      %v4542 = vshrl.u32 %v4292, 16
      %v4544 = vrot.slane %v4542, 4
      %v4545 = vor.u32 %v4544, %v4540
      %v4546 = vrot.slane %v4545, 4
      %v4548 = vshll.u32 %v4293, 16
      %v4550 = vrot.slane %v4548, 5
      %v4551 = vsel %vm2565, %v4546, %v4550
      %v4553 = vshrl.u32 %v4294, 16
      %v4555 = vrot.slane %v4553, 4
      %v4556 = vshll.u32 %v4294, 16
      %v4558 = vrot.slane %v4556, 5
      %v4559 = vor.u32 %v4555, %v4558
      %v4560 = vrot.slane %v4559, 4
      %v4562 = vshll.u32 %v4295, 16
      %v4564 = vrot.slane %v4562, 5
      %v4565 = vsel %vm2565, %v4560, %v4564
      %v4566 = vshrl.u32 %v4295, 16
      %v4568 = vrot.slane %v4566, 4
      %v4569 = vor.u32 %v4568, %v4564
      %v4570 = vrot.slane %v4569, 4
      %v4572 = vshll.u32 %v4296, 16
      %v4574 = vrot.slane %v4572, 5
      %v4575 = vsel %vm2565, %v4570, %v4574
      %v4577 = vshrl.u32 %v4297, 16
      %v4579 = vrot.slane %v4577, 4
      %v4580 = vshll.u32 %v4297, 16
      %v4582 = vrot.slane %v4580, 5
      %v4583 = vor.u32 %v4579, %v4582
      %v4584 = vrot.slane %v4583, 4
      %v4586 = vshll.u32 %v4298, 16
      %v4588 = vrot.slane %v4586, 5
      %v4589 = vsel %vm2565, %v4584, %v4588
      %v4590 = vshrl.u32 %v4298, 16
      %v4592 = vrot.slane %v4590, 4
      %v4593 = vor.u32 %v4592, %v4588
      %v4594 = vrot.slane %v4593, 4
      %v4596 = vshll.u32 %v4299, 16
      %v4598 = vrot.slane %v4596, 5
      %v4599 = vsel %vm2565, %v4594, %v4598
      %v4601 = vshrl.u32 %v4300, 16
      %v4603 = vrot.slane %v4601, 4
      %v4604 = vshll.u32 %v4300, 16
      %v4606 = vrot.slane %v4604, 5
      %v4607 = vor.u32 %v4603, %v4606
      %v4608 = vrot.slane %v4607, 4
      %v4610 = vshll.u32 %v4301, 16
      %v4612 = vrot.slane %v4610, 5
      %v4613 = vsel %vm2565, %v4608, %v4612
      %v4614 = vshrl.u32 %v4301, 16
      %v4616 = vrot.slane %v4614, 4
      %v4617 = vor.u32 %v4616, %v4612
      %v4618 = vrot.slane %v4617, 4
      %v4620 = vshll.u32 %v4302, 16
      %v4622 = vrot.slane %v4620, 5
      %v4623 = vsel %vm2565, %v4618, %v4622
      %v4625 = vshrl.u32 %v4303, 16
      %v4627 = vrot.slane %v4625, 4
      %v4628 = vshll.u32 %v4303, 16
      %v4630 = vrot.slane %v4628, 5
      %v4631 = vor.u32 %v4627, %v4630
      %v4632 = vrot.slane %v4631, 4
      %v4634 = vshll.u32 %v4304, 16
      %v4636 = vrot.slane %v4634, 5
      %v4637 = vsel %vm2565, %v4632, %v4636
      %v4638 = vshrl.u32 %v4304, 16
      %v4640 = vrot.slane %v4638, 4
      %v4641 = vor.u32 %v4640, %v4636
      %v4642 = vrot.slane %v4641, 4
      %v4644 = vshll.u32 %v4305, 16
      %v4646 = vrot.slane %v4644, 5
      %v4647 = vsel %vm2565, %v4642, %v4646
      %v4649 = vshrl.u32 %v4306, 16
      %v4651 = vrot.slane %v4649, 4
      %v4652 = vshll.u32 %v4306, 16
      %v4654 = vrot.slane %v4652, 5
      %v4655 = vor.u32 %v4651, %v4654
      %v4656 = vrot.slane %v4655, 4
      %v4658 = vshll.u32 %v4307, 16
      %v4660 = vrot.slane %v4658, 5
      %v4661 = vsel %vm2565, %v4656, %v4660
      %v4662 = vshrl.u32 %v4307, 16
      %v4664 = vrot.slane %v4662, 4
      %v4665 = vor.u32 %v4664, %v4660
      %v4666 = vrot.slane %v4665, 4
      %v4668 = vshll.u32 %v4308, 16
      %v4670 = vrot.slane %v4668, 5
      %v4671 = vsel %vm2565, %v4666, %v4670
      %v4673 = vshrl.u32 %v4309, 16
      %v4675 = vrot.slane %v4673, 4
      %v4676 = vshll.u32 %v4309, 16
      %v4678 = vrot.slane %v4676, 5
      %v4679 = vor.u32 %v4675, %v4678
      %v4680 = vrot.slane %v4679, 4
      %v4682 = vshll.u32 %v4310, 16
      %v4684 = vrot.slane %v4682, 5
      %v4685 = vsel %vm2565, %v4680, %v4684
      %v4686 = vshrl.u32 %v4310, 16
      %v4688 = vrot.slane %v4686, 4
      %v4689 = vor.u32 %v4688, %v4684
      %v4690 = vrot.slane %v4689, 4
      %v4692 = vshll.u32 %v4311, 16
      %v4694 = vrot.slane %v4692, 5
      %v4695 = vsel %vm2565, %v4690, %v4694
      %s4696 = scalar_lea.vmem %s7, 10
      %v4697 = vld [vmem:[%s4696] sm:$0x3]
      %v4698 = vunpack.c.l.b16 %v4325
      %v4699 = vunpack.c.l.b16 %v4335
      %v4700 = vunpack.c.l.b16 %v4349
      %v4701 = vunpack.c.l.b16 %v4359
      %v4702 = vunpack.c.l.b16 %v4373
      %v4703 = vunpack.c.l.b16 %v4383
      %v4704 = vunpack.c.l.b16 %v4397
      %v4705 = vunpack.c.l.b16 %v4407
      %v4706 = vunpack.c.l.b16 %v4421
      %v4707 = vunpack.c.l.b16 %v4431
      %v4708 = vunpack.c.l.b16 %v4445
      %v4709 = vunpack.c.l.b16 %v4455
      %v4710 = vunpack.c.l.b16 %v4469
      %v4711 = vunpack.c.l.b16 %v4479
      %v4712 = vunpack.c.l.b16 %v4493
      %v4713 = vunpack.c.l.b16 %v4503
      %v4714 = vunpack.c.l.b16 %v4517
      %v4715 = vunpack.c.l.b16 %v4527
      %v4716 = vunpack.c.l.b16 %v4541
      %v4717 = vunpack.c.l.b16 %v4551
      %v4718 = vunpack.c.l.b16 %v4565
      %v4719 = vunpack.c.l.b16 %v4575
      %v4720 = vunpack.c.l.b16 %v4589
      %v4721 = vunpack.c.l.b16 %v4599
      %v4722 = vunpack.c.l.b16 %v4613
      %v4723 = vunpack.c.l.b16 %v4623
      %v4724 = vunpack.c.l.b16 %v4637
      %v4725 = vunpack.c.l.b16 %v4647
      %v4726 = vunpack.c.l.b16 %v4661
      %v4727 = vunpack.c.l.b16 %v4671
      %v4728 = vunpack.c.l.b16 %v4685
      %v4729 = vunpack.c.l.b16 %v4695
      %v4730 = vpack.c.b16 %v4699, %v4698
      %v4731 = vpack.c.b16 %v4701, %v4700
      %v4732 = vpack.c.b16 %v4703, %v4702
      %v4733 = vpack.c.b16 %v4705, %v4704
      %v4734 = vpack.c.b16 %v4707, %v4706
      %v4735 = vpack.c.b16 %v4709, %v4708
      %v4736 = vpack.c.b16 %v4711, %v4710
      %v4737 = vpack.c.b16 %v4713, %v4712
      %v4738 = vpack.c.b16 %v4715, %v4714
      %v4739 = vpack.c.b16 %v4717, %v4716
      %v4740 = vpack.c.b16 %v4719, %v4718
      %v4741 = vpack.c.b16 %v4721, %v4720
      %v4742 = vpack.c.b16 %v4723, %v4722
      %v4743 = vpack.c.b16 %v4725, %v4724
      %v4744 = vpack.c.b16 %v4727, %v4726
      %v4745 = vpack.c.b16 %v4729, %v4728
      %v4747 = vsel %vm586, %v4730, 0
      %v4750 = vsel %vm586, %v4731, 0
      %v4753 = vsel %vm586, %v4732, 0
      %v4756 = vsel %vm586, %v4733, 0
      %v4759 = vsel %vm586, %v4734, 0
      %v4762 = vsel %vm586, %v4735, 0
      %v4765 = vsel %vm586, %v4736, 0
      %v4768 = vsel %vm586, %v4737, 0
      %v4771 = vsel %vm586, %v4738, 0
      %v4774 = vsel %vm586, %v4739, 0
      %v4777 = vsel %vm586, %v4740, 0
      %v4780 = vsel %vm586, %v4741, 0
      %v4783 = vsel %vm586, %v4742, 0
      %v4786 = vsel %vm586, %v4743, 0
      %v4789 = vsel %vm586, %v4744, 0
      %v4792 = vsel %vm586, %v4745, 0
      %v4795 = vsel %vm635, %v4697, 0
      %4797 = vmatprep.subr.bf16.mxu0 0
      %4798 = vmatpush1.bf16.msra.mxu0 %v4795
      %4799 = vmatprep.subr.bf16.mxu0 0
      %4800 = vmatpush1.bf16.msra.mxu0 0
      %4801 = vmatprep.subr.bf16.mxu0 0
      %4802 = vmatpush1.bf16.msra.mxu0 0
      %4803 = vmatprep.subr.bf16.mxu0 0
      %4804 = vmatpush1.bf16.msra.mxu0 0
      %4805 = vmatprep.subr.bf16.mxu0 0
      %4806 = vmatpush1.bf16.msra.mxu0 0
      %4807 = vmatprep.subr.bf16.mxu0 0
      %4808 = vmatpush1.bf16.msra.mxu0 0
      %4809 = vmatprep.subr.bf16.mxu0 0
      %4810 = vmatpush1.bf16.msra.mxu0 0
      %4811 = vmatprep.subr.bf16.mxu0 0
      %4812 = vmatpush1.bf16.msra.mxu0 0
      %4813 = vmatprep.subr.bf16.mxu0 0
      %4814 = vmatpush1.bf16.msra.mxu0 0
      %4815 = vmatprep.subr.bf16.mxu0 0
      %4816 = vmatpush1.bf16.msra.mxu0 0
      %4817 = vmatprep.subr.bf16.mxu0 0
      %4818 = vmatpush1.bf16.msra.mxu0 0
      %4819 = vmatprep.subr.bf16.mxu0 0
      %4820 = vmatpush1.bf16.msra.mxu0 0
      %4821 = vmatprep.subr.bf16.mxu0 0
      %4822 = vmatpush1.bf16.msra.mxu0 0
      %4823 = vmatprep.subr.bf16.mxu0 0
      %4824 = vmatpush1.bf16.msra.mxu0 0
      %4825 = vmatprep.subr.bf16.mxu0 0
      %4826 = vmatpush1.bf16.msra.mxu0 0
      %4827 = vmatprep.subr.bf16.mxu0 0
      %4828 = vmatpush1.bf16.msra.mxu0 0
      %4829 = vmatprep.mubr.bf16.mxu0 0
      %4830 = vmatmul.mubr.bf16.gmra.mrb[0].mxu0 %v4747
      %v4831 = vpop.f32.mrb[0].mxu0
      %v4832 = vadd.f32 0.0, %v4831
      %v4833 = vpop.f32.mrb[0].mxu0
      %v4834 = vpop.f32.mrb[0].mxu0
      %v4835 = vadd.f32 0.0, %v4834
      %v4836 = vpop.f32.mrb[0].mxu0
      %4837 = vmatprep.mubr.bf16.mxu0 0
      %4838 = vmatmul.mubr.bf16.gmra.mrb[0].mxu0 %v4750
      %v4839 = vpop.f32.mrb[0].mxu0
      %v4840 = vadd.f32 0.0, %v4839
      %v4841 = vpop.f32.mrb[0].mxu0
      %v4842 = vpop.f32.mrb[0].mxu0
      %v4843 = vadd.f32 0.0, %v4842
      %v4844 = vpop.f32.mrb[0].mxu0
      %4845 = vmatprep.mubr.bf16.mxu0 0
      %4846 = vmatmul.mubr.bf16.gmra.mrb[0].mxu0 %v4753
      %v4847 = vpop.f32.mrb[0].mxu0
      %v4848 = vadd.f32 0.0, %v4847
      %v4849 = vpop.f32.mrb[0].mxu0
      %v4850 = vpop.f32.mrb[0].mxu0
      %v4851 = vadd.f32 0.0, %v4850
      %v4852 = vpop.f32.mrb[0].mxu0
      %4853 = vmatprep.mubr.bf16.mxu0 0
      %4854 = vmatmul.mubr.bf16.gmra.mrb[0].mxu0 %v4756
      %v4855 = vpop.f32.mrb[0].mxu0
      %v4856 = vadd.f32 0.0, %v4855
      %v4857 = vpop.f32.mrb[0].mxu0
      %v4858 = vpop.f32.mrb[0].mxu0
      %v4859 = vadd.f32 0.0, %v4858
      %v4860 = vpop.f32.mrb[0].mxu0
      %4861 = vmatprep.mubr.bf16.mxu0 0
      %4862 = vmatmul.mubr.bf16.gmra.mrb[0].mxu0 %v4759
      %v4863 = vpop.f32.mrb[0].mxu0
      %v4864 = vadd.f32 0.0, %v4863
      %v4865 = vpop.f32.mrb[0].mxu0
      %v4866 = vpop.f32.mrb[0].mxu0
      %v4867 = vadd.f32 0.0, %v4866
      %v4868 = vpop.f32.mrb[0].mxu0
      %4869 = vmatprep.mubr.bf16.mxu0 0
      %4870 = vmatmul.mubr.bf16.gmra.mrb[0].mxu0 %v4762
      %v4871 = vpop.f32.mrb[0].mxu0
      %v4872 = vadd.f32 0.0, %v4871
      %v4873 = vpop.f32.mrb[0].mxu0
      %v4874 = vpop.f32.mrb[0].mxu0
      %v4875 = vadd.f32 0.0, %v4874
      %v4876 = vpop.f32.mrb[0].mxu0
      %4877 = vmatprep.mubr.bf16.mxu0 0
      %4878 = vmatmul.mubr.bf16.gmra.mrb[0].mxu0 %v4765
      %v4879 = vpop.f32.mrb[0].mxu0
      %v4880 = vadd.f32 0.0, %v4879
      %v4881 = vpop.f32.mrb[0].mxu0
      %v4882 = vpop.f32.mrb[0].mxu0
      %v4883 = vadd.f32 0.0, %v4882
      %v4884 = vpop.f32.mrb[0].mxu0
      %4885 = vmatprep.mubr.bf16.mxu0 0
      %4886 = vmatmul.mubr.bf16.gmra.mrb[0].mxu0 %v4768
      %v4887 = vpop.f32.mrb[0].mxu0
      %v4888 = vadd.f32 0.0, %v4887
      %v4889 = vpop.f32.mrb[0].mxu0
      %v4890 = vpop.f32.mrb[0].mxu0
      %v4891 = vadd.f32 0.0, %v4890
      %v4892 = vpop.f32.mrb[0].mxu0
      %4893 = vmatprep.mubr.bf16.mxu0 0
      %4894 = vmatmul.mubr.bf16.gmra.mrb[0].mxu0 %v4771
      %v4895 = vpop.f32.mrb[0].mxu0
      %v4896 = vadd.f32 0.0, %v4895
      %v4897 = vpop.f32.mrb[0].mxu0
      %v4898 = vpop.f32.mrb[0].mxu0
      %v4899 = vadd.f32 0.0, %v4898
      %v4900 = vpop.f32.mrb[0].mxu0
      %4901 = vmatprep.mubr.bf16.mxu0 0
      %4902 = vmatmul.mubr.bf16.gmra.mrb[0].mxu0 %v4774
      %v4903 = vpop.f32.mrb[0].mxu0
      %v4904 = vadd.f32 0.0, %v4903
      %v4905 = vpop.f32.mrb[0].mxu0
      %v4906 = vpop.f32.mrb[0].mxu0
      %v4907 = vadd.f32 0.0, %v4906
      %v4908 = vpop.f32.mrb[0].mxu0
      %4909 = vmatprep.mubr.bf16.mxu0 0
      %4910 = vmatmul.mubr.bf16.gmra.mrb[0].mxu0 %v4777
      %v4911 = vpop.f32.mrb[0].mxu0
      %v4912 = vadd.f32 0.0, %v4911
      %v4913 = vpop.f32.mrb[0].mxu0
      %v4914 = vpop.f32.mrb[0].mxu0
      %v4915 = vadd.f32 0.0, %v4914
      %v4916 = vpop.f32.mrb[0].mxu0
      %4917 = vmatprep.mubr.bf16.mxu0 0
      %4918 = vmatmul.mubr.bf16.gmra.mrb[0].mxu0 %v4780
      %v4919 = vpop.f32.mrb[0].mxu0
      %v4920 = vadd.f32 0.0, %v4919
      %v4921 = vpop.f32.mrb[0].mxu0
      %v4922 = vpop.f32.mrb[0].mxu0
      %v4923 = vadd.f32 0.0, %v4922
      %v4924 = vpop.f32.mrb[0].mxu0
      %4925 = vmatprep.mubr.bf16.mxu0 0
      %4926 = vmatmul.mubr.bf16.gmra.mrb[0].mxu0 %v4783
      %v4927 = vpop.f32.mrb[0].mxu0
      %v4928 = vadd.f32 0.0, %v4927
      %v4929 = vpop.f32.mrb[0].mxu0
      %v4930 = vpop.f32.mrb[0].mxu0
      %v4931 = vadd.f32 0.0, %v4930
      %v4932 = vpop.f32.mrb[0].mxu0
      %4933 = vmatprep.mubr.bf16.mxu0 0
      %4934 = vmatmul.mubr.bf16.gmra.mrb[0].mxu0 %v4786
      %v4935 = vpop.f32.mrb[0].mxu0
      %v4936 = vadd.f32 0.0, %v4935
      %v4937 = vpop.f32.mrb[0].mxu0
      %v4938 = vpop.f32.mrb[0].mxu0
      %v4939 = vadd.f32 0.0, %v4938
      %v4940 = vpop.f32.mrb[0].mxu0
      %4941 = vmatprep.mubr.bf16.mxu0 0
      %4942 = vmatmul.mubr.bf16.gmra.mrb[0].mxu0 %v4789
      %v4943 = vpop.f32.mrb[0].mxu0
      %v4944 = vadd.f32 0.0, %v4943
      %v4945 = vpop.f32.mrb[0].mxu0
      %v4946 = vpop.f32.mrb[0].mxu0
      %v4947 = vadd.f32 0.0, %v4946
      %v4948 = vpop.f32.mrb[0].mxu0
      %4949 = vmatprep.mubr.bf16.mxu0 0
      %4950 = vmatmul.mubr.bf16.gmra.mrb[0].mxu0 %v4792
      %v4951 = vpop.f32.mrb[0].mxu0
      %v4952 = vadd.f32 0.0, %v4951
      %v4953 = vpop.f32.mrb[0].mxu0
      %v4954 = vpop.f32.mrb[0].mxu0
      %v4955 = vadd.f32 0.0, %v4954
      %v4956 = vpop.f32.mrb[0].mxu0
      %4957 = vdwg.mxu0
      %v4958 = vadd.f32 %v4232, %v4832
      %v4959 = vadd.f32 %v4233, %v4835
      %v4960 = vadd.f32 %v4234, %v4840
      %v4961 = vadd.f32 %v4235, %v4843
      %v4962 = vadd.f32 %v4236, %v4848
      %v4963 = vadd.f32 %v4237, %v4851
      %v4964 = vadd.f32 %v4238, %v4856
      %v4965 = vadd.f32 %v4239, %v4859
      %v4966 = vadd.f32 %v4240, %v4864
      %v4967 = vadd.f32 %v4241, %v4867
      %v4968 = vadd.f32 %v4242, %v4872
      %v4969 = vadd.f32 %v4243, %v4875
      %v4970 = vadd.f32 %v4244, %v4880
      %v4971 = vadd.f32 %v4245, %v4883
      %v4972 = vadd.f32 %v4246, %v4888
      %v4973 = vadd.f32 %v4247, %v4891
      %v4974 = vadd.f32 %v4248, %v4896
      %v4975 = vadd.f32 %v4249, %v4899
      %v4976 = vadd.f32 %v4250, %v4904
      %v4977 = vadd.f32 %v4251, %v4907
      %v4978 = vadd.f32 %v4252, %v4912
      %v4979 = vadd.f32 %v4253, %v4915
      %v4980 = vadd.f32 %v4254, %v4920
      %v4981 = vadd.f32 %v4255, %v4923
      %v4982 = vadd.f32 %v4256, %v4928
      %v4983 = vadd.f32 %v4257, %v4931
      %v4984 = vadd.f32 %v4258, %v4936
      %v4985 = vadd.f32 %v4259, %v4939
      %v4986 = vadd.f32 %v4260, %v4944
      %v4987 = vadd.f32 %v4261, %v4947
      %v4988 = vadd.f32 %v4262, %v4952
      %v4989 = vadd.f32 %v4263, %v4955
      %s4990 = scalar_lea.vmem [#allocation2], 32
      %v4991 = vld [vmem:[%s4990] sm:$0x8]
      %v4992 = vld [vmem:[%s4990 + $0x4] sm:$0xf]
      %v4993 = vld [vmem:[%s4990 + $0x8] sm:$0xf]
      %v4994 = vld [vmem:[%s4990 + $0x10] sm:$0x8]
      %v4995 = vld [vmem:[%s4990 + $0x14] sm:$0xf]
      %v4996 = vld [vmem:[%s4990 + $0x18] sm:$0xf]
      %v4997 = vld [vmem:[%s4990 + $0x20] sm:$0x8]
      %v4998 = vld [vmem:[%s4990 + $0x24] sm:$0xf]
      %v4999 = vld [vmem:[%s4990 + $0x28] sm:$0xf]
      %v5000 = vld [vmem:[%s4990 + $0x30] sm:$0x8]
      %v5001 = vld [vmem:[%s4990 + $0x34] sm:$0xf]
      %v5002 = vld [vmem:[%s4990 + $0x38] sm:$0xf]
      %v5003 = vld [vmem:[%s4990 + $0x40] sm:$0x8]
      %v5004 = vld [vmem:[%s4990 + $0x44] sm:$0xf]
      %v5005 = vld [vmem:[%s4990 + $0x48] sm:$0xf]
      %v5006 = vld [vmem:[%s4990 + $0x50] sm:$0x8]
      %v5007 = vld [vmem:[%s4990 + $0x54] sm:$0xf]
      %v5008 = vld [vmem:[%s4990 + $0x58] sm:$0xf]
      %v5009 = vld [vmem:[%s4990 + $0x60] sm:$0x8]
      %v5010 = vld [vmem:[%s4990 + $0x64] sm:$0xf]
      %v5011 = vld [vmem:[%s4990 + $0x68] sm:$0xf]
      %v5012 = vld [vmem:[%s4990 + $0x70] sm:$0x8]
      %v5013 = vld [vmem:[%s4990 + $0x74] sm:$0xf]
      %v5014 = vld [vmem:[%s4990 + $0x78] sm:$0xf]
      %v5015 = vld [vmem:[%s4990 + $0x80] sm:$0x8]
      %v5016 = vld [vmem:[%s4990 + $0x84] sm:$0xf]
      %v5017 = vld [vmem:[%s4990 + $0x88] sm:$0xf]
      %v5018 = vld [vmem:[%s4990 + $0x90] sm:$0x8]
      %v5019 = vld [vmem:[%s4990 + $0x94] sm:$0xf]
      %v5020 = vld [vmem:[%s4990 + $0x98] sm:$0xf]
      %v5021 = vld [vmem:[%s4990 + $0xa0] sm:$0x8]
      %v5022 = vld [vmem:[%s4990 + $0xa4] sm:$0xf]
      %v5023 = vld [vmem:[%s4990 + $0xa8] sm:$0xf]
      %v5024 = vld [vmem:[%s4990 + $0xb0] sm:$0x8]
      %v5025 = vld [vmem:[%s4990 + $0xb4] sm:$0xf]
      %v5026 = vld [vmem:[%s4990 + $0xb8] sm:$0xf]
      %v5027 = vld [vmem:[%s4990 + $0xc0] sm:$0x8]
      %v5028 = vld [vmem:[%s4990 + $0xc4] sm:$0xf]
      %v5029 = vld [vmem:[%s4990 + $0xc8] sm:$0xf]
      %v5030 = vld [vmem:[%s4990 + $0xd0] sm:$0x8]
      %v5031 = vld [vmem:[%s4990 + $0xd4] sm:$0xf]
      %v5032 = vld [vmem:[%s4990 + $0xd8] sm:$0xf]
      %v5033 = vld [vmem:[%s4990 + $0xe0] sm:$0x8]
      %v5034 = vld [vmem:[%s4990 + $0xe4] sm:$0xf]
      %v5035 = vld [vmem:[%s4990 + $0xe8] sm:$0xf]
      %v5036 = vld [vmem:[%s4990 + $0xf0] sm:$0x8]
      %v5037 = vld [vmem:[%s4990 + $0xf4] sm:$0xf]
      %v5038 = vld [vmem:[%s4990 + $0xf8] sm:$0xf]
      %v5040 = vshrl.u32 %v4991, 16
      %v5042 = vrot.slane %v5040, 7
      %v5043 = vrot.slane %v5042, 4
      %v5045 = vshrl.u32 %v4992, 16
      %v5047 = vrot.slane %v5045, 7
      %v5048 = vshll.u32 %v4992, 16
      %v5050 = vor.u32 %v5047, %v5048
      %v5051 = vsel %vm1607, %v5043, %v5050
      %v5052 = vrot.slane %v5047, 4
      %v5054 = vshrl.u32 %v4993, 16
      %v5056 = vrot.slane %v5054, 7
      %v5057 = vshll.u32 %v4993, 16
      %v5059 = vor.u32 %v5056, %v5057
      %v5060 = vsel %vm1607, %v5052, %v5059
      %v5062 = vshrl.u32 %v4994, 16
      %v5064 = vrot.slane %v5062, 7
      %v5065 = vrot.slane %v5064, 4
      %v5067 = vshrl.u32 %v4995, 16
      %v5069 = vrot.slane %v5067, 7
      %v5070 = vshll.u32 %v4995, 16
      %v5072 = vor.u32 %v5069, %v5070
      %v5073 = vsel %vm1607, %v5065, %v5072
      %v5074 = vrot.slane %v5069, 4
      %v5076 = vshrl.u32 %v4996, 16
      %v5078 = vrot.slane %v5076, 7
      %v5079 = vshll.u32 %v4996, 16
      %v5081 = vor.u32 %v5078, %v5079
      %v5082 = vsel %vm1607, %v5074, %v5081
      %v5084 = vshrl.u32 %v4997, 16
      %v5086 = vrot.slane %v5084, 7
      %v5087 = vrot.slane %v5086, 4
      %v5089 = vshrl.u32 %v4998, 16
      %v5091 = vrot.slane %v5089, 7
      %v5092 = vshll.u32 %v4998, 16
      %v5094 = vor.u32 %v5091, %v5092
      %v5095 = vsel %vm1607, %v5087, %v5094
      %v5096 = vrot.slane %v5091, 4
      %v5098 = vshrl.u32 %v4999, 16
      %v5100 = vrot.slane %v5098, 7
      %v5101 = vshll.u32 %v4999, 16
      %v5103 = vor.u32 %v5100, %v5101
      %v5104 = vsel %vm1607, %v5096, %v5103
      %v5106 = vshrl.u32 %v5000, 16
      %v5108 = vrot.slane %v5106, 7
      %v5109 = vrot.slane %v5108, 4
      %v5111 = vshrl.u32 %v5001, 16
      %v5113 = vrot.slane %v5111, 7
      %v5114 = vshll.u32 %v5001, 16
      %v5116 = vor.u32 %v5113, %v5114
      %v5117 = vsel %vm1607, %v5109, %v5116
      %v5118 = vrot.slane %v5113, 4
      %v5120 = vshrl.u32 %v5002, 16
      %v5122 = vrot.slane %v5120, 7
      %v5123 = vshll.u32 %v5002, 16
      %v5125 = vor.u32 %v5122, %v5123
      %v5126 = vsel %vm1607, %v5118, %v5125
      %v5128 = vshrl.u32 %v5003, 16
      %v5130 = vrot.slane %v5128, 7
      %v5131 = vrot.slane %v5130, 4
      %v5133 = vshrl.u32 %v5004, 16
      %v5135 = vrot.slane %v5133, 7
      %v5136 = vshll.u32 %v5004, 16
      %v5138 = vor.u32 %v5135, %v5136
      %v5139 = vsel %vm1607, %v5131, %v5138
      %v5140 = vrot.slane %v5135, 4
      %v5142 = vshrl.u32 %v5005, 16
      %v5144 = vrot.slane %v5142, 7
      %v5145 = vshll.u32 %v5005, 16
      %v5147 = vor.u32 %v5144, %v5145
      %v5148 = vsel %vm1607, %v5140, %v5147
      %v5150 = vshrl.u32 %v5006, 16
      %v5152 = vrot.slane %v5150, 7
      %v5153 = vrot.slane %v5152, 4
      %v5155 = vshrl.u32 %v5007, 16
      %v5157 = vrot.slane %v5155, 7
      %v5158 = vshll.u32 %v5007, 16
      %v5160 = vor.u32 %v5157, %v5158
      %v5161 = vsel %vm1607, %v5153, %v5160
      %v5162 = vrot.slane %v5157, 4
      %v5164 = vshrl.u32 %v5008, 16
      %v5166 = vrot.slane %v5164, 7
      %v5167 = vshll.u32 %v5008, 16
      %v5169 = vor.u32 %v5166, %v5167
      %v5170 = vsel %vm1607, %v5162, %v5169
      %v5172 = vshrl.u32 %v5009, 16
      %v5174 = vrot.slane %v5172, 7
      %v5175 = vrot.slane %v5174, 4
      %v5177 = vshrl.u32 %v5010, 16
      %v5179 = vrot.slane %v5177, 7
      %v5180 = vshll.u32 %v5010, 16
      %v5182 = vor.u32 %v5179, %v5180
      %v5183 = vsel %vm1607, %v5175, %v5182
      %v5184 = vrot.slane %v5179, 4
      %v5186 = vshrl.u32 %v5011, 16
      %v5188 = vrot.slane %v5186, 7
      %v5189 = vshll.u32 %v5011, 16
      %v5191 = vor.u32 %v5188, %v5189
      %v5192 = vsel %vm1607, %v5184, %v5191
      %v5194 = vshrl.u32 %v5012, 16
      %v5196 = vrot.slane %v5194, 7
      %v5197 = vrot.slane %v5196, 4
      %v5199 = vshrl.u32 %v5013, 16
      %v5201 = vrot.slane %v5199, 7
      %v5202 = vshll.u32 %v5013, 16
      %v5204 = vor.u32 %v5201, %v5202
      %v5205 = vsel %vm1607, %v5197, %v5204
      %v5206 = vrot.slane %v5201, 4
      %v5208 = vshrl.u32 %v5014, 16
      %v5210 = vrot.slane %v5208, 7
      %v5211 = vshll.u32 %v5014, 16
      %v5213 = vor.u32 %v5210, %v5211
      %v5214 = vsel %vm1607, %v5206, %v5213
      %v5216 = vshrl.u32 %v5015, 16
      %v5218 = vrot.slane %v5216, 7
      %v5219 = vrot.slane %v5218, 4
      %v5221 = vshrl.u32 %v5016, 16
      %v5223 = vrot.slane %v5221, 7
      %v5224 = vshll.u32 %v5016, 16
      %v5226 = vor.u32 %v5223, %v5224
      %v5227 = vsel %vm1607, %v5219, %v5226
      %v5228 = vrot.slane %v5223, 4
      %v5230 = vshrl.u32 %v5017, 16
      %v5232 = vrot.slane %v5230, 7
      %v5233 = vshll.u32 %v5017, 16
      %v5235 = vor.u32 %v5232, %v5233
      %v5236 = vsel %vm1607, %v5228, %v5235
      %v5238 = vshrl.u32 %v5018, 16
      %v5240 = vrot.slane %v5238, 7
      %v5241 = vrot.slane %v5240, 4
      %v5243 = vshrl.u32 %v5019, 16
      %v5245 = vrot.slane %v5243, 7
      %v5246 = vshll.u32 %v5019, 16
      %v5248 = vor.u32 %v5245, %v5246
      %v5249 = vsel %vm1607, %v5241, %v5248
      %v5250 = vrot.slane %v5245, 4
      %v5252 = vshrl.u32 %v5020, 16
      %v5254 = vrot.slane %v5252, 7
      %v5255 = vshll.u32 %v5020, 16
      %v5257 = vor.u32 %v5254, %v5255
      %v5258 = vsel %vm1607, %v5250, %v5257
      %v5260 = vshrl.u32 %v5021, 16
      %v5262 = vrot.slane %v5260, 7
      %v5263 = vrot.slane %v5262, 4
      %v5265 = vshrl.u32 %v5022, 16
      %v5267 = vrot.slane %v5265, 7
      %v5268 = vshll.u32 %v5022, 16
      %v5270 = vor.u32 %v5267, %v5268
      %v5271 = vsel %vm1607, %v5263, %v5270
      %v5272 = vrot.slane %v5267, 4
      %v5274 = vshrl.u32 %v5023, 16
      %v5276 = vrot.slane %v5274, 7
      %v5277 = vshll.u32 %v5023, 16
      %v5279 = vor.u32 %v5276, %v5277
      %v5280 = vsel %vm1607, %v5272, %v5279
      %v5282 = vshrl.u32 %v5024, 16
      %v5284 = vrot.slane %v5282, 7
      %v5285 = vrot.slane %v5284, 4
      %v5287 = vshrl.u32 %v5025, 16
      %v5289 = vrot.slane %v5287, 7
      %v5290 = vshll.u32 %v5025, 16
      %v5292 = vor.u32 %v5289, %v5290
      %v5293 = vsel %vm1607, %v5285, %v5292
      %v5294 = vrot.slane %v5289, 4
      %v5296 = vshrl.u32 %v5026, 16
      %v5298 = vrot.slane %v5296, 7
      %v5299 = vshll.u32 %v5026, 16
      %v5301 = vor.u32 %v5298, %v5299
      %v5302 = vsel %vm1607, %v5294, %v5301
      %v5304 = vshrl.u32 %v5027, 16
      %v5306 = vrot.slane %v5304, 7
      %v5307 = vrot.slane %v5306, 4
      %v5309 = vshrl.u32 %v5028, 16
      %v5311 = vrot.slane %v5309, 7
      %v5312 = vshll.u32 %v5028, 16
      %v5314 = vor.u32 %v5311, %v5312
      %v5315 = vsel %vm1607, %v5307, %v5314
      %v5316 = vrot.slane %v5311, 4
      %v5318 = vshrl.u32 %v5029, 16
      %v5320 = vrot.slane %v5318, 7
      %v5321 = vshll.u32 %v5029, 16
      %v5323 = vor.u32 %v5320, %v5321
      %v5324 = vsel %vm1607, %v5316, %v5323
      %v5326 = vshrl.u32 %v5030, 16
      %v5328 = vrot.slane %v5326, 7
      %v5329 = vrot.slane %v5328, 4
      %v5331 = vshrl.u32 %v5031, 16
      %v5333 = vrot.slane %v5331, 7
      %v5334 = vshll.u32 %v5031, 16
      %v5336 = vor.u32 %v5333, %v5334
      %v5337 = vsel %vm1607, %v5329, %v5336
      %v5338 = vrot.slane %v5333, 4
      %v5340 = vshrl.u32 %v5032, 16
      %v5342 = vrot.slane %v5340, 7
      %v5343 = vshll.u32 %v5032, 16
      %v5345 = vor.u32 %v5342, %v5343
      %v5346 = vsel %vm1607, %v5338, %v5345
      %v5348 = vshrl.u32 %v5033, 16
      %v5350 = vrot.slane %v5348, 7
      %v5351 = vrot.slane %v5350, 4
      %v5353 = vshrl.u32 %v5034, 16
      %v5355 = vrot.slane %v5353, 7
      %v5356 = vshll.u32 %v5034, 16
      %v5358 = vor.u32 %v5355, %v5356
      %v5359 = vsel %vm1607, %v5351, %v5358
      %v5360 = vrot.slane %v5355, 4
      %v5362 = vshrl.u32 %v5035, 16
      %v5364 = vrot.slane %v5362, 7
      %v5365 = vshll.u32 %v5035, 16
      %v5367 = vor.u32 %v5364, %v5365
      %v5368 = vsel %vm1607, %v5360, %v5367
      %v5370 = vshrl.u32 %v5036, 16
      %v5372 = vrot.slane %v5370, 7
      %v5373 = vrot.slane %v5372, 4
      %v5375 = vshrl.u32 %v5037, 16
      %v5377 = vrot.slane %v5375, 7
      %v5378 = vshll.u32 %v5037, 16
      %v5380 = vor.u32 %v5377, %v5378
      %v5381 = vsel %vm1607, %v5373, %v5380
      %v5382 = vrot.slane %v5377, 4
      %v5384 = vshrl.u32 %v5038, 16
      %v5386 = vrot.slane %v5384, 7
      %v5387 = vshll.u32 %v5038, 16
      %v5389 = vor.u32 %v5386, %v5387
      %v5390 = vsel %vm1607, %v5382, %v5389
      %s5391 = scalar_lea.vmem %s7, 12
      %v5392 = vld [vmem:[%s5391] sm:$0x3]
      %v5393 = vunpack.c.l.b16 %v5051
      %v5394 = vunpack.c.l.b16 %v5060
      %v5395 = vunpack.c.l.b16 %v5073
      %v5396 = vunpack.c.l.b16 %v5082
      %v5397 = vunpack.c.l.b16 %v5095
      %v5398 = vunpack.c.l.b16 %v5104
      %v5399 = vunpack.c.l.b16 %v5117
      %v5400 = vunpack.c.l.b16 %v5126
      %v5401 = vunpack.c.l.b16 %v5139
      %v5402 = vunpack.c.l.b16 %v5148
      %v5403 = vunpack.c.l.b16 %v5161
      %v5404 = vunpack.c.l.b16 %v5170
      %v5405 = vunpack.c.l.b16 %v5183
      %v5406 = vunpack.c.l.b16 %v5192
      %v5407 = vunpack.c.l.b16 %v5205
      %v5408 = vunpack.c.l.b16 %v5214
      %v5409 = vunpack.c.l.b16 %v5227
      %v5410 = vunpack.c.l.b16 %v5236
      %v5411 = vunpack.c.l.b16 %v5249
      %v5412 = vunpack.c.l.b16 %v5258
      %v5413 = vunpack.c.l.b16 %v5271
      %v5414 = vunpack.c.l.b16 %v5280
      %v5415 = vunpack.c.l.b16 %v5293
      %v5416 = vunpack.c.l.b16 %v5302
      %v5417 = vunpack.c.l.b16 %v5315
      %v5418 = vunpack.c.l.b16 %v5324
      %v5419 = vunpack.c.l.b16 %v5337
      %v5420 = vunpack.c.l.b16 %v5346
      %v5421 = vunpack.c.l.b16 %v5359
      %v5422 = vunpack.c.l.b16 %v5368
      %v5423 = vunpack.c.l.b16 %v5381
      %v5424 = vunpack.c.l.b16 %v5390
      %v5425 = vpack.c.b16 %v5394, %v5393
      %v5426 = vpack.c.b16 %v5396, %v5395
      %v5427 = vpack.c.b16 %v5398, %v5397
      %v5428 = vpack.c.b16 %v5400, %v5399
      %v5429 = vpack.c.b16 %v5402, %v5401
      %v5430 = vpack.c.b16 %v5404, %v5403
      %v5431 = vpack.c.b16 %v5406, %v5405
      %v5432 = vpack.c.b16 %v5408, %v5407
      %v5433 = vpack.c.b16 %v5410, %v5409
      %v5434 = vpack.c.b16 %v5412, %v5411
      %v5435 = vpack.c.b16 %v5414, %v5413
      %v5436 = vpack.c.b16 %v5416, %v5415
      %v5437 = vpack.c.b16 %v5418, %v5417
      %v5438 = vpack.c.b16 %v5420, %v5419
      %v5439 = vpack.c.b16 %v5422, %v5421
      %v5440 = vpack.c.b16 %v5424, %v5423
      %v5442 = vsel %vm586, %v5425, 0
      %v5445 = vsel %vm586, %v5426, 0
      %v5448 = vsel %vm586, %v5427, 0
      %v5451 = vsel %vm586, %v5428, 0
      %v5454 = vsel %vm586, %v5429, 0
      %v5457 = vsel %vm586, %v5430, 0
      %v5460 = vsel %vm586, %v5431, 0
      %v5463 = vsel %vm586, %v5432, 0
      %v5466 = vsel %vm586, %v5433, 0
      %v5469 = vsel %vm586, %v5434, 0
      %v5472 = vsel %vm586, %v5435, 0
      %v5475 = vsel %vm586, %v5436, 0
      %v5478 = vsel %vm586, %v5437, 0
      %v5481 = vsel %vm586, %v5438, 0
      %v5484 = vsel %vm586, %v5439, 0
      %v5487 = vsel %vm586, %v5440, 0
      %v5490 = vsel %vm635, %v5392, 0
      %5492 = vmatprep.subr.bf16.mxu0 0
      %5493 = vmatpush1.bf16.msra.mxu0 %v5490
      %5494 = vmatprep.subr.bf16.mxu0 0
      %5495 = vmatpush1.bf16.msra.mxu0 0
      %5496 = vmatprep.subr.bf16.mxu0 0
      %5497 = vmatpush1.bf16.msra.mxu0 0
      %5498 = vmatprep.subr.bf16.mxu0 0
      %5499 = vmatpush1.bf16.msra.mxu0 0
      %5500 = vmatprep.subr.bf16.mxu0 0
      %5501 = vmatpush1.bf16.msra.mxu0 0
      %5502 = vmatprep.subr.bf16.mxu0 0
      %5503 = vmatpush1.bf16.msra.mxu0 0
      %5504 = vmatprep.subr.bf16.mxu0 0
      %5505 = vmatpush1.bf16.msra.mxu0 0
      %5506 = vmatprep.subr.bf16.mxu0 0
      %5507 = vmatpush1.bf16.msra.mxu0 0
      %5508 = vmatprep.subr.bf16.mxu0 0
      %5509 = vmatpush1.bf16.msra.mxu0 0
      %5510 = vmatprep.subr.bf16.mxu0 0
      %5511 = vmatpush1.bf16.msra.mxu0 0
      %5512 = vmatprep.subr.bf16.mxu0 0
      %5513 = vmatpush1.bf16.msra.mxu0 0
      %5514 = vmatprep.subr.bf16.mxu0 0
      %5515 = vmatpush1.bf16.msra.mxu0 0
      %5516 = vmatprep.subr.bf16.mxu0 0
      %5517 = vmatpush1.bf16.msra.mxu0 0
      %5518 = vmatprep.subr.bf16.mxu0 0
      %5519 = vmatpush1.bf16.msra.mxu0 0
      %5520 = vmatprep.subr.bf16.mxu0 0
      %5521 = vmatpush1.bf16.msra.mxu0 0
      %5522 = vmatprep.subr.bf16.mxu0 0
      %5523 = vmatpush1.bf16.msra.mxu0 0
      %5524 = vmatprep.mubr.bf16.mxu0 0
      %5525 = vmatmul.mubr.bf16.gmra.mrb[0].mxu0 %v5442
      %v5526 = vpop.f32.mrb[0].mxu0
      %v5527 = vadd.f32 0.0, %v5526
      %v5528 = vpop.f32.mrb[0].mxu0
      %v5529 = vpop.f32.mrb[0].mxu0
      %v5530 = vadd.f32 0.0, %v5529
      %v5531 = vpop.f32.mrb[0].mxu0
      %5532 = vmatprep.mubr.bf16.mxu0 0
      %5533 = vmatmul.mubr.bf16.gmra.mrb[0].mxu0 %v5445
      %v5534 = vpop.f32.mrb[0].mxu0
      %v5535 = vadd.f32 0.0, %v5534
      %v5536 = vpop.f32.mrb[0].mxu0
      %v5537 = vpop.f32.mrb[0].mxu0
      %v5538 = vadd.f32 0.0, %v5537
      %v5539 = vpop.f32.mrb[0].mxu0
      %5540 = vmatprep.mubr.bf16.mxu0 0
      %5541 = vmatmul.mubr.bf16.gmra.mrb[0].mxu0 %v5448
      %v5542 = vpop.f32.mrb[0].mxu0
      %v5543 = vadd.f32 0.0, %v5542
      %v5544 = vpop.f32.mrb[0].mxu0
      %v5545 = vpop.f32.mrb[0].mxu0
      %v5546 = vadd.f32 0.0, %v5545
      %v5547 = vpop.f32.mrb[0].mxu0
      %5548 = vmatprep.mubr.bf16.mxu0 0
      %5549 = vmatmul.mubr.bf16.gmra.mrb[0].mxu0 %v5451
      %v5550 = vpop.f32.mrb[0].mxu0
      %v5551 = vadd.f32 0.0, %v5550
      %v5552 = vpop.f32.mrb[0].mxu0
      %v5553 = vpop.f32.mrb[0].mxu0
      %v5554 = vadd.f32 0.0, %v5553
      %v5555 = vpop.f32.mrb[0].mxu0
      %5556 = vmatprep.mubr.bf16.mxu0 0
      %5557 = vmatmul.mubr.bf16.gmra.mrb[0].mxu0 %v5454
      %v5558 = vpop.f32.mrb[0].mxu0
      %v5559 = vadd.f32 0.0, %v5558
      %v5560 = vpop.f32.mrb[0].mxu0
      %v5561 = vpop.f32.mrb[0].mxu0
      %v5562 = vadd.f32 0.0, %v5561
      %v5563 = vpop.f32.mrb[0].mxu0
      %5564 = vmatprep.mubr.bf16.mxu0 0
      %5565 = vmatmul.mubr.bf16.gmra.mrb[0].mxu0 %v5457
      %v5566 = vpop.f32.mrb[0].mxu0
      %v5567 = vadd.f32 0.0, %v5566
      %v5568 = vpop.f32.mrb[0].mxu0
      %v5569 = vpop.f32.mrb[0].mxu0
      %v5570 = vadd.f32 0.0, %v5569
      %v5571 = vpop.f32.mrb[0].mxu0
      %5572 = vmatprep.mubr.bf16.mxu0 0
      %5573 = vmatmul.mubr.bf16.gmra.mrb[0].mxu0 %v5460
      %v5574 = vpop.f32.mrb[0].mxu0
      %v5575 = vadd.f32 0.0, %v5574
      %v5576 = vpop.f32.mrb[0].mxu0
      %v5577 = vpop.f32.mrb[0].mxu0
      %v5578 = vadd.f32 0.0, %v5577
      %v5579 = vpop.f32.mrb[0].mxu0
      %5580 = vmatprep.mubr.bf16.mxu0 0
      %5581 = vmatmul.mubr.bf16.gmra.mrb[0].mxu0 %v5463
      %v5582 = vpop.f32.mrb[0].mxu0
      %v5583 = vadd.f32 0.0, %v5582
      %v5584 = vpop.f32.mrb[0].mxu0
      %v5585 = vpop.f32.mrb[0].mxu0
      %v5586 = vadd.f32 0.0, %v5585
      %v5587 = vpop.f32.mrb[0].mxu0
      %5588 = vmatprep.mubr.bf16.mxu0 0
      %5589 = vmatmul.mubr.bf16.gmra.mrb[0].mxu0 %v5466
      %v5590 = vpop.f32.mrb[0].mxu0
      %v5591 = vadd.f32 0.0, %v5590
      %v5592 = vpop.f32.mrb[0].mxu0
      %v5593 = vpop.f32.mrb[0].mxu0
      %v5594 = vadd.f32 0.0, %v5593
      %v5595 = vpop.f32.mrb[0].mxu0
      %5596 = vmatprep.mubr.bf16.mxu0 0
      %5597 = vmatmul.mubr.bf16.gmra.mrb[0].mxu0 %v5469
      %v5598 = vpop.f32.mrb[0].mxu0
      %v5599 = vadd.f32 0.0, %v5598
      %v5600 = vpop.f32.mrb[0].mxu0
      %v5601 = vpop.f32.mrb[0].mxu0
      %v5602 = vadd.f32 0.0, %v5601
      %v5603 = vpop.f32.mrb[0].mxu0
      %5604 = vmatprep.mubr.bf16.mxu0 0
      %5605 = vmatmul.mubr.bf16.gmra.mrb[0].mxu0 %v5472
      %v5606 = vpop.f32.mrb[0].mxu0
      %v5607 = vadd.f32 0.0, %v5606
      %v5608 = vpop.f32.mrb[0].mxu0
      %v5609 = vpop.f32.mrb[0].mxu0
      %v5610 = vadd.f32 0.0, %v5609
      %v5611 = vpop.f32.mrb[0].mxu0
      %5612 = vmatprep.mubr.bf16.mxu0 0
      %5613 = vmatmul.mubr.bf16.gmra.mrb[0].mxu0 %v5475
      %v5614 = vpop.f32.mrb[0].mxu0
      %v5615 = vadd.f32 0.0, %v5614
      %v5616 = vpop.f32.mrb[0].mxu0
      %v5617 = vpop.f32.mrb[0].mxu0
      %v5618 = vadd.f32 0.0, %v5617
      %v5619 = vpop.f32.mrb[0].mxu0
      %5620 = vmatprep.mubr.bf16.mxu0 0
      %5621 = vmatmul.mubr.bf16.gmra.mrb[0].mxu0 %v5478
      %v5622 = vpop.f32.mrb[0].mxu0
      %v5623 = vadd.f32 0.0, %v5622
      %v5624 = vpop.f32.mrb[0].mxu0
      %v5625 = vpop.f32.mrb[0].mxu0
      %v5626 = vadd.f32 0.0, %v5625
      %v5627 = vpop.f32.mrb[0].mxu0
      %5628 = vmatprep.mubr.bf16.mxu0 0
      %5629 = vmatmul.mubr.bf16.gmra.mrb[0].mxu0 %v5481
      %v5630 = vpop.f32.mrb[0].mxu0
      %v5631 = vadd.f32 0.0, %v5630
      %v5632 = vpop.f32.mrb[0].mxu0
      %v5633 = vpop.f32.mrb[0].mxu0
      %v5634 = vadd.f32 0.0, %v5633
      %v5635 = vpop.f32.mrb[0].mxu0
      %5636 = vmatprep.mubr.bf16.mxu0 0
      %5637 = vmatmul.mubr.bf16.gmra.mrb[0].mxu0 %v5484
      %v5638 = vpop.f32.mrb[0].mxu0
      %v5639 = vadd.f32 0.0, %v5638
      %v5640 = vpop.f32.mrb[0].mxu0
      %v5641 = vpop.f32.mrb[0].mxu0
      %v5642 = vadd.f32 0.0, %v5641
      %v5643 = vpop.f32.mrb[0].mxu0
      %5644 = vmatprep.mubr.bf16.mxu0 0
      %5645 = vmatmul.mubr.bf16.gmra.mrb[0].mxu0 %v5487
      %v5646 = vpop.f32.mrb[0].mxu0
      %v5647 = vadd.f32 0.0, %v5646
      %v5648 = vpop.f32.mrb[0].mxu0
      %v5649 = vpop.f32.mrb[0].mxu0
      %v5650 = vadd.f32 0.0, %v5649
      %v5651 = vpop.f32.mrb[0].mxu0
      %5652 = vdwg.mxu0
      %v5653 = vadd.f32 %v4958, %v5527
      %v5654 = vadd.f32 %v4959, %v5530
      %v5655 = vadd.f32 %v4960, %v5535
      %v5656 = vadd.f32 %v4961, %v5538
      %v5657 = vadd.f32 %v4962, %v5543
      %v5658 = vadd.f32 %v4963, %v5546
      %v5659 = vadd.f32 %v4964, %v5551
      %v5660 = vadd.f32 %v4965, %v5554
      %v5661 = vadd.f32 %v4966, %v5559
      %v5662 = vadd.f32 %v4967, %v5562
      %v5663 = vadd.f32 %v4968, %v5567
      %v5664 = vadd.f32 %v4969, %v5570
      %v5665 = vadd.f32 %v4970, %v5575
      %v5666 = vadd.f32 %v4971, %v5578
      %v5667 = vadd.f32 %v4972, %v5583
      %v5668 = vadd.f32 %v4973, %v5586
      %v5669 = vadd.f32 %v4974, %v5591
      %v5670 = vadd.f32 %v4975, %v5594
      %v5671 = vadd.f32 %v4976, %v5599
      %v5672 = vadd.f32 %v4977, %v5602
      %v5673 = vadd.f32 %v4978, %v5607
      %v5674 = vadd.f32 %v4979, %v5610
      %v5675 = vadd.f32 %v4980, %v5615
      %v5676 = vadd.f32 %v4981, %v5618
      %v5677 = vadd.f32 %v4982, %v5623
      %v5678 = vadd.f32 %v4983, %v5626
      %v5679 = vadd.f32 %v4984, %v5631
      %v5680 = vadd.f32 %v4985, %v5634
      %v5681 = vadd.f32 %v4986, %v5639
      %v5682 = vadd.f32 %v4987, %v5642
      %v5683 = vadd.f32 %v4988, %v5647
      %v5684 = vadd.f32 %v4989, %v5650
      %s5685 = scalar_lea.vmem %s7, 14
      %v5686 = vld [vmem:[%s5685] sm:$0x3]
      %v5719 = vunpack.c.l.b16 %v4992
      %v5720 = vunpack.c.l.b16 %v4993
      %v5721 = vunpack.c.l.b16 %v4995
      %v5722 = vunpack.c.l.b16 %v4996
      %v5723 = vunpack.c.l.b16 %v4998
      %v5724 = vunpack.c.l.b16 %v4999
      %v5725 = vunpack.c.l.b16 %v5001
      %v5726 = vunpack.c.l.b16 %v5002
      %v5727 = vunpack.c.l.b16 %v5004
      %v5728 = vunpack.c.l.b16 %v5005
      %v5729 = vunpack.c.l.b16 %v5007
      %v5730 = vunpack.c.l.b16 %v5008
      %v5731 = vunpack.c.l.b16 %v5010
      %v5732 = vunpack.c.l.b16 %v5011
      %v5733 = vunpack.c.l.b16 %v5013
      %v5734 = vunpack.c.l.b16 %v5014
      %v5735 = vunpack.c.l.b16 %v5016
      %v5736 = vunpack.c.l.b16 %v5017
      %v5737 = vunpack.c.l.b16 %v5019
      %v5738 = vunpack.c.l.b16 %v5020
      %v5739 = vunpack.c.l.b16 %v5022
      %v5740 = vunpack.c.l.b16 %v5023
      %v5741 = vunpack.c.l.b16 %v5025
      %v5742 = vunpack.c.l.b16 %v5026
      %v5743 = vunpack.c.l.b16 %v5028
      %v5744 = vunpack.c.l.b16 %v5029
      %v5745 = vunpack.c.l.b16 %v5031
      %v5746 = vunpack.c.l.b16 %v5032
      %v5747 = vunpack.c.l.b16 %v5034
      %v5748 = vunpack.c.l.b16 %v5035
      %v5749 = vunpack.c.l.b16 %v5037
      %v5750 = vunpack.c.l.b16 %v5038
      %v5751 = vpack.c.b16 %v5720, %v5719
      %v5752 = vpack.c.b16 %v5722, %v5721
      %v5753 = vpack.c.b16 %v5724, %v5723
      %v5754 = vpack.c.b16 %v5726, %v5725
      %v5755 = vpack.c.b16 %v5728, %v5727
      %v5756 = vpack.c.b16 %v5730, %v5729
      %v5757 = vpack.c.b16 %v5732, %v5731
      %v5758 = vpack.c.b16 %v5734, %v5733
      %v5759 = vpack.c.b16 %v5736, %v5735
      %v5760 = vpack.c.b16 %v5738, %v5737
      %v5761 = vpack.c.b16 %v5740, %v5739
      %v5762 = vpack.c.b16 %v5742, %v5741
      %v5763 = vpack.c.b16 %v5744, %v5743
      %v5764 = vpack.c.b16 %v5746, %v5745
      %v5765 = vpack.c.b16 %v5748, %v5747
      %v5766 = vpack.c.b16 %v5750, %v5749
      %v5768 = vsel %vm586, %v5751, 0
      %v5771 = vsel %vm586, %v5752, 0
      %v5774 = vsel %vm586, %v5753, 0
      %v5777 = vsel %vm586, %v5754, 0
      %v5780 = vsel %vm586, %v5755, 0
      %v5783 = vsel %vm586, %v5756, 0
      %v5786 = vsel %vm586, %v5757, 0
      %v5789 = vsel %vm586, %v5758, 0
      %v5792 = vsel %vm586, %v5759, 0
      %v5795 = vsel %vm586, %v5760, 0
      %v5798 = vsel %vm586, %v5761, 0
      %v5801 = vsel %vm586, %v5762, 0
      %v5804 = vsel %vm586, %v5763, 0
      %v5807 = vsel %vm586, %v5764, 0
      %v5810 = vsel %vm586, %v5765, 0
      %v5813 = vsel %vm586, %v5766, 0
      %v5816 = vsel %vm635, %v5686, 0
      %5818 = vmatprep.subr.bf16.mxu0 0
      %5819 = vmatpush1.bf16.msra.mxu0 %v5816
      %5820 = vmatprep.subr.bf16.mxu0 0
      %5821 = vmatpush1.bf16.msra.mxu0 0
      %5822 = vmatprep.subr.bf16.mxu0 0
      %5823 = vmatpush1.bf16.msra.mxu0 0
      %5824 = vmatprep.subr.bf16.mxu0 0
      %5825 = vmatpush1.bf16.msra.mxu0 0
      %5826 = vmatprep.subr.bf16.mxu0 0
      %5827 = vmatpush1.bf16.msra.mxu0 0
      %5828 = vmatprep.subr.bf16.mxu0 0
      %5829 = vmatpush1.bf16.msra.mxu0 0
      %5830 = vmatprep.subr.bf16.mxu0 0
      %5831 = vmatpush1.bf16.msra.mxu0 0
      %5832 = vmatprep.subr.bf16.mxu0 0
      %5833 = vmatpush1.bf16.msra.mxu0 0
      %5834 = vmatprep.subr.bf16.mxu0 0
      %5835 = vmatpush1.bf16.msra.mxu0 0
      %5836 = vmatprep.subr.bf16.mxu0 0
      %5837 = vmatpush1.bf16.msra.mxu0 0
      %5838 = vmatprep.subr.bf16.mxu0 0
      %5839 = vmatpush1.bf16.msra.mxu0 0
      %5840 = vmatprep.subr.bf16.mxu0 0
      %5841 = vmatpush1.bf16.msra.mxu0 0
      %5842 = vmatprep.subr.bf16.mxu0 0
      %5843 = vmatpush1.bf16.msra.mxu0 0
      %5844 = vmatprep.subr.bf16.mxu0 0
      %5845 = vmatpush1.bf16.msra.mxu0 0
      %5846 = vmatprep.subr.bf16.mxu0 0
      %5847 = vmatpush1.bf16.msra.mxu0 0
      %5848 = vmatprep.subr.bf16.mxu0 0
      %5849 = vmatpush1.bf16.msra.mxu0 0
      %5850 = vmatprep.mubr.bf16.mxu0 0
      %5851 = vmatmul.mubr.bf16.gmra.mrb[0].mxu0 %v5768
      %v5852 = vpop.f32.mrb[0].mxu0
      %v5853 = vadd.f32 0.0, %v5852
      %v5854 = vpop.f32.mrb[0].mxu0
      %v5855 = vpop.f32.mrb[0].mxu0
      %v5856 = vadd.f32 0.0, %v5855
      %v5857 = vpop.f32.mrb[0].mxu0
      %5858 = vmatprep.mubr.bf16.mxu0 0
      %5859 = vmatmul.mubr.bf16.gmra.mrb[0].mxu0 %v5771
      %v5860 = vpop.f32.mrb[0].mxu0
      %v5861 = vadd.f32 0.0, %v5860
      %v5862 = vpop.f32.mrb[0].mxu0
      %v5863 = vpop.f32.mrb[0].mxu0
      %v5864 = vadd.f32 0.0, %v5863
      %v5865 = vpop.f32.mrb[0].mxu0
      %5866 = vmatprep.mubr.bf16.mxu0 0
      %5867 = vmatmul.mubr.bf16.gmra.mrb[0].mxu0 %v5774
      %v5868 = vpop.f32.mrb[0].mxu0
      %v5869 = vadd.f32 0.0, %v5868
      %v5870 = vpop.f32.mrb[0].mxu0
      %v5871 = vpop.f32.mrb[0].mxu0
      %v5872 = vadd.f32 0.0, %v5871
      %v5873 = vpop.f32.mrb[0].mxu0
      %5874 = vmatprep.mubr.bf16.mxu0 0
      %5875 = vmatmul.mubr.bf16.gmra.mrb[0].mxu0 %v5777
      %v5876 = vpop.f32.mrb[0].mxu0
      %v5877 = vadd.f32 0.0, %v5876
      %v5878 = vpop.f32.mrb[0].mxu0
      %v5879 = vpop.f32.mrb[0].mxu0
      %v5880 = vadd.f32 0.0, %v5879
      %v5881 = vpop.f32.mrb[0].mxu0
      %5882 = vmatprep.mubr.bf16.mxu0 0
      %5883 = vmatmul.mubr.bf16.gmra.mrb[0].mxu0 %v5780
      %v5884 = vpop.f32.mrb[0].mxu0
      %v5885 = vadd.f32 0.0, %v5884
      %v5886 = vpop.f32.mrb[0].mxu0
      %v5887 = vpop.f32.mrb[0].mxu0
      %v5888 = vadd.f32 0.0, %v5887
      %v5889 = vpop.f32.mrb[0].mxu0
      %5890 = vmatprep.mubr.bf16.mxu0 0
      %5891 = vmatmul.mubr.bf16.gmra.mrb[0].mxu0 %v5783
      %v5892 = vpop.f32.mrb[0].mxu0
      %v5893 = vadd.f32 0.0, %v5892
      %v5894 = vpop.f32.mrb[0].mxu0
      %v5895 = vpop.f32.mrb[0].mxu0
      %v5896 = vadd.f32 0.0, %v5895
      %v5897 = vpop.f32.mrb[0].mxu0
      %5898 = vmatprep.mubr.bf16.mxu0 0
      %5899 = vmatmul.mubr.bf16.gmra.mrb[0].mxu0 %v5786
      %v5900 = vpop.f32.mrb[0].mxu0
      %v5901 = vadd.f32 0.0, %v5900
      %v5902 = vpop.f32.mrb[0].mxu0
      %v5903 = vpop.f32.mrb[0].mxu0
      %v5904 = vadd.f32 0.0, %v5903
      %v5905 = vpop.f32.mrb[0].mxu0
      %5906 = vmatprep.mubr.bf16.mxu0 0
      %5907 = vmatmul.mubr.bf16.gmra.mrb[0].mxu0 %v5789
      %v5908 = vpop.f32.mrb[0].mxu0
      %v5909 = vadd.f32 0.0, %v5908
      %v5910 = vpop.f32.mrb[0].mxu0
      %v5911 = vpop.f32.mrb[0].mxu0
      %v5912 = vadd.f32 0.0, %v5911
      %v5913 = vpop.f32.mrb[0].mxu0
      %5914 = vmatprep.mubr.bf16.mxu0 0
      %5915 = vmatmul.mubr.bf16.gmra.mrb[0].mxu0 %v5792
      %v5916 = vpop.f32.mrb[0].mxu0
      %v5917 = vadd.f32 0.0, %v5916
      %v5918 = vpop.f32.mrb[0].mxu0
      %v5919 = vpop.f32.mrb[0].mxu0
      %v5920 = vadd.f32 0.0, %v5919
      %v5921 = vpop.f32.mrb[0].mxu0
      %5922 = vmatprep.mubr.bf16.mxu0 0
      %5923 = vmatmul.mubr.bf16.gmra.mrb[0].mxu0 %v5795
      %v5924 = vpop.f32.mrb[0].mxu0
      %v5925 = vadd.f32 0.0, %v5924
      %v5926 = vpop.f32.mrb[0].mxu0
      %v5927 = vpop.f32.mrb[0].mxu0
      %v5928 = vadd.f32 0.0, %v5927
      %v5929 = vpop.f32.mrb[0].mxu0
      %5930 = vmatprep.mubr.bf16.mxu0 0
      %5931 = vmatmul.mubr.bf16.gmra.mrb[0].mxu0 %v5798
      %v5932 = vpop.f32.mrb[0].mxu0
      %v5933 = vadd.f32 0.0, %v5932
      %v5934 = vpop.f32.mrb[0].mxu0
      %v5935 = vpop.f32.mrb[0].mxu0
      %v5936 = vadd.f32 0.0, %v5935
      %v5937 = vpop.f32.mrb[0].mxu0
      %5938 = vmatprep.mubr.bf16.mxu0 0
      %5939 = vmatmul.mubr.bf16.gmra.mrb[0].mxu0 %v5801
      %v5940 = vpop.f32.mrb[0].mxu0
      %v5941 = vadd.f32 0.0, %v5940
      %v5942 = vpop.f32.mrb[0].mxu0
      %v5943 = vpop.f32.mrb[0].mxu0
      %v5944 = vadd.f32 0.0, %v5943
      %v5945 = vpop.f32.mrb[0].mxu0
      %5946 = vmatprep.mubr.bf16.mxu0 0
      %5947 = vmatmul.mubr.bf16.gmra.mrb[0].mxu0 %v5804
      %v5948 = vpop.f32.mrb[0].mxu0
      %v5949 = vadd.f32 0.0, %v5948
      %v5950 = vpop.f32.mrb[0].mxu0
      %v5951 = vpop.f32.mrb[0].mxu0
      %v5952 = vadd.f32 0.0, %v5951
      %v5953 = vpop.f32.mrb[0].mxu0
      %5954 = vmatprep.mubr.bf16.mxu0 0
      %5955 = vmatmul.mubr.bf16.gmra.mrb[0].mxu0 %v5807
      %v5956 = vpop.f32.mrb[0].mxu0
      %v5957 = vadd.f32 0.0, %v5956
      %v5958 = vpop.f32.mrb[0].mxu0
      %v5959 = vpop.f32.mrb[0].mxu0
      %v5960 = vadd.f32 0.0, %v5959
      %v5961 = vpop.f32.mrb[0].mxu0
      %5962 = vmatprep.mubr.bf16.mxu0 0
      %5963 = vmatmul.mubr.bf16.gmra.mrb[0].mxu0 %v5810
      %v5964 = vpop.f32.mrb[0].mxu0
      %v5965 = vadd.f32 0.0, %v5964
      %v5966 = vpop.f32.mrb[0].mxu0
      %v5967 = vpop.f32.mrb[0].mxu0
      %v5968 = vadd.f32 0.0, %v5967
      %v5969 = vpop.f32.mrb[0].mxu0
      %5970 = vmatprep.mubr.bf16.mxu0 0
      %5971 = vmatmul.mubr.bf16.gmra.mrb[0].mxu0 %v5813
      %v5972 = vpop.f32.mrb[0].mxu0
      %v5973 = vadd.f32 0.0, %v5972
      %v5974 = vpop.f32.mrb[0].mxu0
      %v5975 = vpop.f32.mrb[0].mxu0
      %v5976 = vadd.f32 0.0, %v5975
      %v5977 = vpop.f32.mrb[0].mxu0
      %5978 = vdwg.mxu0
      %v5979 = vadd.f32 %v5653, %v5853
      %v5980 = vadd.f32 %v5654, %v5856
      %v5981 = vadd.f32 %v5655, %v5861
      %v5982 = vadd.f32 %v5656, %v5864
      %v5983 = vadd.f32 %v5657, %v5869
      %v5984 = vadd.f32 %v5658, %v5872
      %v5985 = vadd.f32 %v5659, %v5877
      %v5986 = vadd.f32 %v5660, %v5880
      %v5987 = vadd.f32 %v5661, %v5885
      %v5988 = vadd.f32 %v5662, %v5888
      %v5989 = vadd.f32 %v5663, %v5893
      %v5990 = vadd.f32 %v5664, %v5896
      %v5991 = vadd.f32 %v5665, %v5901
      %v5992 = vadd.f32 %v5666, %v5904
      %v5993 = vadd.f32 %v5667, %v5909
      %v5994 = vadd.f32 %v5668, %v5912
      %v5995 = vadd.f32 %v5669, %v5917
      %v5996 = vadd.f32 %v5670, %v5920
      %v5997 = vadd.f32 %v5671, %v5925
      %v5998 = vadd.f32 %v5672, %v5928
      %v5999 = vadd.f32 %v5673, %v5933
      %v6000 = vadd.f32 %v5674, %v5936
      %v6001 = vadd.f32 %v5675, %v5941
      %v6002 = vadd.f32 %v5676, %v5944
      %v6003 = vadd.f32 %v5677, %v5949
      %v6004 = vadd.f32 %v5678, %v5952
      %v6005 = vadd.f32 %v5679, %v5957
      %v6006 = vadd.f32 %v5680, %v5960
      %v6007 = vadd.f32 %v5681, %v5965
      %v6008 = vadd.f32 %v5682, %v5968
      %v6009 = vadd.f32 %v5683, %v5973
      %v6010 = vadd.f32 %v5684, %v5976
      %v6011 = vld [vmem:[%s4990 + $0x4] sm:$0xf]
      %v6012 = vld [vmem:[%s4990 + $0x8] sm:$0xf]
      %v6013 = vld [vmem:[%s4990 + $0xc] sm:$0x1]
      %v6014 = vld [vmem:[%s4990 + $0x14] sm:$0xf]
      %v6015 = vld [vmem:[%s4990 + $0x18] sm:$0xf]
      %v6016 = vld [vmem:[%s4990 + $0x1c] sm:$0x1]
      %v6017 = vld [vmem:[%s4990 + $0x24] sm:$0xf]
      %v6018 = vld [vmem:[%s4990 + $0x28] sm:$0xf]
      %v6019 = vld [vmem:[%s4990 + $0x2c] sm:$0x1]
      %v6020 = vld [vmem:[%s4990 + $0x34] sm:$0xf]
      %v6021 = vld [vmem:[%s4990 + $0x38] sm:$0xf]
      %v6022 = vld [vmem:[%s4990 + $0x3c] sm:$0x1]
      %v6023 = vld [vmem:[%s4990 + $0x44] sm:$0xf]
      %v6024 = vld [vmem:[%s4990 + $0x48] sm:$0xf]
      %v6025 = vld [vmem:[%s4990 + $0x4c] sm:$0x1]
      %v6026 = vld [vmem:[%s4990 + $0x54] sm:$0xf]
      %v6027 = vld [vmem:[%s4990 + $0x58] sm:$0xf]
      %v6028 = vld [vmem:[%s4990 + $0x5c] sm:$0x1]
      %v6029 = vld [vmem:[%s4990 + $0x64] sm:$0xf]
      %v6030 = vld [vmem:[%s4990 + $0x68] sm:$0xf]
      %v6031 = vld [vmem:[%s4990 + $0x6c] sm:$0x1]
      %v6032 = vld [vmem:[%s4990 + $0x74] sm:$0xf]
      %v6033 = vld [vmem:[%s4990 + $0x78] sm:$0xf]
      %v6034 = vld [vmem:[%s4990 + $0x7c] sm:$0x1]
      %v6035 = vld [vmem:[%s4990 + $0x84] sm:$0xf]
      %v6036 = vld [vmem:[%s4990 + $0x88] sm:$0xf]
      %v6037 = vld [vmem:[%s4990 + $0x8c] sm:$0x1]
      %v6038 = vld [vmem:[%s4990 + $0x94] sm:$0xf]
      %v6039 = vld [vmem:[%s4990 + $0x98] sm:$0xf]
      %v6040 = vld [vmem:[%s4990 + $0x9c] sm:$0x1]
      %v6041 = vld [vmem:[%s4990 + $0xa4] sm:$0xf]
      %v6042 = vld [vmem:[%s4990 + $0xa8] sm:$0xf]
      %v6043 = vld [vmem:[%s4990 + $0xac] sm:$0x1]
      %v6044 = vld [vmem:[%s4990 + $0xb4] sm:$0xf]
      %v6045 = vld [vmem:[%s4990 + $0xb8] sm:$0xf]
      %v6046 = vld [vmem:[%s4990 + $0xbc] sm:$0x1]
      %v6047 = vld [vmem:[%s4990 + $0xc4] sm:$0xf]
      %v6048 = vld [vmem:[%s4990 + $0xc8] sm:$0xf]
      %v6049 = vld [vmem:[%s4990 + $0xcc] sm:$0x1]
      %v6050 = vld [vmem:[%s4990 + $0xd4] sm:$0xf]
      %v6051 = vld [vmem:[%s4990 + $0xd8] sm:$0xf]
      %v6052 = vld [vmem:[%s4990 + $0xdc] sm:$0x1]
      %v6053 = vld [vmem:[%s4990 + $0xe4] sm:$0xf]
      %v6054 = vld [vmem:[%s4990 + $0xe8] sm:$0xf]
      %v6055 = vld [vmem:[%s4990 + $0xec] sm:$0x1]
      %v6056 = vld [vmem:[%s4990 + $0xf4] sm:$0xf]
      %v6057 = vld [vmem:[%s4990 + $0xf8] sm:$0xf]
      %v6058 = vld [vmem:[%s4990 + $0xfc] sm:$0x1]
      %v6060 = vshrl.u32 %v6011, 16
      %v6062 = vrot.slane %v6060, 4
      %v6063 = vshll.u32 %v6011, 16
      %v6065 = vrot.slane %v6063, 5
      %v6066 = vor.u32 %v6062, %v6065
      %v6067 = vrot.slane %v6066, 4
      %v6069 = vshll.u32 %v6012, 16
      %v6071 = vrot.slane %v6069, 5
      %v6072 = vsel %vm2565, %v6067, %v6071
      %v6073 = vshrl.u32 %v6012, 16
      %v6075 = vrot.slane %v6073, 4
      %v6076 = vor.u32 %v6075, %v6071
      %v6077 = vrot.slane %v6076, 4
      %v6079 = vshll.u32 %v6013, 16
      %v6081 = vrot.slane %v6079, 5
      %v6082 = vsel %vm2565, %v6077, %v6081
      %v6084 = vshrl.u32 %v6014, 16
      %v6086 = vrot.slane %v6084, 4
      %v6087 = vshll.u32 %v6014, 16
      %v6089 = vrot.slane %v6087, 5
      %v6090 = vor.u32 %v6086, %v6089
      %v6091 = vrot.slane %v6090, 4
      %v6093 = vshll.u32 %v6015, 16
      %v6095 = vrot.slane %v6093, 5
      %v6096 = vsel %vm2565, %v6091, %v6095
      %v6097 = vshrl.u32 %v6015, 16
      %v6099 = vrot.slane %v6097, 4
      %v6100 = vor.u32 %v6099, %v6095
      %v6101 = vrot.slane %v6100, 4
      %v6103 = vshll.u32 %v6016, 16
      %v6105 = vrot.slane %v6103, 5
      %v6106 = vsel %vm2565, %v6101, %v6105
      %v6108 = vshrl.u32 %v6017, 16
      %v6110 = vrot.slane %v6108, 4
      %v6111 = vshll.u32 %v6017, 16
      %v6113 = vrot.slane %v6111, 5
      %v6114 = vor.u32 %v6110, %v6113
      %v6115 = vrot.slane %v6114, 4
      %v6117 = vshll.u32 %v6018, 16
      %v6119 = vrot.slane %v6117, 5
      %v6120 = vsel %vm2565, %v6115, %v6119
      %v6121 = vshrl.u32 %v6018, 16
      %v6123 = vrot.slane %v6121, 4
      %v6124 = vor.u32 %v6123, %v6119
      %v6125 = vrot.slane %v6124, 4
      %v6127 = vshll.u32 %v6019, 16
      %v6129 = vrot.slane %v6127, 5
      %v6130 = vsel %vm2565, %v6125, %v6129
      %v6132 = vshrl.u32 %v6020, 16
      %v6134 = vrot.slane %v6132, 4
      %v6135 = vshll.u32 %v6020, 16
      %v6137 = vrot.slane %v6135, 5
      %v6138 = vor.u32 %v6134, %v6137
      %v6139 = vrot.slane %v6138, 4
      %v6141 = vshll.u32 %v6021, 16
      %v6143 = vrot.slane %v6141, 5
      %v6144 = vsel %vm2565, %v6139, %v6143
      %v6145 = vshrl.u32 %v6021, 16
      %v6147 = vrot.slane %v6145, 4
      %v6148 = vor.u32 %v6147, %v6143
      %v6149 = vrot.slane %v6148, 4
      %v6151 = vshll.u32 %v6022, 16
      %v6153 = vrot.slane %v6151, 5
      %v6154 = vsel %vm2565, %v6149, %v6153
      %v6156 = vshrl.u32 %v6023, 16
      %v6158 = vrot.slane %v6156, 4
      %v6159 = vshll.u32 %v6023, 16
      %v6161 = vrot.slane %v6159, 5
      %v6162 = vor.u32 %v6158, %v6161
      %v6163 = vrot.slane %v6162, 4
      %v6165 = vshll.u32 %v6024, 16
      %v6167 = vrot.slane %v6165, 5
      %v6168 = vsel %vm2565, %v6163, %v6167
      %v6169 = vshrl.u32 %v6024, 16
      %v6171 = vrot.slane %v6169, 4
      %v6172 = vor.u32 %v6171, %v6167
      %v6173 = vrot.slane %v6172, 4
      %v6175 = vshll.u32 %v6025, 16
      %v6177 = vrot.slane %v6175, 5
      %v6178 = vsel %vm2565, %v6173, %v6177
      %v6180 = vshrl.u32 %v6026, 16
      %v6182 = vrot.slane %v6180, 4
      %v6183 = vshll.u32 %v6026, 16
      %v6185 = vrot.slane %v6183, 5
      %v6186 = vor.u32 %v6182, %v6185
      %v6187 = vrot.slane %v6186, 4
      %v6189 = vshll.u32 %v6027, 16
      %v6191 = vrot.slane %v6189, 5
      %v6192 = vsel %vm2565, %v6187, %v6191
      %v6193 = vshrl.u32 %v6027, 16
      %v6195 = vrot.slane %v6193, 4
      %v6196 = vor.u32 %v6195, %v6191
      %v6197 = vrot.slane %v6196, 4
      %v6199 = vshll.u32 %v6028, 16
      %v6201 = vrot.slane %v6199, 5
      %v6202 = vsel %vm2565, %v6197, %v6201
      %v6204 = vshrl.u32 %v6029, 16
      %v6206 = vrot.slane %v6204, 4
      %v6207 = vshll.u32 %v6029, 16
      %v6209 = vrot.slane %v6207, 5
      %v6210 = vor.u32 %v6206, %v6209
      %v6211 = vrot.slane %v6210, 4
      %v6213 = vshll.u32 %v6030, 16
      %v6215 = vrot.slane %v6213, 5
      %v6216 = vsel %vm2565, %v6211, %v6215
      %v6217 = vshrl.u32 %v6030, 16
      %v6219 = vrot.slane %v6217, 4
      %v6220 = vor.u32 %v6219, %v6215
      %v6221 = vrot.slane %v6220, 4
      %v6223 = vshll.u32 %v6031, 16
      %v6225 = vrot.slane %v6223, 5
      %v6226 = vsel %vm2565, %v6221, %v6225
      %v6228 = vshrl.u32 %v6032, 16
      %v6230 = vrot.slane %v6228, 4
      %v6231 = vshll.u32 %v6032, 16
      %v6233 = vrot.slane %v6231, 5
      %v6234 = vor.u32 %v6230, %v6233
      %v6235 = vrot.slane %v6234, 4
      %v6237 = vshll.u32 %v6033, 16
      %v6239 = vrot.slane %v6237, 5
      %v6240 = vsel %vm2565, %v6235, %v6239
      %v6241 = vshrl.u32 %v6033, 16
      %v6243 = vrot.slane %v6241, 4
      %v6244 = vor.u32 %v6243, %v6239
      %v6245 = vrot.slane %v6244, 4
      %v6247 = vshll.u32 %v6034, 16
      %v6249 = vrot.slane %v6247, 5
      %v6250 = vsel %vm2565, %v6245, %v6249
      %v6252 = vshrl.u32 %v6035, 16
      %v6254 = vrot.slane %v6252, 4
      %v6255 = vshll.u32 %v6035, 16
      %v6257 = vrot.slane %v6255, 5
      %v6258 = vor.u32 %v6254, %v6257
      %v6259 = vrot.slane %v6258, 4
      %v6261 = vshll.u32 %v6036, 16
      %v6263 = vrot.slane %v6261, 5
      %v6264 = vsel %vm2565, %v6259, %v6263
      %v6265 = vshrl.u32 %v6036, 16
      %v6267 = vrot.slane %v6265, 4
      %v6268 = vor.u32 %v6267, %v6263
      %v6269 = vrot.slane %v6268, 4
      %v6271 = vshll.u32 %v6037, 16
      %v6273 = vrot.slane %v6271, 5
      %v6274 = vsel %vm2565, %v6269, %v6273
      %v6276 = vshrl.u32 %v6038, 16
      %v6278 = vrot.slane %v6276, 4
      %v6279 = vshll.u32 %v6038, 16
      %v6281 = vrot.slane %v6279, 5
      %v6282 = vor.u32 %v6278, %v6281
      %v6283 = vrot.slane %v6282, 4
      %v6285 = vshll.u32 %v6039, 16
      %v6287 = vrot.slane %v6285, 5
      %v6288 = vsel %vm2565, %v6283, %v6287
      %v6289 = vshrl.u32 %v6039, 16
      %v6291 = vrot.slane %v6289, 4
      %v6292 = vor.u32 %v6291, %v6287
      %v6293 = vrot.slane %v6292, 4
      %v6295 = vshll.u32 %v6040, 16
      %v6297 = vrot.slane %v6295, 5
      %v6298 = vsel %vm2565, %v6293, %v6297
      %v6300 = vshrl.u32 %v6041, 16
      %v6302 = vrot.slane %v6300, 4
      %v6303 = vshll.u32 %v6041, 16
      %v6305 = vrot.slane %v6303, 5
      %v6306 = vor.u32 %v6302, %v6305
      %v6307 = vrot.slane %v6306, 4
      %v6309 = vshll.u32 %v6042, 16
      %v6311 = vrot.slane %v6309, 5
      %v6312 = vsel %vm2565, %v6307, %v6311
      %v6313 = vshrl.u32 %v6042, 16
      %v6315 = vrot.slane %v6313, 4
      %v6316 = vor.u32 %v6315, %v6311
      %v6317 = vrot.slane %v6316, 4
      %v6319 = vshll.u32 %v6043, 16
      %v6321 = vrot.slane %v6319, 5
      %v6322 = vsel %vm2565, %v6317, %v6321
      %v6324 = vshrl.u32 %v6044, 16
      %v6326 = vrot.slane %v6324, 4
      %v6327 = vshll.u32 %v6044, 16
      %v6329 = vrot.slane %v6327, 5
      %v6330 = vor.u32 %v6326, %v6329
      %v6331 = vrot.slane %v6330, 4
      %v6333 = vshll.u32 %v6045, 16
      %v6335 = vrot.slane %v6333, 5
      %v6336 = vsel %vm2565, %v6331, %v6335
      %v6337 = vshrl.u32 %v6045, 16
      %v6339 = vrot.slane %v6337, 4
      %v6340 = vor.u32 %v6339, %v6335
      %v6341 = vrot.slane %v6340, 4
      %v6343 = vshll.u32 %v6046, 16
      %v6345 = vrot.slane %v6343, 5
      %v6346 = vsel %vm2565, %v6341, %v6345
      %v6348 = vshrl.u32 %v6047, 16
      %v6350 = vrot.slane %v6348, 4
      %v6351 = vshll.u32 %v6047, 16
      %v6353 = vrot.slane %v6351, 5
      %v6354 = vor.u32 %v6350, %v6353
      %v6355 = vrot.slane %v6354, 4
      %v6357 = vshll.u32 %v6048, 16
      %v6359 = vrot.slane %v6357, 5
      %v6360 = vsel %vm2565, %v6355, %v6359
      %v6361 = vshrl.u32 %v6048, 16
      %v6363 = vrot.slane %v6361, 4
      %v6364 = vor.u32 %v6363, %v6359
      %v6365 = vrot.slane %v6364, 4
      %v6367 = vshll.u32 %v6049, 16
      %v6369 = vrot.slane %v6367, 5
      %v6370 = vsel %vm2565, %v6365, %v6369
      %v6372 = vshrl.u32 %v6050, 16
      %v6374 = vrot.slane %v6372, 4
      %v6375 = vshll.u32 %v6050, 16
      %v6377 = vrot.slane %v6375, 5
      %v6378 = vor.u32 %v6374, %v6377
      %v6379 = vrot.slane %v6378, 4
      %v6381 = vshll.u32 %v6051, 16
      %v6383 = vrot.slane %v6381, 5
      %v6384 = vsel %vm2565, %v6379, %v6383
      %v6385 = vshrl.u32 %v6051, 16
      %v6387 = vrot.slane %v6385, 4
      %v6388 = vor.u32 %v6387, %v6383
      %v6389 = vrot.slane %v6388, 4
      %v6391 = vshll.u32 %v6052, 16
      %v6393 = vrot.slane %v6391, 5
      %v6394 = vsel %vm2565, %v6389, %v6393
      %v6396 = vshrl.u32 %v6053, 16
      %v6398 = vrot.slane %v6396, 4
      %v6399 = vshll.u32 %v6053, 16
      %v6401 = vrot.slane %v6399, 5
      %v6402 = vor.u32 %v6398, %v6401
      %v6403 = vrot.slane %v6402, 4
      %v6405 = vshll.u32 %v6054, 16
      %v6407 = vrot.slane %v6405, 5
      %v6408 = vsel %vm2565, %v6403, %v6407
      %v6409 = vshrl.u32 %v6054, 16
      %v6411 = vrot.slane %v6409, 4
      %v6412 = vor.u32 %v6411, %v6407
      %v6413 = vrot.slane %v6412, 4
      %v6415 = vshll.u32 %v6055, 16
      %v6417 = vrot.slane %v6415, 5
      %v6418 = vsel %vm2565, %v6413, %v6417
      %v6420 = vshrl.u32 %v6056, 16
      %v6422 = vrot.slane %v6420, 4
      %v6423 = vshll.u32 %v6056, 16
      %v6425 = vrot.slane %v6423, 5
      %v6426 = vor.u32 %v6422, %v6425
      %v6427 = vrot.slane %v6426, 4
      %v6429 = vshll.u32 %v6057, 16
      %v6431 = vrot.slane %v6429, 5
      %v6432 = vsel %vm2565, %v6427, %v6431
      %v6433 = vshrl.u32 %v6057, 16
      %v6435 = vrot.slane %v6433, 4
      %v6436 = vor.u32 %v6435, %v6431
      %v6437 = vrot.slane %v6436, 4
      %v6439 = vshll.u32 %v6058, 16
      %v6441 = vrot.slane %v6439, 5
      %v6442 = vsel %vm2565, %v6437, %v6441
      %s6443 = scalar_lea.vmem %s7, 16
      %v6444 = vld [vmem:[%s6443] sm:$0x3]
      %v6445 = vunpack.c.l.b16 %v6072
      %v6446 = vunpack.c.l.b16 %v6082
      %v6447 = vunpack.c.l.b16 %v6096
      %v6448 = vunpack.c.l.b16 %v6106
      %v6449 = vunpack.c.l.b16 %v6120
      %v6450 = vunpack.c.l.b16 %v6130
      %v6451 = vunpack.c.l.b16 %v6144
      %v6452 = vunpack.c.l.b16 %v6154
      %v6453 = vunpack.c.l.b16 %v6168
      %v6454 = vunpack.c.l.b16 %v6178
      %v6455 = vunpack.c.l.b16 %v6192
      %v6456 = vunpack.c.l.b16 %v6202
      %v6457 = vunpack.c.l.b16 %v6216
      %v6458 = vunpack.c.l.b16 %v6226
      %v6459 = vunpack.c.l.b16 %v6240
      %v6460 = vunpack.c.l.b16 %v6250
      %v6461 = vunpack.c.l.b16 %v6264
      %v6462 = vunpack.c.l.b16 %v6274
      %v6463 = vunpack.c.l.b16 %v6288
      %v6464 = vunpack.c.l.b16 %v6298
      %v6465 = vunpack.c.l.b16 %v6312
      %v6466 = vunpack.c.l.b16 %v6322
      %v6467 = vunpack.c.l.b16 %v6336
      %v6468 = vunpack.c.l.b16 %v6346
      %v6469 = vunpack.c.l.b16 %v6360
      %v6470 = vunpack.c.l.b16 %v6370
      %v6471 = vunpack.c.l.b16 %v6384
      %v6472 = vunpack.c.l.b16 %v6394
      %v6473 = vunpack.c.l.b16 %v6408
      %v6474 = vunpack.c.l.b16 %v6418
      %v6475 = vunpack.c.l.b16 %v6432
      %v6476 = vunpack.c.l.b16 %v6442
      %v6477 = vpack.c.b16 %v6446, %v6445
      %v6478 = vpack.c.b16 %v6448, %v6447
      %v6479 = vpack.c.b16 %v6450, %v6449
      %v6480 = vpack.c.b16 %v6452, %v6451
      %v6481 = vpack.c.b16 %v6454, %v6453
      %v6482 = vpack.c.b16 %v6456, %v6455
      %v6483 = vpack.c.b16 %v6458, %v6457
      %v6484 = vpack.c.b16 %v6460, %v6459
      %v6485 = vpack.c.b16 %v6462, %v6461
      %v6486 = vpack.c.b16 %v6464, %v6463
      %v6487 = vpack.c.b16 %v6466, %v6465
      %v6488 = vpack.c.b16 %v6468, %v6467
      %v6489 = vpack.c.b16 %v6470, %v6469
      %v6490 = vpack.c.b16 %v6472, %v6471
      %v6491 = vpack.c.b16 %v6474, %v6473
      %v6492 = vpack.c.b16 %v6476, %v6475
      %v6494 = vsel %vm586, %v6477, 0
      %v6497 = vsel %vm586, %v6478, 0
      %v6500 = vsel %vm586, %v6479, 0
      %v6503 = vsel %vm586, %v6480, 0
      %v6506 = vsel %vm586, %v6481, 0
      %v6509 = vsel %vm586, %v6482, 0
      %v6512 = vsel %vm586, %v6483, 0
      %v6515 = vsel %vm586, %v6484, 0
      %v6518 = vsel %vm586, %v6485, 0
      %v6521 = vsel %vm586, %v6486, 0
      %v6524 = vsel %vm586, %v6487, 0
      %v6527 = vsel %vm586, %v6488, 0
      %v6530 = vsel %vm586, %v6489, 0
      %v6533 = vsel %vm586, %v6490, 0
      %v6536 = vsel %vm586, %v6491, 0
      %v6539 = vsel %vm586, %v6492, 0
      %v6542 = vsel %vm635, %v6444, 0
      %6544 = vmatprep.subr.bf16.mxu0 0
      %6545 = vmatpush1.bf16.msra.mxu0 %v6542
      %6546 = vmatprep.subr.bf16.mxu0 0
      %6547 = vmatpush1.bf16.msra.mxu0 0
      %6548 = vmatprep.subr.bf16.mxu0 0
      %6549 = vmatpush1.bf16.msra.mxu0 0
      %6550 = vmatprep.subr.bf16.mxu0 0
      %6551 = vmatpush1.bf16.msra.mxu0 0
      %6552 = vmatprep.subr.bf16.mxu0 0
      %6553 = vmatpush1.bf16.msra.mxu0 0
      %6554 = vmatprep.subr.bf16.mxu0 0
      %6555 = vmatpush1.bf16.msra.mxu0 0
      %6556 = vmatprep.subr.bf16.mxu0 0
      %6557 = vmatpush1.bf16.msra.mxu0 0
      %6558 = vmatprep.subr.bf16.mxu0 0
      %6559 = vmatpush1.bf16.msra.mxu0 0
      %6560 = vmatprep.subr.bf16.mxu0 0
      %6561 = vmatpush1.bf16.msra.mxu0 0
      %6562 = vmatprep.subr.bf16.mxu0 0
      %6563 = vmatpush1.bf16.msra.mxu0 0
      %6564 = vmatprep.subr.bf16.mxu0 0
      %6565 = vmatpush1.bf16.msra.mxu0 0
      %6566 = vmatprep.subr.bf16.mxu0 0
      %6567 = vmatpush1.bf16.msra.mxu0 0
      %6568 = vmatprep.subr.bf16.mxu0 0
      %6569 = vmatpush1.bf16.msra.mxu0 0
      %6570 = vmatprep.subr.bf16.mxu0 0
      %6571 = vmatpush1.bf16.msra.mxu0 0
      %6572 = vmatprep.subr.bf16.mxu0 0
      %6573 = vmatpush1.bf16.msra.mxu0 0
      %6574 = vmatprep.subr.bf16.mxu0 0
      %6575 = vmatpush1.bf16.msra.mxu0 0
      %6576 = vmatprep.mubr.bf16.mxu0 0
      %6577 = vmatmul.mubr.bf16.gmra.mrb[0].mxu0 %v6494
      %v6578 = vpop.f32.mrb[0].mxu0
      %v6579 = vadd.f32 0.0, %v6578
      %v6580 = vpop.f32.mrb[0].mxu0
      %v6581 = vpop.f32.mrb[0].mxu0
      %v6582 = vadd.f32 0.0, %v6581
      %v6583 = vpop.f32.mrb[0].mxu0
      %6584 = vmatprep.mubr.bf16.mxu0 0
      %6585 = vmatmul.mubr.bf16.gmra.mrb[0].mxu0 %v6497
      %v6586 = vpop.f32.mrb[0].mxu0
      %v6587 = vadd.f32 0.0, %v6586
      %v6588 = vpop.f32.mrb[0].mxu0
      %v6589 = vpop.f32.mrb[0].mxu0
      %v6590 = vadd.f32 0.0, %v6589
      %v6591 = vpop.f32.mrb[0].mxu0
      %6592 = vmatprep.mubr.bf16.mxu0 0
      %6593 = vmatmul.mubr.bf16.gmra.mrb[0].mxu0 %v6500
      %v6594 = vpop.f32.mrb[0].mxu0
      %v6595 = vadd.f32 0.0, %v6594
      %v6596 = vpop.f32.mrb[0].mxu0
      %v6597 = vpop.f32.mrb[0].mxu0
      %v6598 = vadd.f32 0.0, %v6597
      %v6599 = vpop.f32.mrb[0].mxu0
      %6600 = vmatprep.mubr.bf16.mxu0 0
      %6601 = vmatmul.mubr.bf16.gmra.mrb[0].mxu0 %v6503
      %v6602 = vpop.f32.mrb[0].mxu0
      %v6603 = vadd.f32 0.0, %v6602
      %v6604 = vpop.f32.mrb[0].mxu0
      %v6605 = vpop.f32.mrb[0].mxu0
      %v6606 = vadd.f32 0.0, %v6605
      %v6607 = vpop.f32.mrb[0].mxu0
      %6608 = vmatprep.mubr.bf16.mxu0 0
      %6609 = vmatmul.mubr.bf16.gmra.mrb[0].mxu0 %v6506
      %v6610 = vpop.f32.mrb[0].mxu0
      %v6611 = vadd.f32 0.0, %v6610
      %v6612 = vpop.f32.mrb[0].mxu0
      %v6613 = vpop.f32.mrb[0].mxu0
      %v6614 = vadd.f32 0.0, %v6613
      %v6615 = vpop.f32.mrb[0].mxu0
      %6616 = vmatprep.mubr.bf16.mxu0 0
      %6617 = vmatmul.mubr.bf16.gmra.mrb[0].mxu0 %v6509
      %v6618 = vpop.f32.mrb[0].mxu0
      %v6619 = vadd.f32 0.0, %v6618
      %v6620 = vpop.f32.mrb[0].mxu0
      %v6621 = vpop.f32.mrb[0].mxu0
      %v6622 = vadd.f32 0.0, %v6621
      %v6623 = vpop.f32.mrb[0].mxu0
      %6624 = vmatprep.mubr.bf16.mxu0 0
      %6625 = vmatmul.mubr.bf16.gmra.mrb[0].mxu0 %v6512
      %v6626 = vpop.f32.mrb[0].mxu0
      %v6627 = vadd.f32 0.0, %v6626
      %v6628 = vpop.f32.mrb[0].mxu0
      %v6629 = vpop.f32.mrb[0].mxu0
      %v6630 = vadd.f32 0.0, %v6629
      %v6631 = vpop.f32.mrb[0].mxu0
      %6632 = vmatprep.mubr.bf16.mxu0 0
      %6633 = vmatmul.mubr.bf16.gmra.mrb[0].mxu0 %v6515
      %v6634 = vpop.f32.mrb[0].mxu0
      %v6635 = vadd.f32 0.0, %v6634
      %v6636 = vpop.f32.mrb[0].mxu0
      %v6637 = vpop.f32.mrb[0].mxu0
      %v6638 = vadd.f32 0.0, %v6637
      %v6639 = vpop.f32.mrb[0].mxu0
      %6640 = vmatprep.mubr.bf16.mxu0 0
      %6641 = vmatmul.mubr.bf16.gmra.mrb[0].mxu0 %v6518
      %v6642 = vpop.f32.mrb[0].mxu0
      %v6643 = vadd.f32 0.0, %v6642
      %v6644 = vpop.f32.mrb[0].mxu0
      %v6645 = vpop.f32.mrb[0].mxu0
      %v6646 = vadd.f32 0.0, %v6645
      %v6647 = vpop.f32.mrb[0].mxu0
      %6648 = vmatprep.mubr.bf16.mxu0 0
      %6649 = vmatmul.mubr.bf16.gmra.mrb[0].mxu0 %v6521
      %v6650 = vpop.f32.mrb[0].mxu0
      %v6651 = vadd.f32 0.0, %v6650
      %v6652 = vpop.f32.mrb[0].mxu0
      %v6653 = vpop.f32.mrb[0].mxu0
      %v6654 = vadd.f32 0.0, %v6653
      %v6655 = vpop.f32.mrb[0].mxu0
      %6656 = vmatprep.mubr.bf16.mxu0 0
      %6657 = vmatmul.mubr.bf16.gmra.mrb[0].mxu0 %v6524
      %v6658 = vpop.f32.mrb[0].mxu0
      %v6659 = vadd.f32 0.0, %v6658
      %v6660 = vpop.f32.mrb[0].mxu0
      %v6661 = vpop.f32.mrb[0].mxu0
      %v6662 = vadd.f32 0.0, %v6661
      %v6663 = vpop.f32.mrb[0].mxu0
      %6664 = vmatprep.mubr.bf16.mxu0 0
      %6665 = vmatmul.mubr.bf16.gmra.mrb[0].mxu0 %v6527
      %v6666 = vpop.f32.mrb[0].mxu0
      %v6667 = vadd.f32 0.0, %v6666
      %v6668 = vpop.f32.mrb[0].mxu0
      %v6669 = vpop.f32.mrb[0].mxu0
      %v6670 = vadd.f32 0.0, %v6669
      %v6671 = vpop.f32.mrb[0].mxu0
      %6672 = vmatprep.mubr.bf16.mxu0 0
      %6673 = vmatmul.mubr.bf16.gmra.mrb[0].mxu0 %v6530
      %v6674 = vpop.f32.mrb[0].mxu0
      %v6675 = vadd.f32 0.0, %v6674
      %v6676 = vpop.f32.mrb[0].mxu0
      %v6677 = vpop.f32.mrb[0].mxu0
      %v6678 = vadd.f32 0.0, %v6677
      %v6679 = vpop.f32.mrb[0].mxu0
      %6680 = vmatprep.mubr.bf16.mxu0 0
      %6681 = vmatmul.mubr.bf16.gmra.mrb[0].mxu0 %v6533
      %v6682 = vpop.f32.mrb[0].mxu0
      %v6683 = vadd.f32 0.0, %v6682
      %v6684 = vpop.f32.mrb[0].mxu0
      %v6685 = vpop.f32.mrb[0].mxu0
      %v6686 = vadd.f32 0.0, %v6685
      %v6687 = vpop.f32.mrb[0].mxu0
      %6688 = vmatprep.mubr.bf16.mxu0 0
      %6689 = vmatmul.mubr.bf16.gmra.mrb[0].mxu0 %v6536
      %v6690 = vpop.f32.mrb[0].mxu0
      %v6691 = vadd.f32 0.0, %v6690
      %v6692 = vpop.f32.mrb[0].mxu0
      %v6693 = vpop.f32.mrb[0].mxu0
      %v6694 = vadd.f32 0.0, %v6693
      %v6695 = vpop.f32.mrb[0].mxu0
      %6696 = vmatprep.mubr.bf16.mxu0 0
      %6697 = vmatmul.mubr.bf16.gmra.mrb[0].mxu0 %v6539
      %v6698 = vpop.f32.mrb[0].mxu0
      %v6699 = vadd.f32 0.0, %v6698
      %v6700 = vpop.f32.mrb[0].mxu0
      %v6701 = vpop.f32.mrb[0].mxu0
      %v6702 = vadd.f32 0.0, %v6701
      %v6703 = vpop.f32.mrb[0].mxu0
      %6704 = vdwg.mxu0
      %v6705 = vadd.f32 %v5979, %v6579
      %v6706 = vadd.f32 %v5980, %v6582
      %v6707 = vadd.f32 %v5981, %v6587
      %v6708 = vadd.f32 %v5982, %v6590
      %v6709 = vadd.f32 %v5983, %v6595
      %v6710 = vadd.f32 %v5984, %v6598
      %v6711 = vadd.f32 %v5985, %v6603
      %v6712 = vadd.f32 %v5986, %v6606
      %v6713 = vadd.f32 %v5987, %v6611
      %v6714 = vadd.f32 %v5988, %v6614
      %v6715 = vadd.f32 %v5989, %v6619
      %v6716 = vadd.f32 %v5990, %v6622
      %v6717 = vadd.f32 %v5991, %v6627
      %v6718 = vadd.f32 %v5992, %v6630
      %v6719 = vadd.f32 %v5993, %v6635
      %v6720 = vadd.f32 %v5994, %v6638
      %v6721 = vadd.f32 %v5995, %v6643
      %v6722 = vadd.f32 %v5996, %v6646
      %v6723 = vadd.f32 %v5997, %v6651
      %v6724 = vadd.f32 %v5998, %v6654
      %v6725 = vadd.f32 %v5999, %v6659
      %v6726 = vadd.f32 %v6000, %v6662
      %v6727 = vadd.f32 %v6001, %v6667
      %v6728 = vadd.f32 %v6002, %v6670
      %v6729 = vadd.f32 %v6003, %v6675
      %v6730 = vadd.f32 %v6004, %v6678
      %v6731 = vadd.f32 %v6005, %v6683
      %v6732 = vadd.f32 %v6006, %v6686
      %v6733 = vadd.f32 %v6007, %v6691
      %v6734 = vadd.f32 %v6008, %v6694
      %v6735 = vadd.f32 %v6009, %v6699
      %v6736 = vadd.f32 %v6010, %v6702
      %v6737 = vld [vmem:[%s8] sm:$0x1]
      %v6739 = vlaneseq
      %v6740 = vshrl.u32 %v6739, 7
      %v6741 = vsub.s32 0, %v6740
      %v6742 = vrot.slane %v6737, %v6741
      %v6744 = vmul.f32 %v6705, %v6742
      %v6745 = vmul.f32 %v6706, %v6742
      %v6746 = vmul.f32 %v6707, %v6742
      %v6747 = vmul.f32 %v6708, %v6742
      %v6748 = vmul.f32 %v6709, %v6742
      %v6749 = vmul.f32 %v6710, %v6742
      %v6750 = vmul.f32 %v6711, %v6742
      %v6751 = vmul.f32 %v6712, %v6742
      %v6752 = vmul.f32 %v6713, %v6742
      %v6753 = vmul.f32 %v6714, %v6742
      %v6754 = vmul.f32 %v6715, %v6742
      %v6755 = vmul.f32 %v6716, %v6742
      %v6756 = vmul.f32 %v6717, %v6742
      %v6757 = vmul.f32 %v6718, %v6742
      %v6758 = vmul.f32 %v6719, %v6742
      %v6759 = vmul.f32 %v6720, %v6742
      %v6760 = vmul.f32 %v6721, %v6742
      %v6761 = vmul.f32 %v6722, %v6742
      %v6762 = vmul.f32 %v6723, %v6742
      %v6763 = vmul.f32 %v6724, %v6742
      %v6764 = vmul.f32 %v6725, %v6742
      %v6765 = vmul.f32 %v6726, %v6742
      %v6766 = vmul.f32 %v6727, %v6742
      %v6767 = vmul.f32 %v6728, %v6742
      %v6768 = vmul.f32 %v6729, %v6742
      %v6769 = vmul.f32 %v6730, %v6742
      %v6770 = vmul.f32 %v6731, %v6742
      %v6771 = vmul.f32 %v6732, %v6742
      %v6772 = vmul.f32 %v6733, %v6742
      %v6773 = vmul.f32 %v6734, %v6742
      %v6774 = vmul.f32 %v6735, %v6742
      %v6775 = vmul.f32 %v6736, %v6742
      %v6776 = vld [vmem:[%s9] sm:$0x1]
      %v6778 = vlaneseq
      %v6779 = vshrl.u32 %v6778, 7
      %v6780 = vsub.s32 0, %v6779
      %v6781 = vrot.slane %v6776, %v6780
      %v6783 = vadd.f32 %v6744, %v6781
      %v6784 = vadd.f32 %v6745, %v6781
      %v6785 = vadd.f32 %v6746, %v6781
      %v6786 = vadd.f32 %v6747, %v6781
      %v6787 = vadd.f32 %v6748, %v6781
      %v6788 = vadd.f32 %v6749, %v6781
      %v6789 = vadd.f32 %v6750, %v6781
      %v6790 = vadd.f32 %v6751, %v6781
      %v6791 = vadd.f32 %v6752, %v6781
      %v6792 = vadd.f32 %v6753, %v6781
      %v6793 = vadd.f32 %v6754, %v6781
      %v6794 = vadd.f32 %v6755, %v6781
      %v6795 = vadd.f32 %v6756, %v6781
      %v6796 = vadd.f32 %v6757, %v6781
      %v6797 = vadd.f32 %v6758, %v6781
      %v6798 = vadd.f32 %v6759, %v6781
      %v6799 = vadd.f32 %v6760, %v6781
      %v6800 = vadd.f32 %v6761, %v6781
      %v6801 = vadd.f32 %v6762, %v6781
      %v6802 = vadd.f32 %v6763, %v6781
      %v6803 = vadd.f32 %v6764, %v6781
      %v6804 = vadd.f32 %v6765, %v6781
      %v6805 = vadd.f32 %v6766, %v6781
      %v6806 = vadd.f32 %v6767, %v6781
      %v6807 = vadd.f32 %v6768, %v6781
      %v6808 = vadd.f32 %v6769, %v6781
      %v6809 = vadd.f32 %v6770, %v6781
      %v6810 = vadd.f32 %v6771, %v6781
      %v6811 = vadd.f32 %v6772, %v6781
      %v6812 = vadd.f32 %v6773, %v6781
      %v6813 = vadd.f32 %v6774, %v6781
      %v6814 = vadd.f32 %v6775, %v6781
      %v6815 = vmax.f32 %v6783, 0.0
      %v6816 = vmax.f32 %v6784, 0.0
      %v6817 = vmax.f32 %v6785, 0.0
      %v6818 = vmax.f32 %v6786, 0.0
      %v6819 = vmax.f32 %v6787, 0.0
      %v6820 = vmax.f32 %v6788, 0.0
      %v6821 = vmax.f32 %v6789, 0.0
      %v6822 = vmax.f32 %v6790, 0.0
      %v6823 = vmax.f32 %v6791, 0.0
      %v6824 = vmax.f32 %v6792, 0.0
      %v6825 = vmax.f32 %v6793, 0.0
      %v6826 = vmax.f32 %v6794, 0.0
      %v6827 = vmax.f32 %v6795, 0.0
      %v6828 = vmax.f32 %v6796, 0.0
      %v6829 = vmax.f32 %v6797, 0.0
      %v6830 = vmax.f32 %v6798, 0.0
      %v6831 = vmax.f32 %v6799, 0.0
      %v6832 = vmax.f32 %v6800, 0.0
      %v6833 = vmax.f32 %v6801, 0.0
      %v6834 = vmax.f32 %v6802, 0.0
      %v6835 = vmax.f32 %v6803, 0.0
      %v6836 = vmax.f32 %v6804, 0.0
      %v6837 = vmax.f32 %v6805, 0.0
      %v6838 = vmax.f32 %v6806, 0.0
      %v6839 = vmax.f32 %v6807, 0.0
      %v6840 = vmax.f32 %v6808, 0.0
      %v6841 = vmax.f32 %v6809, 0.0
      %v6842 = vmax.f32 %v6810, 0.0
      %v6843 = vmax.f32 %v6811, 0.0
      %v6844 = vmax.f32 %v6812, 0.0
      %v6845 = vmax.f32 %v6813, 0.0
      %v6846 = vmax.f32 %v6814, 0.0
      %v6847 = vpack.c.bf16 %v6816, %v6815
      %v6848 = vpack.c.bf16 %v6818, %v6817
      %v6849 = vpack.c.bf16 %v6820, %v6819
      %v6850 = vpack.c.bf16 %v6822, %v6821
      %v6851 = vpack.c.bf16 %v6824, %v6823
      %v6852 = vpack.c.bf16 %v6826, %v6825
      %v6853 = vpack.c.bf16 %v6828, %v6827
      %v6854 = vpack.c.bf16 %v6830, %v6829
      %v6855 = vpack.c.bf16 %v6832, %v6831
      %v6856 = vpack.c.bf16 %v6834, %v6833
      %v6857 = vpack.c.bf16 %v6836, %v6835
      %v6858 = vpack.c.bf16 %v6838, %v6837
      %v6859 = vpack.c.bf16 %v6840, %v6839
      %v6860 = vpack.c.bf16 %v6842, %v6841
      %v6861 = vpack.c.bf16 %v6844, %v6843
      %v6862 = vpack.c.bf16 %v6846, %v6845
      %v6863 = vld [vmem:[%s10] sm:$0x3]
      %v6865 = vsel %vm586, %v6847, 0
      %v6868 = vsel %vm586, %v6848, 0
      %v6871 = vsel %vm586, %v6849, 0
      %v6874 = vsel %vm586, %v6850, 0
      %v6877 = vsel %vm586, %v6851, 0
      %v6880 = vsel %vm586, %v6852, 0
      %v6883 = vsel %vm586, %v6853, 0
      %v6886 = vsel %vm586, %v6854, 0
      %v6889 = vsel %vm586, %v6855, 0
      %v6892 = vsel %vm586, %v6856, 0
      %v6895 = vsel %vm586, %v6857, 0
      %v6898 = vsel %vm586, %v6858, 0
      %v6901 = vsel %vm586, %v6859, 0
      %v6904 = vsel %vm586, %v6860, 0
      %v6907 = vsel %vm586, %v6861, 0
      %v6910 = vsel %vm586, %v6862, 0
      %v6913 = vsel %vm635, %v6863, 0
      %6915 = vmatprep.subr.bf16.mxu0 0
      %6916 = vmatpush1.bf16.msra.mxu0 %v6913
      %6917 = vmatprep.subr.bf16.mxu0 0
      %6918 = vmatpush1.bf16.msra.mxu0 0
      %6919 = vmatprep.subr.bf16.mxu0 0
      %6920 = vmatpush1.bf16.msra.mxu0 0
      %6921 = vmatprep.subr.bf16.mxu0 0
      %6922 = vmatpush1.bf16.msra.mxu0 0
      %6923 = vmatprep.subr.bf16.mxu0 0
      %6924 = vmatpush1.bf16.msra.mxu0 0
      %6925 = vmatprep.subr.bf16.mxu0 0
      %6926 = vmatpush1.bf16.msra.mxu0 0
      %6927 = vmatprep.subr.bf16.mxu0 0
      %6928 = vmatpush1.bf16.msra.mxu0 0
      %6929 = vmatprep.subr.bf16.mxu0 0
      %6930 = vmatpush1.bf16.msra.mxu0 0
      %6931 = vmatprep.subr.bf16.mxu0 0
      %6932 = vmatpush1.bf16.msra.mxu0 0
      %6933 = vmatprep.subr.bf16.mxu0 0
      %6934 = vmatpush1.bf16.msra.mxu0 0
      %6935 = vmatprep.subr.bf16.mxu0 0
      %6936 = vmatpush1.bf16.msra.mxu0 0
      %6937 = vmatprep.subr.bf16.mxu0 0
      %6938 = vmatpush1.bf16.msra.mxu0 0
      %6939 = vmatprep.subr.bf16.mxu0 0
      %6940 = vmatpush1.bf16.msra.mxu0 0
      %6941 = vmatprep.subr.bf16.mxu0 0
      %6942 = vmatpush1.bf16.msra.mxu0 0
      %6943 = vmatprep.subr.bf16.mxu0 0
      %6944 = vmatpush1.bf16.msra.mxu0 0
      %6945 = vmatprep.subr.bf16.mxu0 0
      %6946 = vmatpush1.bf16.msra.mxu0 0
      %6947 = vmatprep.mubr.bf16.mxu0 0
      %6948 = vmatmul.mubr.bf16.gmra.mrb[0].mxu0 %v6865
      %v6949 = vpop.f32.mrb[0].mxu0
      %v6950 = vadd.f32 0.0, %v6949
      %v6951 = vpop.f32.mrb[0].mxu0
      %v6952 = vpop.f32.mrb[0].mxu0
      %v6953 = vadd.f32 0.0, %v6952
      %v6954 = vpop.f32.mrb[0].mxu0
      %6955 = vmatprep.mubr.bf16.mxu0 0
      %6956 = vmatmul.mubr.bf16.gmra.mrb[0].mxu0 %v6868
      %v6957 = vpop.f32.mrb[0].mxu0
      %v6958 = vadd.f32 0.0, %v6957
      %v6959 = vpop.f32.mrb[0].mxu0
      %v6960 = vpop.f32.mrb[0].mxu0
      %v6961 = vadd.f32 0.0, %v6960
      %v6962 = vpop.f32.mrb[0].mxu0
      %6963 = vmatprep.mubr.bf16.mxu0 0
      %6964 = vmatmul.mubr.bf16.gmra.mrb[0].mxu0 %v6871
      %v6965 = vpop.f32.mrb[0].mxu0
      %v6966 = vadd.f32 0.0, %v6965
      %v6967 = vpop.f32.mrb[0].mxu0
      %v6968 = vpop.f32.mrb[0].mxu0
      %v6969 = vadd.f32 0.0, %v6968
      %v6970 = vpop.f32.mrb[0].mxu0
      %6971 = vmatprep.mubr.bf16.mxu0 0
      %6972 = vmatmul.mubr.bf16.gmra.mrb[0].mxu0 %v6874
      %v6973 = vpop.f32.mrb[0].mxu0
      %v6974 = vadd.f32 0.0, %v6973
      %v6975 = vpop.f32.mrb[0].mxu0
      %v6976 = vpop.f32.mrb[0].mxu0
      %v6977 = vadd.f32 0.0, %v6976
      %v6978 = vpop.f32.mrb[0].mxu0
      %6979 = vmatprep.mubr.bf16.mxu0 0
      %6980 = vmatmul.mubr.bf16.gmra.mrb[0].mxu0 %v6877
      %v6981 = vpop.f32.mrb[0].mxu0
      %v6982 = vadd.f32 0.0, %v6981
      %v6983 = vpop.f32.mrb[0].mxu0
      %v6984 = vpop.f32.mrb[0].mxu0
      %v6985 = vadd.f32 0.0, %v6984
      %v6986 = vpop.f32.mrb[0].mxu0
      %6987 = vmatprep.mubr.bf16.mxu0 0
      %6988 = vmatmul.mubr.bf16.gmra.mrb[0].mxu0 %v6880
      %v6989 = vpop.f32.mrb[0].mxu0
      %v6990 = vadd.f32 0.0, %v6989
      %v6991 = vpop.f32.mrb[0].mxu0
      %v6992 = vpop.f32.mrb[0].mxu0
      %v6993 = vadd.f32 0.0, %v6992
      %v6994 = vpop.f32.mrb[0].mxu0
      %6995 = vmatprep.mubr.bf16.mxu0 0
      %6996 = vmatmul.mubr.bf16.gmra.mrb[0].mxu0 %v6883
      %v6997 = vpop.f32.mrb[0].mxu0
      %v6998 = vadd.f32 0.0, %v6997
      %v6999 = vpop.f32.mrb[0].mxu0
      %v7000 = vpop.f32.mrb[0].mxu0
      %v7001 = vadd.f32 0.0, %v7000
      %v7002 = vpop.f32.mrb[0].mxu0
      %7003 = vmatprep.mubr.bf16.mxu0 0
      %7004 = vmatmul.mubr.bf16.gmra.mrb[0].mxu0 %v6886
      %v7005 = vpop.f32.mrb[0].mxu0
      %v7006 = vadd.f32 0.0, %v7005
      %v7007 = vpop.f32.mrb[0].mxu0
      %v7008 = vpop.f32.mrb[0].mxu0
      %v7009 = vadd.f32 0.0, %v7008
      %v7010 = vpop.f32.mrb[0].mxu0
      %7011 = vmatprep.mubr.bf16.mxu0 0
      %7012 = vmatmul.mubr.bf16.gmra.mrb[0].mxu0 %v6889
      %v7013 = vpop.f32.mrb[0].mxu0
      %v7014 = vadd.f32 0.0, %v7013
      %v7015 = vpop.f32.mrb[0].mxu0
      %v7016 = vpop.f32.mrb[0].mxu0
      %v7017 = vadd.f32 0.0, %v7016
      %v7018 = vpop.f32.mrb[0].mxu0
      %7019 = vmatprep.mubr.bf16.mxu0 0
      %7020 = vmatmul.mubr.bf16.gmra.mrb[0].mxu0 %v6892
      %v7021 = vpop.f32.mrb[0].mxu0
      %v7022 = vadd.f32 0.0, %v7021
      %v7023 = vpop.f32.mrb[0].mxu0
      %v7024 = vpop.f32.mrb[0].mxu0
      %v7025 = vadd.f32 0.0, %v7024
      %v7026 = vpop.f32.mrb[0].mxu0
      %7027 = vmatprep.mubr.bf16.mxu0 0
      %7028 = vmatmul.mubr.bf16.gmra.mrb[0].mxu0 %v6895
      %v7029 = vpop.f32.mrb[0].mxu0
      %v7030 = vadd.f32 0.0, %v7029
      %v7031 = vpop.f32.mrb[0].mxu0
      %v7032 = vpop.f32.mrb[0].mxu0
      %v7033 = vadd.f32 0.0, %v7032
      %v7034 = vpop.f32.mrb[0].mxu0
      %7035 = vmatprep.mubr.bf16.mxu0 0
      %7036 = vmatmul.mubr.bf16.gmra.mrb[0].mxu0 %v6898
      %v7037 = vpop.f32.mrb[0].mxu0
      %v7038 = vadd.f32 0.0, %v7037
      %v7039 = vpop.f32.mrb[0].mxu0
      %v7040 = vpop.f32.mrb[0].mxu0
      %v7041 = vadd.f32 0.0, %v7040
      %v7042 = vpop.f32.mrb[0].mxu0
      %7043 = vmatprep.mubr.bf16.mxu0 0
      %7044 = vmatmul.mubr.bf16.gmra.mrb[0].mxu0 %v6901
      %v7045 = vpop.f32.mrb[0].mxu0
      %v7046 = vadd.f32 0.0, %v7045
      %v7047 = vpop.f32.mrb[0].mxu0
      %v7048 = vpop.f32.mrb[0].mxu0
      %v7049 = vadd.f32 0.0, %v7048
      %v7050 = vpop.f32.mrb[0].mxu0
      %7051 = vmatprep.mubr.bf16.mxu0 0
      %7052 = vmatmul.mubr.bf16.gmra.mrb[0].mxu0 %v6904
      %v7053 = vpop.f32.mrb[0].mxu0
      %v7054 = vadd.f32 0.0, %v7053
      %v7055 = vpop.f32.mrb[0].mxu0
      %v7056 = vpop.f32.mrb[0].mxu0
      %v7057 = vadd.f32 0.0, %v7056
      %v7058 = vpop.f32.mrb[0].mxu0
      %7059 = vmatprep.mubr.bf16.mxu0 0
      %7060 = vmatmul.mubr.bf16.gmra.mrb[0].mxu0 %v6907
      %v7061 = vpop.f32.mrb[0].mxu0
      %v7062 = vadd.f32 0.0, %v7061
      %v7063 = vpop.f32.mrb[0].mxu0
      %v7064 = vpop.f32.mrb[0].mxu0
      %v7065 = vadd.f32 0.0, %v7064
      %v7066 = vpop.f32.mrb[0].mxu0
      %7067 = vmatprep.mubr.bf16.mxu0 0
      %7068 = vmatmul.mubr.bf16.gmra.mrb[0].mxu0 %v6910
      %v7069 = vpop.f32.mrb[0].mxu0
      %v7070 = vadd.f32 0.0, %v7069
      %v7071 = vpop.f32.mrb[0].mxu0
      %v7072 = vpop.f32.mrb[0].mxu0
      %v7073 = vadd.f32 0.0, %v7072
      %v7074 = vpop.f32.mrb[0].mxu0
      %7075 = vdwg.mxu0
      %v7076 = vld [vmem:[%s11] sm:$0x1]
      %v7078 = vlaneseq
      %v7079 = vshrl.u32 %v7078, 7
      %v7080 = vsub.s32 0, %v7079
      %v7081 = vrot.slane %v7076, %v7080
      %v7083 = vmul.f32 %v6950, %v7081
      %v7084 = vmul.f32 %v6953, %v7081
      %v7085 = vmul.f32 %v6958, %v7081
      %v7086 = vmul.f32 %v6961, %v7081
      %v7087 = vmul.f32 %v6966, %v7081
      %v7088 = vmul.f32 %v6969, %v7081
      %v7089 = vmul.f32 %v6974, %v7081
      %v7090 = vmul.f32 %v6977, %v7081
      %v7091 = vmul.f32 %v6982, %v7081
      %v7092 = vmul.f32 %v6985, %v7081
      %v7093 = vmul.f32 %v6990, %v7081
      %v7094 = vmul.f32 %v6993, %v7081
      %v7095 = vmul.f32 %v6998, %v7081
      %v7096 = vmul.f32 %v7001, %v7081
      %v7097 = vmul.f32 %v7006, %v7081
      %v7098 = vmul.f32 %v7009, %v7081
      %v7099 = vmul.f32 %v7014, %v7081
      %v7100 = vmul.f32 %v7017, %v7081
      %v7101 = vmul.f32 %v7022, %v7081
      %v7102 = vmul.f32 %v7025, %v7081
      %v7103 = vmul.f32 %v7030, %v7081
      %v7104 = vmul.f32 %v7033, %v7081
      %v7105 = vmul.f32 %v7038, %v7081
      %v7106 = vmul.f32 %v7041, %v7081
      %v7107 = vmul.f32 %v7046, %v7081
      %v7108 = vmul.f32 %v7049, %v7081
      %v7109 = vmul.f32 %v7054, %v7081
      %v7110 = vmul.f32 %v7057, %v7081
      %v7111 = vmul.f32 %v7062, %v7081
      %v7112 = vmul.f32 %v7065, %v7081
      %v7113 = vmul.f32 %v7070, %v7081
      %v7114 = vmul.f32 %v7073, %v7081
      %v7115 = vld [vmem:[%s12] sm:$0x1]
      %v7117 = vlaneseq
      %v7118 = vshrl.u32 %v7117, 7
      %v7119 = vsub.s32 0, %v7118
      %v7120 = vrot.slane %v7115, %v7119
      %v7122 = vadd.f32 %v7083, %v7120
      %v7123 = vadd.f32 %v7084, %v7120
      %v7124 = vadd.f32 %v7085, %v7120
      %v7125 = vadd.f32 %v7086, %v7120
      %v7126 = vadd.f32 %v7087, %v7120
      %v7127 = vadd.f32 %v7088, %v7120
      %v7128 = vadd.f32 %v7089, %v7120
      %v7129 = vadd.f32 %v7090, %v7120
      %v7130 = vadd.f32 %v7091, %v7120
      %v7131 = vadd.f32 %v7092, %v7120
      %v7132 = vadd.f32 %v7093, %v7120
      %v7133 = vadd.f32 %v7094, %v7120
      %v7134 = vadd.f32 %v7095, %v7120
      %v7135 = vadd.f32 %v7096, %v7120
      %v7136 = vadd.f32 %v7097, %v7120
      %v7137 = vadd.f32 %v7098, %v7120
      %v7138 = vadd.f32 %v7099, %v7120
      %v7139 = vadd.f32 %v7100, %v7120
      %v7140 = vadd.f32 %v7101, %v7120
      %v7141 = vadd.f32 %v7102, %v7120
      %v7142 = vadd.f32 %v7103, %v7120
      %v7143 = vadd.f32 %v7104, %v7120
      %v7144 = vadd.f32 %v7105, %v7120
      %v7145 = vadd.f32 %v7106, %v7120
      %v7146 = vadd.f32 %v7107, %v7120
      %v7147 = vadd.f32 %v7108, %v7120
      %v7148 = vadd.f32 %v7109, %v7120
      %v7149 = vadd.f32 %v7110, %v7120
      %v7150 = vadd.f32 %v7111, %v7120
      %v7151 = vadd.f32 %v7112, %v7120
      %v7152 = vadd.f32 %v7113, %v7120
      %v7153 = vadd.f32 %v7114, %v7120
      %v7154 = vadd.f32 %v7122, %v1119
      %v7155 = vadd.f32 %v7123, %v1120
      %v7156 = vadd.f32 %v7124, %v1121
      %v7157 = vadd.f32 %v7125, %v1122
      %v7158 = vadd.f32 %v7126, %v1123
      %v7159 = vadd.f32 %v7127, %v1124
      %v7160 = vadd.f32 %v7128, %v1125
      %v7161 = vadd.f32 %v7129, %v1126
      %v7162 = vadd.f32 %v7130, %v1127
      %v7163 = vadd.f32 %v7131, %v1128
      %v7164 = vadd.f32 %v7132, %v1129
      %v7165 = vadd.f32 %v7133, %v1130
      %v7166 = vadd.f32 %v7134, %v1131
      %v7167 = vadd.f32 %v7135, %v1132
      %v7168 = vadd.f32 %v7136, %v1133
      %v7169 = vadd.f32 %v7137, %v1134
      %v7170 = vadd.f32 %v7138, %v1135
      %v7171 = vadd.f32 %v7139, %v1136
      %v7172 = vadd.f32 %v7140, %v1137
      %v7173 = vadd.f32 %v7141, %v1138
      %v7174 = vadd.f32 %v7142, %v1139
      %v7175 = vadd.f32 %v7143, %v1140
      %v7176 = vadd.f32 %v7144, %v1141
      %v7177 = vadd.f32 %v7145, %v1142
      %v7178 = vadd.f32 %v7146, %v1143
      %v7179 = vadd.f32 %v7147, %v1144
      %v7180 = vadd.f32 %v7148, %v1145
      %v7181 = vadd.f32 %v7149, %v1146
      %v7182 = vadd.f32 %v7150, %v1147
      %v7183 = vadd.f32 %v7151, %v1148
      %v7184 = vadd.f32 %v7152, %v1149
      %v7185 = vadd.f32 %v7153, %v1150
      %v7186 = vmax.f32 %v7154, 0.0
      %v7187 = vmax.f32 %v7155, 0.0
      %v7188 = vmax.f32 %v7156, 0.0
      %v7189 = vmax.f32 %v7157, 0.0
      %v7190 = vmax.f32 %v7158, 0.0
      %v7191 = vmax.f32 %v7159, 0.0
      %v7192 = vmax.f32 %v7160, 0.0
      %v7193 = vmax.f32 %v7161, 0.0
      %v7194 = vmax.f32 %v7162, 0.0
      %v7195 = vmax.f32 %v7163, 0.0
      %v7196 = vmax.f32 %v7164, 0.0
      %v7197 = vmax.f32 %v7165, 0.0
      %v7198 = vmax.f32 %v7166, 0.0
      %v7199 = vmax.f32 %v7167, 0.0
      %v7200 = vmax.f32 %v7168, 0.0
      %v7201 = vmax.f32 %v7169, 0.0
      %v7202 = vmax.f32 %v7170, 0.0
      %v7203 = vmax.f32 %v7171, 0.0
      %v7204 = vmax.f32 %v7172, 0.0
      %v7205 = vmax.f32 %v7173, 0.0
      %v7206 = vmax.f32 %v7174, 0.0
      %v7207 = vmax.f32 %v7175, 0.0
      %v7208 = vmax.f32 %v7176, 0.0
      %v7209 = vmax.f32 %v7177, 0.0
      %v7210 = vmax.f32 %v7178, 0.0
      %v7211 = vmax.f32 %v7179, 0.0
      %v7212 = vmax.f32 %v7180, 0.0
      %v7213 = vmax.f32 %v7181, 0.0
      %v7214 = vmax.f32 %v7182, 0.0
      %v7215 = vmax.f32 %v7183, 0.0
      %v7216 = vmax.f32 %v7184, 0.0
      %v7217 = vmax.f32 %v7185, 0.0
      %vm7218 = vcmask 64512
      %7219 = vst.msk [vmem:[%s464] sm:$0xff] %vm7218, %v7186
      %7220 = vst.msk [vmem:[%s464 + $0x8] sm:$0xff] %vm7218, %v7187
      %7221 = vst.msk [vmem:[%s464 + $0x10] sm:$0xff] %vm7218, %v7188
      %7222 = vst.msk [vmem:[%s464 + $0x18] sm:$0xff] %vm7218, %v7189
      %7223 = vst.msk [vmem:[%s464 + $0x20] sm:$0xff] %vm7218, %v7190
      %7224 = vst.msk [vmem:[%s464 + $0x28] sm:$0xff] %vm7218, %v7191
      %7225 = vst.msk [vmem:[%s464 + $0x30] sm:$0xff] %vm7218, %v7192
      %7226 = vst.msk [vmem:[%s464 + $0x38] sm:$0xff] %vm7218, %v7193
      %7227 = vst.msk [vmem:[%s464 + $0x40] sm:$0xff] %vm7218, %v7194
      %7228 = vst.msk [vmem:[%s464 + $0x48] sm:$0xff] %vm7218, %v7195
      %7229 = vst.msk [vmem:[%s464 + $0x50] sm:$0xff] %vm7218, %v7196
      %7230 = vst.msk [vmem:[%s464 + $0x58] sm:$0xff] %vm7218, %v7197
      %7231 = vst.msk [vmem:[%s464 + $0x60] sm:$0xff] %vm7218, %v7198
      %7232 = vst.msk [vmem:[%s464 + $0x68] sm:$0xff] %vm7218, %v7199
      %7233 = vst.msk [vmem:[%s464 + $0x70] sm:$0xff] %vm7218, %v7200
      %7234 = vst.msk [vmem:[%s464 + $0x78] sm:$0xff] %vm7218, %v7201
      %7235 = vst.msk [vmem:[%s464 + $0x80] sm:$0xff] %vm7218, %v7202
      %7236 = vst.msk [vmem:[%s464 + $0x88] sm:$0xff] %vm7218, %v7203
      %7237 = vst.msk [vmem:[%s464 + $0x90] sm:$0xff] %vm7218, %v7204
      %7238 = vst.msk [vmem:[%s464 + $0x98] sm:$0xff] %vm7218, %v7205
      %7239 = vst.msk [vmem:[%s464 + $0xa0] sm:$0xff] %vm7218, %v7206
      %7240 = vst.msk [vmem:[%s464 + $0xa8] sm:$0xff] %vm7218, %v7207
      %7241 = vst.msk [vmem:[%s464 + $0xb0] sm:$0xff] %vm7218, %v7208
      %7242 = vst.msk [vmem:[%s464 + $0xb8] sm:$0xff] %vm7218, %v7209
      %7243 = vst.msk [vmem:[%s464 + $0xc0] sm:$0xff] %vm7218, %v7210
      %7244 = vst.msk [vmem:[%s464 + $0xc8] sm:$0xff] %vm7218, %v7211
      %7245 = vst.msk [vmem:[%s464 + $0xd0] sm:$0xff] %vm7218, %v7212
      %7246 = vst.msk [vmem:[%s464 + $0xd8] sm:$0xff] %vm7218, %v7213
      %7247 = vst.msk [vmem:[%s464 + $0xe0] sm:$0xff] %vm7218, %v7214
      %7248 = vst.msk [vmem:[%s464 + $0xe8] sm:$0xff] %vm7218, %v7215
      %7249 = vst.msk [vmem:[%s464 + $0xf0] sm:$0xff] %vm7218, %v7216
      %7250 = vst.msk [vmem:[%s464 + $0xf8] sm:$0xff] %vm7218, %v7217
      %s7251 = smul.u32 16, %s29
      %p7252 = scmp.lt.s32.totalorder %s28, 1
      %s7253 = scalar_select %p7252, %s28, 1
      %p7254 = scmp.lt.s32.totalorder %s7251, 15
      %s7255 = scalar_select %p7254, %s7251, 15
      %s7256 = smul.addr %s7255, 2
      %s7257 = smul.addr %s7253, 32
      %s7258 = sadd.s32 %s7256, %s7257
      %s7259 = smul.addr %s7258, 8
      %s7260 = scalar_lea.vmem %s13, %s7259
      // Predicated region
      $region77: #{tpu_custom_call.1} parent=71 // pred_check
        %p7261 = pneg %p334
      $region78: #{tpu_custom_call.1} parent=71 // pred_check_branch
        %7263 = sbr.rel (%p7261) target = $region80
      $region79: #{tpu_custom_call.1} parent=71 // pred_region
        %s7264 = smul.u32 16, %s29
      $region80: #{tpu_custom_call.1} parent=71 // pred_fallthru
        _
    $region72: #{tpu_custom_call.1} parent=5 // pred_fallthru
      _
    %p7265 = scmp.le.s32.totalorder 2, %s19
    // Predicated region
    $region81: #{tpu_custom_call.1} parent=5 // pred_check
      %p7266 = pneg %p7265
    $region82: #{tpu_custom_call.1} parent=5 // pred_check_branch
      %7268 = sbr.rel (%p7266) target = $region84
    $region83: #{tpu_custom_call.1} parent=5 // pred_region
      %s7269 = ssub.s32 %s19, 2
      // Predicated region
      $region85: #{tpu_custom_call.1} parent=83 // pred_check
        %p7270 = pneg %p340
      $region86: #{tpu_custom_call.1} parent=83 // pred_check_branch
        %7272 = sbr.rel (%p7270) target = $region88
      $region87: #{tpu_custom_call.1} parent=83 // pred_region
        %s7273 = smul.u32 16, %s31
        %p7274 = scmp.lt.s32.totalorder %s30, 1
        %s7275 = scalar_select %p7274, %s30, 1
        %p7276 = scmp.lt.s32.totalorder %s7273, 15
        %s7277 = scalar_select %p7276, %s7273, 15
        %s7278 = smul.addr %s7277, 2
        %s7279 = smul.addr %s7275, 32
        %s7280 = sadd.s32 %s7278, %s7279
        %s7281 = smul.addr %s7280, 8
        %s7282 = scalar_lea.vmem %s13, %s7281
      $region88: #{tpu_custom_call.1} parent=83 // pred_fallthru
        _
    $region84: #{tpu_custom_call.1} parent=5 // pred_fallthru
      _
  $region6: #{tpu_custom_call.1} parent=0 // loop_footer
    %s23 = sadd.s32 1, %s19
  $region7: #{tpu_custom_call.1} parent=0 // loop_footer_branch
    %18 = sbr.rel target = $region3
  $region8: #{tpu_custom_call.1} parent=0 // loop_exit
    _

</llo_original>
